<compile_context>
chip_gen: v7x
topology: tpu7x:2x2x1
jax: 0.10.0
libtpu: 0.0.40
codegen_flags: <defaults>
</compile_context>

<pallas_src>
import math
import numpy as np
import jax
import jax.numpy as jnp
from jax.experimental import pallas as pl
from jax.experimental.pallas import tpu as pltpu

# ---- small config consistent with the module's __init__ ----
B, T, C = 2, 8, 32           # batch, sequence_length, n_embd
H = 4                        # n_head
HD = C // H
V = 64                       # vocab_size
V_PAD = 128                  # lane-dense lm_head / output store
N_LAYER = 4
INCREASE_T_EVERY = 2
N_REPEAT = N_LAYER // INCREASE_T_EVERY
DILATION = 1                 # dilation_factor
ES = 2                       # es (number of embedding splits)
EPS = 1e-5
INV_SQRT2 = 1.0 / math.sqrt(2.0)
ATT_SCALE = 1.0 / math.sqrt(HD)
N_FIXED = 17                 # non-mix kernel inputs


def get_split_sizes(c, es):
    base, rem = c // es, c % es
    return [base + 1 if i < rem else base for i in range(es)]


def _group_sizes():
    # mirrors the x_accs allocation in DenseFormer2.forward (general dilation)
    sizes = []
    for i in range(DILATION):
        gs = (N_REPEAT + 1) // DILATION
        if i < (N_REPEAT + 1) % DILATION:
            gs += 1
        sizes.append(gs)
    return sizes


def _layernorm(x, w, b):
    mu = jnp.mean(x, axis=-1, keepdims=True)
    var = jnp.mean((x - mu) ** 2, axis=-1, keepdims=True)
    return (x - mu) * jax.lax.rsqrt(var + EPS) * w + b


def _gelu_erf(x):
    # exact erf form (matches torch.nn.GELU() default)
    # TODO(synk): tanh-approx GELU would use the idle EUP but changes numerics.
    return 0.5 * x * (1.0 + jax.lax.erf(x * INV_SQRT2))


# ---------------- fused per-sequence forward kernel ----------------
def fused_forward_kernel(*refs):
    (tok_ref, wpe_ref,
     ln1w_ref, ln1b_ref, wqkv_ref, bqkv_ref, wproj_ref, bproj_ref,
     ln2w_ref, ln2b_ref, wfc_ref, bfc_ref, wfc2_ref, bfc2_ref,
     lnfw_ref, lnfb_ref, wte_ref) = refs[:N_FIXED]
    mix_refs = refs[N_FIXED:N_FIXED + N_REPEAT]
    o_ref = refs[N_FIXED + N_REPEAT]

    # token embedding (gathered in the wrapper) + learned absolute positions.
    x = tok_ref[...] + wpe_ref[...]                               # (T, C), dropout=0

    # additive causal bias, built ONCE (per-sequence (T, T); no block-diagonal
    # mask, no per-layer select).
    row = jax.lax.broadcasted_iota(jnp.int32, (T, T), 0)
    col = jax.lax.broadcasted_iota(jnp.int32, (T, T), 1)
    bias = jnp.where(row >= col, 0.0, -1e30).astype(jnp.float32)
    bias = jnp.broadcast_to(bias, (H, T, T))                      # hoisted out of the loop

    def attn(h, wqkv, bqkv, wproj, bproj):
        # heads as a batch dim: (3H, T, C) x (3H, C, HD) -> (3H, T, HD)
        hb = jnp.broadcast_to(h, (3 * H, T, C))
        qkv = jax.lax.dot_general(hb, wqkv, (((2,), (1,)), ((0,), (0,))),
                                  preferred_element_type=jnp.float32) + bqkv
        qkv = qkv.reshape(3, H, T, HD)                            # leading split, free
        q, k, v = qkv[0], qkv[1], qkv[2]                          # (H, T, HD) each
        att = jax.lax.dot_general(q, k, (((2,), (2,)), ((0,), (0,))),
                                  preferred_element_type=jnp.float32)
        att = att * ATT_SCALE + bias                              # (H, T, T)
        att = att - jnp.max(att, axis=-1, keepdims=True)
        p = jnp.exp(att)
        p = p * pl.reciprocal(jnp.sum(p, axis=-1, keepdims=True), approx=True)
        y = jax.lax.dot_general(p, v, (((2,), (1,)), ((0,), (0,))),
                                preferred_element_type=jnp.float32)   # (H, T, HD)
        # output projection with heads kept as a batch dim, merged by a sum
        z = jax.lax.dot_general(y, wproj, (((2,), (1,)), ((0,), (0,))),
                                preferred_element_type=jnp.float32)   # (H, T, C)
        return jnp.sum(z, axis=0) + bproj                         # (T, C)

    def mlp(h, wfc, bfc, wfc2, bfc2):
        f = jnp.dot(h, wfc, preferred_element_type=jnp.float32) + bfc
        f = _gelu_erf(f)
        return jnp.dot(f, wfc2, preferred_element_type=jnp.float32) + bfc2

    # DenseFormer accumulators: static Python structure of traced values;
    # indexed-set matches InPlaceSetSlice for any dilation.
    # TODO(synk): at scaled configs move this stack into a pltpu.VMEM scratch
    # of shape (N_REPEAT+1, T, C) to bound live ranges.
    x_accs = [[None] * gs for gs in _group_sizes()]
    x_accs[0][0] = x

    li = 0
    for rep_idx in range(1, N_REPEAT + 1):
        for _ in range(INCREASE_T_EVERY):
            h1 = _layernorm(x, ln1w_ref[li], ln1b_ref[li])
            x = x + attn(h1, wqkv_ref[li], bqkv_ref[li],
                         wproj_ref[li], bproj_ref[li])
            h2 = _layernorm(x, ln2w_ref[li], ln2b_ref[li])
            x = x + mlp(h2, wfc_ref[li], bfc_ref[li],
                        wfc2_ref[li], bfc2_ref[li])
            li += 1
        acc = x_accs[rep_idx % DILATION]
        acc[rep_idx // DILATION] = x                              # indexed set
        k = rep_idx // DILATION + 1
        wm = mix_refs[rep_idx - 1]                                # (k, 1, C)
        xm = wm[0] * acc[0]
        for j in range(1, k):
            xm = xm + wm[j] * acc[j]
        x = xm

    # final LayerNorm + tied lm_head on the last token of this sequence.
    x_last = x[T - 1:T, :]                                        # (1, C)
    hN = _layernorm(x_last, lnfw_ref[...], lnfb_ref[...])
    wte = wte_ref[...]                                            # read at use site only
    logits = jax.lax.dot_general(hN, wte, (((1,), (1,)), ((), ())),
                                 preferred_element_type=jnp.float32)  # (1, V_PAD)
    o_ref[...] = logits[None]                                     # (1, 1, V_PAD)


# ---------------- wrapper ----------------
def forward(idx, params):
    idx_flat = idx.reshape(-1).astype(jnp.int32)
    # exact embedding row gather in the XLA wrapper (no in-kernel one-hot matmul)
    tok = jnp.take(params["wte"], idx_flat, axis=0)               # (B*T, C)
    # zero-pad the tied lm_head weight so the final store is lane-dense (128)
    wte_pad = jnp.pad(params["wte"], ((0, V_PAD - V), (0, 0)))

    args = [tok, params["wpe"],
            params["ln1w"], params["ln1b"], params["wqkvR"], params["bqkvR"],
            params["wprojR"], params["bproj"], params["ln2w"], params["ln2b"],
            params["wfc"], params["bfc"], params["wfc2"], params["bfc2"],
            params["ln_f_w"], params["ln_f_b"], wte_pad] + list(params["mix"])

    vmem = pl.BlockSpec(memory_space=pltpu.MemorySpace.VMEM)      # whole-array VMEM residency
    in_specs = [pl.BlockSpec((T, C), lambda b: (b, 0))] + [vmem] * (len(args) - 1)

    # TODO(synk): for scaled configs (v7x 64MiB VMEM) stream layer weights via a
    # grid axis over layers with pl.Buffered BlockSpecs instead of full residency.
    logits_pad = pl.pallas_call(
        fused_forward_kernel,
        grid=(B,),                                                # one program per sequence
        out_shape=jax.ShapeDtypeStruct((B, 1, V_PAD), jnp.float32),
        in_specs=in_specs,
        out_specs=pl.BlockSpec((1, 1, V_PAD), lambda b: (b, 0, 0)),
        compiler_params=pltpu.CompilerParams(
            dimension_semantics=("parallel",)),
    )(*args)
    return logits_pad[:, :, :V]                                   # (B, 1, V)


# ---------------- parameter construction (deterministic) ----------------
def init_params(key):
    ks = iter(jax.random.split(key, 4 * N_LAYER + 8))
    std = 0.02
    proj_std = 0.02 / math.sqrt(2 * N_LAYER)

    def nrm(shape, s):
        return s * jax.random.normal(next(ks), shape, dtype=jnp.float32)

    params = {
        "wte": nrm((V, C), std),                 # tied with lm_head
        "wpe": nrm((T, C), std),
        "ln_f_w": jnp.ones((1, C), jnp.float32),
        "ln_f_b": jnp.zeros((1, C), jnp.float32),
    }

    keys = ("ln1w", "ln1b", "wqkvR", "bqkvR", "wprojR", "bproj",
            "ln2w", "ln2b", "wfc", "bfc", "wfc2", "bfc2")
    stacks = {k: [] for k in keys}
    for _ in range(N_LAYER):
        stacks["ln1w"].append(jnp.ones((1, C), jnp.float32))
        stacks["ln1b"].append(jnp.zeros((1, C), jnp.float32))
        # c_attn weight in [in, out] layout, relaid out once to (3H, C, HD) so the
        # in-kernel projection is a canonical head-batched dot_general.
        wqkv = nrm((C, 3 * C), std)
        stacks["wqkvR"].append(
            jnp.transpose(wqkv.reshape(C, 3, H, HD), (1, 2, 0, 3)).reshape(3 * H, C, HD))
        stacks["bqkvR"].append(jnp.zeros((3 * H, 1, HD), jnp.float32))
        # c_proj weight in [in, out] layout, relaid out to (H, HD, C)
        wproj = nrm((C, C), proj_std)
        stacks["wprojR"].append(wproj.reshape(H, HD, C))
        stacks["bproj"].append(jnp.zeros((1, C), jnp.float32))
        stacks["ln2w"].append(jnp.ones((1, C), jnp.float32))
        stacks["ln2b"].append(jnp.zeros((1, C), jnp.float32))
        stacks["wfc"].append(nrm((C, 4 * C), std))
        stacks["bfc"].append(jnp.zeros((1, 4 * C), jnp.float32))
        stacks["wfc2"].append(nrm((4 * C, C), proj_std))
        stacks["bfc2"].append(jnp.zeros((1, C), jnp.float32))
    for k in keys:
        params[k] = jnp.stack(stacks[k], axis=0)  # (N_LAYER, ...)

    # DenseFormer mixing weights: zeros with a 1.0 at the last slot of each of
    # the `es` per-split chunks (the module's deterministic init), broadcast to
    # per-channel form (k, 1, C) for each repeat.
    split_sizes = get_split_sizes(C, ES)
    mix = []
    for rep_idx in range(1, N_REPEAT + 1):
        k = rep_idx // DILATION + 1              # stack length at this repeat
        w = np.zeros((ES, k), np.float32)
        w[:, -1] = 1.0
        wf = np.zeros((k, 1, C), np.float32)
        off = 0
        for j, sz in enumerate(split_sizes):
            wf[:, 0, off:off + sz] = w[j][:, None]
            off += sz
        mix.append(jnp.asarray(wf))
    params["mix"] = mix
    return params


if __name__ == "__main__":
    key = jax.random.PRNGKey(0)
    pkey, dkey = jax.random.split(key)
    params = init_params(pkey)
    idx = jax.random.randint(dkey, (B, T), 0, V, dtype=jnp.int32)

    fwd = jax.jit(forward)
    logits = fwd(idx, params)
    jax.block_until_ready(logits)
    assert logits.shape == (B, 1, V)
    assert bool(jnp.all(jnp.isfinite(logits)))
    print("KERNEL_OK")
</pallas_src>

<mosaic_0001>
module attributes {stable_mosaic.version = 11 : i64} {
  func.func @fused_forward_kernel(%arg0: i32, %arg1: memref<8x32xf32, #tpu.memory_space<vmem>>, %arg2: memref<8x32xf32, #tpu.memory_space<vmem>>, %arg3: memref<4x1x32xf32, #tpu.memory_space<vmem>>, %arg4: memref<4x1x32xf32, #tpu.memory_space<vmem>>, %arg5: memref<4x12x32x8xf32, #tpu.memory_space<vmem>>, %arg6: memref<4x12x1x8xf32, #tpu.memory_space<vmem>>, %arg7: memref<4x4x8x32xf32, #tpu.memory_space<vmem>>, %arg8: memref<4x1x32xf32, #tpu.memory_space<vmem>>, %arg9: memref<4x1x32xf32, #tpu.memory_space<vmem>>, %arg10: memref<4x1x32xf32, #tpu.memory_space<vmem>>, %arg11: memref<4x32x128xf32, #tpu.memory_space<vmem>>, %arg12: memref<4x1x128xf32, #tpu.memory_space<vmem>>, %arg13: memref<4x128x32xf32, #tpu.memory_space<vmem>>, %arg14: memref<4x1x32xf32, #tpu.memory_space<vmem>>, %arg15: memref<1x32xf32, #tpu.memory_space<vmem>>, %arg16: memref<1x32xf32, #tpu.memory_space<vmem>>, %arg17: memref<128x32xf32, #tpu.memory_space<vmem>>, %arg18: memref<2x1x32xf32, #tpu.memory_space<vmem>>, %arg19: memref<3x1x32xf32, #tpu.memory_space<vmem>>, %arg20: memref<1x1x128xf32, #tpu.memory_space<vmem>>) attributes {dimension_semantics = [#tpu.dimension_semantics<parallel>], iteration_bounds = array<i64: 2>, scalar_prefetch = 0 : i64, scratch_operands = 0 : i64, tpu.core_type = #tpu.core_type<tc>, window_params = [{transform_indices = @transform_0, window_bounds = array<i64: 8, 32>}, {pipeline_mode = #tpu.pipeline_mode<synchronous>, transform_indices = @transform_1, window_bounds = array<i64: 8, 32>}, {pipeline_mode = #tpu.pipeline_mode<synchronous>, transform_indices = @transform_2, window_bounds = array<i64: 4, 1, 32>}, {pipeline_mode = #tpu.pipeline_mode<synchronous>, transform_indices = @transform_3, window_bounds = array<i64: 4, 1, 32>}, {pipeline_mode = #tpu.pipeline_mode<synchronous>, transform_indices = @transform_4, window_bounds = array<i64: 4, 12, 32, 8>}, {pipeline_mode = #tpu.pipeline_mode<synchronous>, transform_indices = @transform_5, window_bounds = array<i64: 4, 12, 1, 8>}, {pipeline_mode = #tpu.pipeline_mode<synchronous>, transform_indices = @transform_6, window_bounds = array<i64: 4, 4, 8, 32>}, {pipeline_mode = #tpu.pipeline_mode<synchronous>, transform_indices = @transform_7, window_bounds = array<i64: 4, 1, 32>}, {pipeline_mode = #tpu.pipeline_mode<synchronous>, transform_indices = @transform_8, window_bounds = array<i64: 4, 1, 32>}, {pipeline_mode = #tpu.pipeline_mode<synchronous>, transform_indices = @transform_9, window_bounds = array<i64: 4, 1, 32>}, {pipeline_mode = #tpu.pipeline_mode<synchronous>, transform_indices = @transform_10, window_bounds = array<i64: 4, 32, 128>}, {pipeline_mode = #tpu.pipeline_mode<synchronous>, transform_indices = @transform_11, window_bounds = array<i64: 4, 1, 128>}, {pipeline_mode = #tpu.pipeline_mode<synchronous>, transform_indices = @transform_12, window_bounds = array<i64: 4, 128, 32>}, {pipeline_mode = #tpu.pipeline_mode<synchronous>, transform_indices = @transform_13, window_bounds = array<i64: 4, 1, 32>}, {pipeline_mode = #tpu.pipeline_mode<synchronous>, transform_indices = @transform_14, window_bounds = array<i64: 1, 32>}, {pipeline_mode = #tpu.pipeline_mode<synchronous>, transform_indices = @transform_15, window_bounds = array<i64: 1, 32>}, {pipeline_mode = #tpu.pipeline_mode<synchronous>, transform_indices = @transform_16, window_bounds = array<i64: 128, 32>}, {pipeline_mode = #tpu.pipeline_mode<synchronous>, transform_indices = @transform_17, window_bounds = array<i64: 2, 1, 32>}, {pipeline_mode = #tpu.pipeline_mode<synchronous>, transform_indices = @transform_18, window_bounds = array<i64: 3, 1, 32>}, {transform_indices = @transform_19, window_bounds = array<i64: 1, 1, 128>}]} {
    %c0 = arith.constant 0 : index
    %c0_0 = arith.constant 0 : index
    %0 = vector.load %arg1[%c0, %c0_0] : memref<8x32xf32, #tpu.memory_space<vmem>>, vector<8x32xf32>
    %c0_1 = arith.constant 0 : index
    %c0_2 = arith.constant 0 : index
    %1 = vector.load %arg2[%c0_1, %c0_2] : memref<8x32xf32, #tpu.memory_space<vmem>>, vector<8x32xf32>
    %2 = arith.addf %0, %1 : vector<8x32xf32>
    %3 = tpu.iota {dimensions = array<i32: 0>} : vector<8x8xi32>
    %4 = tpu.iota {dimensions = array<i32: 1>} : vector<8x8xi32>
    %5 = arith.cmpi sge, %3, %4 : vector<8x8xi32>
    %cst = arith.constant 0.000000e+00 : f32
    %cst_3 = arith.constant -1.000000e+30 : f32
    %6 = vector.broadcast %cst : f32 to vector<8x8xf32>
    %7 = vector.broadcast %cst_3 : f32 to vector<8x8xf32>
    %8 = arith.select %5, %6, %7 : vector<8x8xi1>, vector<8x8xf32>
    %9 = vector.shape_cast %8 : vector<8x8xf32> to vector<1x8x8xf32>
    %10 = vector.broadcast %9 : vector<1x8x8xf32> to vector<4x8x8xf32>
    %c0_4 = arith.constant 0 : index
    %c0_5 = arith.constant 0 : index
    %c0_6 = arith.constant 0 : index
    %11 = vector.load %arg3[%c0_4, %c0_5, %c0_6] : memref<4x1x32xf32, #tpu.memory_space<vmem>>, vector<1x1x32xf32>
    %12 = vector.shape_cast %11 : vector<1x1x32xf32> to vector<1x32xf32>
    %c0_7 = arith.constant 0 : index
    %c0_8 = arith.constant 0 : index
    %c0_9 = arith.constant 0 : index
    %13 = vector.load %arg4[%c0_7, %c0_8, %c0_9] : memref<4x1x32xf32, #tpu.memory_space<vmem>>, vector<1x1x32xf32>
    %14 = vector.shape_cast %13 : vector<1x1x32xf32> to vector<1x32xf32>
    %cst_10 = arith.constant dense<0.000000e+00> : vector<8xf32>
    %15 = vector.multi_reduction <add>, %2, %cst_10 [1] : vector<8x32xf32> to vector<8xf32>
    %16 = vector.shape_cast %15 : vector<8xf32> to vector<8x1xf32>
    %cst_11 = arith.constant 3.200000e+01 : f32
    %17 = vector.broadcast %cst_11 : f32 to vector<8x1xf32>
    %18 = arith.divf %16, %17 : vector<8x1xf32>
    %19 = vector.broadcast %18 : vector<8x1xf32> to vector<8x32xf32>
    %20 = arith.subf %2, %19 : vector<8x32xf32>
    %21 = arith.mulf %20, %20 : vector<8x32xf32>
    %cst_12 = arith.constant dense<0.000000e+00> : vector<8xf32>
    %22 = vector.multi_reduction <add>, %21, %cst_12 [1] : vector<8x32xf32> to vector<8xf32>
    %23 = vector.shape_cast %22 : vector<8xf32> to vector<8x1xf32>
    %cst_13 = arith.constant 3.200000e+01 : f32
    %24 = vector.broadcast %cst_13 : f32 to vector<8x1xf32>
    %25 = arith.divf %23, %24 : vector<8x1xf32>
    %26 = vector.broadcast %18 : vector<8x1xf32> to vector<8x32xf32>
    %27 = arith.subf %2, %26 : vector<8x32xf32>
    %cst_14 = arith.constant 9.99999974E-6 : f32
    %28 = vector.broadcast %cst_14 : f32 to vector<8x1xf32>
    %29 = arith.addf %25, %28 : vector<8x1xf32>
    %30 = math.rsqrt %29 : vector<8x1xf32>
    %31 = vector.broadcast %30 : vector<8x1xf32> to vector<8x32xf32>
    %32 = arith.mulf %27, %31 : vector<8x32xf32>
    %33 = vector.broadcast %12 : vector<1x32xf32> to vector<8x32xf32>
    %34 = arith.mulf %32, %33 : vector<8x32xf32>
    %35 = vector.broadcast %14 : vector<1x32xf32> to vector<8x32xf32>
    %36 = arith.addf %34, %35 : vector<8x32xf32>
    %c0_15 = arith.constant 0 : index
    %c0_16 = arith.constant 0 : index
    %c0_17 = arith.constant 0 : index
    %c0_18 = arith.constant 0 : index
    %37 = vector.load %arg5[%c0_15, %c0_16, %c0_17, %c0_18] : memref<4x12x32x8xf32, #tpu.memory_space<vmem>>, vector<1x12x32x8xf32>
    %38 = vector.shape_cast %37 : vector<1x12x32x8xf32> to vector<12x32x8xf32>
    %c0_19 = arith.constant 0 : index
    %c0_20 = arith.constant 0 : index
    %c0_21 = arith.constant 0 : index
    %c0_22 = arith.constant 0 : index
    %39 = vector.load %arg6[%c0_19, %c0_20, %c0_21, %c0_22] : memref<4x12x1x8xf32, #tpu.memory_space<vmem>>, vector<1x12x1x8xf32>
    %40 = vector.shape_cast %39 : vector<1x12x1x8xf32> to vector<12x1x8xf32>
    %c0_23 = arith.constant 0 : index
    %c0_24 = arith.constant 0 : index
    %c0_25 = arith.constant 0 : index
    %c0_26 = arith.constant 0 : index
    %41 = vector.load %arg7[%c0_23, %c0_24, %c0_25, %c0_26] : memref<4x4x8x32xf32, #tpu.memory_space<vmem>>, vector<1x4x8x32xf32>
    %42 = vector.shape_cast %41 : vector<1x4x8x32xf32> to vector<4x8x32xf32>
    %c0_27 = arith.constant 0 : index
    %c0_28 = arith.constant 0 : index
    %c0_29 = arith.constant 0 : index
    %43 = vector.load %arg8[%c0_27, %c0_28, %c0_29] : memref<4x1x32xf32, #tpu.memory_space<vmem>>, vector<1x1x32xf32>
    %44 = vector.shape_cast %43 : vector<1x1x32xf32> to vector<1x32xf32>
    %45 = vector.shape_cast %36 : vector<8x32xf32> to vector<1x8x32xf32>
    %46 = vector.broadcast %45 : vector<1x8x32xf32> to vector<12x8x32xf32>
    %cst_30 = arith.constant dense<0.000000e+00> : vector<12x8x8xf32>
    %47 = tpu.matmul %46, %38, %cst_30 {dimension_numbers = #tpu.dot_dimension_numbers<[2], [1], [1], [2], [0, 0, 0, 1, 1, 2], [0], [0]>} : vector<12x8x32xf32>, vector<12x32x8xf32>, vector<12x8x8xf32> -> vector<12x8x8xf32>
    %48 = vector.broadcast %40 : vector<12x1x8xf32> to vector<12x8x8xf32>
    %49 = arith.addf %47, %48 : vector<12x8x8xf32>
    %50 = vector.shape_cast %49 : vector<12x8x8xf32> to vector<3x4x8x8xf32>
    %51 = vector.extract_strided_slice %50 {offsets = [0, 0, 0, 0], sizes = [1, 4, 8, 8], strides = [1, 1, 1, 1]} : vector<3x4x8x8xf32> to vector<1x4x8x8xf32>
    %52 = vector.shape_cast %51 : vector<1x4x8x8xf32> to vector<4x8x8xf32>
    %53 = vector.extract_strided_slice %50 {offsets = [1, 0, 0, 0], sizes = [1, 4, 8, 8], strides = [1, 1, 1, 1]} : vector<3x4x8x8xf32> to vector<1x4x8x8xf32>
    %54 = vector.shape_cast %53 : vector<1x4x8x8xf32> to vector<4x8x8xf32>
    %55 = vector.extract_strided_slice %50 {offsets = [2, 0, 0, 0], sizes = [1, 4, 8, 8], strides = [1, 1, 1, 1]} : vector<3x4x8x8xf32> to vector<1x4x8x8xf32>
    %56 = vector.shape_cast %55 : vector<1x4x8x8xf32> to vector<4x8x8xf32>
    %cst_31 = arith.constant dense<0.000000e+00> : vector<4x8x8xf32>
    %57 = tpu.matmul %52, %54, %cst_31 {dimension_numbers = #tpu.dot_dimension_numbers<[2], [2], [1], [1], [0, 0, 0, 1, 1, 1], [0], [0]>} : vector<4x8x8xf32>, vector<4x8x8xf32>, vector<4x8x8xf32> -> vector<4x8x8xf32>
    %cst_32 = arith.constant 0.353553385 : f32
    %58 = vector.broadcast %cst_32 : f32 to vector<4x8x8xf32>
    %59 = arith.mulf %57, %58 : vector<4x8x8xf32>
    %60 = arith.addf %59, %10 : vector<4x8x8xf32>
    %cst_33 = arith.constant dense<0xFF800000> : vector<4x8xf32>
    %61 = vector.multi_reduction <maximumf>, %60, %cst_33 [2] : vector<4x8x8xf32> to vector<4x8xf32>
    %62 = vector.shape_cast %61 : vector<4x8xf32> to vector<4x8x1xf32>
    %63 = vector.broadcast %62 : vector<4x8x1xf32> to vector<4x8x8xf32>
    %64 = arith.subf %60, %63 : vector<4x8x8xf32>
    %65 = math.exp %64 : vector<4x8x8xf32>
    %cst_34 = arith.constant dense<0.000000e+00> : vector<4x8xf32>
    %66 = vector.multi_reduction <add>, %65, %cst_34 [2] : vector<4x8x8xf32> to vector<4x8xf32>
    %67 = vector.shape_cast %66 : vector<4x8xf32> to vector<4x8x1xf32>
    %68 = tpu.reciprocal %67 {approx = true} : vector<4x8x1xf32> -> vector<4x8x1xf32>
    %69 = vector.broadcast %68 : vector<4x8x1xf32> to vector<4x8x8xf32>
    %70 = arith.mulf %65, %69 : vector<4x8x8xf32>
    %cst_35 = arith.constant dense<0.000000e+00> : vector<4x8x8xf32>
    %71 = tpu.matmul %70, %56, %cst_35 {dimension_numbers = #tpu.dot_dimension_numbers<[2], [1], [1], [2], [0, 0, 0, 1, 1, 2], [0], [0]>} : vector<4x8x8xf32>, vector<4x8x8xf32>, vector<4x8x8xf32> -> vector<4x8x8xf32>
    %cst_36 = arith.constant dense<0.000000e+00> : vector<4x8x32xf32>
    %72 = tpu.matmul %71, %42, %cst_36 {dimension_numbers = #tpu.dot_dimension_numbers<[2], [1], [1], [2], [0, 0, 0, 1, 1, 2], [0], [0]>} : vector<4x8x8xf32>, vector<4x8x32xf32>, vector<4x8x32xf32> -> vector<4x8x32xf32>
    %cst_37 = arith.constant dense<0.000000e+00> : vector<8x32xf32>
    %73 = vector.multi_reduction <add>, %72, %cst_37 [0] : vector<4x8x32xf32> to vector<8x32xf32>
    %74 = vector.broadcast %44 : vector<1x32xf32> to vector<8x32xf32>
    %75 = arith.addf %73, %74 : vector<8x32xf32>
    %76 = arith.addf %2, %75 : vector<8x32xf32>
    %c0_38 = arith.constant 0 : index
    %c0_39 = arith.constant 0 : index
    %c0_40 = arith.constant 0 : index
    %77 = vector.load %arg9[%c0_38, %c0_39, %c0_40] : memref<4x1x32xf32, #tpu.memory_space<vmem>>, vector<1x1x32xf32>
    %78 = vector.shape_cast %77 : vector<1x1x32xf32> to vector<1x32xf32>
    %c0_41 = arith.constant 0 : index
    %c0_42 = arith.constant 0 : index
    %c0_43 = arith.constant 0 : index
    %79 = vector.load %arg10[%c0_41, %c0_42, %c0_43] : memref<4x1x32xf32, #tpu.memory_space<vmem>>, vector<1x1x32xf32>
    %80 = vector.shape_cast %79 : vector<1x1x32xf32> to vector<1x32xf32>
    %cst_44 = arith.constant dense<0.000000e+00> : vector<8xf32>
    %81 = vector.multi_reduction <add>, %76, %cst_44 [1] : vector<8x32xf32> to vector<8xf32>
    %82 = vector.shape_cast %81 : vector<8xf32> to vector<8x1xf32>
    %cst_45 = arith.constant 3.200000e+01 : f32
    %83 = vector.broadcast %cst_45 : f32 to vector<8x1xf32>
    %84 = arith.divf %82, %83 : vector<8x1xf32>
    %85 = vector.broadcast %84 : vector<8x1xf32> to vector<8x32xf32>
    %86 = arith.subf %76, %85 : vector<8x32xf32>
    %87 = arith.mulf %86, %86 : vector<8x32xf32>
    %cst_46 = arith.constant dense<0.000000e+00> : vector<8xf32>
    %88 = vector.multi_reduction <add>, %87, %cst_46 [1] : vector<8x32xf32> to vector<8xf32>
    %89 = vector.shape_cast %88 : vector<8xf32> to vector<8x1xf32>
    %cst_47 = arith.constant 3.200000e+01 : f32
    %90 = vector.broadcast %cst_47 : f32 to vector<8x1xf32>
    %91 = arith.divf %89, %90 : vector<8x1xf32>
    %92 = vector.broadcast %84 : vector<8x1xf32> to vector<8x32xf32>
    %93 = arith.subf %76, %92 : vector<8x32xf32>
    %cst_48 = arith.constant 9.99999974E-6 : f32
    %94 = vector.broadcast %cst_48 : f32 to vector<8x1xf32>
    %95 = arith.addf %91, %94 : vector<8x1xf32>
    %96 = math.rsqrt %95 : vector<8x1xf32>
    %97 = vector.broadcast %96 : vector<8x1xf32> to vector<8x32xf32>
    %98 = arith.mulf %93, %97 : vector<8x32xf32>
    %99 = vector.broadcast %78 : vector<1x32xf32> to vector<8x32xf32>
    %100 = arith.mulf %98, %99 : vector<8x32xf32>
    %101 = vector.broadcast %80 : vector<1x32xf32> to vector<8x32xf32>
    %102 = arith.addf %100, %101 : vector<8x32xf32>
    %c0_49 = arith.constant 0 : index
    %c0_50 = arith.constant 0 : index
    %c0_51 = arith.constant 0 : index
    %103 = vector.load %arg11[%c0_49, %c0_50, %c0_51] : memref<4x32x128xf32, #tpu.memory_space<vmem>>, vector<1x32x128xf32>
    %104 = vector.shape_cast %103 : vector<1x32x128xf32> to vector<32x128xf32>
    %c0_52 = arith.constant 0 : index
    %c0_53 = arith.constant 0 : index
    %c0_54 = arith.constant 0 : index
    %105 = vector.load %arg12[%c0_52, %c0_53, %c0_54] : memref<4x1x128xf32, #tpu.memory_space<vmem>>, vector<1x1x128xf32>
    %106 = vector.shape_cast %105 : vector<1x1x128xf32> to vector<1x128xf32>
    %c0_55 = arith.constant 0 : index
    %c0_56 = arith.constant 0 : index
    %c0_57 = arith.constant 0 : index
    %107 = vector.load %arg13[%c0_55, %c0_56, %c0_57] : memref<4x128x32xf32, #tpu.memory_space<vmem>>, vector<1x128x32xf32>
    %108 = vector.shape_cast %107 : vector<1x128x32xf32> to vector<128x32xf32>
    %c0_58 = arith.constant 0 : index
    %c0_59 = arith.constant 0 : index
    %c0_60 = arith.constant 0 : index
    %109 = vector.load %arg14[%c0_58, %c0_59, %c0_60] : memref<4x1x32xf32, #tpu.memory_space<vmem>>, vector<1x1x32xf32>
    %110 = vector.shape_cast %109 : vector<1x1x32xf32> to vector<1x32xf32>
    %cst_61 = arith.constant dense<0.000000e+00> : vector<8x128xf32>
    %111 = tpu.matmul %102, %104, %cst_61 {dimension_numbers = #tpu.dot_dimension_numbers<[1], [0], [0], [1], [0, 0, 1, 1], [], []>} : vector<8x32xf32>, vector<32x128xf32>, vector<8x128xf32> -> vector<8x128xf32>
    %112 = vector.broadcast %106 : vector<1x128xf32> to vector<8x128xf32>
    %113 = arith.addf %111, %112 : vector<8x128xf32>
    %cst_62 = arith.constant 5.000000e-01 : f32
    %114 = vector.broadcast %cst_62 : f32 to vector<8x128xf32>
    %115 = arith.mulf %114, %113 : vector<8x128xf32>
    %cst_63 = arith.constant 0.707106769 : f32
    %116 = vector.broadcast %cst_63 : f32 to vector<8x128xf32>
    %117 = arith.mulf %113, %116 : vector<8x128xf32>
    %118 = math.erf %117 : vector<8x128xf32>
    %cst_64 = arith.constant 1.000000e+00 : f32
    %119 = vector.broadcast %cst_64 : f32 to vector<8x128xf32>
    %120 = arith.addf %119, %118 : vector<8x128xf32>
    %121 = arith.mulf %115, %120 : vector<8x128xf32>
    %cst_65 = arith.constant dense<0.000000e+00> : vector<8x32xf32>
    %122 = tpu.matmul %121, %108, %cst_65 {dimension_numbers = #tpu.dot_dimension_numbers<[1], [0], [0], [1], [0, 0, 1, 1], [], []>} : vector<8x128xf32>, vector<128x32xf32>, vector<8x32xf32> -> vector<8x32xf32>
    %123 = vector.broadcast %110 : vector<1x32xf32> to vector<8x32xf32>
    %124 = arith.addf %122, %123 : vector<8x32xf32>
    %125 = arith.addf %76, %124 : vector<8x32xf32>
    %c1 = arith.constant 1 : index
    %c0_66 = arith.constant 0 : index
    %c0_67 = arith.constant 0 : index
    %126 = vector.load %arg3[%c1, %c0_66, %c0_67] : memref<4x1x32xf32, #tpu.memory_space<vmem>>, vector<1x1x32xf32>
    %127 = vector.shape_cast %126 : vector<1x1x32xf32> to vector<1x32xf32>
    %c1_68 = arith.constant 1 : index
    %c0_69 = arith.constant 0 : index
    %c0_70 = arith.constant 0 : index
    %128 = vector.load %arg4[%c1_68, %c0_69, %c0_70] : memref<4x1x32xf32, #tpu.memory_space<vmem>>, vector<1x1x32xf32>
    %129 = vector.shape_cast %128 : vector<1x1x32xf32> to vector<1x32xf32>
    %cst_71 = arith.constant dense<0.000000e+00> : vector<8xf32>
    %130 = vector.multi_reduction <add>, %125, %cst_71 [1] : vector<8x32xf32> to vector<8xf32>
    %131 = vector.shape_cast %130 : vector<8xf32> to vector<8x1xf32>
    %cst_72 = arith.constant 3.200000e+01 : f32
    %132 = vector.broadcast %cst_72 : f32 to vector<8x1xf32>
    %133 = arith.divf %131, %132 : vector<8x1xf32>
    %134 = vector.broadcast %133 : vector<8x1xf32> to vector<8x32xf32>
    %135 = arith.subf %125, %134 : vector<8x32xf32>
    %136 = arith.mulf %135, %135 : vector<8x32xf32>
    %cst_73 = arith.constant dense<0.000000e+00> : vector<8xf32>
    %137 = vector.multi_reduction <add>, %136, %cst_73 [1] : vector<8x32xf32> to vector<8xf32>
    %138 = vector.shape_cast %137 : vector<8xf32> to vector<8x1xf32>
    %cst_74 = arith.constant 3.200000e+01 : f32
    %139 = vector.broadcast %cst_74 : f32 to vector<8x1xf32>
    %140 = arith.divf %138, %139 : vector<8x1xf32>
    %141 = vector.broadcast %133 : vector<8x1xf32> to vector<8x32xf32>
    %142 = arith.subf %125, %141 : vector<8x32xf32>
    %cst_75 = arith.constant 9.99999974E-6 : f32
    %143 = vector.broadcast %cst_75 : f32 to vector<8x1xf32>
    %144 = arith.addf %140, %143 : vector<8x1xf32>
    %145 = math.rsqrt %144 : vector<8x1xf32>
    %146 = vector.broadcast %145 : vector<8x1xf32> to vector<8x32xf32>
    %147 = arith.mulf %142, %146 : vector<8x32xf32>
    %148 = vector.broadcast %127 : vector<1x32xf32> to vector<8x32xf32>
    %149 = arith.mulf %147, %148 : vector<8x32xf32>
    %150 = vector.broadcast %129 : vector<1x32xf32> to vector<8x32xf32>
    %151 = arith.addf %149, %150 : vector<8x32xf32>
    %c1_76 = arith.constant 1 : index
    %c0_77 = arith.constant 0 : index
    %c0_78 = arith.constant 0 : index
    %c0_79 = arith.constant 0 : index
    %152 = vector.load %arg5[%c1_76, %c0_77, %c0_78, %c0_79] : memref<4x12x32x8xf32, #tpu.memory_space<vmem>>, vector<1x12x32x8xf32>
    %153 = vector.shape_cast %152 : vector<1x12x32x8xf32> to vector<12x32x8xf32>
    %c1_80 = arith.constant 1 : index
    %c0_81 = arith.constant 0 : index
    %c0_82 = arith.constant 0 : index
    %c0_83 = arith.constant 0 : index
    %154 = vector.load %arg6[%c1_80, %c0_81, %c0_82, %c0_83] : memref<4x12x1x8xf32, #tpu.memory_space<vmem>>, vector<1x12x1x8xf32>
    %155 = vector.shape_cast %154 : vector<1x12x1x8xf32> to vector<12x1x8xf32>
    %c1_84 = arith.constant 1 : index
    %c0_85 = arith.constant 0 : index
    %c0_86 = arith.constant 0 : index
    %c0_87 = arith.constant 0 : index
    %156 = vector.load %arg7[%c1_84, %c0_85, %c0_86, %c0_87] : memref<4x4x8x32xf32, #tpu.memory_space<vmem>>, vector<1x4x8x32xf32>
    %157 = vector.shape_cast %156 : vector<1x4x8x32xf32> to vector<4x8x32xf32>
    %c1_88 = arith.constant 1 : index
    %c0_89 = arith.constant 0 : index
    %c0_90 = arith.constant 0 : index
    %158 = vector.load %arg8[%c1_88, %c0_89, %c0_90] : memref<4x1x32xf32, #tpu.memory_space<vmem>>, vector<1x1x32xf32>
    %159 = vector.shape_cast %158 : vector<1x1x32xf32> to vector<1x32xf32>
    %160 = vector.shape_cast %151 : vector<8x32xf32> to vector<1x8x32xf32>
    %161 = vector.broadcast %160 : vector<1x8x32xf32> to vector<12x8x32xf32>
    %cst_91 = arith.constant dense<0.000000e+00> : vector<12x8x8xf32>
    %162 = tpu.matmul %161, %153, %cst_91 {dimension_numbers = #tpu.dot_dimension_numbers<[2], [1], [1], [2], [0, 0, 0, 1, 1, 2], [0], [0]>} : vector<12x8x32xf32>, vector<12x32x8xf32>, vector<12x8x8xf32> -> vector<12x8x8xf32>
    %163 = vector.broadcast %155 : vector<12x1x8xf32> to vector<12x8x8xf32>
    %164 = arith.addf %162, %163 : vector<12x8x8xf32>
    %165 = vector.shape_cast %164 : vector<12x8x8xf32> to vector<3x4x8x8xf32>
    %166 = vector.extract_strided_slice %165 {offsets = [0, 0, 0, 0], sizes = [1, 4, 8, 8], strides = [1, 1, 1, 1]} : vector<3x4x8x8xf32> to vector<1x4x8x8xf32>
    %167 = vector.shape_cast %166 : vector<1x4x8x8xf32> to vector<4x8x8xf32>
    %168 = vector.extract_strided_slice %165 {offsets = [1, 0, 0, 0], sizes = [1, 4, 8, 8], strides = [1, 1, 1, 1]} : vector<3x4x8x8xf32> to vector<1x4x8x8xf32>
    %169 = vector.shape_cast %168 : vector<1x4x8x8xf32> to vector<4x8x8xf32>
    %170 = vector.extract_strided_slice %165 {offsets = [2, 0, 0, 0], sizes = [1, 4, 8, 8], strides = [1, 1, 1, 1]} : vector<3x4x8x8xf32> to vector<1x4x8x8xf32>
    %171 = vector.shape_cast %170 : vector<1x4x8x8xf32> to vector<4x8x8xf32>
    %cst_92 = arith.constant dense<0.000000e+00> : vector<4x8x8xf32>
    %172 = tpu.matmul %167, %169, %cst_92 {dimension_numbers = #tpu.dot_dimension_numbers<[2], [2], [1], [1], [0, 0, 0, 1, 1, 1], [0], [0]>} : vector<4x8x8xf32>, vector<4x8x8xf32>, vector<4x8x8xf32> -> vector<4x8x8xf32>
    %cst_93 = arith.constant 0.353553385 : f32
    %173 = vector.broadcast %cst_93 : f32 to vector<4x8x8xf32>
    %174 = arith.mulf %172, %173 : vector<4x8x8xf32>
    %175 = arith.addf %174, %10 : vector<4x8x8xf32>
    %cst_94 = arith.constant dense<0xFF800000> : vector<4x8xf32>
    %176 = vector.multi_reduction <maximumf>, %175, %cst_94 [2] : vector<4x8x8xf32> to vector<4x8xf32>
    %177 = vector.shape_cast %176 : vector<4x8xf32> to vector<4x8x1xf32>
    %178 = vector.broadcast %177 : vector<4x8x1xf32> to vector<4x8x8xf32>
    %179 = arith.subf %175, %178 : vector<4x8x8xf32>
    %180 = math.exp %179 : vector<4x8x8xf32>
    %cst_95 = arith.constant dense<0.000000e+00> : vector<4x8xf32>
    %181 = vector.multi_reduction <add>, %180, %cst_95 [2] : vector<4x8x8xf32> to vector<4x8xf32>
    %182 = vector.shape_cast %181 : vector<4x8xf32> to vector<4x8x1xf32>
    %183 = tpu.reciprocal %182 {approx = true} : vector<4x8x1xf32> -> vector<4x8x1xf32>
    %184 = vector.broadcast %183 : vector<4x8x1xf32> to vector<4x8x8xf32>
    %185 = arith.mulf %180, %184 : vector<4x8x8xf32>
    %cst_96 = arith.constant dense<0.000000e+00> : vector<4x8x8xf32>
    %186 = tpu.matmul %185, %171, %cst_96 {dimension_numbers = #tpu.dot_dimension_numbers<[2], [1], [1], [2], [0, 0, 0, 1, 1, 2], [0], [0]>} : vector<4x8x8xf32>, vector<4x8x8xf32>, vector<4x8x8xf32> -> vector<4x8x8xf32>
    %cst_97 = arith.constant dense<0.000000e+00> : vector<4x8x32xf32>
    %187 = tpu.matmul %186, %157, %cst_97 {dimension_numbers = #tpu.dot_dimension_numbers<[2], [1], [1], [2], [0, 0, 0, 1, 1, 2], [0], [0]>} : vector<4x8x8xf32>, vector<4x8x32xf32>, vector<4x8x32xf32> -> vector<4x8x32xf32>
    %cst_98 = arith.constant dense<0.000000e+00> : vector<8x32xf32>
    %188 = vector.multi_reduction <add>, %187, %cst_98 [0] : vector<4x8x32xf32> to vector<8x32xf32>
    %189 = vector.broadcast %159 : vector<1x32xf32> to vector<8x32xf32>
    %190 = arith.addf %188, %189 : vector<8x32xf32>
    %191 = arith.addf %125, %190 : vector<8x32xf32>
    %c1_99 = arith.constant 1 : index
    %c0_100 = arith.constant 0 : index
    %c0_101 = arith.constant 0 : index
    %192 = vector.load %arg9[%c1_99, %c0_100, %c0_101] : memref<4x1x32xf32, #tpu.memory_space<vmem>>, vector<1x1x32xf32>
    %193 = vector.shape_cast %192 : vector<1x1x32xf32> to vector<1x32xf32>
    %c1_102 = arith.constant 1 : index
    %c0_103 = arith.constant 0 : index
    %c0_104 = arith.constant 0 : index
    %194 = vector.load %arg10[%c1_102, %c0_103, %c0_104] : memref<4x1x32xf32, #tpu.memory_space<vmem>>, vector<1x1x32xf32>
    %195 = vector.shape_cast %194 : vector<1x1x32xf32> to vector<1x32xf32>
    %cst_105 = arith.constant dense<0.000000e+00> : vector<8xf32>
    %196 = vector.multi_reduction <add>, %191, %cst_105 [1] : vector<8x32xf32> to vector<8xf32>
    %197 = vector.shape_cast %196 : vector<8xf32> to vector<8x1xf32>
    %cst_106 = arith.constant 3.200000e+01 : f32
    %198 = vector.broadcast %cst_106 : f32 to vector<8x1xf32>
    %199 = arith.divf %197, %198 : vector<8x1xf32>
    %200 = vector.broadcast %199 : vector<8x1xf32> to vector<8x32xf32>
    %201 = arith.subf %191, %200 : vector<8x32xf32>
    %202 = arith.mulf %201, %201 : vector<8x32xf32>
    %cst_107 = arith.constant dense<0.000000e+00> : vector<8xf32>
    %203 = vector.multi_reduction <add>, %202, %cst_107 [1] : vector<8x32xf32> to vector<8xf32>
    %204 = vector.shape_cast %203 : vector<8xf32> to vector<8x1xf32>
    %cst_108 = arith.constant 3.200000e+01 : f32
    %205 = vector.broadcast %cst_108 : f32 to vector<8x1xf32>
    %206 = arith.divf %204, %205 : vector<8x1xf32>
    %207 = vector.broadcast %199 : vector<8x1xf32> to vector<8x32xf32>
    %208 = arith.subf %191, %207 : vector<8x32xf32>
    %cst_109 = arith.constant 9.99999974E-6 : f32
    %209 = vector.broadcast %cst_109 : f32 to vector<8x1xf32>
    %210 = arith.addf %206, %209 : vector<8x1xf32>
    %211 = math.rsqrt %210 : vector<8x1xf32>
    %212 = vector.broadcast %211 : vector<8x1xf32> to vector<8x32xf32>
    %213 = arith.mulf %208, %212 : vector<8x32xf32>
    %214 = vector.broadcast %193 : vector<1x32xf32> to vector<8x32xf32>
    %215 = arith.mulf %213, %214 : vector<8x32xf32>
    %216 = vector.broadcast %195 : vector<1x32xf32> to vector<8x32xf32>
    %217 = arith.addf %215, %216 : vector<8x32xf32>
    %c1_110 = arith.constant 1 : index
    %c0_111 = arith.constant 0 : index
    %c0_112 = arith.constant 0 : index
    %218 = vector.load %arg11[%c1_110, %c0_111, %c0_112] : memref<4x32x128xf32, #tpu.memory_space<vmem>>, vector<1x32x128xf32>
    %219 = vector.shape_cast %218 : vector<1x32x128xf32> to vector<32x128xf32>
    %c1_113 = arith.constant 1 : index
    %c0_114 = arith.constant 0 : index
    %c0_115 = arith.constant 0 : index
    %220 = vector.load %arg12[%c1_113, %c0_114, %c0_115] : memref<4x1x128xf32, #tpu.memory_space<vmem>>, vector<1x1x128xf32>
    %221 = vector.shape_cast %220 : vector<1x1x128xf32> to vector<1x128xf32>
    %c1_116 = arith.constant 1 : index
    %c0_117 = arith.constant 0 : index
    %c0_118 = arith.constant 0 : index
    %222 = vector.load %arg13[%c1_116, %c0_117, %c0_118] : memref<4x128x32xf32, #tpu.memory_space<vmem>>, vector<1x128x32xf32>
    %223 = vector.shape_cast %222 : vector<1x128x32xf32> to vector<128x32xf32>
    %c1_119 = arith.constant 1 : index
    %c0_120 = arith.constant 0 : index
    %c0_121 = arith.constant 0 : index
    %224 = vector.load %arg14[%c1_119, %c0_120, %c0_121] : memref<4x1x32xf32, #tpu.memory_space<vmem>>, vector<1x1x32xf32>
    %225 = vector.shape_cast %224 : vector<1x1x32xf32> to vector<1x32xf32>
    %cst_122 = arith.constant dense<0.000000e+00> : vector<8x128xf32>
    %226 = tpu.matmul %217, %219, %cst_122 {dimension_numbers = #tpu.dot_dimension_numbers<[1], [0], [0], [1], [0, 0, 1, 1], [], []>} : vector<8x32xf32>, vector<32x128xf32>, vector<8x128xf32> -> vector<8x128xf32>
    %227 = vector.broadcast %221 : vector<1x128xf32> to vector<8x128xf32>
    %228 = arith.addf %226, %227 : vector<8x128xf32>
    %cst_123 = arith.constant 5.000000e-01 : f32
    %229 = vector.broadcast %cst_123 : f32 to vector<8x128xf32>
    %230 = arith.mulf %229, %228 : vector<8x128xf32>
    %cst_124 = arith.constant 0.707106769 : f32
    %231 = vector.broadcast %cst_124 : f32 to vector<8x128xf32>
    %232 = arith.mulf %228, %231 : vector<8x128xf32>
    %233 = math.erf %232 : vector<8x128xf32>
    %cst_125 = arith.constant 1.000000e+00 : f32
    %234 = vector.broadcast %cst_125 : f32 to vector<8x128xf32>
    %235 = arith.addf %234, %233 : vector<8x128xf32>
    %236 = arith.mulf %230, %235 : vector<8x128xf32>
    %cst_126 = arith.constant dense<0.000000e+00> : vector<8x32xf32>
    %237 = tpu.matmul %236, %223, %cst_126 {dimension_numbers = #tpu.dot_dimension_numbers<[1], [0], [0], [1], [0, 0, 1, 1], [], []>} : vector<8x128xf32>, vector<128x32xf32>, vector<8x32xf32> -> vector<8x32xf32>
    %238 = vector.broadcast %225 : vector<1x32xf32> to vector<8x32xf32>
    %239 = arith.addf %237, %238 : vector<8x32xf32>
    %240 = arith.addf %191, %239 : vector<8x32xf32>
    %c0_127 = arith.constant 0 : index
    %c0_128 = arith.constant 0 : index
    %c0_129 = arith.constant 0 : index
    %241 = vector.load %arg18[%c0_127, %c0_128, %c0_129] : memref<2x1x32xf32, #tpu.memory_space<vmem>>, vector<1x1x32xf32>
    %242 = vector.shape_cast %241 : vector<1x1x32xf32> to vector<1x32xf32>
    %243 = vector.broadcast %242 : vector<1x32xf32> to vector<8x32xf32>
    %244 = arith.mulf %243, %2 : vector<8x32xf32>
    %c1_130 = arith.constant 1 : index
    %c0_131 = arith.constant 0 : index
    %c0_132 = arith.constant 0 : index
    %245 = vector.load %arg18[%c1_130, %c0_131, %c0_132] : memref<2x1x32xf32, #tpu.memory_space<vmem>>, vector<1x1x32xf32>
    %246 = vector.shape_cast %245 : vector<1x1x32xf32> to vector<1x32xf32>
    %247 = vector.broadcast %246 : vector<1x32xf32> to vector<8x32xf32>
    %248 = arith.mulf %247, %240 : vector<8x32xf32>
    %249 = arith.addf %244, %248 : vector<8x32xf32>
    %c2 = arith.constant 2 : index
    %c0_133 = arith.constant 0 : index
    %c0_134 = arith.constant 0 : index
    %250 = vector.load %arg3[%c2, %c0_133, %c0_134] : memref<4x1x32xf32, #tpu.memory_space<vmem>>, vector<1x1x32xf32>
    %251 = vector.shape_cast %250 : vector<1x1x32xf32> to vector<1x32xf32>
    %c2_135 = arith.constant 2 : index
    %c0_136 = arith.constant 0 : index
    %c0_137 = arith.constant 0 : index
    %252 = vector.load %arg4[%c2_135, %c0_136, %c0_137] : memref<4x1x32xf32, #tpu.memory_space<vmem>>, vector<1x1x32xf32>
    %253 = vector.shape_cast %252 : vector<1x1x32xf32> to vector<1x32xf32>
    %cst_138 = arith.constant dense<0.000000e+00> : vector<8xf32>
    %254 = vector.multi_reduction <add>, %249, %cst_138 [1] : vector<8x32xf32> to vector<8xf32>
    %255 = vector.shape_cast %254 : vector<8xf32> to vector<8x1xf32>
    %cst_139 = arith.constant 3.200000e+01 : f32
    %256 = vector.broadcast %cst_139 : f32 to vector<8x1xf32>
    %257 = arith.divf %255, %256 : vector<8x1xf32>
    %258 = vector.broadcast %257 : vector<8x1xf32> to vector<8x32xf32>
    %259 = arith.subf %249, %258 : vector<8x32xf32>
    %260 = arith.mulf %259, %259 : vector<8x32xf32>
    %cst_140 = arith.constant dense<0.000000e+00> : vector<8xf32>
    %261 = vector.multi_reduction <add>, %260, %cst_140 [1] : vector<8x32xf32> to vector<8xf32>
    %262 = vector.shape_cast %261 : vector<8xf32> to vector<8x1xf32>
    %cst_141 = arith.constant 3.200000e+01 : f32
    %263 = vector.broadcast %cst_141 : f32 to vector<8x1xf32>
    %264 = arith.divf %262, %263 : vector<8x1xf32>
    %265 = vector.broadcast %257 : vector<8x1xf32> to vector<8x32xf32>
    %266 = arith.subf %249, %265 : vector<8x32xf32>
    %cst_142 = arith.constant 9.99999974E-6 : f32
    %267 = vector.broadcast %cst_142 : f32 to vector<8x1xf32>
    %268 = arith.addf %264, %267 : vector<8x1xf32>
    %269 = math.rsqrt %268 : vector<8x1xf32>
    %270 = vector.broadcast %269 : vector<8x1xf32> to vector<8x32xf32>
    %271 = arith.mulf %266, %270 : vector<8x32xf32>
    %272 = vector.broadcast %251 : vector<1x32xf32> to vector<8x32xf32>
    %273 = arith.mulf %271, %272 : vector<8x32xf32>
    %274 = vector.broadcast %253 : vector<1x32xf32> to vector<8x32xf32>
    %275 = arith.addf %273, %274 : vector<8x32xf32>
    %c2_143 = arith.constant 2 : index
    %c0_144 = arith.constant 0 : index
    %c0_145 = arith.constant 0 : index
    %c0_146 = arith.constant 0 : index
    %276 = vector.load %arg5[%c2_143, %c0_144, %c0_145, %c0_146] : memref<4x12x32x8xf32, #tpu.memory_space<vmem>>, vector<1x12x32x8xf32>
    %277 = vector.shape_cast %276 : vector<1x12x32x8xf32> to vector<12x32x8xf32>
    %c2_147 = arith.constant 2 : index
    %c0_148 = arith.constant 0 : index
    %c0_149 = arith.constant 0 : index
    %c0_150 = arith.constant 0 : index
    %278 = vector.load %arg6[%c2_147, %c0_148, %c0_149, %c0_150] : memref<4x12x1x8xf32, #tpu.memory_space<vmem>>, vector<1x12x1x8xf32>
    %279 = vector.shape_cast %278 : vector<1x12x1x8xf32> to vector<12x1x8xf32>
    %c2_151 = arith.constant 2 : index
    %c0_152 = arith.constant 0 : index
    %c0_153 = arith.constant 0 : index
    %c0_154 = arith.constant 0 : index
    %280 = vector.load %arg7[%c2_151, %c0_152, %c0_153, %c0_154] : memref<4x4x8x32xf32, #tpu.memory_space<vmem>>, vector<1x4x8x32xf32>
    %281 = vector.shape_cast %280 : vector<1x4x8x32xf32> to vector<4x8x32xf32>
    %c2_155 = arith.constant 2 : index
    %c0_156 = arith.constant 0 : index
    %c0_157 = arith.constant 0 : index
    %282 = vector.load %arg8[%c2_155, %c0_156, %c0_157] : memref<4x1x32xf32, #tpu.memory_space<vmem>>, vector<1x1x32xf32>
    %283 = vector.shape_cast %282 : vector<1x1x32xf32> to vector<1x32xf32>
    %284 = vector.shape_cast %275 : vector<8x32xf32> to vector<1x8x32xf32>
    %285 = vector.broadcast %284 : vector<1x8x32xf32> to vector<12x8x32xf32>
    %cst_158 = arith.constant dense<0.000000e+00> : vector<12x8x8xf32>
    %286 = tpu.matmul %285, %277, %cst_158 {dimension_numbers = #tpu.dot_dimension_numbers<[2], [1], [1], [2], [0, 0, 0, 1, 1, 2], [0], [0]>} : vector<12x8x32xf32>, vector<12x32x8xf32>, vector<12x8x8xf32> -> vector<12x8x8xf32>
    %287 = vector.broadcast %279 : vector<12x1x8xf32> to vector<12x8x8xf32>
    %288 = arith.addf %286, %287 : vector<12x8x8xf32>
    %289 = vector.shape_cast %288 : vector<12x8x8xf32> to vector<3x4x8x8xf32>
    %290 = vector.extract_strided_slice %289 {offsets = [0, 0, 0, 0], sizes = [1, 4, 8, 8], strides = [1, 1, 1, 1]} : vector<3x4x8x8xf32> to vector<1x4x8x8xf32>
    %291 = vector.shape_cast %290 : vector<1x4x8x8xf32> to vector<4x8x8xf32>
    %292 = vector.extract_strided_slice %289 {offsets = [1, 0, 0, 0], sizes = [1, 4, 8, 8], strides = [1, 1, 1, 1]} : vector<3x4x8x8xf32> to vector<1x4x8x8xf32>
    %293 = vector.shape_cast %292 : vector<1x4x8x8xf32> to vector<4x8x8xf32>
    %294 = vector.extract_strided_slice %289 {offsets = [2, 0, 0, 0], sizes = [1, 4, 8, 8], strides = [1, 1, 1, 1]} : vector<3x4x8x8xf32> to vector<1x4x8x8xf32>
    %295 = vector.shape_cast %294 : vector<1x4x8x8xf32> to vector<4x8x8xf32>
    %cst_159 = arith.constant dense<0.000000e+00> : vector<4x8x8xf32>
    %296 = tpu.matmul %291, %293, %cst_159 {dimension_numbers = #tpu.dot_dimension_numbers<[2], [2], [1], [1], [0, 0, 0, 1, 1, 1], [0], [0]>} : vector<4x8x8xf32>, vector<4x8x8xf32>, vector<4x8x8xf32> -> vector<4x8x8xf32>
    %cst_160 = arith.constant 0.353553385 : f32
    %297 = vector.broadcast %cst_160 : f32 to vector<4x8x8xf32>
    %298 = arith.mulf %296, %297 : vector<4x8x8xf32>
    %299 = arith.addf %298, %10 : vector<4x8x8xf32>
    %cst_161 = arith.constant dense<0xFF800000> : vector<4x8xf32>
    %300 = vector.multi_reduction <maximumf>, %299, %cst_161 [2] : vector<4x8x8xf32> to vector<4x8xf32>
    %301 = vector.shape_cast %300 : vector<4x8xf32> to vector<4x8x1xf32>
    %302 = vector.broadcast %301 : vector<4x8x1xf32> to vector<4x8x8xf32>
    %303 = arith.subf %299, %302 : vector<4x8x8xf32>
    %304 = math.exp %303 : vector<4x8x8xf32>
    %cst_162 = arith.constant dense<0.000000e+00> : vector<4x8xf32>
    %305 = vector.multi_reduction <add>, %304, %cst_162 [2] : vector<4x8x8xf32> to vector<4x8xf32>
    %306 = vector.shape_cast %305 : vector<4x8xf32> to vector<4x8x1xf32>
    %307 = tpu.reciprocal %306 {approx = true} : vector<4x8x1xf32> -> vector<4x8x1xf32>
    %308 = vector.broadcast %307 : vector<4x8x1xf32> to vector<4x8x8xf32>
    %309 = arith.mulf %304, %308 : vector<4x8x8xf32>
    %cst_163 = arith.constant dense<0.000000e+00> : vector<4x8x8xf32>
    %310 = tpu.matmul %309, %295, %cst_163 {dimension_numbers = #tpu.dot_dimension_numbers<[2], [1], [1], [2], [0, 0, 0, 1, 1, 2], [0], [0]>} : vector<4x8x8xf32>, vector<4x8x8xf32>, vector<4x8x8xf32> -> vector<4x8x8xf32>
    %cst_164 = arith.constant dense<0.000000e+00> : vector<4x8x32xf32>
    %311 = tpu.matmul %310, %281, %cst_164 {dimension_numbers = #tpu.dot_dimension_numbers<[2], [1], [1], [2], [0, 0, 0, 1, 1, 2], [0], [0]>} : vector<4x8x8xf32>, vector<4x8x32xf32>, vector<4x8x32xf32> -> vector<4x8x32xf32>
    %cst_165 = arith.constant dense<0.000000e+00> : vector<8x32xf32>
    %312 = vector.multi_reduction <add>, %311, %cst_165 [0] : vector<4x8x32xf32> to vector<8x32xf32>
    %313 = vector.broadcast %283 : vector<1x32xf32> to vector<8x32xf32>
    %314 = arith.addf %312, %313 : vector<8x32xf32>
    %315 = arith.addf %249, %314 : vector<8x32xf32>
    %c2_166 = arith.constant 2 : index
    %c0_167 = arith.constant 0 : index
    %c0_168 = arith.constant 0 : index
    %316 = vector.load %arg9[%c2_166, %c0_167, %c0_168] : memref<4x1x32xf32, #tpu.memory_space<vmem>>, vector<1x1x32xf32>
    %317 = vector.shape_cast %316 : vector<1x1x32xf32> to vector<1x32xf32>
    %c2_169 = arith.constant 2 : index
    %c0_170 = arith.constant 0 : index
    %c0_171 = arith.constant 0 : index
    %318 = vector.load %arg10[%c2_169, %c0_170, %c0_171] : memref<4x1x32xf32, #tpu.memory_space<vmem>>, vector<1x1x32xf32>
    %319 = vector.shape_cast %318 : vector<1x1x32xf32> to vector<1x32xf32>
    %cst_172 = arith.constant dense<0.000000e+00> : vector<8xf32>
    %320 = vector.multi_reduction <add>, %315, %cst_172 [1] : vector<8x32xf32> to vector<8xf32>
    %321 = vector.shape_cast %320 : vector<8xf32> to vector<8x1xf32>
    %cst_173 = arith.constant 3.200000e+01 : f32
    %322 = vector.broadcast %cst_173 : f32 to vector<8x1xf32>
    %323 = arith.divf %321, %322 : vector<8x1xf32>
    %324 = vector.broadcast %323 : vector<8x1xf32> to vector<8x32xf32>
    %325 = arith.subf %315, %324 : vector<8x32xf32>
    %326 = arith.mulf %325, %325 : vector<8x32xf32>
    %cst_174 = arith.constant dense<0.000000e+00> : vector<8xf32>
    %327 = vector.multi_reduction <add>, %326, %cst_174 [1] : vector<8x32xf32> to vector<8xf32>
    %328 = vector.shape_cast %327 : vector<8xf32> to vector<8x1xf32>
    %cst_175 = arith.constant 3.200000e+01 : f32
    %329 = vector.broadcast %cst_175 : f32 to vector<8x1xf32>
    %330 = arith.divf %328, %329 : vector<8x1xf32>
    %331 = vector.broadcast %323 : vector<8x1xf32> to vector<8x32xf32>
    %332 = arith.subf %315, %331 : vector<8x32xf32>
    %cst_176 = arith.constant 9.99999974E-6 : f32
    %333 = vector.broadcast %cst_176 : f32 to vector<8x1xf32>
    %334 = arith.addf %330, %333 : vector<8x1xf32>
    %335 = math.rsqrt %334 : vector<8x1xf32>
    %336 = vector.broadcast %335 : vector<8x1xf32> to vector<8x32xf32>
    %337 = arith.mulf %332, %336 : vector<8x32xf32>
    %338 = vector.broadcast %317 : vector<1x32xf32> to vector<8x32xf32>
    %339 = arith.mulf %337, %338 : vector<8x32xf32>
    %340 = vector.broadcast %319 : vector<1x32xf32> to vector<8x32xf32>
    %341 = arith.addf %339, %340 : vector<8x32xf32>
    %c2_177 = arith.constant 2 : index
    %c0_178 = arith.constant 0 : index
    %c0_179 = arith.constant 0 : index
    %342 = vector.load %arg11[%c2_177, %c0_178, %c0_179] : memref<4x32x128xf32, #tpu.memory_space<vmem>>, vector<1x32x128xf32>
    %343 = vector.shape_cast %342 : vector<1x32x128xf32> to vector<32x128xf32>
    %c2_180 = arith.constant 2 : index
    %c0_181 = arith.constant 0 : index
    %c0_182 = arith.constant 0 : index
    %344 = vector.load %arg12[%c2_180, %c0_181, %c0_182] : memref<4x1x128xf32, #tpu.memory_space<vmem>>, vector<1x1x128xf32>
    %345 = vector.shape_cast %344 : vector<1x1x128xf32> to vector<1x128xf32>
    %c2_183 = arith.constant 2 : index
    %c0_184 = arith.constant 0 : index
    %c0_185 = arith.constant 0 : index
    %346 = vector.load %arg13[%c2_183, %c0_184, %c0_185] : memref<4x128x32xf32, #tpu.memory_space<vmem>>, vector<1x128x32xf32>
    %347 = vector.shape_cast %346 : vector<1x128x32xf32> to vector<128x32xf32>
    %c2_186 = arith.constant 2 : index
    %c0_187 = arith.constant 0 : index
    %c0_188 = arith.constant 0 : index
    %348 = vector.load %arg14[%c2_186, %c0_187, %c0_188] : memref<4x1x32xf32, #tpu.memory_space<vmem>>, vector<1x1x32xf32>
    %349 = vector.shape_cast %348 : vector<1x1x32xf32> to vector<1x32xf32>
    %cst_189 = arith.constant dense<0.000000e+00> : vector<8x128xf32>
    %350 = tpu.matmul %341, %343, %cst_189 {dimension_numbers = #tpu.dot_dimension_numbers<[1], [0], [0], [1], [0, 0, 1, 1], [], []>} : vector<8x32xf32>, vector<32x128xf32>, vector<8x128xf32> -> vector<8x128xf32>
    %351 = vector.broadcast %345 : vector<1x128xf32> to vector<8x128xf32>
    %352 = arith.addf %350, %351 : vector<8x128xf32>
    %cst_190 = arith.constant 5.000000e-01 : f32
    %353 = vector.broadcast %cst_190 : f32 to vector<8x128xf32>
    %354 = arith.mulf %353, %352 : vector<8x128xf32>
    %cst_191 = arith.constant 0.707106769 : f32
    %355 = vector.broadcast %cst_191 : f32 to vector<8x128xf32>
    %356 = arith.mulf %352, %355 : vector<8x128xf32>
    %357 = math.erf %356 : vector<8x128xf32>
    %cst_192 = arith.constant 1.000000e+00 : f32
    %358 = vector.broadcast %cst_192 : f32 to vector<8x128xf32>
    %359 = arith.addf %358, %357 : vector<8x128xf32>
    %360 = arith.mulf %354, %359 : vector<8x128xf32>
    %cst_193 = arith.constant dense<0.000000e+00> : vector<8x32xf32>
    %361 = tpu.matmul %360, %347, %cst_193 {dimension_numbers = #tpu.dot_dimension_numbers<[1], [0], [0], [1], [0, 0, 1, 1], [], []>} : vector<8x128xf32>, vector<128x32xf32>, vector<8x32xf32> -> vector<8x32xf32>
    %362 = vector.broadcast %349 : vector<1x32xf32> to vector<8x32xf32>
    %363 = arith.addf %361, %362 : vector<8x32xf32>
    %364 = arith.addf %315, %363 : vector<8x32xf32>
    %c3 = arith.constant 3 : index
    %c0_194 = arith.constant 0 : index
    %c0_195 = arith.constant 0 : index
    %365 = vector.load %arg3[%c3, %c0_194, %c0_195] : memref<4x1x32xf32, #tpu.memory_space<vmem>>, vector<1x1x32xf32>
    %366 = vector.shape_cast %365 : vector<1x1x32xf32> to vector<1x32xf32>
    %c3_196 = arith.constant 3 : index
    %c0_197 = arith.constant 0 : index
    %c0_198 = arith.constant 0 : index
    %367 = vector.load %arg4[%c3_196, %c0_197, %c0_198] : memref<4x1x32xf32, #tpu.memory_space<vmem>>, vector<1x1x32xf32>
    %368 = vector.shape_cast %367 : vector<1x1x32xf32> to vector<1x32xf32>
    %cst_199 = arith.constant dense<0.000000e+00> : vector<8xf32>
    %369 = vector.multi_reduction <add>, %364, %cst_199 [1] : vector<8x32xf32> to vector<8xf32>
    %370 = vector.shape_cast %369 : vector<8xf32> to vector<8x1xf32>
    %cst_200 = arith.constant 3.200000e+01 : f32
    %371 = vector.broadcast %cst_200 : f32 to vector<8x1xf32>
    %372 = arith.divf %370, %371 : vector<8x1xf32>
    %373 = vector.broadcast %372 : vector<8x1xf32> to vector<8x32xf32>
    %374 = arith.subf %364, %373 : vector<8x32xf32>
    %375 = arith.mulf %374, %374 : vector<8x32xf32>
    %cst_201 = arith.constant dense<0.000000e+00> : vector<8xf32>
    %376 = vector.multi_reduction <add>, %375, %cst_201 [1] : vector<8x32xf32> to vector<8xf32>
    %377 = vector.shape_cast %376 : vector<8xf32> to vector<8x1xf32>
    %cst_202 = arith.constant 3.200000e+01 : f32
    %378 = vector.broadcast %cst_202 : f32 to vector<8x1xf32>
    %379 = arith.divf %377, %378 : vector<8x1xf32>
    %380 = vector.broadcast %372 : vector<8x1xf32> to vector<8x32xf32>
    %381 = arith.subf %364, %380 : vector<8x32xf32>
    %cst_203 = arith.constant 9.99999974E-6 : f32
    %382 = vector.broadcast %cst_203 : f32 to vector<8x1xf32>
    %383 = arith.addf %379, %382 : vector<8x1xf32>
    %384 = math.rsqrt %383 : vector<8x1xf32>
    %385 = vector.broadcast %384 : vector<8x1xf32> to vector<8x32xf32>
    %386 = arith.mulf %381, %385 : vector<8x32xf32>
    %387 = vector.broadcast %366 : vector<1x32xf32> to vector<8x32xf32>
    %388 = arith.mulf %386, %387 : vector<8x32xf32>
    %389 = vector.broadcast %368 : vector<1x32xf32> to vector<8x32xf32>
    %390 = arith.addf %388, %389 : vector<8x32xf32>
    %c3_204 = arith.constant 3 : index
    %c0_205 = arith.constant 0 : index
    %c0_206 = arith.constant 0 : index
    %c0_207 = arith.constant 0 : index
    %391 = vector.load %arg5[%c3_204, %c0_205, %c0_206, %c0_207] : memref<4x12x32x8xf32, #tpu.memory_space<vmem>>, vector<1x12x32x8xf32>
    %392 = vector.shape_cast %391 : vector<1x12x32x8xf32> to vector<12x32x8xf32>
    %c3_208 = arith.constant 3 : index
    %c0_209 = arith.constant 0 : index
    %c0_210 = arith.constant 0 : index
    %c0_211 = arith.constant 0 : index
    %393 = vector.load %arg6[%c3_208, %c0_209, %c0_210, %c0_211] : memref<4x12x1x8xf32, #tpu.memory_space<vmem>>, vector<1x12x1x8xf32>
    %394 = vector.shape_cast %393 : vector<1x12x1x8xf32> to vector<12x1x8xf32>
    %c3_212 = arith.constant 3 : index
    %c0_213 = arith.constant 0 : index
    %c0_214 = arith.constant 0 : index
    %c0_215 = arith.constant 0 : index
    %395 = vector.load %arg7[%c3_212, %c0_213, %c0_214, %c0_215] : memref<4x4x8x32xf32, #tpu.memory_space<vmem>>, vector<1x4x8x32xf32>
    %396 = vector.shape_cast %395 : vector<1x4x8x32xf32> to vector<4x8x32xf32>
    %c3_216 = arith.constant 3 : index
    %c0_217 = arith.constant 0 : index
    %c0_218 = arith.constant 0 : index
    %397 = vector.load %arg8[%c3_216, %c0_217, %c0_218] : memref<4x1x32xf32, #tpu.memory_space<vmem>>, vector<1x1x32xf32>
    %398 = vector.shape_cast %397 : vector<1x1x32xf32> to vector<1x32xf32>
    %399 = vector.shape_cast %390 : vector<8x32xf32> to vector<1x8x32xf32>
    %400 = vector.broadcast %399 : vector<1x8x32xf32> to vector<12x8x32xf32>
    %cst_219 = arith.constant dense<0.000000e+00> : vector<12x8x8xf32>
    %401 = tpu.matmul %400, %392, %cst_219 {dimension_numbers = #tpu.dot_dimension_numbers<[2], [1], [1], [2], [0, 0, 0, 1, 1, 2], [0], [0]>} : vector<12x8x32xf32>, vector<12x32x8xf32>, vector<12x8x8xf32> -> vector<12x8x8xf32>
    %402 = vector.broadcast %394 : vector<12x1x8xf32> to vector<12x8x8xf32>
    %403 = arith.addf %401, %402 : vector<12x8x8xf32>
    %404 = vector.shape_cast %403 : vector<12x8x8xf32> to vector<3x4x8x8xf32>
    %405 = vector.extract_strided_slice %404 {offsets = [0, 0, 0, 0], sizes = [1, 4, 8, 8], strides = [1, 1, 1, 1]} : vector<3x4x8x8xf32> to vector<1x4x8x8xf32>
    %406 = vector.shape_cast %405 : vector<1x4x8x8xf32> to vector<4x8x8xf32>
    %407 = vector.extract_strided_slice %404 {offsets = [1, 0, 0, 0], sizes = [1, 4, 8, 8], strides = [1, 1, 1, 1]} : vector<3x4x8x8xf32> to vector<1x4x8x8xf32>
    %408 = vector.shape_cast %407 : vector<1x4x8x8xf32> to vector<4x8x8xf32>
    %409 = vector.extract_strided_slice %404 {offsets = [2, 0, 0, 0], sizes = [1, 4, 8, 8], strides = [1, 1, 1, 1]} : vector<3x4x8x8xf32> to vector<1x4x8x8xf32>
    %410 = vector.shape_cast %409 : vector<1x4x8x8xf32> to vector<4x8x8xf32>
    %cst_220 = arith.constant dense<0.000000e+00> : vector<4x8x8xf32>
    %411 = tpu.matmul %406, %408, %cst_220 {dimension_numbers = #tpu.dot_dimension_numbers<[2], [2], [1], [1], [0, 0, 0, 1, 1, 1], [0], [0]>} : vector<4x8x8xf32>, vector<4x8x8xf32>, vector<4x8x8xf32> -> vector<4x8x8xf32>
    %cst_221 = arith.constant 0.353553385 : f32
    %412 = vector.broadcast %cst_221 : f32 to vector<4x8x8xf32>
    %413 = arith.mulf %411, %412 : vector<4x8x8xf32>
    %414 = arith.addf %413, %10 : vector<4x8x8xf32>
    %cst_222 = arith.constant dense<0xFF800000> : vector<4x8xf32>
    %415 = vector.multi_reduction <maximumf>, %414, %cst_222 [2] : vector<4x8x8xf32> to vector<4x8xf32>
    %416 = vector.shape_cast %415 : vector<4x8xf32> to vector<4x8x1xf32>
    %417 = vector.broadcast %416 : vector<4x8x1xf32> to vector<4x8x8xf32>
    %418 = arith.subf %414, %417 : vector<4x8x8xf32>
    %419 = math.exp %418 : vector<4x8x8xf32>
    %cst_223 = arith.constant dense<0.000000e+00> : vector<4x8xf32>
    %420 = vector.multi_reduction <add>, %419, %cst_223 [2] : vector<4x8x8xf32> to vector<4x8xf32>
    %421 = vector.shape_cast %420 : vector<4x8xf32> to vector<4x8x1xf32>
    %422 = tpu.reciprocal %421 {approx = true} : vector<4x8x1xf32> -> vector<4x8x1xf32>
    %423 = vector.broadcast %422 : vector<4x8x1xf32> to vector<4x8x8xf32>
    %424 = arith.mulf %419, %423 : vector<4x8x8xf32>
    %cst_224 = arith.constant dense<0.000000e+00> : vector<4x8x8xf32>
    %425 = tpu.matmul %424, %410, %cst_224 {dimension_numbers = #tpu.dot_dimension_numbers<[2], [1], [1], [2], [0, 0, 0, 1, 1, 2], [0], [0]>} : vector<4x8x8xf32>, vector<4x8x8xf32>, vector<4x8x8xf32> -> vector<4x8x8xf32>
    %cst_225 = arith.constant dense<0.000000e+00> : vector<4x8x32xf32>
    %426 = tpu.matmul %425, %396, %cst_225 {dimension_numbers = #tpu.dot_dimension_numbers<[2], [1], [1], [2], [0, 0, 0, 1, 1, 2], [0], [0]>} : vector<4x8x8xf32>, vector<4x8x32xf32>, vector<4x8x32xf32> -> vector<4x8x32xf32>
    %cst_226 = arith.constant dense<0.000000e+00> : vector<8x32xf32>
    %427 = vector.multi_reduction <add>, %426, %cst_226 [0] : vector<4x8x32xf32> to vector<8x32xf32>
    %428 = vector.broadcast %398 : vector<1x32xf32> to vector<8x32xf32>
    %429 = arith.addf %427, %428 : vector<8x32xf32>
    %430 = arith.addf %364, %429 : vector<8x32xf32>
    %c3_227 = arith.constant 3 : index
    %c0_228 = arith.constant 0 : index
    %c0_229 = arith.constant 0 : index
    %431 = vector.load %arg9[%c3_227, %c0_228, %c0_229] : memref<4x1x32xf32, #tpu.memory_space<vmem>>, vector<1x1x32xf32>
    %432 = vector.shape_cast %431 : vector<1x1x32xf32> to vector<1x32xf32>
    %c3_230 = arith.constant 3 : index
    %c0_231 = arith.constant 0 : index
    %c0_232 = arith.constant 0 : index
    %433 = vector.load %arg10[%c3_230, %c0_231, %c0_232] : memref<4x1x32xf32, #tpu.memory_space<vmem>>, vector<1x1x32xf32>
    %434 = vector.shape_cast %433 : vector<1x1x32xf32> to vector<1x32xf32>
    %cst_233 = arith.constant dense<0.000000e+00> : vector<8xf32>
    %435 = vector.multi_reduction <add>, %430, %cst_233 [1] : vector<8x32xf32> to vector<8xf32>
    %436 = vector.shape_cast %435 : vector<8xf32> to vector<8x1xf32>
    %cst_234 = arith.constant 3.200000e+01 : f32
    %437 = vector.broadcast %cst_234 : f32 to vector<8x1xf32>
    %438 = arith.divf %436, %437 : vector<8x1xf32>
    %439 = vector.broadcast %438 : vector<8x1xf32> to vector<8x32xf32>
    %440 = arith.subf %430, %439 : vector<8x32xf32>
    %441 = arith.mulf %440, %440 : vector<8x32xf32>
    %cst_235 = arith.constant dense<0.000000e+00> : vector<8xf32>
    %442 = vector.multi_reduction <add>, %441, %cst_235 [1] : vector<8x32xf32> to vector<8xf32>
    %443 = vector.shape_cast %442 : vector<8xf32> to vector<8x1xf32>
    %cst_236 = arith.constant 3.200000e+01 : f32
    %444 = vector.broadcast %cst_236 : f32 to vector<8x1xf32>
    %445 = arith.divf %443, %444 : vector<8x1xf32>
    %446 = vector.broadcast %438 : vector<8x1xf32> to vector<8x32xf32>
    %447 = arith.subf %430, %446 : vector<8x32xf32>
    %cst_237 = arith.constant 9.99999974E-6 : f32
    %448 = vector.broadcast %cst_237 : f32 to vector<8x1xf32>
    %449 = arith.addf %445, %448 : vector<8x1xf32>
    %450 = math.rsqrt %449 : vector<8x1xf32>
    %451 = vector.broadcast %450 : vector<8x1xf32> to vector<8x32xf32>
    %452 = arith.mulf %447, %451 : vector<8x32xf32>
    %453 = vector.broadcast %432 : vector<1x32xf32> to vector<8x32xf32>
    %454 = arith.mulf %452, %453 : vector<8x32xf32>
    %455 = vector.broadcast %434 : vector<1x32xf32> to vector<8x32xf32>
    %456 = arith.addf %454, %455 : vector<8x32xf32>
    %c3_238 = arith.constant 3 : index
    %c0_239 = arith.constant 0 : index
    %c0_240 = arith.constant 0 : index
    %457 = vector.load %arg11[%c3_238, %c0_239, %c0_240] : memref<4x32x128xf32, #tpu.memory_space<vmem>>, vector<1x32x128xf32>
    %458 = vector.shape_cast %457 : vector<1x32x128xf32> to vector<32x128xf32>
    %c3_241 = arith.constant 3 : index
    %c0_242 = arith.constant 0 : index
    %c0_243 = arith.constant 0 : index
    %459 = vector.load %arg12[%c3_241, %c0_242, %c0_243] : memref<4x1x128xf32, #tpu.memory_space<vmem>>, vector<1x1x128xf32>
    %460 = vector.shape_cast %459 : vector<1x1x128xf32> to vector<1x128xf32>
    %c3_244 = arith.constant 3 : index
    %c0_245 = arith.constant 0 : index
    %c0_246 = arith.constant 0 : index
    %461 = vector.load %arg13[%c3_244, %c0_245, %c0_246] : memref<4x128x32xf32, #tpu.memory_space<vmem>>, vector<1x128x32xf32>
    %462 = vector.shape_cast %461 : vector<1x128x32xf32> to vector<128x32xf32>
    %c3_247 = arith.constant 3 : index
    %c0_248 = arith.constant 0 : index
    %c0_249 = arith.constant 0 : index
    %463 = vector.load %arg14[%c3_247, %c0_248, %c0_249] : memref<4x1x32xf32, #tpu.memory_space<vmem>>, vector<1x1x32xf32>
    %464 = vector.shape_cast %463 : vector<1x1x32xf32> to vector<1x32xf32>
    %cst_250 = arith.constant dense<0.000000e+00> : vector<8x128xf32>
    %465 = tpu.matmul %456, %458, %cst_250 {dimension_numbers = #tpu.dot_dimension_numbers<[1], [0], [0], [1], [0, 0, 1, 1], [], []>} : vector<8x32xf32>, vector<32x128xf32>, vector<8x128xf32> -> vector<8x128xf32>
    %466 = vector.broadcast %460 : vector<1x128xf32> to vector<8x128xf32>
    %467 = arith.addf %465, %466 : vector<8x128xf32>
    %cst_251 = arith.constant 5.000000e-01 : f32
    %468 = vector.broadcast %cst_251 : f32 to vector<8x128xf32>
    %469 = arith.mulf %468, %467 : vector<8x128xf32>
    %cst_252 = arith.constant 0.707106769 : f32
    %470 = vector.broadcast %cst_252 : f32 to vector<8x128xf32>
    %471 = arith.mulf %467, %470 : vector<8x128xf32>
    %472 = math.erf %471 : vector<8x128xf32>
    %cst_253 = arith.constant 1.000000e+00 : f32
    %473 = vector.broadcast %cst_253 : f32 to vector<8x128xf32>
    %474 = arith.addf %473, %472 : vector<8x128xf32>
    %475 = arith.mulf %469, %474 : vector<8x128xf32>
    %cst_254 = arith.constant dense<0.000000e+00> : vector<8x32xf32>
    %476 = tpu.matmul %475, %462, %cst_254 {dimension_numbers = #tpu.dot_dimension_numbers<[1], [0], [0], [1], [0, 0, 1, 1], [], []>} : vector<8x128xf32>, vector<128x32xf32>, vector<8x32xf32> -> vector<8x32xf32>
    %477 = vector.broadcast %464 : vector<1x32xf32> to vector<8x32xf32>
    %478 = arith.addf %476, %477 : vector<8x32xf32>
    %479 = arith.addf %430, %478 : vector<8x32xf32>
    %c0_255 = arith.constant 0 : index
    %c0_256 = arith.constant 0 : index
    %c0_257 = arith.constant 0 : index
    %480 = vector.load %arg19[%c0_255, %c0_256, %c0_257] : memref<3x1x32xf32, #tpu.memory_space<vmem>>, vector<1x1x32xf32>
    %481 = vector.shape_cast %480 : vector<1x1x32xf32> to vector<1x32xf32>
    %482 = vector.broadcast %481 : vector<1x32xf32> to vector<8x32xf32>
    %483 = arith.mulf %482, %2 : vector<8x32xf32>
    %c1_258 = arith.constant 1 : index
    %c0_259 = arith.constant 0 : index
    %c0_260 = arith.constant 0 : index
    %484 = vector.load %arg19[%c1_258, %c0_259, %c0_260] : memref<3x1x32xf32, #tpu.memory_space<vmem>>, vector<1x1x32xf32>
    %485 = vector.shape_cast %484 : vector<1x1x32xf32> to vector<1x32xf32>
    %486 = vector.broadcast %485 : vector<1x32xf32> to vector<8x32xf32>
    %487 = arith.mulf %486, %240 : vector<8x32xf32>
    %488 = arith.addf %483, %487 : vector<8x32xf32>
    %c2_261 = arith.constant 2 : index
    %c0_262 = arith.constant 0 : index
    %c0_263 = arith.constant 0 : index
    %489 = vector.load %arg19[%c2_261, %c0_262, %c0_263] : memref<3x1x32xf32, #tpu.memory_space<vmem>>, vector<1x1x32xf32>
    %490 = vector.shape_cast %489 : vector<1x1x32xf32> to vector<1x32xf32>
    %491 = vector.broadcast %490 : vector<1x32xf32> to vector<8x32xf32>
    %492 = arith.mulf %491, %479 : vector<8x32xf32>
    %493 = arith.addf %488, %492 : vector<8x32xf32>
    %494 = vector.extract_strided_slice %493 {offsets = [7, 0], sizes = [1, 32], strides = [1, 1]} : vector<8x32xf32> to vector<1x32xf32>
    %c0_264 = arith.constant 0 : index
    %c0_265 = arith.constant 0 : index
    %495 = vector.load %arg15[%c0_264, %c0_265] : memref<1x32xf32, #tpu.memory_space<vmem>>, vector<1x32xf32>
    %c0_266 = arith.constant 0 : index
    %c0_267 = arith.constant 0 : index
    %496 = vector.load %arg16[%c0_266, %c0_267] : memref<1x32xf32, #tpu.memory_space<vmem>>, vector<1x32xf32>
    %cst_268 = arith.constant dense<0.000000e+00> : vector<1xf32>
    %497 = vector.multi_reduction <add>, %494, %cst_268 [1] : vector<1x32xf32> to vector<1xf32>
    %498 = vector.shape_cast %497 : vector<1xf32> to vector<1x1xf32>
    %cst_269 = arith.constant 3.200000e+01 : f32
    %499 = vector.broadcast %cst_269 : f32 to vector<1x1xf32>
    %500 = arith.divf %498, %499 : vector<1x1xf32>
    %501 = vector.broadcast %500 : vector<1x1xf32> to vector<1x32xf32>
    %502 = arith.subf %494, %501 : vector<1x32xf32>
    %503 = arith.mulf %502, %502 : vector<1x32xf32>
    %cst_270 = arith.constant dense<0.000000e+00> : vector<1xf32>
    %504 = vector.multi_reduction <add>, %503, %cst_270 [1] : vector<1x32xf32> to vector<1xf32>
    %505 = vector.shape_cast %504 : vector<1xf32> to vector<1x1xf32>
    %cst_271 = arith.constant 3.200000e+01 : f32
    %506 = vector.broadcast %cst_271 : f32 to vector<1x1xf32>
    %507 = arith.divf %505, %506 : vector<1x1xf32>
    %508 = vector.broadcast %500 : vector<1x1xf32> to vector<1x32xf32>
    %509 = arith.subf %494, %508 : vector<1x32xf32>
    %cst_272 = arith.constant 9.99999974E-6 : f32
    %510 = vector.broadcast %cst_272 : f32 to vector<1x1xf32>
    %511 = arith.addf %507, %510 : vector<1x1xf32>
    %512 = math.rsqrt %511 : vector<1x1xf32>
    %513 = vector.broadcast %512 : vector<1x1xf32> to vector<1x32xf32>
    %514 = arith.mulf %509, %513 : vector<1x32xf32>
    %515 = arith.mulf %514, %495 : vector<1x32xf32>
    %516 = arith.addf %515, %496 : vector<1x32xf32>
    %c0_273 = arith.constant 0 : index
    %c0_274 = arith.constant 0 : index
    %517 = vector.load %arg17[%c0_273, %c0_274] : memref<128x32xf32, #tpu.memory_space<vmem>>, vector<128x32xf32>
    %cst_275 = arith.constant dense<0.000000e+00> : vector<1x128xf32>
    %518 = tpu.matmul %516, %517, %cst_275 {dimension_numbers = #tpu.dot_dimension_numbers<[1], [1], [0], [0], [0, 0, 1, 0], [], []>} : vector<1x32xf32>, vector<128x32xf32>, vector<1x128xf32> -> vector<1x128xf32>
    %519 = vector.shape_cast %518 : vector<1x128xf32> to vector<1x1x128xf32>
    %c0_276 = arith.constant 0 : index
    %c0_277 = arith.constant 0 : index
    %c0_278 = arith.constant 0 : index
    %520 = vector.load %arg20[%c0_276, %c0_277, %c0_278] : memref<1x1x128xf32, #tpu.memory_space<vmem>>, vector<1x1x128xf32>
    tpu.vector_store %arg20[%c0_276, %c0_277, %c0_278], %519 {strides = array<i32>} : memref<1x1x128xf32, #tpu.memory_space<vmem>>, vector<1x1x128xf32>,
    return
  }
  func.func @transform_0(%arg0: i32) -> (i32, i32) {
    %c0_i32 = arith.constant 0 : i32
    %c0_i32_0 = arith.constant 0 : i32
    return %arg0, %c0_i32 : i32, i32
  }
  func.func @transform_1(%arg0: i32) -> (i32, i32) {
    %c0_i32 = arith.constant 0 : i32
    %c0_i32_0 = arith.constant 0 : i32
    %c0_i32_1 = arith.constant 0 : i32
    return %c0_i32, %c0_i32_0 : i32, i32
  }
  func.func @transform_2(%arg0: i32) -> (i32, i32, i32) {
    %c0_i32 = arith.constant 0 : i32
    %c0_i32_0 = arith.constant 0 : i32
    %c0_i32_1 = arith.constant 0 : i32
    %c0_i32_2 = arith.constant 0 : i32
    return %c0_i32, %c0_i32_0, %c0_i32_1 : i32, i32, i32
  }
  func.func @transform_3(%arg0: i32) -> (i32, i32, i32) {
    %c0_i32 = arith.constant 0 : i32
    %c0_i32_0 = arith.constant 0 : i32
    %c0_i32_1 = arith.constant 0 : i32
    %c0_i32_2 = arith.constant 0 : i32
    return %c0_i32, %c0_i32_0, %c0_i32_1 : i32, i32, i32
  }
  func.func @transform_4(%arg0: i32) -> (i32, i32, i32, i32) {
    %c0_i32 = arith.constant 0 : i32
    %c0_i32_0 = arith.constant 0 : i32
    %c0_i32_1 = arith.constant 0 : i32
    %c0_i32_2 = arith.constant 0 : i32
    %c0_i32_3 = arith.constant 0 : i32
    return %c0_i32, %c0_i32_0, %c0_i32_1, %c0_i32_2 : i32, i32, i32, i32
  }
  func.func @transform_5(%arg0: i32) -> (i32, i32, i32, i32) {
    %c0_i32 = arith.constant 0 : i32
    %c0_i32_0 = arith.constant 0 : i32
    %c0_i32_1 = arith.constant 0 : i32
    %c0_i32_2 = arith.constant 0 : i32
    %c0_i32_3 = arith.constant 0 : i32
    return %c0_i32, %c0_i32_0, %c0_i32_1, %c0_i32_2 : i32, i32, i32, i32
  }
  func.func @transform_6(%arg0: i32) -> (i32, i32, i32, i32) {
    %c0_i32 = arith.constant 0 : i32
    %c0_i32_0 = arith.constant 0 : i32
    %c0_i32_1 = arith.constant 0 : i32
    %c0_i32_2 = arith.constant 0 : i32
    %c0_i32_3 = arith.constant 0 : i32
    return %c0_i32, %c0_i32_0, %c0_i32_1, %c0_i32_2 : i32, i32, i32, i32
  }
  func.func @transform_7(%arg0: i32) -> (i32, i32, i32) {
    %c0_i32 = arith.constant 0 : i32
    %c0_i32_0 = arith.constant 0 : i32
    %c0_i32_1 = arith.constant 0 : i32
    %c0_i32_2 = arith.constant 0 : i32
    return %c0_i32, %c0_i32_0, %c0_i32_1 : i32, i32, i32
  }
  func.func @transform_8(%arg0: i32) -> (i32, i32, i32) {
    %c0_i32 = arith.constant 0 : i32
    %c0_i32_0 = arith.constant 0 : i32
    %c0_i32_1 = arith.constant 0 : i32
    %c0_i32_2 = arith.constant 0 : i32
    return %c0_i32, %c0_i32_0, %c0_i32_1 : i32, i32, i32
  }
  func.func @transform_9(%arg0: i32) -> (i32, i32, i32) {
    %c0_i32 = arith.constant 0 : i32
    %c0_i32_0 = arith.constant 0 : i32
    %c0_i32_1 = arith.constant 0 : i32
    %c0_i32_2 = arith.constant 0 : i32
    return %c0_i32, %c0_i32_0, %c0_i32_1 : i32, i32, i32
  }
  func.func @transform_10(%arg0: i32) -> (i32, i32, i32) {
    %c0_i32 = arith.constant 0 : i32
    %c0_i32_0 = arith.constant 0 : i32
    %c0_i32_1 = arith.constant 0 : i32
    %c0_i32_2 = arith.constant 0 : i32
    return %c0_i32, %c0_i32_0, %c0_i32_1 : i32, i32, i32
  }
  func.func @transform_11(%arg0: i32) -> (i32, i32, i32) {
    %c0_i32 = arith.constant 0 : i32
    %c0_i32_0 = arith.constant 0 : i32
    %c0_i32_1 = arith.constant 0 : i32
    %c0_i32_2 = arith.constant 0 : i32
    return %c0_i32, %c0_i32_0, %c0_i32_1 : i32, i32, i32
  }
  func.func @transform_12(%arg0: i32) -> (i32, i32, i32) {
    %c0_i32 = arith.constant 0 : i32
    %c0_i32_0 = arith.constant 0 : i32
    %c0_i32_1 = arith.constant 0 : i32
    %c0_i32_2 = arith.constant 0 : i32
    return %c0_i32, %c0_i32_0, %c0_i32_1 : i32, i32, i32
  }
  func.func @transform_13(%arg0: i32) -> (i32, i32, i32) {
    %c0_i32 = arith.constant 0 : i32
    %c0_i32_0 = arith.constant 0 : i32
    %c0_i32_1 = arith.constant 0 : i32
    %c0_i32_2 = arith.constant 0 : i32
    return %c0_i32, %c0_i32_0, %c0_i32_1 : i32, i32, i32
  }
  func.func @transform_14(%arg0: i32) -> (i32, i32) {
    %c0_i32 = arith.constant 0 : i32
    %c0_i32_0 = arith.constant 0 : i32
    %c0_i32_1 = arith.constant 0 : i32
    return %c0_i32, %c0_i32_0 : i32, i32
  }
  func.func @transform_15(%arg0: i32) -> (i32, i32) {
    %c0_i32 = arith.constant 0 : i32
    %c0_i32_0 = arith.constant 0 : i32
    %c0_i32_1 = arith.constant 0 : i32
    return %c0_i32, %c0_i32_0 : i32, i32
  }
  func.func @transform_16(%arg0: i32) -> (i32, i32) {
    %c0_i32 = arith.constant 0 : i32
    %c0_i32_0 = arith.constant 0 : i32
    %c0_i32_1 = arith.constant 0 : i32
    return %c0_i32, %c0_i32_0 : i32, i32
  }
  func.func @transform_17(%arg0: i32) -> (i32, i32, i32) {
    %c0_i32 = arith.constant 0 : i32
    %c0_i32_0 = arith.constant 0 : i32
    %c0_i32_1 = arith.constant 0 : i32
    %c0_i32_2 = arith.constant 0 : i32
    return %c0_i32, %c0_i32_0, %c0_i32_1 : i32, i32, i32
  }
  func.func @transform_18(%arg0: i32) -> (i32, i32, i32) {
    %c0_i32 = arith.constant 0 : i32
    %c0_i32_0 = arith.constant 0 : i32
    %c0_i32_1 = arith.constant 0 : i32
    %c0_i32_2 = arith.constant 0 : i32
    return %c0_i32, %c0_i32_0, %c0_i32_1 : i32, i32, i32
  }
  func.func @transform_19(%arg0: i32) -> (i32, i32, i32) {
    %c0_i32 = arith.constant 0 : i32
    %c0_i32_0 = arith.constant 0 : i32
    %c0_i32_1 = arith.constant 0 : i32
    return %arg0, %c0_i32, %c0_i32_0 : i32, i32, i32
  }
}

</mosaic_0001>

<llo_original>
// kernel: forward.1
$region0: #{forward.1}
  #allocation0 [shape = 'u32[]', space=smem, size = 0x4, offset = 0x4, fixed_abs, tag = 'smem constant byte address 0x4 - core index']
  #allocation1 [shape = 'u32[144,128]{1,0:T(1,128)}', space=vmem, size = 0x12000, scoped, tag = 'internal scratch']
  %s0 = inlined_call_operand.vmem [shape: f32[16,32], index: 0, kind: input, shape index: {}]
  %s1 = inlined_call_operand.vmem [shape: f32[8,32], index: 1, kind: input, shape index: {}]
  %s2 = inlined_call_operand.vmem [shape: f32[4,1,32], index: 2, kind: input, shape index: {}]
  %s3 = inlined_call_operand.vmem [shape: f32[4,1,32], index: 3, kind: input, shape index: {}]
  %s4 = inlined_call_operand.vmem [shape: f32[4,12,32,8], index: 4, kind: input, shape index: {}]
  %s5 = inlined_call_operand.vmem [shape: f32[4,12,1,8], index: 5, kind: input, shape index: {}]
  %s6 = inlined_call_operand.vmem [shape: f32[4,4,8,32], index: 6, kind: input, shape index: {}]
  %s7 = inlined_call_operand.vmem [shape: f32[4,1,32], index: 7, kind: input, shape index: {}]
  %s8 = inlined_call_operand.vmem [shape: f32[4,1,32], index: 8, kind: input, shape index: {}]
  %s9 = inlined_call_operand.vmem [shape: f32[4,1,32], index: 9, kind: input, shape index: {}]
  %s10 = inlined_call_operand.vmem [shape: f32[4,32,128], index: 10, kind: input, shape index: {}]
  %s11 = inlined_call_operand.vmem [shape: f32[4,1,128], index: 11, kind: input, shape index: {}]
  %s12 = inlined_call_operand.vmem [shape: f32[4,128,32], index: 12, kind: input, shape index: {}]
  %s13 = inlined_call_operand.vmem [shape: f32[4,1,32], index: 13, kind: input, shape index: {}]
  %s14 = inlined_call_operand.vmem [shape: f32[1,32], index: 14, kind: input, shape index: {}]
  %s15 = inlined_call_operand.vmem [shape: f32[1,32], index: 15, kind: input, shape index: {}]
  %s16 = inlined_call_operand.vmem [shape: f32[128,32], index: 16, kind: input, shape index: {}]
  %s17 = inlined_call_operand.vmem [shape: f32[2,1,32], index: 17, kind: input, shape index: {}]
  %s18 = inlined_call_operand.vmem [shape: f32[3,1,32], index: 18, kind: input, shape index: {}]
  %s19 = inlined_call_operand.hbm [shape: f32[2,1,128], index: 19, kind: output, shape index: {}]
  %s20 = sld [smem:[#allocation0]]
  $region109: #{forward.1} parent=0
    _
  %s22 = ssub.s32 1, %s20
  %s23 = scalar_select 0, %s22, %s20
  $region1: #{forward.1} parent=0
    #allocation2 [shape = 'u8[1024]{0}', space=vmem, size = 0x400, scoped, tag = 'output window, operand 0']
    #allocation3 [shape = 's32[2]{0}', space=sflag, size = 0x8, scoped, tag = 'scoped memory for forward.1']
    %24 = vsyncpa [#allocation3], 0
    %s25 = scalar_lea.sflag [#allocation3], 1
    %26 = vsyncpa %s25, 0
    loop: start=0, step=1, limit=4
    $region2: #{forward.1} parent=1 // loop_pre_header
      _
    $region3: #{forward.1} parent=1 // loop_header
      %s28 = sphi 0, %s32
      %p29 = scmp.ge.s32.totalorder %s28, 4
      %s38 = sphi 0, %s40
      %s41 = sphi 0, %s38
      %s42 = sphi 0, %s41
      %s58 = sphi 0, %s42
      %s62 = sphi 0, %s62
      %s64 = sphi 0, %s62
      %s65 = sphi 0, %s64
      %s79 = sphi 0, %s65
      %s83 = sphi 0, %s83
      %s85 = sphi 0, %s83
      %s86 = sphi 0, %s85
      %s100 = sphi 0, %s86
      %s104 = sphi 0, %s104
      %s106 = sphi 0, %s104
      %s107 = sphi 0, %s106
      %s121 = sphi 0, %s107
      %s125 = sphi 0, %s125
      %s127 = sphi 0, %s125
      %s128 = sphi 0, %s127
      %s142 = sphi 0, %s128
      %s146 = sphi 0, %s146
      %s148 = sphi 0, %s146
      %s149 = sphi 0, %s148
      %s163 = sphi 0, %s149
      %s167 = sphi 0, %s167
      %s169 = sphi 0, %s167
      %s170 = sphi 0, %s169
      %s184 = sphi 0, %s170
      %s188 = sphi 0, %s188
      %s190 = sphi 0, %s188
      %s191 = sphi 0, %s190
      %s205 = sphi 0, %s191
      %s209 = sphi 0, %s209
      %s211 = sphi 0, %s209
      %s212 = sphi 0, %s211
      %s226 = sphi 0, %s212
      %s230 = sphi 0, %s230
      %s232 = sphi 0, %s230
      %s233 = sphi 0, %s232
      %s247 = sphi 0, %s233
      %s251 = sphi 0, %s251
      %s253 = sphi 0, %s251
      %s254 = sphi 0, %s253
      %s268 = sphi 0, %s254
      %s272 = sphi 0, %s272
      %s274 = sphi 0, %s272
      %s275 = sphi 0, %s274
      %s289 = sphi 0, %s275
      %s293 = sphi 0, %s293
      %s295 = sphi 0, %s293
      %s296 = sphi 0, %s295
      %s310 = sphi 0, %s296
      %s314 = sphi 0, %s314
      %s316 = sphi 0, %s314
      %s317 = sphi 0, %s316
      %s331 = sphi 0, %s317
      %s335 = sphi 0, %s335
      %s337 = sphi 0, %s335
      %s338 = sphi 0, %s337
      %s352 = sphi 0, %s338
      %s356 = sphi 0, %s356
      %s358 = sphi 0, %s356
      %s359 = sphi 0, %s358
      %s373 = sphi 0, %s359
      %s377 = sphi 0, %s377
      %s379 = sphi 0, %s377
      %s380 = sphi 0, %s379
      %s394 = sphi 0, %s380
      %s398 = sphi 0, %s398
      %s400 = sphi 0, %s398
      %s401 = sphi 0, %s400
      %s415 = sphi 0, %s401
      %s419 = sphi 0, %s419
      %s421 = sphi 0, %s419
      %s422 = sphi 0, %s421
      %s436 = sphi 0, %s422
      %s442 = sphi 0, %s444
      %s445 = sphi 0, %s442
      %s446 = sphi 0, %s445
      %s462 = sphi 0, %s446
    $region4: #{forward.1} parent=1 // loop_header_branch
      %31 = sbr.rel (%p29) target = $region8
    $region5: #{forward.1} parent=1 // loop_body
      %s33 = ssub.s32 %s28, 1
      %s34 = ssub.s32 %s28, 2
      %s35 = sadd.s32 %s28, 1
      %s36 = ssub.s32 %s28, %s35
      %p37 = scmp.eq.s32.totalorder %s36, 0
      %s39 = sadd.s32 %s38, 1
      %s40 = scalar_select %p37, %s38, %s39
      %p43 = pneg %p37
      %p44 = scmp.eq.s32.totalorder %s28, 1
      %p45 = por %p43, %p44
      %p46 = scmp.ne.s32.totalorder %s38, %s41
      %p47 = scmp.eq.s32.totalorder %s28, 0
      %p48 = por %p46, %p47
      %p49 = scmp.ne.s32.totalorder %s38, %s41
      %p50 = scmp.eq.s32.totalorder %s33, 1
      %p51 = por %p49, %p50
      %p52 = scmp.ne.s32.totalorder %s41, %s42
      %p53 = scmp.eq.s32.totalorder %s33, 0
      %p54 = por %p52, %p53
      %p55 = scmp.ne.s32.totalorder %s41, %s42
      %p56 = scmp.eq.s32.totalorder %s34, 1
      %p57 = por %p55, %p56
      %p59 = scmp.ne.s32.totalorder %s42, %s58
      %p60 = scmp.eq.s32.totalorder %s34, 0
      %p61 = por %p59, %p60
      %s63 = sadd.s32 %s62, 1
      %p66 = scmp.eq.s32.totalorder %s28, 1
      %p67 = scmp.ne.s32.totalorder %s62, %s64
      %p68 = scmp.eq.s32.totalorder %s28, 0
      %p69 = por %p67, %p68
      %p70 = scmp.ne.s32.totalorder %s62, %s64
      %p71 = scmp.eq.s32.totalorder %s33, 1
      %p72 = por %p70, %p71
      %p73 = scmp.ne.s32.totalorder %s64, %s65
      %p74 = scmp.eq.s32.totalorder %s33, 0
      %p75 = por %p73, %p74
      %p76 = scmp.ne.s32.totalorder %s64, %s65
      %p77 = scmp.eq.s32.totalorder %s34, 1
      %p78 = por %p76, %p77
      %p80 = scmp.ne.s32.totalorder %s65, %s79
      %p81 = scmp.eq.s32.totalorder %s34, 0
      %p82 = por %p80, %p81
      %s84 = sadd.s32 %s83, 1
      %p87 = scmp.eq.s32.totalorder %s28, 1
      %p88 = scmp.ne.s32.totalorder %s83, %s85
      %p89 = scmp.eq.s32.totalorder %s28, 0
      %p90 = por %p88, %p89
      %p91 = scmp.ne.s32.totalorder %s83, %s85
      %p92 = scmp.eq.s32.totalorder %s33, 1
      %p93 = por %p91, %p92
      %p94 = scmp.ne.s32.totalorder %s85, %s86
      %p95 = scmp.eq.s32.totalorder %s33, 0
      %p96 = por %p94, %p95
      %p97 = scmp.ne.s32.totalorder %s85, %s86
      %p98 = scmp.eq.s32.totalorder %s34, 1
      %p99 = por %p97, %p98
      %p101 = scmp.ne.s32.totalorder %s86, %s100
      %p102 = scmp.eq.s32.totalorder %s34, 0
      %p103 = por %p101, %p102
      %s105 = sadd.s32 %s104, 1
      %p108 = scmp.eq.s32.totalorder %s28, 1
      %p109 = scmp.ne.s32.totalorder %s104, %s106
      %p110 = scmp.eq.s32.totalorder %s28, 0
      %p111 = por %p109, %p110
      %p112 = scmp.ne.s32.totalorder %s104, %s106
      %p113 = scmp.eq.s32.totalorder %s33, 1
      %p114 = por %p112, %p113
      %p115 = scmp.ne.s32.totalorder %s106, %s107
      %p116 = scmp.eq.s32.totalorder %s33, 0
      %p117 = por %p115, %p116
      %p118 = scmp.ne.s32.totalorder %s106, %s107
      %p119 = scmp.eq.s32.totalorder %s34, 1
      %p120 = por %p118, %p119
      %p122 = scmp.ne.s32.totalorder %s107, %s121
      %p123 = scmp.eq.s32.totalorder %s34, 0
      %p124 = por %p122, %p123
      %s126 = sadd.s32 %s125, 1
      %p129 = scmp.eq.s32.totalorder %s28, 1
      %p130 = scmp.ne.s32.totalorder %s125, %s127
      %p131 = scmp.eq.s32.totalorder %s28, 0
      %p132 = por %p130, %p131
      %p133 = scmp.ne.s32.totalorder %s125, %s127
      %p134 = scmp.eq.s32.totalorder %s33, 1
      %p135 = por %p133, %p134
      %p136 = scmp.ne.s32.totalorder %s127, %s128
      %p137 = scmp.eq.s32.totalorder %s33, 0
      %p138 = por %p136, %p137
      %p139 = scmp.ne.s32.totalorder %s127, %s128
      %p140 = scmp.eq.s32.totalorder %s34, 1
      %p141 = por %p139, %p140
      %p143 = scmp.ne.s32.totalorder %s128, %s142
      %p144 = scmp.eq.s32.totalorder %s34, 0
      %p145 = por %p143, %p144
      %s147 = sadd.s32 %s146, 1
      %p150 = scmp.eq.s32.totalorder %s28, 1
      %p151 = scmp.ne.s32.totalorder %s146, %s148
      %p152 = scmp.eq.s32.totalorder %s28, 0
      %p153 = por %p151, %p152
      %p154 = scmp.ne.s32.totalorder %s146, %s148
      %p155 = scmp.eq.s32.totalorder %s33, 1
      %p156 = por %p154, %p155
      %p157 = scmp.ne.s32.totalorder %s148, %s149
      %p158 = scmp.eq.s32.totalorder %s33, 0
      %p159 = por %p157, %p158
      %p160 = scmp.ne.s32.totalorder %s148, %s149
      %p161 = scmp.eq.s32.totalorder %s34, 1
      %p162 = por %p160, %p161
      %p164 = scmp.ne.s32.totalorder %s149, %s163
      %p165 = scmp.eq.s32.totalorder %s34, 0
      %p166 = por %p164, %p165
      %s168 = sadd.s32 %s167, 1
      %p171 = scmp.eq.s32.totalorder %s28, 1
      %p172 = scmp.ne.s32.totalorder %s167, %s169
      %p173 = scmp.eq.s32.totalorder %s28, 0
      %p174 = por %p172, %p173
      %p175 = scmp.ne.s32.totalorder %s167, %s169
      %p176 = scmp.eq.s32.totalorder %s33, 1
      %p177 = por %p175, %p176
      %p178 = scmp.ne.s32.totalorder %s169, %s170
      %p179 = scmp.eq.s32.totalorder %s33, 0
      %p180 = por %p178, %p179
      %p181 = scmp.ne.s32.totalorder %s169, %s170
      %p182 = scmp.eq.s32.totalorder %s34, 1
      %p183 = por %p181, %p182
      %p185 = scmp.ne.s32.totalorder %s170, %s184
      %p186 = scmp.eq.s32.totalorder %s34, 0
      %p187 = por %p185, %p186
      %s189 = sadd.s32 %s188, 1
      %p192 = scmp.eq.s32.totalorder %s28, 1
      %p193 = scmp.ne.s32.totalorder %s188, %s190
      %p194 = scmp.eq.s32.totalorder %s28, 0
      %p195 = por %p193, %p194
      %p196 = scmp.ne.s32.totalorder %s188, %s190
      %p197 = scmp.eq.s32.totalorder %s33, 1
      %p198 = por %p196, %p197
      %p199 = scmp.ne.s32.totalorder %s190, %s191
      %p200 = scmp.eq.s32.totalorder %s33, 0
      %p201 = por %p199, %p200
      %p202 = scmp.ne.s32.totalorder %s190, %s191
      %p203 = scmp.eq.s32.totalorder %s34, 1
      %p204 = por %p202, %p203
      %p206 = scmp.ne.s32.totalorder %s191, %s205
      %p207 = scmp.eq.s32.totalorder %s34, 0
      %p208 = por %p206, %p207
      %s210 = sadd.s32 %s209, 1
      %p213 = scmp.eq.s32.totalorder %s28, 1
      %p214 = scmp.ne.s32.totalorder %s209, %s211
      %p215 = scmp.eq.s32.totalorder %s28, 0
      %p216 = por %p214, %p215
      %p217 = scmp.ne.s32.totalorder %s209, %s211
      %p218 = scmp.eq.s32.totalorder %s33, 1
      %p219 = por %p217, %p218
      %p220 = scmp.ne.s32.totalorder %s211, %s212
      %p221 = scmp.eq.s32.totalorder %s33, 0
      %p222 = por %p220, %p221
      %p223 = scmp.ne.s32.totalorder %s211, %s212
      %p224 = scmp.eq.s32.totalorder %s34, 1
      %p225 = por %p223, %p224
      %p227 = scmp.ne.s32.totalorder %s212, %s226
      %p228 = scmp.eq.s32.totalorder %s34, 0
      %p229 = por %p227, %p228
      %s231 = sadd.s32 %s230, 1
      %p234 = scmp.eq.s32.totalorder %s28, 1
      %p235 = scmp.ne.s32.totalorder %s230, %s232
      %p236 = scmp.eq.s32.totalorder %s28, 0
      %p237 = por %p235, %p236
      %p238 = scmp.ne.s32.totalorder %s230, %s232
      %p239 = scmp.eq.s32.totalorder %s33, 1
      %p240 = por %p238, %p239
      %p241 = scmp.ne.s32.totalorder %s232, %s233
      %p242 = scmp.eq.s32.totalorder %s33, 0
      %p243 = por %p241, %p242
      %p244 = scmp.ne.s32.totalorder %s232, %s233
      %p245 = scmp.eq.s32.totalorder %s34, 1
      %p246 = por %p244, %p245
      %p248 = scmp.ne.s32.totalorder %s233, %s247
      %p249 = scmp.eq.s32.totalorder %s34, 0
      %p250 = por %p248, %p249
      %s252 = sadd.s32 %s251, 1
      %p255 = scmp.eq.s32.totalorder %s28, 1
      %p256 = scmp.ne.s32.totalorder %s251, %s253
      %p257 = scmp.eq.s32.totalorder %s28, 0
      %p258 = por %p256, %p257
      %p259 = scmp.ne.s32.totalorder %s251, %s253
      %p260 = scmp.eq.s32.totalorder %s33, 1
      %p261 = por %p259, %p260
      %p262 = scmp.ne.s32.totalorder %s253, %s254
      %p263 = scmp.eq.s32.totalorder %s33, 0
      %p264 = por %p262, %p263
      %p265 = scmp.ne.s32.totalorder %s253, %s254
      %p266 = scmp.eq.s32.totalorder %s34, 1
      %p267 = por %p265, %p266
      %p269 = scmp.ne.s32.totalorder %s254, %s268
      %p270 = scmp.eq.s32.totalorder %s34, 0
      %p271 = por %p269, %p270
      %s273 = sadd.s32 %s272, 1
      %p276 = scmp.eq.s32.totalorder %s28, 1
      %p277 = scmp.ne.s32.totalorder %s272, %s274
      %p278 = scmp.eq.s32.totalorder %s28, 0
      %p279 = por %p277, %p278
      %p280 = scmp.ne.s32.totalorder %s272, %s274
      %p281 = scmp.eq.s32.totalorder %s33, 1
      %p282 = por %p280, %p281
      %p283 = scmp.ne.s32.totalorder %s274, %s275
      %p284 = scmp.eq.s32.totalorder %s33, 0
      %p285 = por %p283, %p284
      %p286 = scmp.ne.s32.totalorder %s274, %s275
      %p287 = scmp.eq.s32.totalorder %s34, 1
      %p288 = por %p286, %p287
      %p290 = scmp.ne.s32.totalorder %s275, %s289
      %p291 = scmp.eq.s32.totalorder %s34, 0
      %p292 = por %p290, %p291
      %s294 = sadd.s32 %s293, 1
      %p297 = scmp.eq.s32.totalorder %s28, 1
      %p298 = scmp.ne.s32.totalorder %s293, %s295
      %p299 = scmp.eq.s32.totalorder %s28, 0
      %p300 = por %p298, %p299
      %p301 = scmp.ne.s32.totalorder %s293, %s295
      %p302 = scmp.eq.s32.totalorder %s33, 1
      %p303 = por %p301, %p302
      %p304 = scmp.ne.s32.totalorder %s295, %s296
      %p305 = scmp.eq.s32.totalorder %s33, 0
      %p306 = por %p304, %p305
      %p307 = scmp.ne.s32.totalorder %s295, %s296
      %p308 = scmp.eq.s32.totalorder %s34, 1
      %p309 = por %p307, %p308
      %p311 = scmp.ne.s32.totalorder %s296, %s310
      %p312 = scmp.eq.s32.totalorder %s34, 0
      %p313 = por %p311, %p312
      %s315 = sadd.s32 %s314, 1
      %p318 = scmp.eq.s32.totalorder %s28, 1
      %p319 = scmp.ne.s32.totalorder %s314, %s316
      %p320 = scmp.eq.s32.totalorder %s28, 0
      %p321 = por %p319, %p320
      %p322 = scmp.ne.s32.totalorder %s314, %s316
      %p323 = scmp.eq.s32.totalorder %s33, 1
      %p324 = por %p322, %p323
      %p325 = scmp.ne.s32.totalorder %s316, %s317
      %p326 = scmp.eq.s32.totalorder %s33, 0
      %p327 = por %p325, %p326
      %p328 = scmp.ne.s32.totalorder %s316, %s317
      %p329 = scmp.eq.s32.totalorder %s34, 1
      %p330 = por %p328, %p329
      %p332 = scmp.ne.s32.totalorder %s317, %s331
      %p333 = scmp.eq.s32.totalorder %s34, 0
      %p334 = por %p332, %p333
      %s336 = sadd.s32 %s335, 1
      %p339 = scmp.eq.s32.totalorder %s28, 1
      %p340 = scmp.ne.s32.totalorder %s335, %s337
      %p341 = scmp.eq.s32.totalorder %s28, 0
      %p342 = por %p340, %p341
      %p343 = scmp.ne.s32.totalorder %s335, %s337
      %p344 = scmp.eq.s32.totalorder %s33, 1
      %p345 = por %p343, %p344
      %p346 = scmp.ne.s32.totalorder %s337, %s338
      %p347 = scmp.eq.s32.totalorder %s33, 0
      %p348 = por %p346, %p347
      %p349 = scmp.ne.s32.totalorder %s337, %s338
      %p350 = scmp.eq.s32.totalorder %s34, 1
      %p351 = por %p349, %p350
      %p353 = scmp.ne.s32.totalorder %s338, %s352
      %p354 = scmp.eq.s32.totalorder %s34, 0
      %p355 = por %p353, %p354
      %s357 = sadd.s32 %s356, 1
      %p360 = scmp.eq.s32.totalorder %s28, 1
      %p361 = scmp.ne.s32.totalorder %s356, %s358
      %p362 = scmp.eq.s32.totalorder %s28, 0
      %p363 = por %p361, %p362
      %p364 = scmp.ne.s32.totalorder %s356, %s358
      %p365 = scmp.eq.s32.totalorder %s33, 1
      %p366 = por %p364, %p365
      %p367 = scmp.ne.s32.totalorder %s358, %s359
      %p368 = scmp.eq.s32.totalorder %s33, 0
      %p369 = por %p367, %p368
      %p370 = scmp.ne.s32.totalorder %s358, %s359
      %p371 = scmp.eq.s32.totalorder %s34, 1
      %p372 = por %p370, %p371
      %p374 = scmp.ne.s32.totalorder %s359, %s373
      %p375 = scmp.eq.s32.totalorder %s34, 0
      %p376 = por %p374, %p375
      %s378 = sadd.s32 %s377, 1
      %p381 = scmp.eq.s32.totalorder %s28, 1
      %p382 = scmp.ne.s32.totalorder %s377, %s379
      %p383 = scmp.eq.s32.totalorder %s28, 0
      %p384 = por %p382, %p383
      %p385 = scmp.ne.s32.totalorder %s377, %s379
      %p386 = scmp.eq.s32.totalorder %s33, 1
      %p387 = por %p385, %p386
      %p388 = scmp.ne.s32.totalorder %s379, %s380
      %p389 = scmp.eq.s32.totalorder %s33, 0
      %p390 = por %p388, %p389
      %p391 = scmp.ne.s32.totalorder %s379, %s380
      %p392 = scmp.eq.s32.totalorder %s34, 1
      %p393 = por %p391, %p392
      %p395 = scmp.ne.s32.totalorder %s380, %s394
      %p396 = scmp.eq.s32.totalorder %s34, 0
      %p397 = por %p395, %p396
      %s399 = sadd.s32 %s398, 1
      %p402 = scmp.eq.s32.totalorder %s28, 1
      %p403 = scmp.ne.s32.totalorder %s398, %s400
      %p404 = scmp.eq.s32.totalorder %s28, 0
      %p405 = por %p403, %p404
      %p406 = scmp.ne.s32.totalorder %s398, %s400
      %p407 = scmp.eq.s32.totalorder %s33, 1
      %p408 = por %p406, %p407
      %p409 = scmp.ne.s32.totalorder %s400, %s401
      %p410 = scmp.eq.s32.totalorder %s33, 0
      %p411 = por %p409, %p410
      %p412 = scmp.ne.s32.totalorder %s400, %s401
      %p413 = scmp.eq.s32.totalorder %s34, 1
      %p414 = por %p412, %p413
      %p416 = scmp.ne.s32.totalorder %s401, %s415
      %p417 = scmp.eq.s32.totalorder %s34, 0
      %p418 = por %p416, %p417
      %s420 = sadd.s32 %s419, 1
      %p423 = scmp.eq.s32.totalorder %s28, 1
      %p424 = scmp.ne.s32.totalorder %s419, %s421
      %p425 = scmp.eq.s32.totalorder %s28, 0
      %p426 = por %p424, %p425
      %p427 = scmp.ne.s32.totalorder %s419, %s421
      %p428 = scmp.eq.s32.totalorder %s33, 1
      %p429 = por %p427, %p428
      %p430 = scmp.ne.s32.totalorder %s421, %s422
      %p431 = scmp.eq.s32.totalorder %s33, 0
      %p432 = por %p430, %p431
      %p433 = scmp.ne.s32.totalorder %s421, %s422
      %p434 = scmp.eq.s32.totalorder %s34, 1
      %p435 = por %p433, %p434
      %p437 = scmp.ne.s32.totalorder %s422, %s436
      %p438 = scmp.eq.s32.totalorder %s34, 0
      %p439 = por %p437, %p438
      %s440 = ssub.s32 %s28, %s35
      %p441 = scmp.eq.s32.totalorder %s440, 0
      %s443 = sadd.s32 %s442, 1
      %s444 = scalar_select %p441, %s442, %s443
      %p447 = pneg %p441
      %p448 = scmp.eq.s32.totalorder %s28, 1
      %p449 = por %p447, %p448
      %p450 = scmp.ne.s32.totalorder %s442, %s445
      %p451 = scmp.eq.s32.totalorder %s28, 0
      %p452 = por %p450, %p451
      %p453 = scmp.ne.s32.totalorder %s442, %s445
      %p454 = scmp.eq.s32.totalorder %s33, 1
      %p455 = por %p453, %p454
      %p456 = scmp.ne.s32.totalorder %s445, %s446
      %p457 = scmp.eq.s32.totalorder %s33, 0
      %p458 = por %p456, %p457
      %p459 = scmp.ne.s32.totalorder %s445, %s446
      %p460 = scmp.eq.s32.totalorder %s34, 1
      %p461 = por %p459, %p460
      %p463 = scmp.ne.s32.totalorder %s446, %s462
      %p464 = scmp.eq.s32.totalorder %s34, 0
      %p465 = por %p463, %p464
      %p466 = scmp.le.s32.totalorder 1, %s28
      %p467 = scmp.lt.s32.totalorder %s28, 3
      %p468 = pnand %p466, %p467
      %p469 = pneg %p468
      // Predicated region
      $region9: #{forward.1} parent=5 // pred_check
        _
      $region10: #{forward.1} parent=5 // pred_check_branch
        %471 = sbr.rel (%p468) target = $region12
      $region11: #{forward.1} parent=5 // pred_region
        %s472 = ssub.s32 %s28, 1
        // Predicated region
        $region13: #{forward.1} parent=11 // pred_check
          %p473 = pneg %p75
        $region14: #{forward.1} parent=11 // pred_check_branch
          %475 = sbr.rel (%p473) target = $region16
        $region15: #{forward.1} parent=11 // pred_region
          _
        $region16: #{forward.1} parent=11 // pred_fallthru
          _
        // Predicated region
        $region17: #{forward.1} parent=11 // pred_check
          %p476 = pneg %p96
        $region18: #{forward.1} parent=11 // pred_check_branch
          %478 = sbr.rel (%p476) target = $region20
        $region19: #{forward.1} parent=11 // pred_region
          _
        $region20: #{forward.1} parent=11 // pred_fallthru
          _
        // Predicated region
        $region21: #{forward.1} parent=11 // pred_check
          %p479 = pneg %p117
        $region22: #{forward.1} parent=11 // pred_check_branch
          %481 = sbr.rel (%p479) target = $region24
        $region23: #{forward.1} parent=11 // pred_region
          _
        $region24: #{forward.1} parent=11 // pred_fallthru
          _
        // Predicated region
        $region25: #{forward.1} parent=11 // pred_check
          %p482 = pneg %p138
        $region26: #{forward.1} parent=11 // pred_check_branch
          %484 = sbr.rel (%p482) target = $region28
        $region27: #{forward.1} parent=11 // pred_region
          _
        $region28: #{forward.1} parent=11 // pred_fallthru
          _
        // Predicated region
        $region29: #{forward.1} parent=11 // pred_check
          %p485 = pneg %p159
        $region30: #{forward.1} parent=11 // pred_check_branch
          %487 = sbr.rel (%p485) target = $region32
        $region31: #{forward.1} parent=11 // pred_region
          _
        $region32: #{forward.1} parent=11 // pred_fallthru
          _
        // Predicated region
        $region33: #{forward.1} parent=11 // pred_check
          %p488 = pneg %p180
        $region34: #{forward.1} parent=11 // pred_check_branch
          %490 = sbr.rel (%p488) target = $region36
        $region35: #{forward.1} parent=11 // pred_region
          _
        $region36: #{forward.1} parent=11 // pred_fallthru
          _
        // Predicated region
        $region37: #{forward.1} parent=11 // pred_check
          %p491 = pneg %p201
        $region38: #{forward.1} parent=11 // pred_check_branch
          %493 = sbr.rel (%p491) target = $region40
        $region39: #{forward.1} parent=11 // pred_region
          _
        $region40: #{forward.1} parent=11 // pred_fallthru
          _
        // Predicated region
        $region41: #{forward.1} parent=11 // pred_check
          %p494 = pneg %p222
        $region42: #{forward.1} parent=11 // pred_check_branch
          %496 = sbr.rel (%p494) target = $region44
        $region43: #{forward.1} parent=11 // pred_region
          _
        $region44: #{forward.1} parent=11 // pred_fallthru
          _
        // Predicated region
        $region45: #{forward.1} parent=11 // pred_check
          %p497 = pneg %p243
        $region46: #{forward.1} parent=11 // pred_check_branch
          %499 = sbr.rel (%p497) target = $region48
        $region47: #{forward.1} parent=11 // pred_region
          _
        $region48: #{forward.1} parent=11 // pred_fallthru
          _
        // Predicated region
        $region49: #{forward.1} parent=11 // pred_check
          %p500 = pneg %p264
        $region50: #{forward.1} parent=11 // pred_check_branch
          %502 = sbr.rel (%p500) target = $region52
        $region51: #{forward.1} parent=11 // pred_region
          _
        $region52: #{forward.1} parent=11 // pred_fallthru
          _
        // Predicated region
        $region53: #{forward.1} parent=11 // pred_check
          %p503 = pneg %p285
        $region54: #{forward.1} parent=11 // pred_check_branch
          %505 = sbr.rel (%p503) target = $region56
        $region55: #{forward.1} parent=11 // pred_region
          _
        $region56: #{forward.1} parent=11 // pred_fallthru
          _
        // Predicated region
        $region57: #{forward.1} parent=11 // pred_check
          %p506 = pneg %p306
        $region58: #{forward.1} parent=11 // pred_check_branch
          %508 = sbr.rel (%p506) target = $region60
        $region59: #{forward.1} parent=11 // pred_region
          _
        $region60: #{forward.1} parent=11 // pred_fallthru
          _
        // Predicated region
        $region61: #{forward.1} parent=11 // pred_check
          %p509 = pneg %p327
        $region62: #{forward.1} parent=11 // pred_check_branch
          %511 = sbr.rel (%p509) target = $region64
        $region63: #{forward.1} parent=11 // pred_region
          _
        $region64: #{forward.1} parent=11 // pred_fallthru
          _
        // Predicated region
        $region65: #{forward.1} parent=11 // pred_check
          %p512 = pneg %p348
        $region66: #{forward.1} parent=11 // pred_check_branch
          %514 = sbr.rel (%p512) target = $region68
        $region67: #{forward.1} parent=11 // pred_region
          _
        $region68: #{forward.1} parent=11 // pred_fallthru
          _
        // Predicated region
        $region69: #{forward.1} parent=11 // pred_check
          %p515 = pneg %p369
        $region70: #{forward.1} parent=11 // pred_check_branch
          %517 = sbr.rel (%p515) target = $region72
        $region71: #{forward.1} parent=11 // pred_region
          _
        $region72: #{forward.1} parent=11 // pred_fallthru
          _
        // Predicated region
        $region73: #{forward.1} parent=11 // pred_check
          %p518 = pneg %p390
        $region74: #{forward.1} parent=11 // pred_check_branch
          %520 = sbr.rel (%p518) target = $region76
        $region75: #{forward.1} parent=11 // pred_region
          _
        $region76: #{forward.1} parent=11 // pred_fallthru
          _
        // Predicated region
        $region77: #{forward.1} parent=11 // pred_check
          %p521 = pneg %p411
        $region78: #{forward.1} parent=11 // pred_check_branch
          %523 = sbr.rel (%p521) target = $region80
        $region79: #{forward.1} parent=11 // pred_region
          _
        $region80: #{forward.1} parent=11 // pred_fallthru
          _
        // Predicated region
        $region81: #{forward.1} parent=11 // pred_check
          %p524 = pneg %p432
        $region82: #{forward.1} parent=11 // pred_check_branch
          %526 = sbr.rel (%p524) target = $region84
        $region83: #{forward.1} parent=11 // pred_region
          _
        $region84: #{forward.1} parent=11 // pred_fallthru
          _
      $region12: #{forward.1} parent=5 // pred_fallthru
        _
      %p527 = scmp.lt.s32.totalorder %s28, 2
      // Predicated region
      $region85: #{forward.1} parent=5 // pred_check
        %p528 = pneg %p527
      $region86: #{forward.1} parent=5 // pred_check_branch
        %530 = sbr.rel (%p528) target = $region88
      $region87: #{forward.1} parent=5 // pred_region
        // Predicated region
        $region89: #{forward.1} parent=87 // pred_check
          %p531 = pneg %p48
        $region90: #{forward.1} parent=87 // pred_check_branch
          %533 = sbr.rel (%p531) target = $region92
        $region91: #{forward.1} parent=87 // pred_region
          %p534 = scmp.lt.s32.totalorder %s28, 1
          %s535 = scalar_select %p534, %s28, 1
          %s536 = smul.addr %s535, 8
          %s537 = scalar_lea.vmem %s0, %s536
        $region92: #{forward.1} parent=87 // pred_fallthru
          _
      $region88: #{forward.1} parent=5 // pred_fallthru
        _
      %p538 = scmp.le.s32.totalorder 1, %s28
      %p539 = scmp.lt.s32.totalorder %s28, 3
      %p540 = pnand %p538, %p539
      %p541 = pneg %p540
      // Predicated region
      $region93: #{forward.1} parent=5 // pred_check
        _
      $region94: #{forward.1} parent=5 // pred_check_branch
        %543 = sbr.rel (%p540) target = $region96
      $region95: #{forward.1} parent=5 // pred_region
        %s544 = ssub.s32 %s28, 1
        %p545 = scmp.lt.s32.totalorder %s33, 1
        %s546 = scalar_select %p545, %s33, 1
        %s547 = smul.addr %s546, 8
        %s548 = scalar_lea.vmem %s0, %s547
        %p549 = pneg %p54
        %p550 = pneg %p51
        %p551 = pneg %p75
        %p552 = pneg %p72
        %p553 = pneg %p96
        %p554 = pneg %p93
        %p555 = pneg %p117
        %p556 = pneg %p114
        %p557 = pneg %p138
        %p558 = pneg %p135
        %p559 = pneg %p159
        %p560 = pneg %p156
        %p561 = pneg %p180
        %p562 = pneg %p177
        %p563 = pneg %p201
        %p564 = pneg %p198
        %p565 = pneg %p222
        %p566 = pneg %p219
        %p567 = pneg %p243
        %p568 = pneg %p240
        %p569 = pneg %p264
        %p570 = pneg %p261
        %p571 = pneg %p285
        %p572 = pneg %p282
        %p573 = pneg %p306
        %p574 = pneg %p303
        %p575 = pneg %p327
        %p576 = pneg %p324
        %p577 = pneg %p348
        %p578 = pneg %p345
        %p579 = pneg %p369
        %p580 = pneg %p366
        %p581 = pneg %p390
        %p582 = pneg %p387
        %p583 = pneg %p411
        %p584 = pneg %p408
        %p585 = pneg %p432
        %p586 = pneg %p429
        %p587 = pneg %p458
        %p588 = pneg %p455
        %s589 = sand.u32 %s445, 1
        %s590 = scalar_lea.sflag [#allocation3], %s589
        %s591 = sand.u32 %s445, 1
        %s592 = scalar_lea.vmem [#allocation2], %s591
        %p593 = scmp.lt.s32.totalorder %s33, 1
        %s594 = scalar_select %p593, %s33, 1
        %s595 = smul.addr %s594, 8
        %s596 = scalar_lea.vmem %s0, %s595
        %v597 = vld [vmem:[%s596] sm:$0xff]
        %v598 = vld [vmem:[%s1] sm:$0xff]
        %v599 = vadd.f32 %v597, %v598
        %v600 = vlaneseq
        %v601 = vshrl.u32 %v600, 7
        %v602 = vlaneseq
        %v603 = vand.u32 %v602, 127
        %vm604 = vcmp.ge.s32.totalorder %v601, %v603
        %v605 = vsel %vm604, 0.0, -1e+30
        %v606 = vld [vmem:[%s2] sm:$0x1]
        %v607 = vld [vmem:[%s3] sm:$0x1]
        %vm608 = vcmask 261120
        %v609 = vsel %vm608, %v599, 0.0
        %610 = vadd.xlane.f32.xlu0 %v609
        %v611 = vpop.xlane.xlu0 %610
        %v612 = vrcp.pop 32.0
        %v613 = vmul.f32 %v611, %v612
        %v614 = vsub.f32 %v599, %v613
        %v615 = vmul.f32 %v614, %v614
        %v616 = vsel %vm608, %v615, 0.0
        %617 = vadd.xlane.f32.xlu0 %v616
        %v618 = vpop.xlane.xlu0 %617
        %v619 = vmul.f32 %v618, %v612
        %v620 = vadd.f32 %v619, 1e-05
        %v621 = vrsqrt.pop %v620
        %v622 = vmul.f32 %v614, %v621
        %v624 = vlaneseq
        %v625 = vshrl.u32 %v624, 7
        %v626 = vsub.s32 0, %v625
        %v627 = vrot.slane %v606, %v626
        %v629 = vmul.f32 %v622, %v627
        %v631 = vlaneseq
        %v632 = vshrl.u32 %v631, 7
        %v633 = vsub.s32 0, %v632
        %v634 = vrot.slane %v607, %v633
        %v636 = vadd.f32 %v629, %v634
        %v637 = vld [vmem:[%s4] sm:$0xff]
        %v638 = vld [vmem:[%s4 + $0x8] sm:$0xff]
        %v639 = vld [vmem:[%s4 + $0x10] sm:$0xff]
        %v640 = vld [vmem:[%s4 + $0x18] sm:$0xff]
        %v641 = vld [vmem:[%s4 + $0x20] sm:$0xff]
        %v642 = vld [vmem:[%s4 + $0x28] sm:$0xff]
        %v643 = vld [vmem:[%s4 + $0x30] sm:$0xff]
        %v644 = vld [vmem:[%s4 + $0x38] sm:$0xff]
        %v645 = vld [vmem:[%s4 + $0x40] sm:$0xff]
        %v646 = vld [vmem:[%s4 + $0x48] sm:$0xff]
        %v647 = vld [vmem:[%s4 + $0x50] sm:$0xff]
        %v648 = vld [vmem:[%s4 + $0x58] sm:$0xff]
        %v649 = vld [vmem:[%s4 + $0x60] sm:$0xff]
        %v650 = vld [vmem:[%s4 + $0x68] sm:$0xff]
        %v651 = vld [vmem:[%s4 + $0x70] sm:$0xff]
        %v652 = vld [vmem:[%s4 + $0x78] sm:$0xff]
        %v653 = vld [vmem:[%s4 + $0x80] sm:$0xff]
        %v654 = vld [vmem:[%s4 + $0x88] sm:$0xff]
        %v655 = vld [vmem:[%s4 + $0x90] sm:$0xff]
        %v656 = vld [vmem:[%s4 + $0x98] sm:$0xff]
        %v657 = vld [vmem:[%s4 + $0xa0] sm:$0xff]
        %v658 = vld [vmem:[%s4 + $0xa8] sm:$0xff]
        %v659 = vld [vmem:[%s4 + $0xb0] sm:$0xff]
        %v660 = vld [vmem:[%s4 + $0xb8] sm:$0xff]
        %v661 = vld [vmem:[%s4 + $0xc0] sm:$0xff]
        %v662 = vld [vmem:[%s4 + $0xc8] sm:$0xff]
        %v663 = vld [vmem:[%s4 + $0xd0] sm:$0xff]
        %v664 = vld [vmem:[%s4 + $0xd8] sm:$0xff]
        %v665 = vld [vmem:[%s4 + $0xe0] sm:$0xff]
        %v666 = vld [vmem:[%s4 + $0xe8] sm:$0xff]
        %v667 = vld [vmem:[%s4 + $0xf0] sm:$0xff]
        %v668 = vld [vmem:[%s4 + $0xf8] sm:$0xff]
        %v669 = vld [vmem:[%s4 + $0x100] sm:$0xff]
        %v670 = vld [vmem:[%s4 + $0x108] sm:$0xff]
        %v671 = vld [vmem:[%s4 + $0x110] sm:$0xff]
        %v672 = vld [vmem:[%s4 + $0x118] sm:$0xff]
        %v673 = vld [vmem:[%s4 + $0x120] sm:$0xff]
        %v674 = vld [vmem:[%s4 + $0x128] sm:$0xff]
        %v675 = vld [vmem:[%s4 + $0x130] sm:$0xff]
        %v676 = vld [vmem:[%s4 + $0x138] sm:$0xff]
        %v677 = vld [vmem:[%s4 + $0x140] sm:$0xff]
        %v678 = vld [vmem:[%s4 + $0x148] sm:$0xff]
        %v679 = vld [vmem:[%s4 + $0x150] sm:$0xff]
        %v680 = vld [vmem:[%s4 + $0x158] sm:$0xff]
        %v681 = vld [vmem:[%s4 + $0x160] sm:$0xff]
        %v682 = vld [vmem:[%s4 + $0x168] sm:$0xff]
        %v683 = vld [vmem:[%s4 + $0x170] sm:$0xff]
        %v684 = vld [vmem:[%s4 + $0x178] sm:$0xff]
        %v685 = vld [vmem:[%s5] sm:$0x1]
        %v686 = vld [vmem:[%s5 + $0x1] sm:$0x1]
        %v687 = vld [vmem:[%s5 + $0x2] sm:$0x1]
        %v688 = vld [vmem:[%s5 + $0x3] sm:$0x1]
        %v689 = vld [vmem:[%s5 + $0x4] sm:$0x1]
        %v690 = vld [vmem:[%s5 + $0x5] sm:$0x1]
        %v691 = vld [vmem:[%s5 + $0x6] sm:$0x1]
        %v692 = vld [vmem:[%s5 + $0x7] sm:$0x1]
        %v693 = vld [vmem:[%s5 + $0x8] sm:$0x1]
        %v694 = vld [vmem:[%s5 + $0x9] sm:$0x1]
        %v695 = vld [vmem:[%s5 + $0xa] sm:$0x1]
        %v696 = vld [vmem:[%s5 + $0xb] sm:$0x1]
        %v697 = vld [vmem:[%s6] sm:$0xff]
        %v698 = vld [vmem:[%s6 + $0x8] sm:$0xff]
        %v699 = vld [vmem:[%s6 + $0x10] sm:$0xff]
        %v700 = vld [vmem:[%s6 + $0x18] sm:$0xff]
        %v701 = vld [vmem:[%s7] sm:$0x1]
        %v714 = vlaneseq
        %v715 = vshrl.u32 %v714, 7
        %v716 = vsub.s32 0, %v715
        %v717 = vrot.slane %v685, %v716
        %v718 = vlaneseq
        %v719 = vshrl.u32 %v718, 7
        %v720 = vsub.s32 0, %v719
        %v721 = vrot.slane %v686, %v720
        %v722 = vlaneseq
        %v723 = vshrl.u32 %v722, 7
        %v724 = vsub.s32 0, %v723
        %v725 = vrot.slane %v687, %v724
        %v726 = vlaneseq
        %v727 = vshrl.u32 %v726, 7
        %v728 = vsub.s32 0, %v727
        %v729 = vrot.slane %v688, %v728
        %v730 = vlaneseq
        %v731 = vshrl.u32 %v730, 7
        %v732 = vsub.s32 0, %v731
        %v733 = vrot.slane %v689, %v732
        %v734 = vlaneseq
        %v735 = vshrl.u32 %v734, 7
        %v736 = vsub.s32 0, %v735
        %v737 = vrot.slane %v690, %v736
        %v738 = vlaneseq
        %v739 = vshrl.u32 %v738, 7
        %v740 = vsub.s32 0, %v739
        %v741 = vrot.slane %v691, %v740
        %v742 = vlaneseq
        %v743 = vshrl.u32 %v742, 7
        %v744 = vsub.s32 0, %v743
        %v745 = vrot.slane %v692, %v744
        %v746 = vlaneseq
        %v747 = vshrl.u32 %v746, 7
        %v748 = vsub.s32 0, %v747
        %v749 = vrot.slane %v693, %v748
        %v750 = vlaneseq
        %v751 = vshrl.u32 %v750, 7
        %v752 = vsub.s32 0, %v751
        %v753 = vrot.slane %v694, %v752
        %v754 = vlaneseq
        %v755 = vshrl.u32 %v754, 7
        %v756 = vsub.s32 0, %v755
        %v757 = vrot.slane %v695, %v756
        %v758 = vlaneseq
        %v759 = vshrl.u32 %v758, 7
        %v760 = vsub.s32 0, %v759
        %v761 = vrot.slane %v696, %v760
        %v775 = vsel %vm608, %v636, 0
        %777 = vmatprep.subr.mxu0 0.0
        %778 = vmatpush1.msra.mxu0 %v637
        %779 = vmatprep.subr.mxu0 0.0
        %780 = vmatpush1.msra.mxu0 %v638
        %781 = vmatprep.subr.mxu0 0.0
        %782 = vmatpush1.msra.mxu0 %v639
        %783 = vmatprep.subr.mxu0 0.0
        %784 = vmatpush1.msra.mxu0 %v640
        %785 = vmatprep.subr.mxu0 0.0
        %786 = vmatpush1.msra.mxu0 0.0
        %787 = vmatprep.subr.mxu0 0.0
        %788 = vmatpush1.msra.mxu0 0.0
        %789 = vmatprep.subr.mxu0 0.0
        %790 = vmatpush1.msra.mxu0 0.0
        %791 = vmatprep.subr.mxu0 0.0
        %792 = vmatpush1.msra.mxu0 0.0
        %793 = vmatprep.subr.mxu0 0.0
        %794 = vmatpush1.msra.mxu0 0.0
        %795 = vmatprep.subr.mxu0 0.0
        %796 = vmatpush1.msra.mxu0 0.0
        %797 = vmatprep.subr.mxu0 0.0
        %798 = vmatpush1.msra.mxu0 0.0
        %799 = vmatprep.subr.mxu0 0.0
        %800 = vmatpush1.msra.mxu0 0.0
        %801 = vmatprep.subr.mxu0 0.0
        %802 = vmatpush1.msra.mxu0 0.0
        %803 = vmatprep.subr.mxu0 0.0
        %804 = vmatpush1.msra.mxu0 0.0
        %805 = vmatprep.subr.mxu0 0.0
        %806 = vmatpush1.msra.mxu0 0.0
        %807 = vmatprep.subr.mxu0 0.0
        %808 = vmatpush1.msra.mxu0 0.0
        %809 = vmatprep.subr.mxu0 0.0
        %810 = vmatpush1.msra.mxu0 0.0
        %811 = vmatprep.subr.mxu0 0.0
        %812 = vmatpush1.msra.mxu0 0.0
        %813 = vmatprep.subr.mxu0 0.0
        %814 = vmatpush1.msra.mxu0 0.0
        %815 = vmatprep.subr.mxu0 0.0
        %816 = vmatpush1.msra.mxu0 0.0
        %817 = vmatprep.subr.mxu0 0.0
        %818 = vmatpush1.msra.mxu0 0.0
        %819 = vmatprep.subr.mxu0 0.0
        %820 = vmatpush1.msra.mxu0 0.0
        %821 = vmatprep.subr.mxu0 0.0
        %822 = vmatpush1.msra.mxu0 0.0
        %823 = vmatprep.subr.mxu0 0.0
        %824 = vmatpush1.msra.mxu0 0.0
        %825 = vmatprep.subr.mxu0 0.0
        %826 = vmatpush1.msra.mxu0 0.0
        %827 = vmatprep.subr.mxu0 0.0
        %828 = vmatpush1.msra.mxu0 0.0
        %829 = vmatprep.subr.mxu0 0.0
        %830 = vmatpush1.msra.mxu0 0.0
        %831 = vmatprep.subr.mxu0 0.0
        %832 = vmatpush1.msra.mxu0 0.0
        %833 = vmatprep.subr.mxu0 0.0
        %834 = vmatpush1.msra.mxu0 0.0
        %835 = vmatprep.subr.mxu0 0.0
        %836 = vmatpush1.msra.mxu0 0.0
        %837 = vmatprep.subr.mxu0 0.0
        %838 = vmatpush1.msra.mxu0 0.0
        %839 = vmatprep.subr.mxu0 0.0
        %840 = vmatpush1.msra.mxu0 0.0
        %841 = vmatprep.mubr.f32.mxu0 0.0
        %842 = vmatmul.mubr.f32.gmra.mrb[0].mxu0 %v775
        %v843 = vpop.f32.mrb[0].mxu0
        %v844 = vadd.f32 %v717, %v843
        %v845 = vpop.f32.mrb[0].mxu0
        %846 = vdwg.mxu0
        %847 = vmatprep.subr.mxu0 0.0
        %848 = vmatpush1.msra.mxu0 %v641
        %849 = vmatprep.subr.mxu0 0.0
        %850 = vmatpush1.msra.mxu0 %v642
        %851 = vmatprep.subr.mxu0 0.0
        %852 = vmatpush1.msra.mxu0 %v643
        %853 = vmatprep.subr.mxu0 0.0
        %854 = vmatpush1.msra.mxu0 %v644
        %855 = vmatprep.subr.mxu0 0.0
        %856 = vmatpush1.msra.mxu0 0.0
        %857 = vmatprep.subr.mxu0 0.0
        %858 = vmatpush1.msra.mxu0 0.0
        %859 = vmatprep.subr.mxu0 0.0
        %860 = vmatpush1.msra.mxu0 0.0
        %861 = vmatprep.subr.mxu0 0.0
        %862 = vmatpush1.msra.mxu0 0.0
        %863 = vmatprep.subr.mxu0 0.0
        %864 = vmatpush1.msra.mxu0 0.0
        %865 = vmatprep.subr.mxu0 0.0
        %866 = vmatpush1.msra.mxu0 0.0
        %867 = vmatprep.subr.mxu0 0.0
        %868 = vmatpush1.msra.mxu0 0.0
        %869 = vmatprep.subr.mxu0 0.0
        %870 = vmatpush1.msra.mxu0 0.0
        %871 = vmatprep.subr.mxu0 0.0
        %872 = vmatpush1.msra.mxu0 0.0
        %873 = vmatprep.subr.mxu0 0.0
        %874 = vmatpush1.msra.mxu0 0.0
        %875 = vmatprep.subr.mxu0 0.0
        %876 = vmatpush1.msra.mxu0 0.0
        %877 = vmatprep.subr.mxu0 0.0
        %878 = vmatpush1.msra.mxu0 0.0
        %879 = vmatprep.subr.mxu0 0.0
        %880 = vmatpush1.msra.mxu0 0.0
        %881 = vmatprep.subr.mxu0 0.0
        %882 = vmatpush1.msra.mxu0 0.0
        %883 = vmatprep.subr.mxu0 0.0
        %884 = vmatpush1.msra.mxu0 0.0
        %885 = vmatprep.subr.mxu0 0.0
        %886 = vmatpush1.msra.mxu0 0.0
        %887 = vmatprep.subr.mxu0 0.0
        %888 = vmatpush1.msra.mxu0 0.0
        %889 = vmatprep.subr.mxu0 0.0
        %890 = vmatpush1.msra.mxu0 0.0
        %891 = vmatprep.subr.mxu0 0.0
        %892 = vmatpush1.msra.mxu0 0.0
        %893 = vmatprep.subr.mxu0 0.0
        %894 = vmatpush1.msra.mxu0 0.0
        %895 = vmatprep.subr.mxu0 0.0
        %896 = vmatpush1.msra.mxu0 0.0
        %897 = vmatprep.subr.mxu0 0.0
        %898 = vmatpush1.msra.mxu0 0.0
        %899 = vmatprep.subr.mxu0 0.0
        %900 = vmatpush1.msra.mxu0 0.0
        %901 = vmatprep.subr.mxu0 0.0
        %902 = vmatpush1.msra.mxu0 0.0
        %903 = vmatprep.subr.mxu0 0.0
        %904 = vmatpush1.msra.mxu0 0.0
        %905 = vmatprep.subr.mxu0 0.0
        %906 = vmatpush1.msra.mxu0 0.0
        %907 = vmatprep.subr.mxu0 0.0
        %908 = vmatpush1.msra.mxu0 0.0
        %909 = vmatprep.subr.mxu0 0.0
        %910 = vmatpush1.msra.mxu0 0.0
        %911 = vmatprep.mubr.f32.mxu0 0.0
        %912 = vmatmul.mubr.f32.gmra.mrb[0].mxu0 %v775
        %v913 = vpop.f32.mrb[0].mxu0
        %v914 = vadd.f32 %v721, %v913
        %v915 = vpop.f32.mrb[0].mxu0
        %916 = vdwg.mxu0
        %917 = vmatprep.subr.mxu0 0.0
        %918 = vmatpush1.msra.mxu0 %v645
        %919 = vmatprep.subr.mxu0 0.0
        %920 = vmatpush1.msra.mxu0 %v646
        %921 = vmatprep.subr.mxu0 0.0
        %922 = vmatpush1.msra.mxu0 %v647
        %923 = vmatprep.subr.mxu0 0.0
        %924 = vmatpush1.msra.mxu0 %v648
        %925 = vmatprep.subr.mxu0 0.0
        %926 = vmatpush1.msra.mxu0 0.0
        %927 = vmatprep.subr.mxu0 0.0
        %928 = vmatpush1.msra.mxu0 0.0
        %929 = vmatprep.subr.mxu0 0.0
        %930 = vmatpush1.msra.mxu0 0.0
        %931 = vmatprep.subr.mxu0 0.0
        %932 = vmatpush1.msra.mxu0 0.0
        %933 = vmatprep.subr.mxu0 0.0
        %934 = vmatpush1.msra.mxu0 0.0
        %935 = vmatprep.subr.mxu0 0.0
        %936 = vmatpush1.msra.mxu0 0.0
        %937 = vmatprep.subr.mxu0 0.0
        %938 = vmatpush1.msra.mxu0 0.0
        %939 = vmatprep.subr.mxu0 0.0
        %940 = vmatpush1.msra.mxu0 0.0
        %941 = vmatprep.subr.mxu0 0.0
        %942 = vmatpush1.msra.mxu0 0.0
        %943 = vmatprep.subr.mxu0 0.0
        %944 = vmatpush1.msra.mxu0 0.0
        %945 = vmatprep.subr.mxu0 0.0
        %946 = vmatpush1.msra.mxu0 0.0
        %947 = vmatprep.subr.mxu0 0.0
        %948 = vmatpush1.msra.mxu0 0.0
        %949 = vmatprep.subr.mxu0 0.0
        %950 = vmatpush1.msra.mxu0 0.0
        %951 = vmatprep.subr.mxu0 0.0
        %952 = vmatpush1.msra.mxu0 0.0
        %953 = vmatprep.subr.mxu0 0.0
        %954 = vmatpush1.msra.mxu0 0.0
        %955 = vmatprep.subr.mxu0 0.0
        %956 = vmatpush1.msra.mxu0 0.0
        %957 = vmatprep.subr.mxu0 0.0
        %958 = vmatpush1.msra.mxu0 0.0
        %959 = vmatprep.subr.mxu0 0.0
        %960 = vmatpush1.msra.mxu0 0.0
        %961 = vmatprep.subr.mxu0 0.0
        %962 = vmatpush1.msra.mxu0 0.0
        %963 = vmatprep.subr.mxu0 0.0
        %964 = vmatpush1.msra.mxu0 0.0
        %965 = vmatprep.subr.mxu0 0.0
        %966 = vmatpush1.msra.mxu0 0.0
        %967 = vmatprep.subr.mxu0 0.0
        %968 = vmatpush1.msra.mxu0 0.0
        %969 = vmatprep.subr.mxu0 0.0
        %970 = vmatpush1.msra.mxu0 0.0
        %971 = vmatprep.subr.mxu0 0.0
        %972 = vmatpush1.msra.mxu0 0.0
        %973 = vmatprep.subr.mxu0 0.0
        %974 = vmatpush1.msra.mxu0 0.0
        %975 = vmatprep.subr.mxu0 0.0
        %976 = vmatpush1.msra.mxu0 0.0
        %977 = vmatprep.subr.mxu0 0.0
        %978 = vmatpush1.msra.mxu0 0.0
        %979 = vmatprep.subr.mxu0 0.0
        %980 = vmatpush1.msra.mxu0 0.0
        %981 = vmatprep.mubr.f32.mxu0 0.0
        %982 = vmatmul.mubr.f32.gmra.mrb[0].mxu0 %v775
        %v983 = vpop.f32.mrb[0].mxu0
        %v984 = vadd.f32 %v725, %v983
        %v985 = vpop.f32.mrb[0].mxu0
        %986 = vdwg.mxu0
        %987 = vmatprep.subr.mxu0 0.0
        %988 = vmatpush1.msra.mxu0 %v649
        %989 = vmatprep.subr.mxu0 0.0
        %990 = vmatpush1.msra.mxu0 %v650
        %991 = vmatprep.subr.mxu0 0.0
        %992 = vmatpush1.msra.mxu0 %v651
        %993 = vmatprep.subr.mxu0 0.0
        %994 = vmatpush1.msra.mxu0 %v652
        %995 = vmatprep.subr.mxu0 0.0
        %996 = vmatpush1.msra.mxu0 0.0
        %997 = vmatprep.subr.mxu0 0.0
        %998 = vmatpush1.msra.mxu0 0.0
        %999 = vmatprep.subr.mxu0 0.0
        %1000 = vmatpush1.msra.mxu0 0.0
        %1001 = vmatprep.subr.mxu0 0.0
        %1002 = vmatpush1.msra.mxu0 0.0
        %1003 = vmatprep.subr.mxu0 0.0
        %1004 = vmatpush1.msra.mxu0 0.0
        %1005 = vmatprep.subr.mxu0 0.0
        %1006 = vmatpush1.msra.mxu0 0.0
        %1007 = vmatprep.subr.mxu0 0.0
        %1008 = vmatpush1.msra.mxu0 0.0
        %1009 = vmatprep.subr.mxu0 0.0
        %1010 = vmatpush1.msra.mxu0 0.0
        %1011 = vmatprep.subr.mxu0 0.0
        %1012 = vmatpush1.msra.mxu0 0.0
        %1013 = vmatprep.subr.mxu0 0.0
        %1014 = vmatpush1.msra.mxu0 0.0
        %1015 = vmatprep.subr.mxu0 0.0
        %1016 = vmatpush1.msra.mxu0 0.0
        %1017 = vmatprep.subr.mxu0 0.0
        %1018 = vmatpush1.msra.mxu0 0.0
        %1019 = vmatprep.subr.mxu0 0.0
        %1020 = vmatpush1.msra.mxu0 0.0
        %1021 = vmatprep.subr.mxu0 0.0
        %1022 = vmatpush1.msra.mxu0 0.0
        %1023 = vmatprep.subr.mxu0 0.0
        %1024 = vmatpush1.msra.mxu0 0.0
        %1025 = vmatprep.subr.mxu0 0.0
        %1026 = vmatpush1.msra.mxu0 0.0
        %1027 = vmatprep.subr.mxu0 0.0
        %1028 = vmatpush1.msra.mxu0 0.0
        %1029 = vmatprep.subr.mxu0 0.0
        %1030 = vmatpush1.msra.mxu0 0.0
        %1031 = vmatprep.subr.mxu0 0.0
        %1032 = vmatpush1.msra.mxu0 0.0
        %1033 = vmatprep.subr.mxu0 0.0
        %1034 = vmatpush1.msra.mxu0 0.0
        %1035 = vmatprep.subr.mxu0 0.0
        %1036 = vmatpush1.msra.mxu0 0.0
        %1037 = vmatprep.subr.mxu0 0.0
        %1038 = vmatpush1.msra.mxu0 0.0
        %1039 = vmatprep.subr.mxu0 0.0
        %1040 = vmatpush1.msra.mxu0 0.0
        %1041 = vmatprep.subr.mxu0 0.0
        %1042 = vmatpush1.msra.mxu0 0.0
        %1043 = vmatprep.subr.mxu0 0.0
        %1044 = vmatpush1.msra.mxu0 0.0
        %1045 = vmatprep.subr.mxu0 0.0
        %1046 = vmatpush1.msra.mxu0 0.0
        %1047 = vmatprep.subr.mxu0 0.0
        %1048 = vmatpush1.msra.mxu0 0.0
        %1049 = vmatprep.subr.mxu0 0.0
        %1050 = vmatpush1.msra.mxu0 0.0
        %1051 = vmatprep.mubr.f32.mxu0 0.0
        %1052 = vmatmul.mubr.f32.gmra.mrb[0].mxu0 %v775
        %v1053 = vpop.f32.mrb[0].mxu0
        %v1054 = vadd.f32 %v729, %v1053
        %v1055 = vpop.f32.mrb[0].mxu0
        %1056 = vdwg.mxu0
        %1057 = vmatprep.subr.mxu0 0.0
        %1058 = vmatpush1.msra.mxu0 %v653
        %1059 = vmatprep.subr.mxu0 0.0
        %1060 = vmatpush1.msra.mxu0 %v654
        %1061 = vmatprep.subr.mxu0 0.0
        %1062 = vmatpush1.msra.mxu0 %v655
        %1063 = vmatprep.subr.mxu0 0.0
        %1064 = vmatpush1.msra.mxu0 %v656
        %1065 = vmatprep.subr.mxu0 0.0
        %1066 = vmatpush1.msra.mxu0 0.0
        %1067 = vmatprep.subr.mxu0 0.0
        %1068 = vmatpush1.msra.mxu0 0.0
        %1069 = vmatprep.subr.mxu0 0.0
        %1070 = vmatpush1.msra.mxu0 0.0
        %1071 = vmatprep.subr.mxu0 0.0
        %1072 = vmatpush1.msra.mxu0 0.0
        %1073 = vmatprep.subr.mxu0 0.0
        %1074 = vmatpush1.msra.mxu0 0.0
        %1075 = vmatprep.subr.mxu0 0.0
        %1076 = vmatpush1.msra.mxu0 0.0
        %1077 = vmatprep.subr.mxu0 0.0
        %1078 = vmatpush1.msra.mxu0 0.0
        %1079 = vmatprep.subr.mxu0 0.0
        %1080 = vmatpush1.msra.mxu0 0.0
        %1081 = vmatprep.subr.mxu0 0.0
        %1082 = vmatpush1.msra.mxu0 0.0
        %1083 = vmatprep.subr.mxu0 0.0
        %1084 = vmatpush1.msra.mxu0 0.0
        %1085 = vmatprep.subr.mxu0 0.0
        %1086 = vmatpush1.msra.mxu0 0.0
        %1087 = vmatprep.subr.mxu0 0.0
        %1088 = vmatpush1.msra.mxu0 0.0
        %1089 = vmatprep.subr.mxu0 0.0
        %1090 = vmatpush1.msra.mxu0 0.0
        %1091 = vmatprep.subr.mxu0 0.0
        %1092 = vmatpush1.msra.mxu0 0.0
        %1093 = vmatprep.subr.mxu0 0.0
        %1094 = vmatpush1.msra.mxu0 0.0
        %1095 = vmatprep.subr.mxu0 0.0
        %1096 = vmatpush1.msra.mxu0 0.0
        %1097 = vmatprep.subr.mxu0 0.0
        %1098 = vmatpush1.msra.mxu0 0.0
        %1099 = vmatprep.subr.mxu0 0.0
        %1100 = vmatpush1.msra.mxu0 0.0
        %1101 = vmatprep.subr.mxu0 0.0
        %1102 = vmatpush1.msra.mxu0 0.0
        %1103 = vmatprep.subr.mxu0 0.0
        %1104 = vmatpush1.msra.mxu0 0.0
        %1105 = vmatprep.subr.mxu0 0.0
        %1106 = vmatpush1.msra.mxu0 0.0
        %1107 = vmatprep.subr.mxu0 0.0
        %1108 = vmatpush1.msra.mxu0 0.0
        %1109 = vmatprep.subr.mxu0 0.0
        %1110 = vmatpush1.msra.mxu0 0.0
        %1111 = vmatprep.subr.mxu0 0.0
        %1112 = vmatpush1.msra.mxu0 0.0
        %1113 = vmatprep.subr.mxu0 0.0
        %1114 = vmatpush1.msra.mxu0 0.0
        %1115 = vmatprep.subr.mxu0 0.0
        %1116 = vmatpush1.msra.mxu0 0.0
        %1117 = vmatprep.subr.mxu0 0.0
        %1118 = vmatpush1.msra.mxu0 0.0
        %1119 = vmatprep.subr.mxu0 0.0
        %1120 = vmatpush1.msra.mxu0 0.0
        %1121 = vmatprep.mubr.f32.mxu0 0.0
        %1122 = vmatmul.mubr.f32.gmra.mrb[0].mxu0 %v775
        %v1123 = vpop.f32.mrb[0].mxu0
        %v1124 = vadd.f32 %v733, %v1123
        %v1125 = vpop.f32.mrb[0].mxu0
        %1126 = vdwg.mxu0
        %1127 = vmatprep.subr.mxu0 0.0
        %1128 = vmatpush1.msra.mxu0 %v657
        %1129 = vmatprep.subr.mxu0 0.0
        %1130 = vmatpush1.msra.mxu0 %v658
        %1131 = vmatprep.subr.mxu0 0.0
        %1132 = vmatpush1.msra.mxu0 %v659
        %1133 = vmatprep.subr.mxu0 0.0
        %1134 = vmatpush1.msra.mxu0 %v660
        %1135 = vmatprep.subr.mxu0 0.0
        %1136 = vmatpush1.msra.mxu0 0.0
        %1137 = vmatprep.subr.mxu0 0.0
        %1138 = vmatpush1.msra.mxu0 0.0
        %1139 = vmatprep.subr.mxu0 0.0
        %1140 = vmatpush1.msra.mxu0 0.0
        %1141 = vmatprep.subr.mxu0 0.0
        %1142 = vmatpush1.msra.mxu0 0.0
        %1143 = vmatprep.subr.mxu0 0.0
        %1144 = vmatpush1.msra.mxu0 0.0
        %1145 = vmatprep.subr.mxu0 0.0
        %1146 = vmatpush1.msra.mxu0 0.0
        %1147 = vmatprep.subr.mxu0 0.0
        %1148 = vmatpush1.msra.mxu0 0.0
        %1149 = vmatprep.subr.mxu0 0.0
        %1150 = vmatpush1.msra.mxu0 0.0
        %1151 = vmatprep.subr.mxu0 0.0
        %1152 = vmatpush1.msra.mxu0 0.0
        %1153 = vmatprep.subr.mxu0 0.0
        %1154 = vmatpush1.msra.mxu0 0.0
        %1155 = vmatprep.subr.mxu0 0.0
        %1156 = vmatpush1.msra.mxu0 0.0
        %1157 = vmatprep.subr.mxu0 0.0
        %1158 = vmatpush1.msra.mxu0 0.0
        %1159 = vmatprep.subr.mxu0 0.0
        %1160 = vmatpush1.msra.mxu0 0.0
        %1161 = vmatprep.subr.mxu0 0.0
        %1162 = vmatpush1.msra.mxu0 0.0
        %1163 = vmatprep.subr.mxu0 0.0
        %1164 = vmatpush1.msra.mxu0 0.0
        %1165 = vmatprep.subr.mxu0 0.0
        %1166 = vmatpush1.msra.mxu0 0.0
        %1167 = vmatprep.subr.mxu0 0.0
        %1168 = vmatpush1.msra.mxu0 0.0
        %1169 = vmatprep.subr.mxu0 0.0
        %1170 = vmatpush1.msra.mxu0 0.0
        %1171 = vmatprep.subr.mxu0 0.0
        %1172 = vmatpush1.msra.mxu0 0.0
        %1173 = vmatprep.subr.mxu0 0.0
        %1174 = vmatpush1.msra.mxu0 0.0
        %1175 = vmatprep.subr.mxu0 0.0
        %1176 = vmatpush1.msra.mxu0 0.0
        %1177 = vmatprep.subr.mxu0 0.0
        %1178 = vmatpush1.msra.mxu0 0.0
        %1179 = vmatprep.subr.mxu0 0.0
        %1180 = vmatpush1.msra.mxu0 0.0
        %1181 = vmatprep.subr.mxu0 0.0
        %1182 = vmatpush1.msra.mxu0 0.0
        %1183 = vmatprep.subr.mxu0 0.0
        %1184 = vmatpush1.msra.mxu0 0.0
        %1185 = vmatprep.subr.mxu0 0.0
        %1186 = vmatpush1.msra.mxu0 0.0
        %1187 = vmatprep.subr.mxu0 0.0
        %1188 = vmatpush1.msra.mxu0 0.0
        %1189 = vmatprep.subr.mxu0 0.0
        %1190 = vmatpush1.msra.mxu0 0.0
        %1191 = vmatprep.mubr.f32.mxu0 0.0
        %1192 = vmatmul.mubr.f32.gmra.mrb[0].mxu0 %v775
        %v1193 = vpop.f32.mrb[0].mxu0
        %v1194 = vadd.f32 %v737, %v1193
        %v1195 = vpop.f32.mrb[0].mxu0
        %1196 = vdwg.mxu0
        %1197 = vmatprep.subr.mxu0 0.0
        %1198 = vmatpush1.msra.mxu0 %v661
        %1199 = vmatprep.subr.mxu0 0.0
        %1200 = vmatpush1.msra.mxu0 %v662
        %1201 = vmatprep.subr.mxu0 0.0
        %1202 = vmatpush1.msra.mxu0 %v663
        %1203 = vmatprep.subr.mxu0 0.0
        %1204 = vmatpush1.msra.mxu0 %v664
        %1205 = vmatprep.subr.mxu0 0.0
        %1206 = vmatpush1.msra.mxu0 0.0
        %1207 = vmatprep.subr.mxu0 0.0
        %1208 = vmatpush1.msra.mxu0 0.0
        %1209 = vmatprep.subr.mxu0 0.0
        %1210 = vmatpush1.msra.mxu0 0.0
        %1211 = vmatprep.subr.mxu0 0.0
        %1212 = vmatpush1.msra.mxu0 0.0
        %1213 = vmatprep.subr.mxu0 0.0
        %1214 = vmatpush1.msra.mxu0 0.0
        %1215 = vmatprep.subr.mxu0 0.0
        %1216 = vmatpush1.msra.mxu0 0.0
        %1217 = vmatprep.subr.mxu0 0.0
        %1218 = vmatpush1.msra.mxu0 0.0
        %1219 = vmatprep.subr.mxu0 0.0
        %1220 = vmatpush1.msra.mxu0 0.0
        %1221 = vmatprep.subr.mxu0 0.0
        %1222 = vmatpush1.msra.mxu0 0.0
        %1223 = vmatprep.subr.mxu0 0.0
        %1224 = vmatpush1.msra.mxu0 0.0
        %1225 = vmatprep.subr.mxu0 0.0
        %1226 = vmatpush1.msra.mxu0 0.0
        %1227 = vmatprep.subr.mxu0 0.0
        %1228 = vmatpush1.msra.mxu0 0.0
        %1229 = vmatprep.subr.mxu0 0.0
        %1230 = vmatpush1.msra.mxu0 0.0
        %1231 = vmatprep.subr.mxu0 0.0
        %1232 = vmatpush1.msra.mxu0 0.0
        %1233 = vmatprep.subr.mxu0 0.0
        %1234 = vmatpush1.msra.mxu0 0.0
        %1235 = vmatprep.subr.mxu0 0.0
        %1236 = vmatpush1.msra.mxu0 0.0
        %1237 = vmatprep.subr.mxu0 0.0
        %1238 = vmatpush1.msra.mxu0 0.0
        %1239 = vmatprep.subr.mxu0 0.0
        %1240 = vmatpush1.msra.mxu0 0.0
        %1241 = vmatprep.subr.mxu0 0.0
        %1242 = vmatpush1.msra.mxu0 0.0
        %1243 = vmatprep.subr.mxu0 0.0
        %1244 = vmatpush1.msra.mxu0 0.0
        %1245 = vmatprep.subr.mxu0 0.0
        %1246 = vmatpush1.msra.mxu0 0.0
        %1247 = vmatprep.subr.mxu0 0.0
        %1248 = vmatpush1.msra.mxu0 0.0
        %1249 = vmatprep.subr.mxu0 0.0
        %1250 = vmatpush1.msra.mxu0 0.0
        %1251 = vmatprep.subr.mxu0 0.0
        %1252 = vmatpush1.msra.mxu0 0.0
        %1253 = vmatprep.subr.mxu0 0.0
        %1254 = vmatpush1.msra.mxu0 0.0
        %1255 = vmatprep.subr.mxu0 0.0
        %1256 = vmatpush1.msra.mxu0 0.0
        %1257 = vmatprep.subr.mxu0 0.0
        %1258 = vmatpush1.msra.mxu0 0.0
        %1259 = vmatprep.subr.mxu0 0.0
        %1260 = vmatpush1.msra.mxu0 0.0
        %1261 = vmatprep.mubr.f32.mxu0 0.0
        %1262 = vmatmul.mubr.f32.gmra.mrb[0].mxu0 %v775
        %v1263 = vpop.f32.mrb[0].mxu0
        %v1264 = vadd.f32 %v741, %v1263
        %v1265 = vpop.f32.mrb[0].mxu0
        %1266 = vdwg.mxu0
        %1267 = vmatprep.subr.mxu0 0.0
        %1268 = vmatpush1.msra.mxu0 %v665
        %1269 = vmatprep.subr.mxu0 0.0
        %1270 = vmatpush1.msra.mxu0 %v666
        %1271 = vmatprep.subr.mxu0 0.0
        %1272 = vmatpush1.msra.mxu0 %v667
        %1273 = vmatprep.subr.mxu0 0.0
        %1274 = vmatpush1.msra.mxu0 %v668
        %1275 = vmatprep.subr.mxu0 0.0
        %1276 = vmatpush1.msra.mxu0 0.0
        %1277 = vmatprep.subr.mxu0 0.0
        %1278 = vmatpush1.msra.mxu0 0.0
        %1279 = vmatprep.subr.mxu0 0.0
        %1280 = vmatpush1.msra.mxu0 0.0
        %1281 = vmatprep.subr.mxu0 0.0
        %1282 = vmatpush1.msra.mxu0 0.0
        %1283 = vmatprep.subr.mxu0 0.0
        %1284 = vmatpush1.msra.mxu0 0.0
        %1285 = vmatprep.subr.mxu0 0.0
        %1286 = vmatpush1.msra.mxu0 0.0
        %1287 = vmatprep.subr.mxu0 0.0
        %1288 = vmatpush1.msra.mxu0 0.0
        %1289 = vmatprep.subr.mxu0 0.0
        %1290 = vmatpush1.msra.mxu0 0.0
        %1291 = vmatprep.subr.mxu0 0.0
        %1292 = vmatpush1.msra.mxu0 0.0
        %1293 = vmatprep.subr.mxu0 0.0
        %1294 = vmatpush1.msra.mxu0 0.0
        %1295 = vmatprep.subr.mxu0 0.0
        %1296 = vmatpush1.msra.mxu0 0.0
        %1297 = vmatprep.subr.mxu0 0.0
        %1298 = vmatpush1.msra.mxu0 0.0
        %1299 = vmatprep.subr.mxu0 0.0
        %1300 = vmatpush1.msra.mxu0 0.0
        %1301 = vmatprep.subr.mxu0 0.0
        %1302 = vmatpush1.msra.mxu0 0.0
        %1303 = vmatprep.subr.mxu0 0.0
        %1304 = vmatpush1.msra.mxu0 0.0
        %1305 = vmatprep.subr.mxu0 0.0
        %1306 = vmatpush1.msra.mxu0 0.0
        %1307 = vmatprep.subr.mxu0 0.0
        %1308 = vmatpush1.msra.mxu0 0.0
        %1309 = vmatprep.subr.mxu0 0.0
        %1310 = vmatpush1.msra.mxu0 0.0
        %1311 = vmatprep.subr.mxu0 0.0
        %1312 = vmatpush1.msra.mxu0 0.0
        %1313 = vmatprep.subr.mxu0 0.0
        %1314 = vmatpush1.msra.mxu0 0.0
        %1315 = vmatprep.subr.mxu0 0.0
        %1316 = vmatpush1.msra.mxu0 0.0
        %1317 = vmatprep.subr.mxu0 0.0
        %1318 = vmatpush1.msra.mxu0 0.0
        %1319 = vmatprep.subr.mxu0 0.0
        %1320 = vmatpush1.msra.mxu0 0.0
        %1321 = vmatprep.subr.mxu0 0.0
        %1322 = vmatpush1.msra.mxu0 0.0
        %1323 = vmatprep.subr.mxu0 0.0
        %1324 = vmatpush1.msra.mxu0 0.0
        %1325 = vmatprep.subr.mxu0 0.0
        %1326 = vmatpush1.msra.mxu0 0.0
        %1327 = vmatprep.subr.mxu0 0.0
        %1328 = vmatpush1.msra.mxu0 0.0
        %1329 = vmatprep.subr.mxu0 0.0
        %1330 = vmatpush1.msra.mxu0 0.0
        %1331 = vmatprep.mubr.f32.mxu0 0.0
        %1332 = vmatmul.mubr.f32.gmra.mrb[0].mxu0 %v775
        %v1333 = vpop.f32.mrb[0].mxu0
        %v1334 = vadd.f32 %v745, %v1333
        %v1335 = vpop.f32.mrb[0].mxu0
        %1336 = vdwg.mxu0
        %1337 = vmatprep.subr.mxu0 0.0
        %1338 = vmatpush1.msra.mxu0 %v669
        %1339 = vmatprep.subr.mxu0 0.0
        %1340 = vmatpush1.msra.mxu0 %v670
        %1341 = vmatprep.subr.mxu0 0.0
        %1342 = vmatpush1.msra.mxu0 %v671
        %1343 = vmatprep.subr.mxu0 0.0
        %1344 = vmatpush1.msra.mxu0 %v672
        %1345 = vmatprep.subr.mxu0 0.0
        %1346 = vmatpush1.msra.mxu0 0.0
        %1347 = vmatprep.subr.mxu0 0.0
        %1348 = vmatpush1.msra.mxu0 0.0
        %1349 = vmatprep.subr.mxu0 0.0
        %1350 = vmatpush1.msra.mxu0 0.0
        %1351 = vmatprep.subr.mxu0 0.0
        %1352 = vmatpush1.msra.mxu0 0.0
        %1353 = vmatprep.subr.mxu0 0.0
        %1354 = vmatpush1.msra.mxu0 0.0
        %1355 = vmatprep.subr.mxu0 0.0
        %1356 = vmatpush1.msra.mxu0 0.0
        %1357 = vmatprep.subr.mxu0 0.0
        %1358 = vmatpush1.msra.mxu0 0.0
        %1359 = vmatprep.subr.mxu0 0.0
        %1360 = vmatpush1.msra.mxu0 0.0
        %1361 = vmatprep.subr.mxu0 0.0
        %1362 = vmatpush1.msra.mxu0 0.0
        %1363 = vmatprep.subr.mxu0 0.0
        %1364 = vmatpush1.msra.mxu0 0.0
        %1365 = vmatprep.subr.mxu0 0.0
        %1366 = vmatpush1.msra.mxu0 0.0
        %1367 = vmatprep.subr.mxu0 0.0
        %1368 = vmatpush1.msra.mxu0 0.0
        %1369 = vmatprep.subr.mxu0 0.0
        %1370 = vmatpush1.msra.mxu0 0.0
        %1371 = vmatprep.subr.mxu0 0.0
        %1372 = vmatpush1.msra.mxu0 0.0
        %1373 = vmatprep.subr.mxu0 0.0
        %1374 = vmatpush1.msra.mxu0 0.0
        %1375 = vmatprep.subr.mxu0 0.0
        %1376 = vmatpush1.msra.mxu0 0.0
        %1377 = vmatprep.subr.mxu0 0.0
        %1378 = vmatpush1.msra.mxu0 0.0
        %1379 = vmatprep.subr.mxu0 0.0
        %1380 = vmatpush1.msra.mxu0 0.0
        %1381 = vmatprep.subr.mxu0 0.0
        %1382 = vmatpush1.msra.mxu0 0.0
        %1383 = vmatprep.subr.mxu0 0.0
        %1384 = vmatpush1.msra.mxu0 0.0
        %1385 = vmatprep.subr.mxu0 0.0
        %1386 = vmatpush1.msra.mxu0 0.0
        %1387 = vmatprep.subr.mxu0 0.0
        %1388 = vmatpush1.msra.mxu0 0.0
        %1389 = vmatprep.subr.mxu0 0.0
        %1390 = vmatpush1.msra.mxu0 0.0
        %1391 = vmatprep.subr.mxu0 0.0
        %1392 = vmatpush1.msra.mxu0 0.0
        %1393 = vmatprep.subr.mxu0 0.0
        %1394 = vmatpush1.msra.mxu0 0.0
        %1395 = vmatprep.subr.mxu0 0.0
        %1396 = vmatpush1.msra.mxu0 0.0
        %1397 = vmatprep.subr.mxu0 0.0
        %1398 = vmatpush1.msra.mxu0 0.0
        %1399 = vmatprep.subr.mxu0 0.0
        %1400 = vmatpush1.msra.mxu0 0.0
        %1401 = vmatprep.mubr.f32.mxu0 0.0
        %1402 = vmatmul.mubr.f32.gmra.mrb[0].mxu0 %v775
        %v1403 = vpop.f32.mrb[0].mxu0
        %v1404 = vadd.f32 %v749, %v1403
        %v1405 = vpop.f32.mrb[0].mxu0
        %1406 = vdwg.mxu0
        %1407 = vmatprep.subr.mxu0 0.0
        %1408 = vmatpush1.msra.mxu0 %v673
        %1409 = vmatprep.subr.mxu0 0.0
        %1410 = vmatpush1.msra.mxu0 %v674
        %1411 = vmatprep.subr.mxu0 0.0
        %1412 = vmatpush1.msra.mxu0 %v675
        %1413 = vmatprep.subr.mxu0 0.0
        %1414 = vmatpush1.msra.mxu0 %v676
        %1415 = vmatprep.subr.mxu0 0.0
        %1416 = vmatpush1.msra.mxu0 0.0
        %1417 = vmatprep.subr.mxu0 0.0
        %1418 = vmatpush1.msra.mxu0 0.0
        %1419 = vmatprep.subr.mxu0 0.0
        %1420 = vmatpush1.msra.mxu0 0.0
        %1421 = vmatprep.subr.mxu0 0.0
        %1422 = vmatpush1.msra.mxu0 0.0
        %1423 = vmatprep.subr.mxu0 0.0
        %1424 = vmatpush1.msra.mxu0 0.0
        %1425 = vmatprep.subr.mxu0 0.0
        %1426 = vmatpush1.msra.mxu0 0.0
        %1427 = vmatprep.subr.mxu0 0.0
        %1428 = vmatpush1.msra.mxu0 0.0
        %1429 = vmatprep.subr.mxu0 0.0
        %1430 = vmatpush1.msra.mxu0 0.0
        %1431 = vmatprep.subr.mxu0 0.0
        %1432 = vmatpush1.msra.mxu0 0.0
        %1433 = vmatprep.subr.mxu0 0.0
        %1434 = vmatpush1.msra.mxu0 0.0
        %1435 = vmatprep.subr.mxu0 0.0
        %1436 = vmatpush1.msra.mxu0 0.0
        %1437 = vmatprep.subr.mxu0 0.0
        %1438 = vmatpush1.msra.mxu0 0.0
        %1439 = vmatprep.subr.mxu0 0.0
        %1440 = vmatpush1.msra.mxu0 0.0
        %1441 = vmatprep.subr.mxu0 0.0
        %1442 = vmatpush1.msra.mxu0 0.0
        %1443 = vmatprep.subr.mxu0 0.0
        %1444 = vmatpush1.msra.mxu0 0.0
        %1445 = vmatprep.subr.mxu0 0.0
        %1446 = vmatpush1.msra.mxu0 0.0
        %1447 = vmatprep.subr.mxu0 0.0
        %1448 = vmatpush1.msra.mxu0 0.0
        %1449 = vmatprep.subr.mxu0 0.0
        %1450 = vmatpush1.msra.mxu0 0.0
        %1451 = vmatprep.subr.mxu0 0.0
        %1452 = vmatpush1.msra.mxu0 0.0
        %1453 = vmatprep.subr.mxu0 0.0
        %1454 = vmatpush1.msra.mxu0 0.0
        %1455 = vmatprep.subr.mxu0 0.0
        %1456 = vmatpush1.msra.mxu0 0.0
        %1457 = vmatprep.subr.mxu0 0.0
        %1458 = vmatpush1.msra.mxu0 0.0
        %1459 = vmatprep.subr.mxu0 0.0
        %1460 = vmatpush1.msra.mxu0 0.0
        %1461 = vmatprep.subr.mxu0 0.0
        %1462 = vmatpush1.msra.mxu0 0.0
        %1463 = vmatprep.subr.mxu0 0.0
        %1464 = vmatpush1.msra.mxu0 0.0
        %1465 = vmatprep.subr.mxu0 0.0
        %1466 = vmatpush1.msra.mxu0 0.0
        %1467 = vmatprep.subr.mxu0 0.0
        %1468 = vmatpush1.msra.mxu0 0.0
        %1469 = vmatprep.subr.mxu0 0.0
        %1470 = vmatpush1.msra.mxu0 0.0
        %1471 = vmatprep.mubr.f32.mxu0 0.0
        %1472 = vmatmul.mubr.f32.gmra.mrb[0].mxu0 %v775
        %v1473 = vpop.f32.mrb[0].mxu0
        %v1474 = vadd.f32 %v753, %v1473
        %v1475 = vpop.f32.mrb[0].mxu0
        %1476 = vdwg.mxu0
        %1477 = vmatprep.subr.mxu0 0.0
        %1478 = vmatpush1.msra.mxu0 %v677
        %1479 = vmatprep.subr.mxu0 0.0
        %1480 = vmatpush1.msra.mxu0 %v678
        %1481 = vmatprep.subr.mxu0 0.0
        %1482 = vmatpush1.msra.mxu0 %v679
        %1483 = vmatprep.subr.mxu0 0.0
        %1484 = vmatpush1.msra.mxu0 %v680
        %1485 = vmatprep.subr.mxu0 0.0
        %1486 = vmatpush1.msra.mxu0 0.0
        %1487 = vmatprep.subr.mxu0 0.0
        %1488 = vmatpush1.msra.mxu0 0.0
        %1489 = vmatprep.subr.mxu0 0.0
        %1490 = vmatpush1.msra.mxu0 0.0
        %1491 = vmatprep.subr.mxu0 0.0
        %1492 = vmatpush1.msra.mxu0 0.0
        %1493 = vmatprep.subr.mxu0 0.0
        %1494 = vmatpush1.msra.mxu0 0.0
        %1495 = vmatprep.subr.mxu0 0.0
        %1496 = vmatpush1.msra.mxu0 0.0
        %1497 = vmatprep.subr.mxu0 0.0
        %1498 = vmatpush1.msra.mxu0 0.0
        %1499 = vmatprep.subr.mxu0 0.0
        %1500 = vmatpush1.msra.mxu0 0.0
        %1501 = vmatprep.subr.mxu0 0.0
        %1502 = vmatpush1.msra.mxu0 0.0
        %1503 = vmatprep.subr.mxu0 0.0
        %1504 = vmatpush1.msra.mxu0 0.0
        %1505 = vmatprep.subr.mxu0 0.0
        %1506 = vmatpush1.msra.mxu0 0.0
        %1507 = vmatprep.subr.mxu0 0.0
        %1508 = vmatpush1.msra.mxu0 0.0
        %1509 = vmatprep.subr.mxu0 0.0
        %1510 = vmatpush1.msra.mxu0 0.0
        %1511 = vmatprep.subr.mxu0 0.0
        %1512 = vmatpush1.msra.mxu0 0.0
        %1513 = vmatprep.subr.mxu0 0.0
        %1514 = vmatpush1.msra.mxu0 0.0
        %1515 = vmatprep.subr.mxu0 0.0
        %1516 = vmatpush1.msra.mxu0 0.0
        %1517 = vmatprep.subr.mxu0 0.0
        %1518 = vmatpush1.msra.mxu0 0.0
        %1519 = vmatprep.subr.mxu0 0.0
        %1520 = vmatpush1.msra.mxu0 0.0
        %1521 = vmatprep.subr.mxu0 0.0
        %1522 = vmatpush1.msra.mxu0 0.0
        %1523 = vmatprep.subr.mxu0 0.0
        %1524 = vmatpush1.msra.mxu0 0.0
        %1525 = vmatprep.subr.mxu0 0.0
        %1526 = vmatpush1.msra.mxu0 0.0
        %1527 = vmatprep.subr.mxu0 0.0
        %1528 = vmatpush1.msra.mxu0 0.0
        %1529 = vmatprep.subr.mxu0 0.0
        %1530 = vmatpush1.msra.mxu0 0.0
        %1531 = vmatprep.subr.mxu0 0.0
        %1532 = vmatpush1.msra.mxu0 0.0
        %1533 = vmatprep.subr.mxu0 0.0
        %1534 = vmatpush1.msra.mxu0 0.0
        %1535 = vmatprep.subr.mxu0 0.0
        %1536 = vmatpush1.msra.mxu0 0.0
        %1537 = vmatprep.subr.mxu0 0.0
        %1538 = vmatpush1.msra.mxu0 0.0
        %1539 = vmatprep.subr.mxu0 0.0
        %1540 = vmatpush1.msra.mxu0 0.0
        %1541 = vmatprep.mubr.f32.mxu0 0.0
        %1542 = vmatmul.mubr.f32.gmra.mrb[0].mxu0 %v775
        %v1543 = vpop.f32.mrb[0].mxu0
        %v1544 = vadd.f32 %v757, %v1543
        %v1545 = vpop.f32.mrb[0].mxu0
        %1546 = vdwg.mxu0
        %1547 = vmatprep.subr.mxu0 0.0
        %1548 = vmatpush1.msra.mxu0 %v681
        %1549 = vmatprep.subr.mxu0 0.0
        %1550 = vmatpush1.msra.mxu0 %v682
        %1551 = vmatprep.subr.mxu0 0.0
        %1552 = vmatpush1.msra.mxu0 %v683
        %1553 = vmatprep.subr.mxu0 0.0
        %1554 = vmatpush1.msra.mxu0 %v684
        %1555 = vmatprep.subr.mxu0 0.0
        %1556 = vmatpush1.msra.mxu0 0.0
        %1557 = vmatprep.subr.mxu0 0.0
        %1558 = vmatpush1.msra.mxu0 0.0
        %1559 = vmatprep.subr.mxu0 0.0
        %1560 = vmatpush1.msra.mxu0 0.0
        %1561 = vmatprep.subr.mxu0 0.0
        %1562 = vmatpush1.msra.mxu0 0.0
        %1563 = vmatprep.subr.mxu0 0.0
        %1564 = vmatpush1.msra.mxu0 0.0
        %1565 = vmatprep.subr.mxu0 0.0
        %1566 = vmatpush1.msra.mxu0 0.0
        %1567 = vmatprep.subr.mxu0 0.0
        %1568 = vmatpush1.msra.mxu0 0.0
        %1569 = vmatprep.subr.mxu0 0.0
        %1570 = vmatpush1.msra.mxu0 0.0
        %1571 = vmatprep.subr.mxu0 0.0
        %1572 = vmatpush1.msra.mxu0 0.0
        %1573 = vmatprep.subr.mxu0 0.0
        %1574 = vmatpush1.msra.mxu0 0.0
        %1575 = vmatprep.subr.mxu0 0.0
        %1576 = vmatpush1.msra.mxu0 0.0
        %1577 = vmatprep.subr.mxu0 0.0
        %1578 = vmatpush1.msra.mxu0 0.0
        %1579 = vmatprep.subr.mxu0 0.0
        %1580 = vmatpush1.msra.mxu0 0.0
        %1581 = vmatprep.subr.mxu0 0.0
        %1582 = vmatpush1.msra.mxu0 0.0
        %1583 = vmatprep.subr.mxu0 0.0
        %1584 = vmatpush1.msra.mxu0 0.0
        %1585 = vmatprep.subr.mxu0 0.0
        %1586 = vmatpush1.msra.mxu0 0.0
        %1587 = vmatprep.subr.mxu0 0.0
        %1588 = vmatpush1.msra.mxu0 0.0
        %1589 = vmatprep.subr.mxu0 0.0
        %1590 = vmatpush1.msra.mxu0 0.0
        %1591 = vmatprep.subr.mxu0 0.0
        %1592 = vmatpush1.msra.mxu0 0.0
        %1593 = vmatprep.subr.mxu0 0.0
        %1594 = vmatpush1.msra.mxu0 0.0
        %1595 = vmatprep.subr.mxu0 0.0
        %1596 = vmatpush1.msra.mxu0 0.0
        %1597 = vmatprep.subr.mxu0 0.0
        %1598 = vmatpush1.msra.mxu0 0.0
        %1599 = vmatprep.subr.mxu0 0.0
        %1600 = vmatpush1.msra.mxu0 0.0
        %1601 = vmatprep.subr.mxu0 0.0
        %1602 = vmatpush1.msra.mxu0 0.0
        %1603 = vmatprep.subr.mxu0 0.0
        %1604 = vmatpush1.msra.mxu0 0.0
        %1605 = vmatprep.subr.mxu0 0.0
        %1606 = vmatpush1.msra.mxu0 0.0
        %1607 = vmatprep.subr.mxu0 0.0
        %1608 = vmatpush1.msra.mxu0 0.0
        %1609 = vmatprep.subr.mxu0 0.0
        %1610 = vmatpush1.msra.mxu0 0.0
        %1611 = vmatprep.mubr.f32.mxu0 0.0
        %1612 = vmatmul.mubr.f32.gmra.mrb[0].mxu0 %v775
        %v1613 = vpop.f32.mrb[0].mxu0
        %v1614 = vadd.f32 %v761, %v1613
        %v1615 = vpop.f32.mrb[0].mxu0
        %1616 = vdwg.mxu0
        %vm1617 = vcmask 64512
        %v1619 = vsel %vm1617, %v844, 0
        %v1622 = vsel %vm1617, %v1124, 0
        %1624 = vmatprep.subr.mxu0 0.0
        %1625 = vmatpush1.xpose.msra.mxu0 %v1622
        %1626 = vmatprep.subr.mxu0 0.0
        %1627 = vmatpush1.xpose.msra.mxu0 0.0
        %1628 = vmatprep.subr.mxu0 0.0
        %1629 = vmatpush1.xpose.msra.mxu0 0.0
        %1630 = vmatprep.subr.mxu0 0.0
        %1631 = vmatpush1.xpose.msra.mxu0 0.0
        %1632 = vmatprep.subr.mxu0 0.0
        %1633 = vmatpush1.xpose.msra.mxu0 0.0
        %1634 = vmatprep.subr.mxu0 0.0
        %1635 = vmatpush1.xpose.msra.mxu0 0.0
        %1636 = vmatprep.subr.mxu0 0.0
        %1637 = vmatpush1.xpose.msra.mxu0 0.0
        %1638 = vmatprep.subr.mxu0 0.0
        %1639 = vmatpush1.xpose.msra.mxu0 0.0
        %1640 = vmatprep.subr.mxu0 0.0
        %1641 = vmatpush1.xpose.msra.mxu0 0.0
        %1642 = vmatprep.subr.mxu0 0.0
        %1643 = vmatpush1.xpose.msra.mxu0 0.0
        %1644 = vmatprep.subr.mxu0 0.0
        %1645 = vmatpush1.xpose.msra.mxu0 0.0
        %1646 = vmatprep.subr.mxu0 0.0
        %1647 = vmatpush1.xpose.msra.mxu0 0.0
        %1648 = vmatprep.subr.mxu0 0.0
        %1649 = vmatpush1.xpose.msra.mxu0 0.0
        %1650 = vmatprep.subr.mxu0 0.0
        %1651 = vmatpush1.xpose.msra.mxu0 0.0
        %1652 = vmatprep.subr.mxu0 0.0
        %1653 = vmatpush1.xpose.msra.mxu0 0.0
        %1654 = vmatprep.subr.mxu0 0.0
        %1655 = vmatpush1.xpose.msra.mxu0 0.0
        %1656 = vmatprep.subr.mxu0 0.0
        %1657 = vmatpush1.xpose.msra.mxu0 0.0
        %1658 = vmatprep.subr.mxu0 0.0
        %1659 = vmatpush1.xpose.msra.mxu0 0.0
        %1660 = vmatprep.subr.mxu0 0.0
        %1661 = vmatpush1.xpose.msra.mxu0 0.0
        %1662 = vmatprep.subr.mxu0 0.0
        %1663 = vmatpush1.xpose.msra.mxu0 0.0
        %1664 = vmatprep.subr.mxu0 0.0
        %1665 = vmatpush1.xpose.msra.mxu0 0.0
        %1666 = vmatprep.subr.mxu0 0.0
        %1667 = vmatpush1.xpose.msra.mxu0 0.0
        %1668 = vmatprep.subr.mxu0 0.0
        %1669 = vmatpush1.xpose.msra.mxu0 0.0
        %1670 = vmatprep.subr.mxu0 0.0
        %1671 = vmatpush1.xpose.msra.mxu0 0.0
        %1672 = vmatprep.subr.mxu0 0.0
        %1673 = vmatpush1.xpose.msra.mxu0 0.0
        %1674 = vmatprep.subr.mxu0 0.0
        %1675 = vmatpush1.xpose.msra.mxu0 0.0
        %1676 = vmatprep.subr.mxu0 0.0
        %1677 = vmatpush1.xpose.msra.mxu0 0.0
        %1678 = vmatprep.subr.mxu0 0.0
        %1679 = vmatpush1.xpose.msra.mxu0 0.0
        %1680 = vmatprep.subr.mxu0 0.0
        %1681 = vmatpush1.xpose.msra.mxu0 0.0
        %1682 = vmatprep.subr.mxu0 0.0
        %1683 = vmatpush1.xpose.msra.mxu0 0.0
        %1684 = vmatprep.subr.mxu0 0.0
        %1685 = vmatpush1.xpose.msra.mxu0 0.0
        %1686 = vmatprep.subr.mxu0 0.0
        %1687 = vmatpush1.xpose.msra.mxu0 0.0
        %1688 = vmatprep.mubr.f32.mxu0 0.0
        %1689 = vmatmul.mubr.f32.gmra.mrb[0].mxu0 %v1619
        %v1690 = vpop.f32.mrb[0].mxu0
        %v1691 = vadd.f32 0.0, %v1690
        %v1692 = vpop.f32.mrb[0].mxu0
        %1693 = vdwg.mxu0
        %v1695 = vsel %vm1617, %v914, 0
        %v1698 = vsel %vm1617, %v1194, 0
        %1700 = vmatprep.subr.mxu0 0.0
        %1701 = vmatpush1.xpose.msra.mxu0 %v1698
        %1702 = vmatprep.subr.mxu0 0.0
        %1703 = vmatpush1.xpose.msra.mxu0 0.0
        %1704 = vmatprep.subr.mxu0 0.0
        %1705 = vmatpush1.xpose.msra.mxu0 0.0
        %1706 = vmatprep.subr.mxu0 0.0
        %1707 = vmatpush1.xpose.msra.mxu0 0.0
        %1708 = vmatprep.subr.mxu0 0.0
        %1709 = vmatpush1.xpose.msra.mxu0 0.0
        %1710 = vmatprep.subr.mxu0 0.0
        %1711 = vmatpush1.xpose.msra.mxu0 0.0
        %1712 = vmatprep.subr.mxu0 0.0
        %1713 = vmatpush1.xpose.msra.mxu0 0.0
        %1714 = vmatprep.subr.mxu0 0.0
        %1715 = vmatpush1.xpose.msra.mxu0 0.0
        %1716 = vmatprep.subr.mxu0 0.0
        %1717 = vmatpush1.xpose.msra.mxu0 0.0
        %1718 = vmatprep.subr.mxu0 0.0
        %1719 = vmatpush1.xpose.msra.mxu0 0.0
        %1720 = vmatprep.subr.mxu0 0.0
        %1721 = vmatpush1.xpose.msra.mxu0 0.0
        %1722 = vmatprep.subr.mxu0 0.0
        %1723 = vmatpush1.xpose.msra.mxu0 0.0
        %1724 = vmatprep.subr.mxu0 0.0
        %1725 = vmatpush1.xpose.msra.mxu0 0.0
        %1726 = vmatprep.subr.mxu0 0.0
        %1727 = vmatpush1.xpose.msra.mxu0 0.0
        %1728 = vmatprep.subr.mxu0 0.0
        %1729 = vmatpush1.xpose.msra.mxu0 0.0
        %1730 = vmatprep.subr.mxu0 0.0
        %1731 = vmatpush1.xpose.msra.mxu0 0.0
        %1732 = vmatprep.subr.mxu0 0.0
        %1733 = vmatpush1.xpose.msra.mxu0 0.0
        %1734 = vmatprep.subr.mxu0 0.0
        %1735 = vmatpush1.xpose.msra.mxu0 0.0
        %1736 = vmatprep.subr.mxu0 0.0
        %1737 = vmatpush1.xpose.msra.mxu0 0.0
        %1738 = vmatprep.subr.mxu0 0.0
        %1739 = vmatpush1.xpose.msra.mxu0 0.0
        %1740 = vmatprep.subr.mxu0 0.0
        %1741 = vmatpush1.xpose.msra.mxu0 0.0
        %1742 = vmatprep.subr.mxu0 0.0
        %1743 = vmatpush1.xpose.msra.mxu0 0.0
        %1744 = vmatprep.subr.mxu0 0.0
        %1745 = vmatpush1.xpose.msra.mxu0 0.0
        %1746 = vmatprep.subr.mxu0 0.0
        %1747 = vmatpush1.xpose.msra.mxu0 0.0
        %1748 = vmatprep.subr.mxu0 0.0
        %1749 = vmatpush1.xpose.msra.mxu0 0.0
        %1750 = vmatprep.subr.mxu0 0.0
        %1751 = vmatpush1.xpose.msra.mxu0 0.0
        %1752 = vmatprep.subr.mxu0 0.0
        %1753 = vmatpush1.xpose.msra.mxu0 0.0
        %1754 = vmatprep.subr.mxu0 0.0
        %1755 = vmatpush1.xpose.msra.mxu0 0.0
        %1756 = vmatprep.subr.mxu0 0.0
        %1757 = vmatpush1.xpose.msra.mxu0 0.0
        %1758 = vmatprep.subr.mxu0 0.0
        %1759 = vmatpush1.xpose.msra.mxu0 0.0
        %1760 = vmatprep.subr.mxu0 0.0
        %1761 = vmatpush1.xpose.msra.mxu0 0.0
        %1762 = vmatprep.subr.mxu0 0.0
        %1763 = vmatpush1.xpose.msra.mxu0 0.0
        %1764 = vmatprep.mubr.f32.mxu0 0.0
        %1765 = vmatmul.mubr.f32.gmra.mrb[0].mxu0 %v1695
        %v1766 = vpop.f32.mrb[0].mxu0
        %v1767 = vadd.f32 0.0, %v1766
        %v1768 = vpop.f32.mrb[0].mxu0
        %1769 = vdwg.mxu0
        %v1771 = vsel %vm1617, %v984, 0
        %v1774 = vsel %vm1617, %v1264, 0
        %1776 = vmatprep.subr.mxu0 0.0
        %1777 = vmatpush1.xpose.msra.mxu0 %v1774
        %1778 = vmatprep.subr.mxu0 0.0
        %1779 = vmatpush1.xpose.msra.mxu0 0.0
        %1780 = vmatprep.subr.mxu0 0.0
        %1781 = vmatpush1.xpose.msra.mxu0 0.0
        %1782 = vmatprep.subr.mxu0 0.0
        %1783 = vmatpush1.xpose.msra.mxu0 0.0
        %1784 = vmatprep.subr.mxu0 0.0
        %1785 = vmatpush1.xpose.msra.mxu0 0.0
        %1786 = vmatprep.subr.mxu0 0.0
        %1787 = vmatpush1.xpose.msra.mxu0 0.0
        %1788 = vmatprep.subr.mxu0 0.0
        %1789 = vmatpush1.xpose.msra.mxu0 0.0
        %1790 = vmatprep.subr.mxu0 0.0
        %1791 = vmatpush1.xpose.msra.mxu0 0.0
        %1792 = vmatprep.subr.mxu0 0.0
        %1793 = vmatpush1.xpose.msra.mxu0 0.0
        %1794 = vmatprep.subr.mxu0 0.0
        %1795 = vmatpush1.xpose.msra.mxu0 0.0
        %1796 = vmatprep.subr.mxu0 0.0
        %1797 = vmatpush1.xpose.msra.mxu0 0.0
        %1798 = vmatprep.subr.mxu0 0.0
        %1799 = vmatpush1.xpose.msra.mxu0 0.0
        %1800 = vmatprep.subr.mxu0 0.0
        %1801 = vmatpush1.xpose.msra.mxu0 0.0
        %1802 = vmatprep.subr.mxu0 0.0
        %1803 = vmatpush1.xpose.msra.mxu0 0.0
        %1804 = vmatprep.subr.mxu0 0.0
        %1805 = vmatpush1.xpose.msra.mxu0 0.0
        %1806 = vmatprep.subr.mxu0 0.0
        %1807 = vmatpush1.xpose.msra.mxu0 0.0
        %1808 = vmatprep.subr.mxu0 0.0
        %1809 = vmatpush1.xpose.msra.mxu0 0.0
        %1810 = vmatprep.subr.mxu0 0.0
        %1811 = vmatpush1.xpose.msra.mxu0 0.0
        %1812 = vmatprep.subr.mxu0 0.0
        %1813 = vmatpush1.xpose.msra.mxu0 0.0
        %1814 = vmatprep.subr.mxu0 0.0
        %1815 = vmatpush1.xpose.msra.mxu0 0.0
        %1816 = vmatprep.subr.mxu0 0.0
        %1817 = vmatpush1.xpose.msra.mxu0 0.0
        %1818 = vmatprep.subr.mxu0 0.0
        %1819 = vmatpush1.xpose.msra.mxu0 0.0
        %1820 = vmatprep.subr.mxu0 0.0
        %1821 = vmatpush1.xpose.msra.mxu0 0.0
        %1822 = vmatprep.subr.mxu0 0.0
        %1823 = vmatpush1.xpose.msra.mxu0 0.0
        %1824 = vmatprep.subr.mxu0 0.0
        %1825 = vmatpush1.xpose.msra.mxu0 0.0
        %1826 = vmatprep.subr.mxu0 0.0
        %1827 = vmatpush1.xpose.msra.mxu0 0.0
        %1828 = vmatprep.subr.mxu0 0.0
        %1829 = vmatpush1.xpose.msra.mxu0 0.0
        %1830 = vmatprep.subr.mxu0 0.0
        %1831 = vmatpush1.xpose.msra.mxu0 0.0
        %1832 = vmatprep.subr.mxu0 0.0
        %1833 = vmatpush1.xpose.msra.mxu0 0.0
        %1834 = vmatprep.subr.mxu0 0.0
        %1835 = vmatpush1.xpose.msra.mxu0 0.0
        %1836 = vmatprep.subr.mxu0 0.0
        %1837 = vmatpush1.xpose.msra.mxu0 0.0
        %1838 = vmatprep.subr.mxu0 0.0
        %1839 = vmatpush1.xpose.msra.mxu0 0.0
        %1840 = vmatprep.mubr.f32.mxu0 0.0
        %1841 = vmatmul.mubr.f32.gmra.mrb[0].mxu0 %v1771
        %v1842 = vpop.f32.mrb[0].mxu0
        %v1843 = vadd.f32 0.0, %v1842
        %v1844 = vpop.f32.mrb[0].mxu0
        %1845 = vdwg.mxu0
        %v1847 = vsel %vm1617, %v1054, 0
        %v1850 = vsel %vm1617, %v1334, 0
        %1852 = vmatprep.subr.mxu0 0.0
        %1853 = vmatpush1.xpose.msra.mxu0 %v1850
        %1854 = vmatprep.subr.mxu0 0.0
        %1855 = vmatpush1.xpose.msra.mxu0 0.0
        %1856 = vmatprep.subr.mxu0 0.0
        %1857 = vmatpush1.xpose.msra.mxu0 0.0
        %1858 = vmatprep.subr.mxu0 0.0
        %1859 = vmatpush1.xpose.msra.mxu0 0.0
        %1860 = vmatprep.subr.mxu0 0.0
        %1861 = vmatpush1.xpose.msra.mxu0 0.0
        %1862 = vmatprep.subr.mxu0 0.0
        %1863 = vmatpush1.xpose.msra.mxu0 0.0
        %1864 = vmatprep.subr.mxu0 0.0
        %1865 = vmatpush1.xpose.msra.mxu0 0.0
        %1866 = vmatprep.subr.mxu0 0.0
        %1867 = vmatpush1.xpose.msra.mxu0 0.0
        %1868 = vmatprep.subr.mxu0 0.0
        %1869 = vmatpush1.xpose.msra.mxu0 0.0
        %1870 = vmatprep.subr.mxu0 0.0
        %1871 = vmatpush1.xpose.msra.mxu0 0.0
        %1872 = vmatprep.subr.mxu0 0.0
        %1873 = vmatpush1.xpose.msra.mxu0 0.0
        %1874 = vmatprep.subr.mxu0 0.0
        %1875 = vmatpush1.xpose.msra.mxu0 0.0
        %1876 = vmatprep.subr.mxu0 0.0
        %1877 = vmatpush1.xpose.msra.mxu0 0.0
        %1878 = vmatprep.subr.mxu0 0.0
        %1879 = vmatpush1.xpose.msra.mxu0 0.0
        %1880 = vmatprep.subr.mxu0 0.0
        %1881 = vmatpush1.xpose.msra.mxu0 0.0
        %1882 = vmatprep.subr.mxu0 0.0
        %1883 = vmatpush1.xpose.msra.mxu0 0.0
        %1884 = vmatprep.subr.mxu0 0.0
        %1885 = vmatpush1.xpose.msra.mxu0 0.0
        %1886 = vmatprep.subr.mxu0 0.0
        %1887 = vmatpush1.xpose.msra.mxu0 0.0
        %1888 = vmatprep.subr.mxu0 0.0
        %1889 = vmatpush1.xpose.msra.mxu0 0.0
        %1890 = vmatprep.subr.mxu0 0.0
        %1891 = vmatpush1.xpose.msra.mxu0 0.0
        %1892 = vmatprep.subr.mxu0 0.0
        %1893 = vmatpush1.xpose.msra.mxu0 0.0
        %1894 = vmatprep.subr.mxu0 0.0
        %1895 = vmatpush1.xpose.msra.mxu0 0.0
        %1896 = vmatprep.subr.mxu0 0.0
        %1897 = vmatpush1.xpose.msra.mxu0 0.0
        %1898 = vmatprep.subr.mxu0 0.0
        %1899 = vmatpush1.xpose.msra.mxu0 0.0
        %1900 = vmatprep.subr.mxu0 0.0
        %1901 = vmatpush1.xpose.msra.mxu0 0.0
        %1902 = vmatprep.subr.mxu0 0.0
        %1903 = vmatpush1.xpose.msra.mxu0 0.0
        %1904 = vmatprep.subr.mxu0 0.0
        %1905 = vmatpush1.xpose.msra.mxu0 0.0
        %1906 = vmatprep.subr.mxu0 0.0
        %1907 = vmatpush1.xpose.msra.mxu0 0.0
        %1908 = vmatprep.subr.mxu0 0.0
        %1909 = vmatpush1.xpose.msra.mxu0 0.0
        %1910 = vmatprep.subr.mxu0 0.0
        %1911 = vmatpush1.xpose.msra.mxu0 0.0
        %1912 = vmatprep.subr.mxu0 0.0
        %1913 = vmatpush1.xpose.msra.mxu0 0.0
        %1914 = vmatprep.subr.mxu0 0.0
        %1915 = vmatpush1.xpose.msra.mxu0 0.0
        %1916 = vmatprep.mubr.f32.mxu0 0.0
        %1917 = vmatmul.mubr.f32.gmra.mrb[0].mxu0 %v1847
        %v1918 = vpop.f32.mrb[0].mxu0
        %v1919 = vadd.f32 0.0, %v1918
        %v1920 = vpop.f32.mrb[0].mxu0
        %1921 = vdwg.mxu0
        %v1922 = vmul.f32 %v1691, 0.35355338
        %v1923 = vmul.f32 %v1767, 0.35355338
        %v1924 = vmul.f32 %v1843, 0.35355338
        %v1925 = vmul.f32 %v1919, 0.35355338
        %v1926 = vadd.f32 %v1922, %v605
        %v1927 = vadd.f32 %v1923, %v605
        %v1928 = vadd.f32 %v1924, %v605
        %v1929 = vadd.f32 %v1925, %v605
        %v1930 = vsel %vm1617, %v1926, -inf
        %1931 = vmax.xlane.f32.xlu0 %v1930
        %v1932 = vpop.xlane.xlu0 %1931
        %v1933 = vsel %vm1617, %v1927, -inf
        %1934 = vmax.xlane.f32.xlu0 %v1933
        %v1935 = vpop.xlane.xlu0 %1934
        %v1936 = vsel %vm1617, %v1928, -inf
        %1937 = vmax.xlane.f32.xlu0 %v1936
        %v1938 = vpop.xlane.xlu0 %1937
        %v1939 = vsel %vm1617, %v1929, -inf
        %1940 = vmax.xlane.f32.xlu0 %v1939
        %v1941 = vpop.xlane.xlu0 %1940
        %v1942 = vsub.f32 %v1926, %v1932
        %v1943 = vsub.f32 %v1927, %v1935
        %v1944 = vsub.f32 %v1928, %v1938
        %v1945 = vsub.f32 %v1929, %v1941
        %v1946 = vmul.f32 %v1942, 1.442695
        %v1947 = vpow.pop %v1946
        %v1948 = vmul.f32 %v1943, 1.442695
        %v1949 = vpow.pop %v1948
        %v1950 = vmul.f32 %v1944, 1.442695
        %v1951 = vpow.pop %v1950
        %v1952 = vmul.f32 %v1945, 1.442695
        %v1953 = vpow.pop %v1952
        %v1954 = vsel %vm1617, %v1947, 0.0
        %1955 = vadd.xlane.f32.xlu0 %v1954
        %v1956 = vpop.xlane.xlu0 %1955
        %v1957 = vsel %vm1617, %v1949, 0.0
        %1958 = vadd.xlane.f32.xlu0 %v1957
        %v1959 = vpop.xlane.xlu0 %1958
        %v1960 = vsel %vm1617, %v1951, 0.0
        %1961 = vadd.xlane.f32.xlu0 %v1960
        %v1962 = vpop.xlane.xlu0 %1961
        %v1963 = vsel %vm1617, %v1953, 0.0
        %1964 = vadd.xlane.f32.xlu0 %v1963
        %v1965 = vpop.xlane.xlu0 %1964
        %v1966 = vrcp.pop %v1956
        %v1967 = vrcp.pop %v1959
        %v1968 = vrcp.pop %v1962
        %v1969 = vrcp.pop %v1965
        %v1970 = vmul.f32 %v1947, %v1966
        %v1971 = vmul.f32 %v1949, %v1967
        %v1972 = vmul.f32 %v1951, %v1968
        %v1973 = vmul.f32 %v1953, %v1969
        %v1975 = vsel %vm1617, %v1970, 0
        %1977 = vmatprep.subr.mxu0 0.0
        %1978 = vmatpush1.msra.mxu0 %v1404
        %1979 = vmatprep.subr.mxu0 0.0
        %1980 = vmatpush1.msra.mxu0 0.0
        %1981 = vmatprep.subr.mxu0 0.0
        %1982 = vmatpush1.msra.mxu0 0.0
        %1983 = vmatprep.subr.mxu0 0.0
        %1984 = vmatpush1.msra.mxu0 0.0
        %1985 = vmatprep.subr.mxu0 0.0
        %1986 = vmatpush1.msra.mxu0 0.0
        %1987 = vmatprep.subr.mxu0 0.0
        %1988 = vmatpush1.msra.mxu0 0.0
        %1989 = vmatprep.subr.mxu0 0.0
        %1990 = vmatpush1.msra.mxu0 0.0
        %1991 = vmatprep.subr.mxu0 0.0
        %1992 = vmatpush1.msra.mxu0 0.0
        %1993 = vmatprep.subr.mxu0 0.0
        %1994 = vmatpush1.msra.mxu0 0.0
        %1995 = vmatprep.subr.mxu0 0.0
        %1996 = vmatpush1.msra.mxu0 0.0
        %1997 = vmatprep.subr.mxu0 0.0
        %1998 = vmatpush1.msra.mxu0 0.0
        %1999 = vmatprep.subr.mxu0 0.0
        %2000 = vmatpush1.msra.mxu0 0.0
        %2001 = vmatprep.subr.mxu0 0.0
        %2002 = vmatpush1.msra.mxu0 0.0
        %2003 = vmatprep.subr.mxu0 0.0
        %2004 = vmatpush1.msra.mxu0 0.0
        %2005 = vmatprep.subr.mxu0 0.0
        %2006 = vmatpush1.msra.mxu0 0.0
        %2007 = vmatprep.subr.mxu0 0.0
        %2008 = vmatpush1.msra.mxu0 0.0
        %2009 = vmatprep.subr.mxu0 0.0
        %2010 = vmatpush1.msra.mxu0 0.0
        %2011 = vmatprep.subr.mxu0 0.0
        %2012 = vmatpush1.msra.mxu0 0.0
        %2013 = vmatprep.subr.mxu0 0.0
        %2014 = vmatpush1.msra.mxu0 0.0
        %2015 = vmatprep.subr.mxu0 0.0
        %2016 = vmatpush1.msra.mxu0 0.0
        %2017 = vmatprep.subr.mxu0 0.0
        %2018 = vmatpush1.msra.mxu0 0.0
        %2019 = vmatprep.subr.mxu0 0.0
        %2020 = vmatpush1.msra.mxu0 0.0
        %2021 = vmatprep.subr.mxu0 0.0
        %2022 = vmatpush1.msra.mxu0 0.0
        %2023 = vmatprep.subr.mxu0 0.0
        %2024 = vmatpush1.msra.mxu0 0.0
        %2025 = vmatprep.subr.mxu0 0.0
        %2026 = vmatpush1.msra.mxu0 0.0
        %2027 = vmatprep.subr.mxu0 0.0
        %2028 = vmatpush1.msra.mxu0 0.0
        %2029 = vmatprep.subr.mxu0 0.0
        %2030 = vmatpush1.msra.mxu0 0.0
        %2031 = vmatprep.subr.mxu0 0.0
        %2032 = vmatpush1.msra.mxu0 0.0
        %2033 = vmatprep.subr.mxu0 0.0
        %2034 = vmatpush1.msra.mxu0 0.0
        %2035 = vmatprep.subr.mxu0 0.0
        %2036 = vmatpush1.msra.mxu0 0.0
        %2037 = vmatprep.subr.mxu0 0.0
        %2038 = vmatpush1.msra.mxu0 0.0
        %2039 = vmatprep.subr.mxu0 0.0
        %2040 = vmatpush1.msra.mxu0 0.0
        %2041 = vmatprep.mubr.f32.mxu0 0.0
        %2042 = vmatmul.mubr.f32.gmra.mrb[0].mxu0 %v1975
        %v2043 = vpop.f32.mrb[0].mxu0
        %v2044 = vadd.f32 0.0, %v2043
        %v2045 = vpop.f32.mrb[0].mxu0
        %2046 = vdwg.mxu0
        %v2048 = vsel %vm1617, %v1971, 0
        %2050 = vmatprep.subr.mxu0 0.0
        %2051 = vmatpush1.msra.mxu0 %v1474
        %2052 = vmatprep.subr.mxu0 0.0
        %2053 = vmatpush1.msra.mxu0 0.0
        %2054 = vmatprep.subr.mxu0 0.0
        %2055 = vmatpush1.msra.mxu0 0.0
        %2056 = vmatprep.subr.mxu0 0.0
        %2057 = vmatpush1.msra.mxu0 0.0
        %2058 = vmatprep.subr.mxu0 0.0
        %2059 = vmatpush1.msra.mxu0 0.0
        %2060 = vmatprep.subr.mxu0 0.0
        %2061 = vmatpush1.msra.mxu0 0.0
        %2062 = vmatprep.subr.mxu0 0.0
        %2063 = vmatpush1.msra.mxu0 0.0
        %2064 = vmatprep.subr.mxu0 0.0
        %2065 = vmatpush1.msra.mxu0 0.0
        %2066 = vmatprep.subr.mxu0 0.0
        %2067 = vmatpush1.msra.mxu0 0.0
        %2068 = vmatprep.subr.mxu0 0.0
        %2069 = vmatpush1.msra.mxu0 0.0
        %2070 = vmatprep.subr.mxu0 0.0
        %2071 = vmatpush1.msra.mxu0 0.0
        %2072 = vmatprep.subr.mxu0 0.0
        %2073 = vmatpush1.msra.mxu0 0.0
        %2074 = vmatprep.subr.mxu0 0.0
        %2075 = vmatpush1.msra.mxu0 0.0
        %2076 = vmatprep.subr.mxu0 0.0
        %2077 = vmatpush1.msra.mxu0 0.0
        %2078 = vmatprep.subr.mxu0 0.0
        %2079 = vmatpush1.msra.mxu0 0.0
        %2080 = vmatprep.subr.mxu0 0.0
        %2081 = vmatpush1.msra.mxu0 0.0
        %2082 = vmatprep.subr.mxu0 0.0
        %2083 = vmatpush1.msra.mxu0 0.0
        %2084 = vmatprep.subr.mxu0 0.0
        %2085 = vmatpush1.msra.mxu0 0.0
        %2086 = vmatprep.subr.mxu0 0.0
        %2087 = vmatpush1.msra.mxu0 0.0
        %2088 = vmatprep.subr.mxu0 0.0
        %2089 = vmatpush1.msra.mxu0 0.0
        %2090 = vmatprep.subr.mxu0 0.0
        %2091 = vmatpush1.msra.mxu0 0.0
        %2092 = vmatprep.subr.mxu0 0.0
        %2093 = vmatpush1.msra.mxu0 0.0
        %2094 = vmatprep.subr.mxu0 0.0
        %2095 = vmatpush1.msra.mxu0 0.0
        %2096 = vmatprep.subr.mxu0 0.0
        %2097 = vmatpush1.msra.mxu0 0.0
        %2098 = vmatprep.subr.mxu0 0.0
        %2099 = vmatpush1.msra.mxu0 0.0
        %2100 = vmatprep.subr.mxu0 0.0
        %2101 = vmatpush1.msra.mxu0 0.0
        %2102 = vmatprep.subr.mxu0 0.0
        %2103 = vmatpush1.msra.mxu0 0.0
        %2104 = vmatprep.subr.mxu0 0.0
        %2105 = vmatpush1.msra.mxu0 0.0
        %2106 = vmatprep.subr.mxu0 0.0
        %2107 = vmatpush1.msra.mxu0 0.0
        %2108 = vmatprep.subr.mxu0 0.0
        %2109 = vmatpush1.msra.mxu0 0.0
        %2110 = vmatprep.subr.mxu0 0.0
        %2111 = vmatpush1.msra.mxu0 0.0
        %2112 = vmatprep.subr.mxu0 0.0
        %2113 = vmatpush1.msra.mxu0 0.0
        %2114 = vmatprep.mubr.f32.mxu0 0.0
        %2115 = vmatmul.mubr.f32.gmra.mrb[0].mxu0 %v2048
        %v2116 = vpop.f32.mrb[0].mxu0
        %v2117 = vadd.f32 0.0, %v2116
        %v2118 = vpop.f32.mrb[0].mxu0
        %2119 = vdwg.mxu0
        %v2121 = vsel %vm1617, %v1972, 0
        %2123 = vmatprep.subr.mxu0 0.0
        %2124 = vmatpush1.msra.mxu0 %v1544
        %2125 = vmatprep.subr.mxu0 0.0
        %2126 = vmatpush1.msra.mxu0 0.0
        %2127 = vmatprep.subr.mxu0 0.0
        %2128 = vmatpush1.msra.mxu0 0.0
        %2129 = vmatprep.subr.mxu0 0.0
        %2130 = vmatpush1.msra.mxu0 0.0
        %2131 = vmatprep.subr.mxu0 0.0
        %2132 = vmatpush1.msra.mxu0 0.0
        %2133 = vmatprep.subr.mxu0 0.0
        %2134 = vmatpush1.msra.mxu0 0.0
        %2135 = vmatprep.subr.mxu0 0.0
        %2136 = vmatpush1.msra.mxu0 0.0
        %2137 = vmatprep.subr.mxu0 0.0
        %2138 = vmatpush1.msra.mxu0 0.0
        %2139 = vmatprep.subr.mxu0 0.0
        %2140 = vmatpush1.msra.mxu0 0.0
        %2141 = vmatprep.subr.mxu0 0.0
        %2142 = vmatpush1.msra.mxu0 0.0
        %2143 = vmatprep.subr.mxu0 0.0
        %2144 = vmatpush1.msra.mxu0 0.0
        %2145 = vmatprep.subr.mxu0 0.0
        %2146 = vmatpush1.msra.mxu0 0.0
        %2147 = vmatprep.subr.mxu0 0.0
        %2148 = vmatpush1.msra.mxu0 0.0
        %2149 = vmatprep.subr.mxu0 0.0
        %2150 = vmatpush1.msra.mxu0 0.0
        %2151 = vmatprep.subr.mxu0 0.0
        %2152 = vmatpush1.msra.mxu0 0.0
        %2153 = vmatprep.subr.mxu0 0.0
        %2154 = vmatpush1.msra.mxu0 0.0
        %2155 = vmatprep.subr.mxu0 0.0
        %2156 = vmatpush1.msra.mxu0 0.0
        %2157 = vmatprep.subr.mxu0 0.0
        %2158 = vmatpush1.msra.mxu0 0.0
        %2159 = vmatprep.subr.mxu0 0.0
        %2160 = vmatpush1.msra.mxu0 0.0
        %2161 = vmatprep.subr.mxu0 0.0
        %2162 = vmatpush1.msra.mxu0 0.0
        %2163 = vmatprep.subr.mxu0 0.0
        %2164 = vmatpush1.msra.mxu0 0.0
        %2165 = vmatprep.subr.mxu0 0.0
        %2166 = vmatpush1.msra.mxu0 0.0
        %2167 = vmatprep.subr.mxu0 0.0
        %2168 = vmatpush1.msra.mxu0 0.0
        %2169 = vmatprep.subr.mxu0 0.0
        %2170 = vmatpush1.msra.mxu0 0.0
        %2171 = vmatprep.subr.mxu0 0.0
        %2172 = vmatpush1.msra.mxu0 0.0
        %2173 = vmatprep.subr.mxu0 0.0
        %2174 = vmatpush1.msra.mxu0 0.0
        %2175 = vmatprep.subr.mxu0 0.0
        %2176 = vmatpush1.msra.mxu0 0.0
        %2177 = vmatprep.subr.mxu0 0.0
        %2178 = vmatpush1.msra.mxu0 0.0
        %2179 = vmatprep.subr.mxu0 0.0
        %2180 = vmatpush1.msra.mxu0 0.0
        %2181 = vmatprep.subr.mxu0 0.0
        %2182 = vmatpush1.msra.mxu0 0.0
        %2183 = vmatprep.subr.mxu0 0.0
        %2184 = vmatpush1.msra.mxu0 0.0
        %2185 = vmatprep.subr.mxu0 0.0
        %2186 = vmatpush1.msra.mxu0 0.0
        %2187 = vmatprep.mubr.f32.mxu0 0.0
        %2188 = vmatmul.mubr.f32.gmra.mrb[0].mxu0 %v2121
        %v2189 = vpop.f32.mrb[0].mxu0
        %v2190 = vadd.f32 0.0, %v2189
        %v2191 = vpop.f32.mrb[0].mxu0
        %2192 = vdwg.mxu0
        %v2194 = vsel %vm1617, %v1973, 0
        %2196 = vmatprep.subr.mxu0 0.0
        %2197 = vmatpush1.msra.mxu0 %v1614
        %2198 = vmatprep.subr.mxu0 0.0
        %2199 = vmatpush1.msra.mxu0 0.0
        %2200 = vmatprep.subr.mxu0 0.0
        %2201 = vmatpush1.msra.mxu0 0.0
        %2202 = vmatprep.subr.mxu0 0.0
        %2203 = vmatpush1.msra.mxu0 0.0
        %2204 = vmatprep.subr.mxu0 0.0
        %2205 = vmatpush1.msra.mxu0 0.0
        %2206 = vmatprep.subr.mxu0 0.0
        %2207 = vmatpush1.msra.mxu0 0.0
        %2208 = vmatprep.subr.mxu0 0.0
        %2209 = vmatpush1.msra.mxu0 0.0
        %2210 = vmatprep.subr.mxu0 0.0
        %2211 = vmatpush1.msra.mxu0 0.0
        %2212 = vmatprep.subr.mxu0 0.0
        %2213 = vmatpush1.msra.mxu0 0.0
        %2214 = vmatprep.subr.mxu0 0.0
        %2215 = vmatpush1.msra.mxu0 0.0
        %2216 = vmatprep.subr.mxu0 0.0
        %2217 = vmatpush1.msra.mxu0 0.0
        %2218 = vmatprep.subr.mxu0 0.0
        %2219 = vmatpush1.msra.mxu0 0.0
        %2220 = vmatprep.subr.mxu0 0.0
        %2221 = vmatpush1.msra.mxu0 0.0
        %2222 = vmatprep.subr.mxu0 0.0
        %2223 = vmatpush1.msra.mxu0 0.0
        %2224 = vmatprep.subr.mxu0 0.0
        %2225 = vmatpush1.msra.mxu0 0.0
        %2226 = vmatprep.subr.mxu0 0.0
        %2227 = vmatpush1.msra.mxu0 0.0
        %2228 = vmatprep.subr.mxu0 0.0
        %2229 = vmatpush1.msra.mxu0 0.0
        %2230 = vmatprep.subr.mxu0 0.0
        %2231 = vmatpush1.msra.mxu0 0.0
        %2232 = vmatprep.subr.mxu0 0.0
        %2233 = vmatpush1.msra.mxu0 0.0
        %2234 = vmatprep.subr.mxu0 0.0
        %2235 = vmatpush1.msra.mxu0 0.0
        %2236 = vmatprep.subr.mxu0 0.0
        %2237 = vmatpush1.msra.mxu0 0.0
        %2238 = vmatprep.subr.mxu0 0.0
        %2239 = vmatpush1.msra.mxu0 0.0
        %2240 = vmatprep.subr.mxu0 0.0
        %2241 = vmatpush1.msra.mxu0 0.0
        %2242 = vmatprep.subr.mxu0 0.0
        %2243 = vmatpush1.msra.mxu0 0.0
        %2244 = vmatprep.subr.mxu0 0.0
        %2245 = vmatpush1.msra.mxu0 0.0
        %2246 = vmatprep.subr.mxu0 0.0
        %2247 = vmatpush1.msra.mxu0 0.0
        %2248 = vmatprep.subr.mxu0 0.0
        %2249 = vmatpush1.msra.mxu0 0.0
        %2250 = vmatprep.subr.mxu0 0.0
        %2251 = vmatpush1.msra.mxu0 0.0
        %2252 = vmatprep.subr.mxu0 0.0
        %2253 = vmatpush1.msra.mxu0 0.0
        %2254 = vmatprep.subr.mxu0 0.0
        %2255 = vmatpush1.msra.mxu0 0.0
        %2256 = vmatprep.subr.mxu0 0.0
        %2257 = vmatpush1.msra.mxu0 0.0
        %2258 = vmatprep.subr.mxu0 0.0
        %2259 = vmatpush1.msra.mxu0 0.0
        %2260 = vmatprep.mubr.f32.mxu0 0.0
        %2261 = vmatmul.mubr.f32.gmra.mrb[0].mxu0 %v2194
        %v2262 = vpop.f32.mrb[0].mxu0
        %v2263 = vadd.f32 0.0, %v2262
        %v2264 = vpop.f32.mrb[0].mxu0
        %2265 = vdwg.mxu0
        %v2267 = vsel %vm1617, %v2044, 0
        %2269 = vmatprep.subr.mxu0 0.0
        %2270 = vmatpush1.msra.mxu0 %v697
        %2271 = vmatprep.subr.mxu0 0.0
        %2272 = vmatpush1.msra.mxu0 0.0
        %2273 = vmatprep.subr.mxu0 0.0
        %2274 = vmatpush1.msra.mxu0 0.0
        %2275 = vmatprep.subr.mxu0 0.0
        %2276 = vmatpush1.msra.mxu0 0.0
        %2277 = vmatprep.subr.mxu0 0.0
        %2278 = vmatpush1.msra.mxu0 0.0
        %2279 = vmatprep.subr.mxu0 0.0
        %2280 = vmatpush1.msra.mxu0 0.0
        %2281 = vmatprep.subr.mxu0 0.0
        %2282 = vmatpush1.msra.mxu0 0.0
        %2283 = vmatprep.subr.mxu0 0.0
        %2284 = vmatpush1.msra.mxu0 0.0
        %2285 = vmatprep.subr.mxu0 0.0
        %2286 = vmatpush1.msra.mxu0 0.0
        %2287 = vmatprep.subr.mxu0 0.0
        %2288 = vmatpush1.msra.mxu0 0.0
        %2289 = vmatprep.subr.mxu0 0.0
        %2290 = vmatpush1.msra.mxu0 0.0
        %2291 = vmatprep.subr.mxu0 0.0
        %2292 = vmatpush1.msra.mxu0 0.0
        %2293 = vmatprep.subr.mxu0 0.0
        %2294 = vmatpush1.msra.mxu0 0.0
        %2295 = vmatprep.subr.mxu0 0.0
        %2296 = vmatpush1.msra.mxu0 0.0
        %2297 = vmatprep.subr.mxu0 0.0
        %2298 = vmatpush1.msra.mxu0 0.0
        %2299 = vmatprep.subr.mxu0 0.0
        %2300 = vmatpush1.msra.mxu0 0.0
        %2301 = vmatprep.subr.mxu0 0.0
        %2302 = vmatpush1.msra.mxu0 0.0
        %2303 = vmatprep.subr.mxu0 0.0
        %2304 = vmatpush1.msra.mxu0 0.0
        %2305 = vmatprep.subr.mxu0 0.0
        %2306 = vmatpush1.msra.mxu0 0.0
        %2307 = vmatprep.subr.mxu0 0.0
        %2308 = vmatpush1.msra.mxu0 0.0
        %2309 = vmatprep.subr.mxu0 0.0
        %2310 = vmatpush1.msra.mxu0 0.0
        %2311 = vmatprep.subr.mxu0 0.0
        %2312 = vmatpush1.msra.mxu0 0.0
        %2313 = vmatprep.subr.mxu0 0.0
        %2314 = vmatpush1.msra.mxu0 0.0
        %2315 = vmatprep.subr.mxu0 0.0
        %2316 = vmatpush1.msra.mxu0 0.0
        %2317 = vmatprep.subr.mxu0 0.0
        %2318 = vmatpush1.msra.mxu0 0.0
        %2319 = vmatprep.subr.mxu0 0.0
        %2320 = vmatpush1.msra.mxu0 0.0
        %2321 = vmatprep.subr.mxu0 0.0
        %2322 = vmatpush1.msra.mxu0 0.0
        %2323 = vmatprep.subr.mxu0 0.0
        %2324 = vmatpush1.msra.mxu0 0.0
        %2325 = vmatprep.subr.mxu0 0.0
        %2326 = vmatpush1.msra.mxu0 0.0
        %2327 = vmatprep.subr.mxu0 0.0
        %2328 = vmatpush1.msra.mxu0 0.0
        %2329 = vmatprep.subr.mxu0 0.0
        %2330 = vmatpush1.msra.mxu0 0.0
        %2331 = vmatprep.subr.mxu0 0.0
        %2332 = vmatpush1.msra.mxu0 0.0
        %2333 = vmatprep.mubr.f32.mxu0 0.0
        %2334 = vmatmul.mubr.f32.gmra.mrb[0].mxu0 %v2267
        %v2335 = vpop.f32.mrb[0].mxu0
        %v2336 = vadd.f32 0.0, %v2335
        %v2337 = vpop.f32.mrb[0].mxu0
        %2338 = vdwg.mxu0
        %v2340 = vsel %vm1617, %v2117, 0
        %2342 = vmatprep.subr.mxu0 0.0
        %2343 = vmatpush1.msra.mxu0 %v698
        %2344 = vmatprep.subr.mxu0 0.0
        %2345 = vmatpush1.msra.mxu0 0.0
        %2346 = vmatprep.subr.mxu0 0.0
        %2347 = vmatpush1.msra.mxu0 0.0
        %2348 = vmatprep.subr.mxu0 0.0
        %2349 = vmatpush1.msra.mxu0 0.0
        %2350 = vmatprep.subr.mxu0 0.0
        %2351 = vmatpush1.msra.mxu0 0.0
        %2352 = vmatprep.subr.mxu0 0.0
        %2353 = vmatpush1.msra.mxu0 0.0
        %2354 = vmatprep.subr.mxu0 0.0
        %2355 = vmatpush1.msra.mxu0 0.0
        %2356 = vmatprep.subr.mxu0 0.0
        %2357 = vmatpush1.msra.mxu0 0.0
        %2358 = vmatprep.subr.mxu0 0.0
        %2359 = vmatpush1.msra.mxu0 0.0
        %2360 = vmatprep.subr.mxu0 0.0
        %2361 = vmatpush1.msra.mxu0 0.0
        %2362 = vmatprep.subr.mxu0 0.0
        %2363 = vmatpush1.msra.mxu0 0.0
        %2364 = vmatprep.subr.mxu0 0.0
        %2365 = vmatpush1.msra.mxu0 0.0
        %2366 = vmatprep.subr.mxu0 0.0
        %2367 = vmatpush1.msra.mxu0 0.0
        %2368 = vmatprep.subr.mxu0 0.0
        %2369 = vmatpush1.msra.mxu0 0.0
        %2370 = vmatprep.subr.mxu0 0.0
        %2371 = vmatpush1.msra.mxu0 0.0
        %2372 = vmatprep.subr.mxu0 0.0
        %2373 = vmatpush1.msra.mxu0 0.0
        %2374 = vmatprep.subr.mxu0 0.0
        %2375 = vmatpush1.msra.mxu0 0.0
        %2376 = vmatprep.subr.mxu0 0.0
        %2377 = vmatpush1.msra.mxu0 0.0
        %2378 = vmatprep.subr.mxu0 0.0
        %2379 = vmatpush1.msra.mxu0 0.0
        %2380 = vmatprep.subr.mxu0 0.0
        %2381 = vmatpush1.msra.mxu0 0.0
        %2382 = vmatprep.subr.mxu0 0.0
        %2383 = vmatpush1.msra.mxu0 0.0
        %2384 = vmatprep.subr.mxu0 0.0
        %2385 = vmatpush1.msra.mxu0 0.0
        %2386 = vmatprep.subr.mxu0 0.0
        %2387 = vmatpush1.msra.mxu0 0.0
        %2388 = vmatprep.subr.mxu0 0.0
        %2389 = vmatpush1.msra.mxu0 0.0
        %2390 = vmatprep.subr.mxu0 0.0
        %2391 = vmatpush1.msra.mxu0 0.0
        %2392 = vmatprep.subr.mxu0 0.0
        %2393 = vmatpush1.msra.mxu0 0.0
        %2394 = vmatprep.subr.mxu0 0.0
        %2395 = vmatpush1.msra.mxu0 0.0
        %2396 = vmatprep.subr.mxu0 0.0
        %2397 = vmatpush1.msra.mxu0 0.0
        %2398 = vmatprep.subr.mxu0 0.0
        %2399 = vmatpush1.msra.mxu0 0.0
        %2400 = vmatprep.subr.mxu0 0.0
        %2401 = vmatpush1.msra.mxu0 0.0
        %2402 = vmatprep.subr.mxu0 0.0
        %2403 = vmatpush1.msra.mxu0 0.0
        %2404 = vmatprep.subr.mxu0 0.0
        %2405 = vmatpush1.msra.mxu0 0.0
        %2406 = vmatprep.mubr.f32.mxu0 0.0
        %2407 = vmatmul.mubr.f32.gmra.mrb[0].mxu0 %v2340
        %v2408 = vpop.f32.mrb[0].mxu0
        %v2409 = vadd.f32 0.0, %v2408
        %v2410 = vpop.f32.mrb[0].mxu0
        %2411 = vdwg.mxu0
        %v2413 = vsel %vm1617, %v2190, 0
        %2415 = vmatprep.subr.mxu0 0.0
        %2416 = vmatpush1.msra.mxu0 %v699
        %2417 = vmatprep.subr.mxu0 0.0
        %2418 = vmatpush1.msra.mxu0 0.0
        %2419 = vmatprep.subr.mxu0 0.0
        %2420 = vmatpush1.msra.mxu0 0.0
        %2421 = vmatprep.subr.mxu0 0.0
        %2422 = vmatpush1.msra.mxu0 0.0
        %2423 = vmatprep.subr.mxu0 0.0
        %2424 = vmatpush1.msra.mxu0 0.0
        %2425 = vmatprep.subr.mxu0 0.0
        %2426 = vmatpush1.msra.mxu0 0.0
        %2427 = vmatprep.subr.mxu0 0.0
        %2428 = vmatpush1.msra.mxu0 0.0
        %2429 = vmatprep.subr.mxu0 0.0
        %2430 = vmatpush1.msra.mxu0 0.0
        %2431 = vmatprep.subr.mxu0 0.0
        %2432 = vmatpush1.msra.mxu0 0.0
        %2433 = vmatprep.subr.mxu0 0.0
        %2434 = vmatpush1.msra.mxu0 0.0
        %2435 = vmatprep.subr.mxu0 0.0
        %2436 = vmatpush1.msra.mxu0 0.0
        %2437 = vmatprep.subr.mxu0 0.0
        %2438 = vmatpush1.msra.mxu0 0.0
        %2439 = vmatprep.subr.mxu0 0.0
        %2440 = vmatpush1.msra.mxu0 0.0
        %2441 = vmatprep.subr.mxu0 0.0
        %2442 = vmatpush1.msra.mxu0 0.0
        %2443 = vmatprep.subr.mxu0 0.0
        %2444 = vmatpush1.msra.mxu0 0.0
        %2445 = vmatprep.subr.mxu0 0.0
        %2446 = vmatpush1.msra.mxu0 0.0
        %2447 = vmatprep.subr.mxu0 0.0
        %2448 = vmatpush1.msra.mxu0 0.0
        %2449 = vmatprep.subr.mxu0 0.0
        %2450 = vmatpush1.msra.mxu0 0.0
        %2451 = vmatprep.subr.mxu0 0.0
        %2452 = vmatpush1.msra.mxu0 0.0
        %2453 = vmatprep.subr.mxu0 0.0
        %2454 = vmatpush1.msra.mxu0 0.0
        %2455 = vmatprep.subr.mxu0 0.0
        %2456 = vmatpush1.msra.mxu0 0.0
        %2457 = vmatprep.subr.mxu0 0.0
        %2458 = vmatpush1.msra.mxu0 0.0
        %2459 = vmatprep.subr.mxu0 0.0
        %2460 = vmatpush1.msra.mxu0 0.0
        %2461 = vmatprep.subr.mxu0 0.0
        %2462 = vmatpush1.msra.mxu0 0.0
        %2463 = vmatprep.subr.mxu0 0.0
        %2464 = vmatpush1.msra.mxu0 0.0
        %2465 = vmatprep.subr.mxu0 0.0
        %2466 = vmatpush1.msra.mxu0 0.0
        %2467 = vmatprep.subr.mxu0 0.0
        %2468 = vmatpush1.msra.mxu0 0.0
        %2469 = vmatprep.subr.mxu0 0.0
        %2470 = vmatpush1.msra.mxu0 0.0
        %2471 = vmatprep.subr.mxu0 0.0
        %2472 = vmatpush1.msra.mxu0 0.0
        %2473 = vmatprep.subr.mxu0 0.0
        %2474 = vmatpush1.msra.mxu0 0.0
        %2475 = vmatprep.subr.mxu0 0.0
        %2476 = vmatpush1.msra.mxu0 0.0
        %2477 = vmatprep.subr.mxu0 0.0
        %2478 = vmatpush1.msra.mxu0 0.0
        %2479 = vmatprep.mubr.f32.mxu0 0.0
        %2480 = vmatmul.mubr.f32.gmra.mrb[0].mxu0 %v2413
        %v2481 = vpop.f32.mrb[0].mxu0
        %v2482 = vadd.f32 0.0, %v2481
        %v2483 = vpop.f32.mrb[0].mxu0
        %2484 = vdwg.mxu0
        %v2486 = vsel %vm1617, %v2263, 0
        %2488 = vmatprep.subr.mxu0 0.0
        %2489 = vmatpush1.msra.mxu0 %v700
        %2490 = vmatprep.subr.mxu0 0.0
        %2491 = vmatpush1.msra.mxu0 0.0
        %2492 = vmatprep.subr.mxu0 0.0
        %2493 = vmatpush1.msra.mxu0 0.0
        %2494 = vmatprep.subr.mxu0 0.0
        %2495 = vmatpush1.msra.mxu0 0.0
        %2496 = vmatprep.subr.mxu0 0.0
        %2497 = vmatpush1.msra.mxu0 0.0
        %2498 = vmatprep.subr.mxu0 0.0
        %2499 = vmatpush1.msra.mxu0 0.0
        %2500 = vmatprep.subr.mxu0 0.0
        %2501 = vmatpush1.msra.mxu0 0.0
        %2502 = vmatprep.subr.mxu0 0.0
        %2503 = vmatpush1.msra.mxu0 0.0
        %2504 = vmatprep.subr.mxu0 0.0
        %2505 = vmatpush1.msra.mxu0 0.0
        %2506 = vmatprep.subr.mxu0 0.0
        %2507 = vmatpush1.msra.mxu0 0.0
        %2508 = vmatprep.subr.mxu0 0.0
        %2509 = vmatpush1.msra.mxu0 0.0
        %2510 = vmatprep.subr.mxu0 0.0
        %2511 = vmatpush1.msra.mxu0 0.0
        %2512 = vmatprep.subr.mxu0 0.0
        %2513 = vmatpush1.msra.mxu0 0.0
        %2514 = vmatprep.subr.mxu0 0.0
        %2515 = vmatpush1.msra.mxu0 0.0
        %2516 = vmatprep.subr.mxu0 0.0
        %2517 = vmatpush1.msra.mxu0 0.0
        %2518 = vmatprep.subr.mxu0 0.0
        %2519 = vmatpush1.msra.mxu0 0.0
        %2520 = vmatprep.subr.mxu0 0.0
        %2521 = vmatpush1.msra.mxu0 0.0
        %2522 = vmatprep.subr.mxu0 0.0
        %2523 = vmatpush1.msra.mxu0 0.0
        %2524 = vmatprep.subr.mxu0 0.0
        %2525 = vmatpush1.msra.mxu0 0.0
        %2526 = vmatprep.subr.mxu0 0.0
        %2527 = vmatpush1.msra.mxu0 0.0
        %2528 = vmatprep.subr.mxu0 0.0
        %2529 = vmatpush1.msra.mxu0 0.0
        %2530 = vmatprep.subr.mxu0 0.0
        %2531 = vmatpush1.msra.mxu0 0.0
        %2532 = vmatprep.subr.mxu0 0.0
        %2533 = vmatpush1.msra.mxu0 0.0
        %2534 = vmatprep.subr.mxu0 0.0
        %2535 = vmatpush1.msra.mxu0 0.0
        %2536 = vmatprep.subr.mxu0 0.0
        %2537 = vmatpush1.msra.mxu0 0.0
        %2538 = vmatprep.subr.mxu0 0.0
        %2539 = vmatpush1.msra.mxu0 0.0
        %2540 = vmatprep.subr.mxu0 0.0
        %2541 = vmatpush1.msra.mxu0 0.0
        %2542 = vmatprep.subr.mxu0 0.0
        %2543 = vmatpush1.msra.mxu0 0.0
        %2544 = vmatprep.subr.mxu0 0.0
        %2545 = vmatpush1.msra.mxu0 0.0
        %2546 = vmatprep.subr.mxu0 0.0
        %2547 = vmatpush1.msra.mxu0 0.0
        %2548 = vmatprep.subr.mxu0 0.0
        %2549 = vmatpush1.msra.mxu0 0.0
        %2550 = vmatprep.subr.mxu0 0.0
        %2551 = vmatpush1.msra.mxu0 0.0
        %2552 = vmatprep.mubr.f32.mxu0 0.0
        %2553 = vmatmul.mubr.f32.gmra.mrb[0].mxu0 %v2486
        %v2554 = vpop.f32.mrb[0].mxu0
        %v2555 = vadd.f32 0.0, %v2554
        %v2556 = vpop.f32.mrb[0].mxu0
        %2557 = vdwg.mxu0
        %v2558 = vsel %vm608, %v2336, 0.0
        %v2559 = vsel %vm608, %v2409, 0.0
        %v2560 = vadd.f32 %v2558, %v2559
        %v2561 = vsel %vm608, %v2482, 0.0
        %v2562 = vadd.f32 %v2560, %v2561
        %v2563 = vsel %vm608, %v2555, 0.0
        %v2564 = vadd.f32 %v2562, %v2563
        %v2566 = vlaneseq
        %v2567 = vshrl.u32 %v2566, 7
        %v2568 = vsub.s32 0, %v2567
        %v2569 = vrot.slane %v701, %v2568
        %v2571 = vadd.f32 %v2564, %v2569
        %v2572 = vadd.f32 %v599, %v2571
        %v2573 = vld [vmem:[%s8] sm:$0x1]
        %v2574 = vld [vmem:[%s9] sm:$0x1]
        %v2575 = vsel %vm608, %v2572, 0.0
        %2576 = vadd.xlane.f32.xlu0 %v2575
        %v2577 = vpop.xlane.xlu0 %2576
        %v2578 = vmul.f32 %v2577, %v612
        %v2579 = vsub.f32 %v2572, %v2578
        %v2580 = vmul.f32 %v2579, %v2579
        %v2581 = vsel %vm608, %v2580, 0.0
        %2582 = vadd.xlane.f32.xlu0 %v2581
        %v2583 = vpop.xlane.xlu0 %2582
        %v2584 = vmul.f32 %v2583, %v612
        %v2585 = vadd.f32 %v2584, 1e-05
        %v2586 = vrsqrt.pop %v2585
        %v2587 = vmul.f32 %v2579, %v2586
        %v2589 = vlaneseq
        %v2590 = vshrl.u32 %v2589, 7
        %v2591 = vsub.s32 0, %v2590
        %v2592 = vrot.slane %v2573, %v2591
        %v2594 = vmul.f32 %v2587, %v2592
        %v2596 = vlaneseq
        %v2597 = vshrl.u32 %v2596, 7
        %v2598 = vsub.s32 0, %v2597
        %v2599 = vrot.slane %v2574, %v2598
        %v2601 = vadd.f32 %v2594, %v2599
        %v2602 = vld [vmem:[%s10] sm:$0xff]
        %v2603 = vld [vmem:[%s10 + $0x8] sm:$0xff]
        %v2604 = vld [vmem:[%s10 + $0x10] sm:$0xff]
        %v2605 = vld [vmem:[%s10 + $0x18] sm:$0xff]
        %v2606 = vld [vmem:[%s11] sm:$0x1]
        %v2607 = vld [vmem:[%s12] sm:$0xff]
        %v2608 = vld [vmem:[%s12 + $0x8] sm:$0xff]
        %v2609 = vld [vmem:[%s12 + $0x10] sm:$0xff]
        %v2610 = vld [vmem:[%s12 + $0x18] sm:$0xff]
        %v2611 = vld [vmem:[%s12 + $0x20] sm:$0xff]
        %v2612 = vld [vmem:[%s12 + $0x28] sm:$0xff]
        %v2613 = vld [vmem:[%s12 + $0x30] sm:$0xff]
        %v2614 = vld [vmem:[%s12 + $0x38] sm:$0xff]
        %v2615 = vld [vmem:[%s12 + $0x40] sm:$0xff]
        %v2616 = vld [vmem:[%s12 + $0x48] sm:$0xff]
        %v2617 = vld [vmem:[%s12 + $0x50] sm:$0xff]
        %v2618 = vld [vmem:[%s12 + $0x58] sm:$0xff]
        %v2619 = vld [vmem:[%s12 + $0x60] sm:$0xff]
        %v2620 = vld [vmem:[%s12 + $0x68] sm:$0xff]
        %v2621 = vld [vmem:[%s12 + $0x70] sm:$0xff]
        %v2622 = vld [vmem:[%s12 + $0x78] sm:$0xff]
        %v2623 = vld [vmem:[%s13] sm:$0x1]
        %v2625 = vlaneseq
        %v2626 = vshrl.u32 %v2625, 7
        %v2627 = vsub.s32 0, %v2626
        %v2628 = vrot.slane %v2606, %v2627
        %v2631 = vsel %vm608, %v2601, 0
        %2633 = vmatprep.subr.mxu0 0.0
        %2634 = vmatpush1.msra.mxu0 %v2602
        %2635 = vmatprep.subr.mxu0 0.0
        %2636 = vmatpush1.msra.mxu0 %v2603
        %2637 = vmatprep.subr.mxu0 0.0
        %2638 = vmatpush1.msra.mxu0 %v2604
        %2639 = vmatprep.subr.mxu0 0.0
        %2640 = vmatpush1.msra.mxu0 %v2605
        %2641 = vmatprep.subr.mxu0 0.0
        %2642 = vmatpush1.msra.mxu0 0.0
        %2643 = vmatprep.subr.mxu0 0.0
        %2644 = vmatpush1.msra.mxu0 0.0
        %2645 = vmatprep.subr.mxu0 0.0
        %2646 = vmatpush1.msra.mxu0 0.0
        %2647 = vmatprep.subr.mxu0 0.0
        %2648 = vmatpush1.msra.mxu0 0.0
        %2649 = vmatprep.subr.mxu0 0.0
        %2650 = vmatpush1.msra.mxu0 0.0
        %2651 = vmatprep.subr.mxu0 0.0
        %2652 = vmatpush1.msra.mxu0 0.0
        %2653 = vmatprep.subr.mxu0 0.0
        %2654 = vmatpush1.msra.mxu0 0.0
        %2655 = vmatprep.subr.mxu0 0.0
        %2656 = vmatpush1.msra.mxu0 0.0
        %2657 = vmatprep.subr.mxu0 0.0
        %2658 = vmatpush1.msra.mxu0 0.0
        %2659 = vmatprep.subr.mxu0 0.0
        %2660 = vmatpush1.msra.mxu0 0.0
        %2661 = vmatprep.subr.mxu0 0.0
        %2662 = vmatpush1.msra.mxu0 0.0
        %2663 = vmatprep.subr.mxu0 0.0
        %2664 = vmatpush1.msra.mxu0 0.0
        %2665 = vmatprep.subr.mxu0 0.0
        %2666 = vmatpush1.msra.mxu0 0.0
        %2667 = vmatprep.subr.mxu0 0.0
        %2668 = vmatpush1.msra.mxu0 0.0
        %2669 = vmatprep.subr.mxu0 0.0
        %2670 = vmatpush1.msra.mxu0 0.0
        %2671 = vmatprep.subr.mxu0 0.0
        %2672 = vmatpush1.msra.mxu0 0.0
        %2673 = vmatprep.subr.mxu0 0.0
        %2674 = vmatpush1.msra.mxu0 0.0
        %2675 = vmatprep.subr.mxu0 0.0
        %2676 = vmatpush1.msra.mxu0 0.0
        %2677 = vmatprep.subr.mxu0 0.0
        %2678 = vmatpush1.msra.mxu0 0.0
        %2679 = vmatprep.subr.mxu0 0.0
        %2680 = vmatpush1.msra.mxu0 0.0
        %2681 = vmatprep.subr.mxu0 0.0
        %2682 = vmatpush1.msra.mxu0 0.0
        %2683 = vmatprep.subr.mxu0 0.0
        %2684 = vmatpush1.msra.mxu0 0.0
        %2685 = vmatprep.subr.mxu0 0.0
        %2686 = vmatpush1.msra.mxu0 0.0
        %2687 = vmatprep.subr.mxu0 0.0
        %2688 = vmatpush1.msra.mxu0 0.0
        %2689 = vmatprep.subr.mxu0 0.0
        %2690 = vmatpush1.msra.mxu0 0.0
        %2691 = vmatprep.subr.mxu0 0.0
        %2692 = vmatpush1.msra.mxu0 0.0
        %2693 = vmatprep.subr.mxu0 0.0
        %2694 = vmatpush1.msra.mxu0 0.0
        %2695 = vmatprep.subr.mxu0 0.0
        %2696 = vmatpush1.msra.mxu0 0.0
        %2697 = vmatprep.mubr.f32.mxu0 0.0
        %2698 = vmatmul.mubr.f32.gmra.mrb[0].mxu0 %v2631
        %v2699 = vpop.f32.mrb[0].mxu0
        %v2700 = vadd.f32 %v2628, %v2699
        %v2701 = vpop.f32.mrb[0].mxu0
        %2702 = vdwg.mxu0
        %v2703 = vmul.f32 %v2700, 0.5
        %v2704 = vmul.f32 %v2700, 0.70710677
        %v2705 = verf.f32.pop %v2704
        %v2706 = vadd.f32 %v2705, 1.0
        %v2707 = vmul.f32 %v2703, %v2706
        %v2709 = vlaneseq
        %v2710 = vshrl.u32 %v2709, 7
        %v2711 = vsub.s32 0, %v2710
        %v2712 = vrot.slane %v2623, %v2711
        %2714 = vmatprep.subr.mxu0 0.0
        %2715 = vmatpush1.msra.mxu0 %v2607
        %2716 = vmatprep.subr.mxu0 0.0
        %2717 = vmatpush1.msra.mxu0 %v2608
        %2718 = vmatprep.subr.mxu0 0.0
        %2719 = vmatpush1.msra.mxu0 %v2609
        %2720 = vmatprep.subr.mxu0 0.0
        %2721 = vmatpush1.msra.mxu0 %v2610
        %2722 = vmatprep.subr.mxu0 0.0
        %2723 = vmatpush1.msra.mxu0 %v2611
        %2724 = vmatprep.subr.mxu0 0.0
        %2725 = vmatpush1.msra.mxu0 %v2612
        %2726 = vmatprep.subr.mxu0 0.0
        %2727 = vmatpush1.msra.mxu0 %v2613
        %2728 = vmatprep.subr.mxu0 0.0
        %2729 = vmatpush1.msra.mxu0 %v2614
        %2730 = vmatprep.subr.mxu0 0.0
        %2731 = vmatpush1.msra.mxu0 %v2615
        %2732 = vmatprep.subr.mxu0 0.0
        %2733 = vmatpush1.msra.mxu0 %v2616
        %2734 = vmatprep.subr.mxu0 0.0
        %2735 = vmatpush1.msra.mxu0 %v2617
        %2736 = vmatprep.subr.mxu0 0.0
        %2737 = vmatpush1.msra.mxu0 %v2618
        %2738 = vmatprep.subr.mxu0 0.0
        %2739 = vmatpush1.msra.mxu0 %v2619
        %2740 = vmatprep.subr.mxu0 0.0
        %2741 = vmatpush1.msra.mxu0 %v2620
        %2742 = vmatprep.subr.mxu0 0.0
        %2743 = vmatpush1.msra.mxu0 %v2621
        %2744 = vmatprep.subr.mxu0 0.0
        %2745 = vmatpush1.msra.mxu0 %v2622
        %2746 = vmatprep.subr.mxu0 0.0
        %2747 = vmatpush1.msra.mxu0 0.0
        %2748 = vmatprep.subr.mxu0 0.0
        %2749 = vmatpush1.msra.mxu0 0.0
        %2750 = vmatprep.subr.mxu0 0.0
        %2751 = vmatpush1.msra.mxu0 0.0
        %2752 = vmatprep.subr.mxu0 0.0
        %2753 = vmatpush1.msra.mxu0 0.0
        %2754 = vmatprep.subr.mxu0 0.0
        %2755 = vmatpush1.msra.mxu0 0.0
        %2756 = vmatprep.subr.mxu0 0.0
        %2757 = vmatpush1.msra.mxu0 0.0
        %2758 = vmatprep.subr.mxu0 0.0
        %2759 = vmatpush1.msra.mxu0 0.0
        %2760 = vmatprep.subr.mxu0 0.0
        %2761 = vmatpush1.msra.mxu0 0.0
        %2762 = vmatprep.subr.mxu0 0.0
        %2763 = vmatpush1.msra.mxu0 0.0
        %2764 = vmatprep.subr.mxu0 0.0
        %2765 = vmatpush1.msra.mxu0 0.0
        %2766 = vmatprep.subr.mxu0 0.0
        %2767 = vmatpush1.msra.mxu0 0.0
        %2768 = vmatprep.subr.mxu0 0.0
        %2769 = vmatpush1.msra.mxu0 0.0
        %2770 = vmatprep.subr.mxu0 0.0
        %2771 = vmatpush1.msra.mxu0 0.0
        %2772 = vmatprep.subr.mxu0 0.0
        %2773 = vmatpush1.msra.mxu0 0.0
        %2774 = vmatprep.subr.mxu0 0.0
        %2775 = vmatpush1.msra.mxu0 0.0
        %2776 = vmatprep.subr.mxu0 0.0
        %2777 = vmatpush1.msra.mxu0 0.0
        %2778 = vmatprep.mubr.f32.mxu0 0.0
        %2779 = vmatmul.mubr.f32.gmra.mrb[0].mxu0 %v2707
        %v2780 = vpop.f32.mrb[0].mxu0
        %v2781 = vadd.f32 %v2712, %v2780
        %v2782 = vpop.f32.mrb[0].mxu0
        %2783 = vdwg.mxu0
        %v2784 = vadd.f32 %v2572, %v2781
        %s2785 = scalar_lea.vmem %s2, 1
        %v2786 = vld [vmem:[%s2785] sm:$0x1]
        %s2787 = scalar_lea.vmem %s3, 1
        %v2788 = vld [vmem:[%s2787] sm:$0x1]
        %v2789 = vsel %vm608, %v2784, 0.0
        %2790 = vadd.xlane.f32.xlu0 %v2789
        %v2791 = vpop.xlane.xlu0 %2790
        %v2792 = vmul.f32 %v2791, %v612
        %v2793 = vsub.f32 %v2784, %v2792
        %v2794 = vmul.f32 %v2793, %v2793
        %v2795 = vsel %vm608, %v2794, 0.0
        %2796 = vadd.xlane.f32.xlu0 %v2795
        %v2797 = vpop.xlane.xlu0 %2796
        %v2798 = vmul.f32 %v2797, %v612
        %v2799 = vadd.f32 %v2798, 1e-05
        %v2800 = vrsqrt.pop %v2799
        %v2801 = vmul.f32 %v2793, %v2800
        %v2803 = vlaneseq
        %v2804 = vshrl.u32 %v2803, 7
        %v2805 = vsub.s32 0, %v2804
        %v2806 = vrot.slane %v2786, %v2805
        %v2808 = vmul.f32 %v2801, %v2806
        %v2810 = vlaneseq
        %v2811 = vshrl.u32 %v2810, 7
        %v2812 = vsub.s32 0, %v2811
        %v2813 = vrot.slane %v2788, %v2812
        %v2815 = vadd.f32 %v2808, %v2813
        %s2816 = scalar_lea.vmem %s4, 384
        %v2817 = vld [vmem:[%s2816] sm:$0xff]
        %v2818 = vld [vmem:[%s2816 + $0x8] sm:$0xff]
        %v2819 = vld [vmem:[%s2816 + $0x10] sm:$0xff]
        %v2820 = vld [vmem:[%s2816 + $0x18] sm:$0xff]
        %v2821 = vld [vmem:[%s2816 + $0x20] sm:$0xff]
        %v2822 = vld [vmem:[%s2816 + $0x28] sm:$0xff]
        %v2823 = vld [vmem:[%s2816 + $0x30] sm:$0xff]
        %v2824 = vld [vmem:[%s2816 + $0x38] sm:$0xff]
        %v2825 = vld [vmem:[%s2816 + $0x40] sm:$0xff]
        %v2826 = vld [vmem:[%s2816 + $0x48] sm:$0xff]
        %v2827 = vld [vmem:[%s2816 + $0x50] sm:$0xff]
        %v2828 = vld [vmem:[%s2816 + $0x58] sm:$0xff]
        %v2829 = vld [vmem:[%s2816 + $0x60] sm:$0xff]
        %v2830 = vld [vmem:[%s2816 + $0x68] sm:$0xff]
        %v2831 = vld [vmem:[%s2816 + $0x70] sm:$0xff]
        %v2832 = vld [vmem:[%s2816 + $0x78] sm:$0xff]
        %v2833 = vld [vmem:[%s2816 + $0x80] sm:$0xff]
        %v2834 = vld [vmem:[%s2816 + $0x88] sm:$0xff]
        %v2835 = vld [vmem:[%s2816 + $0x90] sm:$0xff]
        %v2836 = vld [vmem:[%s2816 + $0x98] sm:$0xff]
        %v2837 = vld [vmem:[%s2816 + $0xa0] sm:$0xff]
        %v2838 = vld [vmem:[%s2816 + $0xa8] sm:$0xff]
        %v2839 = vld [vmem:[%s2816 + $0xb0] sm:$0xff]
        %v2840 = vld [vmem:[%s2816 + $0xb8] sm:$0xff]
        %v2841 = vld [vmem:[%s2816 + $0xc0] sm:$0xff]
        %v2842 = vld [vmem:[%s2816 + $0xc8] sm:$0xff]
        %v2843 = vld [vmem:[%s2816 + $0xd0] sm:$0xff]
        %v2844 = vld [vmem:[%s2816 + $0xd8] sm:$0xff]
        %v2845 = vld [vmem:[%s2816 + $0xe0] sm:$0xff]
        %v2846 = vld [vmem:[%s2816 + $0xe8] sm:$0xff]
        %v2847 = vld [vmem:[%s2816 + $0xf0] sm:$0xff]
        %v2848 = vld [vmem:[%s2816 + $0xf8] sm:$0xff]
        %v2849 = vld [vmem:[%s2816 + $0x100] sm:$0xff]
        %v2850 = vld [vmem:[%s2816 + $0x108] sm:$0xff]
        %v2851 = vld [vmem:[%s2816 + $0x110] sm:$0xff]
        %v2852 = vld [vmem:[%s2816 + $0x118] sm:$0xff]
        %v2853 = vld [vmem:[%s2816 + $0x120] sm:$0xff]
        %v2854 = vld [vmem:[%s2816 + $0x128] sm:$0xff]
        %v2855 = vld [vmem:[%s2816 + $0x130] sm:$0xff]
        %v2856 = vld [vmem:[%s2816 + $0x138] sm:$0xff]
        %v2857 = vld [vmem:[%s2816 + $0x140] sm:$0xff]
        %v2858 = vld [vmem:[%s2816 + $0x148] sm:$0xff]
        %v2859 = vld [vmem:[%s2816 + $0x150] sm:$0xff]
        %v2860 = vld [vmem:[%s2816 + $0x158] sm:$0xff]
        %v2861 = vld [vmem:[%s2816 + $0x160] sm:$0xff]
        %v2862 = vld [vmem:[%s2816 + $0x168] sm:$0xff]
        %v2863 = vld [vmem:[%s2816 + $0x170] sm:$0xff]
        %v2864 = vld [vmem:[%s2816 + $0x178] sm:$0xff]
        %s2865 = scalar_lea.vmem %s5, 12
        %v2866 = vld [vmem:[%s2865] sm:$0x1]
        %v2867 = vld [vmem:[%s2865 + $0x1] sm:$0x1]
        %v2868 = vld [vmem:[%s2865 + $0x2] sm:$0x1]
        %v2869 = vld [vmem:[%s2865 + $0x3] sm:$0x1]
        %v2870 = vld [vmem:[%s2865 + $0x4] sm:$0x1]
        %v2871 = vld [vmem:[%s2865 + $0x5] sm:$0x1]
        %v2872 = vld [vmem:[%s2865 + $0x6] sm:$0x1]
        %v2873 = vld [vmem:[%s2865 + $0x7] sm:$0x1]
        %v2874 = vld [vmem:[%s2865 + $0x8] sm:$0x1]
        %v2875 = vld [vmem:[%s2865 + $0x9] sm:$0x1]
        %v2876 = vld [vmem:[%s2865 + $0xa] sm:$0x1]
        %v2877 = vld [vmem:[%s2865 + $0xb] sm:$0x1]
        %s2878 = scalar_lea.vmem %s6, 32
        %v2879 = vld [vmem:[%s2878] sm:$0xff]
        %v2880 = vld [vmem:[%s2878 + $0x8] sm:$0xff]
        %v2881 = vld [vmem:[%s2878 + $0x10] sm:$0xff]
        %v2882 = vld [vmem:[%s2878 + $0x18] sm:$0xff]
        %s2883 = scalar_lea.vmem %s7, 1
        %v2884 = vld [vmem:[%s2883] sm:$0x1]
        %v2897 = vlaneseq
        %v2898 = vshrl.u32 %v2897, 7
        %v2899 = vsub.s32 0, %v2898
        %v2900 = vrot.slane %v2866, %v2899
        %v2901 = vlaneseq
        %v2902 = vshrl.u32 %v2901, 7
        %v2903 = vsub.s32 0, %v2902
        %v2904 = vrot.slane %v2867, %v2903
        %v2905 = vlaneseq
        %v2906 = vshrl.u32 %v2905, 7
        %v2907 = vsub.s32 0, %v2906
        %v2908 = vrot.slane %v2868, %v2907
        %v2909 = vlaneseq
        %v2910 = vshrl.u32 %v2909, 7
        %v2911 = vsub.s32 0, %v2910
        %v2912 = vrot.slane %v2869, %v2911
        %v2913 = vlaneseq
        %v2914 = vshrl.u32 %v2913, 7
        %v2915 = vsub.s32 0, %v2914
        %v2916 = vrot.slane %v2870, %v2915
        %v2917 = vlaneseq
        %v2918 = vshrl.u32 %v2917, 7
        %v2919 = vsub.s32 0, %v2918
        %v2920 = vrot.slane %v2871, %v2919
        %v2921 = vlaneseq
        %v2922 = vshrl.u32 %v2921, 7
        %v2923 = vsub.s32 0, %v2922
        %v2924 = vrot.slane %v2872, %v2923
        %v2925 = vlaneseq
        %v2926 = vshrl.u32 %v2925, 7
        %v2927 = vsub.s32 0, %v2926
        %v2928 = vrot.slane %v2873, %v2927
        %v2929 = vlaneseq
        %v2930 = vshrl.u32 %v2929, 7
        %v2931 = vsub.s32 0, %v2930
        %v2932 = vrot.slane %v2874, %v2931
        %v2933 = vlaneseq
        %v2934 = vshrl.u32 %v2933, 7
        %v2935 = vsub.s32 0, %v2934
        %v2936 = vrot.slane %v2875, %v2935
        %v2937 = vlaneseq
        %v2938 = vshrl.u32 %v2937, 7
        %v2939 = vsub.s32 0, %v2938
        %v2940 = vrot.slane %v2876, %v2939
        %v2941 = vlaneseq
        %v2942 = vshrl.u32 %v2941, 7
        %v2943 = vsub.s32 0, %v2942
        %v2944 = vrot.slane %v2877, %v2943
        %v2958 = vsel %vm608, %v2815, 0
        %2960 = vmatprep.subr.mxu0 0.0
        %2961 = vmatpush1.msra.mxu0 %v2817
        %2962 = vmatprep.subr.mxu0 0.0
        %2963 = vmatpush1.msra.mxu0 %v2818
        %2964 = vmatprep.subr.mxu0 0.0
        %2965 = vmatpush1.msra.mxu0 %v2819
        %2966 = vmatprep.subr.mxu0 0.0
        %2967 = vmatpush1.msra.mxu0 %v2820
        %2968 = vmatprep.subr.mxu0 0.0
        %2969 = vmatpush1.msra.mxu0 0.0
        %2970 = vmatprep.subr.mxu0 0.0
        %2971 = vmatpush1.msra.mxu0 0.0
        %2972 = vmatprep.subr.mxu0 0.0
        %2973 = vmatpush1.msra.mxu0 0.0
        %2974 = vmatprep.subr.mxu0 0.0
        %2975 = vmatpush1.msra.mxu0 0.0
        %2976 = vmatprep.subr.mxu0 0.0
        %2977 = vmatpush1.msra.mxu0 0.0
        %2978 = vmatprep.subr.mxu0 0.0
        %2979 = vmatpush1.msra.mxu0 0.0
        %2980 = vmatprep.subr.mxu0 0.0
        %2981 = vmatpush1.msra.mxu0 0.0
        %2982 = vmatprep.subr.mxu0 0.0
        %2983 = vmatpush1.msra.mxu0 0.0
        %2984 = vmatprep.subr.mxu0 0.0
        %2985 = vmatpush1.msra.mxu0 0.0
        %2986 = vmatprep.subr.mxu0 0.0
        %2987 = vmatpush1.msra.mxu0 0.0
        %2988 = vmatprep.subr.mxu0 0.0
        %2989 = vmatpush1.msra.mxu0 0.0
        %2990 = vmatprep.subr.mxu0 0.0
        %2991 = vmatpush1.msra.mxu0 0.0
        %2992 = vmatprep.subr.mxu0 0.0
        %2993 = vmatpush1.msra.mxu0 0.0
        %2994 = vmatprep.subr.mxu0 0.0
        %2995 = vmatpush1.msra.mxu0 0.0
        %2996 = vmatprep.subr.mxu0 0.0
        %2997 = vmatpush1.msra.mxu0 0.0
        %2998 = vmatprep.subr.mxu0 0.0
        %2999 = vmatpush1.msra.mxu0 0.0
        %3000 = vmatprep.subr.mxu0 0.0
        %3001 = vmatpush1.msra.mxu0 0.0
        %3002 = vmatprep.subr.mxu0 0.0
        %3003 = vmatpush1.msra.mxu0 0.0
        %3004 = vmatprep.subr.mxu0 0.0
        %3005 = vmatpush1.msra.mxu0 0.0
        %3006 = vmatprep.subr.mxu0 0.0
        %3007 = vmatpush1.msra.mxu0 0.0
        %3008 = vmatprep.subr.mxu0 0.0
        %3009 = vmatpush1.msra.mxu0 0.0
        %3010 = vmatprep.subr.mxu0 0.0
        %3011 = vmatpush1.msra.mxu0 0.0
        %3012 = vmatprep.subr.mxu0 0.0
        %3013 = vmatpush1.msra.mxu0 0.0
        %3014 = vmatprep.subr.mxu0 0.0
        %3015 = vmatpush1.msra.mxu0 0.0
        %3016 = vmatprep.subr.mxu0 0.0
        %3017 = vmatpush1.msra.mxu0 0.0
        %3018 = vmatprep.subr.mxu0 0.0
        %3019 = vmatpush1.msra.mxu0 0.0
        %3020 = vmatprep.subr.mxu0 0.0
        %3021 = vmatpush1.msra.mxu0 0.0
        %3022 = vmatprep.subr.mxu0 0.0
        %3023 = vmatpush1.msra.mxu0 0.0
        %3024 = vmatprep.mubr.f32.mxu0 0.0
        %3025 = vmatmul.mubr.f32.gmra.mrb[0].mxu0 %v2958
        %v3026 = vpop.f32.mrb[0].mxu0
        %v3027 = vadd.f32 %v2900, %v3026
        %v3028 = vpop.f32.mrb[0].mxu0
        %3029 = vdwg.mxu0
        %3030 = vmatprep.subr.mxu0 0.0
        %3031 = vmatpush1.msra.mxu0 %v2821
        %3032 = vmatprep.subr.mxu0 0.0
        %3033 = vmatpush1.msra.mxu0 %v2822
        %3034 = vmatprep.subr.mxu0 0.0
        %3035 = vmatpush1.msra.mxu0 %v2823
        %3036 = vmatprep.subr.mxu0 0.0
        %3037 = vmatpush1.msra.mxu0 %v2824
        %3038 = vmatprep.subr.mxu0 0.0
        %3039 = vmatpush1.msra.mxu0 0.0
        %3040 = vmatprep.subr.mxu0 0.0
        %3041 = vmatpush1.msra.mxu0 0.0
        %3042 = vmatprep.subr.mxu0 0.0
        %3043 = vmatpush1.msra.mxu0 0.0
        %3044 = vmatprep.subr.mxu0 0.0
        %3045 = vmatpush1.msra.mxu0 0.0
        %3046 = vmatprep.subr.mxu0 0.0
        %3047 = vmatpush1.msra.mxu0 0.0
        %3048 = vmatprep.subr.mxu0 0.0
        %3049 = vmatpush1.msra.mxu0 0.0
        %3050 = vmatprep.subr.mxu0 0.0
        %3051 = vmatpush1.msra.mxu0 0.0
        %3052 = vmatprep.subr.mxu0 0.0
        %3053 = vmatpush1.msra.mxu0 0.0
        %3054 = vmatprep.subr.mxu0 0.0
        %3055 = vmatpush1.msra.mxu0 0.0
        %3056 = vmatprep.subr.mxu0 0.0
        %3057 = vmatpush1.msra.mxu0 0.0
        %3058 = vmatprep.subr.mxu0 0.0
        %3059 = vmatpush1.msra.mxu0 0.0
        %3060 = vmatprep.subr.mxu0 0.0
        %3061 = vmatpush1.msra.mxu0 0.0
        %3062 = vmatprep.subr.mxu0 0.0
        %3063 = vmatpush1.msra.mxu0 0.0
        %3064 = vmatprep.subr.mxu0 0.0
        %3065 = vmatpush1.msra.mxu0 0.0
        %3066 = vmatprep.subr.mxu0 0.0
        %3067 = vmatpush1.msra.mxu0 0.0
        %3068 = vmatprep.subr.mxu0 0.0
        %3069 = vmatpush1.msra.mxu0 0.0
        %3070 = vmatprep.subr.mxu0 0.0
        %3071 = vmatpush1.msra.mxu0 0.0
        %3072 = vmatprep.subr.mxu0 0.0
        %3073 = vmatpush1.msra.mxu0 0.0
        %3074 = vmatprep.subr.mxu0 0.0
        %3075 = vmatpush1.msra.mxu0 0.0
        %3076 = vmatprep.subr.mxu0 0.0
        %3077 = vmatpush1.msra.mxu0 0.0
        %3078 = vmatprep.subr.mxu0 0.0
        %3079 = vmatpush1.msra.mxu0 0.0
        %3080 = vmatprep.subr.mxu0 0.0
        %3081 = vmatpush1.msra.mxu0 0.0
        %3082 = vmatprep.subr.mxu0 0.0
        %3083 = vmatpush1.msra.mxu0 0.0
        %3084 = vmatprep.subr.mxu0 0.0
        %3085 = vmatpush1.msra.mxu0 0.0
        %3086 = vmatprep.subr.mxu0 0.0
        %3087 = vmatpush1.msra.mxu0 0.0
        %3088 = vmatprep.subr.mxu0 0.0
        %3089 = vmatpush1.msra.mxu0 0.0
        %3090 = vmatprep.subr.mxu0 0.0
        %3091 = vmatpush1.msra.mxu0 0.0
        %3092 = vmatprep.subr.mxu0 0.0
        %3093 = vmatpush1.msra.mxu0 0.0
        %3094 = vmatprep.mubr.f32.mxu0 0.0
        %3095 = vmatmul.mubr.f32.gmra.mrb[0].mxu0 %v2958
        %v3096 = vpop.f32.mrb[0].mxu0
        %v3097 = vadd.f32 %v2904, %v3096
        %v3098 = vpop.f32.mrb[0].mxu0
        %3099 = vdwg.mxu0
        %3100 = vmatprep.subr.mxu0 0.0
        %3101 = vmatpush1.msra.mxu0 %v2825
        %3102 = vmatprep.subr.mxu0 0.0
        %3103 = vmatpush1.msra.mxu0 %v2826
        %3104 = vmatprep.subr.mxu0 0.0
        %3105 = vmatpush1.msra.mxu0 %v2827
        %3106 = vmatprep.subr.mxu0 0.0
        %3107 = vmatpush1.msra.mxu0 %v2828
        %3108 = vmatprep.subr.mxu0 0.0
        %3109 = vmatpush1.msra.mxu0 0.0
        %3110 = vmatprep.subr.mxu0 0.0
        %3111 = vmatpush1.msra.mxu0 0.0
        %3112 = vmatprep.subr.mxu0 0.0
        %3113 = vmatpush1.msra.mxu0 0.0
        %3114 = vmatprep.subr.mxu0 0.0
        %3115 = vmatpush1.msra.mxu0 0.0
        %3116 = vmatprep.subr.mxu0 0.0
        %3117 = vmatpush1.msra.mxu0 0.0
        %3118 = vmatprep.subr.mxu0 0.0
        %3119 = vmatpush1.msra.mxu0 0.0
        %3120 = vmatprep.subr.mxu0 0.0
        %3121 = vmatpush1.msra.mxu0 0.0
        %3122 = vmatprep.subr.mxu0 0.0
        %3123 = vmatpush1.msra.mxu0 0.0
        %3124 = vmatprep.subr.mxu0 0.0
        %3125 = vmatpush1.msra.mxu0 0.0
        %3126 = vmatprep.subr.mxu0 0.0
        %3127 = vmatpush1.msra.mxu0 0.0
        %3128 = vmatprep.subr.mxu0 0.0
        %3129 = vmatpush1.msra.mxu0 0.0
        %3130 = vmatprep.subr.mxu0 0.0
        %3131 = vmatpush1.msra.mxu0 0.0
        %3132 = vmatprep.subr.mxu0 0.0
        %3133 = vmatpush1.msra.mxu0 0.0
        %3134 = vmatprep.subr.mxu0 0.0
        %3135 = vmatpush1.msra.mxu0 0.0
        %3136 = vmatprep.subr.mxu0 0.0
        %3137 = vmatpush1.msra.mxu0 0.0
        %3138 = vmatprep.subr.mxu0 0.0
        %3139 = vmatpush1.msra.mxu0 0.0
        %3140 = vmatprep.subr.mxu0 0.0
        %3141 = vmatpush1.msra.mxu0 0.0
        %3142 = vmatprep.subr.mxu0 0.0
        %3143 = vmatpush1.msra.mxu0 0.0
        %3144 = vmatprep.subr.mxu0 0.0
        %3145 = vmatpush1.msra.mxu0 0.0
        %3146 = vmatprep.subr.mxu0 0.0
        %3147 = vmatpush1.msra.mxu0 0.0
        %3148 = vmatprep.subr.mxu0 0.0
        %3149 = vmatpush1.msra.mxu0 0.0
        %3150 = vmatprep.subr.mxu0 0.0
        %3151 = vmatpush1.msra.mxu0 0.0
        %3152 = vmatprep.subr.mxu0 0.0
        %3153 = vmatpush1.msra.mxu0 0.0
        %3154 = vmatprep.subr.mxu0 0.0
        %3155 = vmatpush1.msra.mxu0 0.0
        %3156 = vmatprep.subr.mxu0 0.0
        %3157 = vmatpush1.msra.mxu0 0.0
        %3158 = vmatprep.subr.mxu0 0.0
        %3159 = vmatpush1.msra.mxu0 0.0
        %3160 = vmatprep.subr.mxu0 0.0
        %3161 = vmatpush1.msra.mxu0 0.0
        %3162 = vmatprep.subr.mxu0 0.0
        %3163 = vmatpush1.msra.mxu0 0.0
        %3164 = vmatprep.mubr.f32.mxu0 0.0
        %3165 = vmatmul.mubr.f32.gmra.mrb[0].mxu0 %v2958
        %v3166 = vpop.f32.mrb[0].mxu0
        %v3167 = vadd.f32 %v2908, %v3166
        %v3168 = vpop.f32.mrb[0].mxu0
        %3169 = vdwg.mxu0
        %3170 = vmatprep.subr.mxu0 0.0
        %3171 = vmatpush1.msra.mxu0 %v2829
        %3172 = vmatprep.subr.mxu0 0.0
        %3173 = vmatpush1.msra.mxu0 %v2830
        %3174 = vmatprep.subr.mxu0 0.0
        %3175 = vmatpush1.msra.mxu0 %v2831
        %3176 = vmatprep.subr.mxu0 0.0
        %3177 = vmatpush1.msra.mxu0 %v2832
        %3178 = vmatprep.subr.mxu0 0.0
        %3179 = vmatpush1.msra.mxu0 0.0
        %3180 = vmatprep.subr.mxu0 0.0
        %3181 = vmatpush1.msra.mxu0 0.0
        %3182 = vmatprep.subr.mxu0 0.0
        %3183 = vmatpush1.msra.mxu0 0.0
        %3184 = vmatprep.subr.mxu0 0.0
        %3185 = vmatpush1.msra.mxu0 0.0
        %3186 = vmatprep.subr.mxu0 0.0
        %3187 = vmatpush1.msra.mxu0 0.0
        %3188 = vmatprep.subr.mxu0 0.0
        %3189 = vmatpush1.msra.mxu0 0.0
        %3190 = vmatprep.subr.mxu0 0.0
        %3191 = vmatpush1.msra.mxu0 0.0
        %3192 = vmatprep.subr.mxu0 0.0
        %3193 = vmatpush1.msra.mxu0 0.0
        %3194 = vmatprep.subr.mxu0 0.0
        %3195 = vmatpush1.msra.mxu0 0.0
        %3196 = vmatprep.subr.mxu0 0.0
        %3197 = vmatpush1.msra.mxu0 0.0
        %3198 = vmatprep.subr.mxu0 0.0
        %3199 = vmatpush1.msra.mxu0 0.0
        %3200 = vmatprep.subr.mxu0 0.0
        %3201 = vmatpush1.msra.mxu0 0.0
        %3202 = vmatprep.subr.mxu0 0.0
        %3203 = vmatpush1.msra.mxu0 0.0
        %3204 = vmatprep.subr.mxu0 0.0
        %3205 = vmatpush1.msra.mxu0 0.0
        %3206 = vmatprep.subr.mxu0 0.0
        %3207 = vmatpush1.msra.mxu0 0.0
        %3208 = vmatprep.subr.mxu0 0.0
        %3209 = vmatpush1.msra.mxu0 0.0
        %3210 = vmatprep.subr.mxu0 0.0
        %3211 = vmatpush1.msra.mxu0 0.0
        %3212 = vmatprep.subr.mxu0 0.0
        %3213 = vmatpush1.msra.mxu0 0.0
        %3214 = vmatprep.subr.mxu0 0.0
        %3215 = vmatpush1.msra.mxu0 0.0
        %3216 = vmatprep.subr.mxu0 0.0
        %3217 = vmatpush1.msra.mxu0 0.0
        %3218 = vmatprep.subr.mxu0 0.0
        %3219 = vmatpush1.msra.mxu0 0.0
        %3220 = vmatprep.subr.mxu0 0.0
        %3221 = vmatpush1.msra.mxu0 0.0
        %3222 = vmatprep.subr.mxu0 0.0
        %3223 = vmatpush1.msra.mxu0 0.0
        %3224 = vmatprep.subr.mxu0 0.0
        %3225 = vmatpush1.msra.mxu0 0.0
        %3226 = vmatprep.subr.mxu0 0.0
        %3227 = vmatpush1.msra.mxu0 0.0
        %3228 = vmatprep.subr.mxu0 0.0
        %3229 = vmatpush1.msra.mxu0 0.0
        %3230 = vmatprep.subr.mxu0 0.0
        %3231 = vmatpush1.msra.mxu0 0.0
        %3232 = vmatprep.subr.mxu0 0.0
        %3233 = vmatpush1.msra.mxu0 0.0
        %3234 = vmatprep.mubr.f32.mxu0 0.0
        %3235 = vmatmul.mubr.f32.gmra.mrb[0].mxu0 %v2958
        %v3236 = vpop.f32.mrb[0].mxu0
        %v3237 = vadd.f32 %v2912, %v3236
        %v3238 = vpop.f32.mrb[0].mxu0
        %3239 = vdwg.mxu0
        %3240 = vmatprep.subr.mxu0 0.0
        %3241 = vmatpush1.msra.mxu0 %v2833
        %3242 = vmatprep.subr.mxu0 0.0
        %3243 = vmatpush1.msra.mxu0 %v2834
        %3244 = vmatprep.subr.mxu0 0.0
        %3245 = vmatpush1.msra.mxu0 %v2835
        %3246 = vmatprep.subr.mxu0 0.0
        %3247 = vmatpush1.msra.mxu0 %v2836
        %3248 = vmatprep.subr.mxu0 0.0
        %3249 = vmatpush1.msra.mxu0 0.0
        %3250 = vmatprep.subr.mxu0 0.0
        %3251 = vmatpush1.msra.mxu0 0.0
        %3252 = vmatprep.subr.mxu0 0.0
        %3253 = vmatpush1.msra.mxu0 0.0
        %3254 = vmatprep.subr.mxu0 0.0
        %3255 = vmatpush1.msra.mxu0 0.0
        %3256 = vmatprep.subr.mxu0 0.0
        %3257 = vmatpush1.msra.mxu0 0.0
        %3258 = vmatprep.subr.mxu0 0.0
        %3259 = vmatpush1.msra.mxu0 0.0
        %3260 = vmatprep.subr.mxu0 0.0
        %3261 = vmatpush1.msra.mxu0 0.0
        %3262 = vmatprep.subr.mxu0 0.0
        %3263 = vmatpush1.msra.mxu0 0.0
        %3264 = vmatprep.subr.mxu0 0.0
        %3265 = vmatpush1.msra.mxu0 0.0
        %3266 = vmatprep.subr.mxu0 0.0
        %3267 = vmatpush1.msra.mxu0 0.0
        %3268 = vmatprep.subr.mxu0 0.0
        %3269 = vmatpush1.msra.mxu0 0.0
        %3270 = vmatprep.subr.mxu0 0.0
        %3271 = vmatpush1.msra.mxu0 0.0
        %3272 = vmatprep.subr.mxu0 0.0
        %3273 = vmatpush1.msra.mxu0 0.0
        %3274 = vmatprep.subr.mxu0 0.0
        %3275 = vmatpush1.msra.mxu0 0.0
        %3276 = vmatprep.subr.mxu0 0.0
        %3277 = vmatpush1.msra.mxu0 0.0
        %3278 = vmatprep.subr.mxu0 0.0
        %3279 = vmatpush1.msra.mxu0 0.0
        %3280 = vmatprep.subr.mxu0 0.0
        %3281 = vmatpush1.msra.mxu0 0.0
        %3282 = vmatprep.subr.mxu0 0.0
        %3283 = vmatpush1.msra.mxu0 0.0
        %3284 = vmatprep.subr.mxu0 0.0
        %3285 = vmatpush1.msra.mxu0 0.0
        %3286 = vmatprep.subr.mxu0 0.0
        %3287 = vmatpush1.msra.mxu0 0.0
        %3288 = vmatprep.subr.mxu0 0.0
        %3289 = vmatpush1.msra.mxu0 0.0
        %3290 = vmatprep.subr.mxu0 0.0
        %3291 = vmatpush1.msra.mxu0 0.0
        %3292 = vmatprep.subr.mxu0 0.0
        %3293 = vmatpush1.msra.mxu0 0.0
        %3294 = vmatprep.subr.mxu0 0.0
        %3295 = vmatpush1.msra.mxu0 0.0
        %3296 = vmatprep.subr.mxu0 0.0
        %3297 = vmatpush1.msra.mxu0 0.0
        %3298 = vmatprep.subr.mxu0 0.0
        %3299 = vmatpush1.msra.mxu0 0.0
        %3300 = vmatprep.subr.mxu0 0.0
        %3301 = vmatpush1.msra.mxu0 0.0
        %3302 = vmatprep.subr.mxu0 0.0
        %3303 = vmatpush1.msra.mxu0 0.0
        %3304 = vmatprep.mubr.f32.mxu0 0.0
        %3305 = vmatmul.mubr.f32.gmra.mrb[0].mxu0 %v2958
        %v3306 = vpop.f32.mrb[0].mxu0
        %v3307 = vadd.f32 %v2916, %v3306
        %v3308 = vpop.f32.mrb[0].mxu0
        %3309 = vdwg.mxu0
        %3310 = vmatprep.subr.mxu0 0.0
        %3311 = vmatpush1.msra.mxu0 %v2837
        %3312 = vmatprep.subr.mxu0 0.0
        %3313 = vmatpush1.msra.mxu0 %v2838
        %3314 = vmatprep.subr.mxu0 0.0
        %3315 = vmatpush1.msra.mxu0 %v2839
        %3316 = vmatprep.subr.mxu0 0.0
        %3317 = vmatpush1.msra.mxu0 %v2840
        %3318 = vmatprep.subr.mxu0 0.0
        %3319 = vmatpush1.msra.mxu0 0.0
        %3320 = vmatprep.subr.mxu0 0.0
        %3321 = vmatpush1.msra.mxu0 0.0
        %3322 = vmatprep.subr.mxu0 0.0
        %3323 = vmatpush1.msra.mxu0 0.0
        %3324 = vmatprep.subr.mxu0 0.0
        %3325 = vmatpush1.msra.mxu0 0.0
        %3326 = vmatprep.subr.mxu0 0.0
        %3327 = vmatpush1.msra.mxu0 0.0
        %3328 = vmatprep.subr.mxu0 0.0
        %3329 = vmatpush1.msra.mxu0 0.0
        %3330 = vmatprep.subr.mxu0 0.0
        %3331 = vmatpush1.msra.mxu0 0.0
        %3332 = vmatprep.subr.mxu0 0.0
        %3333 = vmatpush1.msra.mxu0 0.0
        %3334 = vmatprep.subr.mxu0 0.0
        %3335 = vmatpush1.msra.mxu0 0.0
        %3336 = vmatprep.subr.mxu0 0.0
        %3337 = vmatpush1.msra.mxu0 0.0
        %3338 = vmatprep.subr.mxu0 0.0
        %3339 = vmatpush1.msra.mxu0 0.0
        %3340 = vmatprep.subr.mxu0 0.0
        %3341 = vmatpush1.msra.mxu0 0.0
        %3342 = vmatprep.subr.mxu0 0.0
        %3343 = vmatpush1.msra.mxu0 0.0
        %3344 = vmatprep.subr.mxu0 0.0
        %3345 = vmatpush1.msra.mxu0 0.0
        %3346 = vmatprep.subr.mxu0 0.0
        %3347 = vmatpush1.msra.mxu0 0.0
        %3348 = vmatprep.subr.mxu0 0.0
        %3349 = vmatpush1.msra.mxu0 0.0
        %3350 = vmatprep.subr.mxu0 0.0
        %3351 = vmatpush1.msra.mxu0 0.0
        %3352 = vmatprep.subr.mxu0 0.0
        %3353 = vmatpush1.msra.mxu0 0.0
        %3354 = vmatprep.subr.mxu0 0.0
        %3355 = vmatpush1.msra.mxu0 0.0
        %3356 = vmatprep.subr.mxu0 0.0
        %3357 = vmatpush1.msra.mxu0 0.0
        %3358 = vmatprep.subr.mxu0 0.0
        %3359 = vmatpush1.msra.mxu0 0.0
        %3360 = vmatprep.subr.mxu0 0.0
        %3361 = vmatpush1.msra.mxu0 0.0
        %3362 = vmatprep.subr.mxu0 0.0
        %3363 = vmatpush1.msra.mxu0 0.0
        %3364 = vmatprep.subr.mxu0 0.0
        %3365 = vmatpush1.msra.mxu0 0.0
        %3366 = vmatprep.subr.mxu0 0.0
        %3367 = vmatpush1.msra.mxu0 0.0
        %3368 = vmatprep.subr.mxu0 0.0
        %3369 = vmatpush1.msra.mxu0 0.0
        %3370 = vmatprep.subr.mxu0 0.0
        %3371 = vmatpush1.msra.mxu0 0.0
        %3372 = vmatprep.subr.mxu0 0.0
        %3373 = vmatpush1.msra.mxu0 0.0
        %3374 = vmatprep.mubr.f32.mxu0 0.0
        %3375 = vmatmul.mubr.f32.gmra.mrb[0].mxu0 %v2958
        %v3376 = vpop.f32.mrb[0].mxu0
        %v3377 = vadd.f32 %v2920, %v3376
        %v3378 = vpop.f32.mrb[0].mxu0
        %3379 = vdwg.mxu0
        %3380 = vmatprep.subr.mxu0 0.0
        %3381 = vmatpush1.msra.mxu0 %v2841
        %3382 = vmatprep.subr.mxu0 0.0
        %3383 = vmatpush1.msra.mxu0 %v2842
        %3384 = vmatprep.subr.mxu0 0.0
        %3385 = vmatpush1.msra.mxu0 %v2843
        %3386 = vmatprep.subr.mxu0 0.0
        %3387 = vmatpush1.msra.mxu0 %v2844
        %3388 = vmatprep.subr.mxu0 0.0
        %3389 = vmatpush1.msra.mxu0 0.0
        %3390 = vmatprep.subr.mxu0 0.0
        %3391 = vmatpush1.msra.mxu0 0.0
        %3392 = vmatprep.subr.mxu0 0.0
        %3393 = vmatpush1.msra.mxu0 0.0
        %3394 = vmatprep.subr.mxu0 0.0
        %3395 = vmatpush1.msra.mxu0 0.0
        %3396 = vmatprep.subr.mxu0 0.0
        %3397 = vmatpush1.msra.mxu0 0.0
        %3398 = vmatprep.subr.mxu0 0.0
        %3399 = vmatpush1.msra.mxu0 0.0
        %3400 = vmatprep.subr.mxu0 0.0
        %3401 = vmatpush1.msra.mxu0 0.0
        %3402 = vmatprep.subr.mxu0 0.0
        %3403 = vmatpush1.msra.mxu0 0.0
        %3404 = vmatprep.subr.mxu0 0.0
        %3405 = vmatpush1.msra.mxu0 0.0
        %3406 = vmatprep.subr.mxu0 0.0
        %3407 = vmatpush1.msra.mxu0 0.0
        %3408 = vmatprep.subr.mxu0 0.0
        %3409 = vmatpush1.msra.mxu0 0.0
        %3410 = vmatprep.subr.mxu0 0.0
        %3411 = vmatpush1.msra.mxu0 0.0
        %3412 = vmatprep.subr.mxu0 0.0
        %3413 = vmatpush1.msra.mxu0 0.0
        %3414 = vmatprep.subr.mxu0 0.0
        %3415 = vmatpush1.msra.mxu0 0.0
        %3416 = vmatprep.subr.mxu0 0.0
        %3417 = vmatpush1.msra.mxu0 0.0
        %3418 = vmatprep.subr.mxu0 0.0
        %3419 = vmatpush1.msra.mxu0 0.0
        %3420 = vmatprep.subr.mxu0 0.0
        %3421 = vmatpush1.msra.mxu0 0.0
        %3422 = vmatprep.subr.mxu0 0.0
        %3423 = vmatpush1.msra.mxu0 0.0
        %3424 = vmatprep.subr.mxu0 0.0
        %3425 = vmatpush1.msra.mxu0 0.0
        %3426 = vmatprep.subr.mxu0 0.0
        %3427 = vmatpush1.msra.mxu0 0.0
        %3428 = vmatprep.subr.mxu0 0.0
        %3429 = vmatpush1.msra.mxu0 0.0
        %3430 = vmatprep.subr.mxu0 0.0
        %3431 = vmatpush1.msra.mxu0 0.0
        %3432 = vmatprep.subr.mxu0 0.0
        %3433 = vmatpush1.msra.mxu0 0.0
        %3434 = vmatprep.subr.mxu0 0.0
        %3435 = vmatpush1.msra.mxu0 0.0
        %3436 = vmatprep.subr.mxu0 0.0
        %3437 = vmatpush1.msra.mxu0 0.0
        %3438 = vmatprep.subr.mxu0 0.0
        %3439 = vmatpush1.msra.mxu0 0.0
        %3440 = vmatprep.subr.mxu0 0.0
        %3441 = vmatpush1.msra.mxu0 0.0
        %3442 = vmatprep.subr.mxu0 0.0
        %3443 = vmatpush1.msra.mxu0 0.0
        %3444 = vmatprep.mubr.f32.mxu0 0.0
        %3445 = vmatmul.mubr.f32.gmra.mrb[0].mxu0 %v2958
        %v3446 = vpop.f32.mrb[0].mxu0
        %v3447 = vadd.f32 %v2924, %v3446
        %v3448 = vpop.f32.mrb[0].mxu0
        %3449 = vdwg.mxu0
        %3450 = vmatprep.subr.mxu0 0.0
        %3451 = vmatpush1.msra.mxu0 %v2845
        %3452 = vmatprep.subr.mxu0 0.0
        %3453 = vmatpush1.msra.mxu0 %v2846
        %3454 = vmatprep.subr.mxu0 0.0
        %3455 = vmatpush1.msra.mxu0 %v2847
        %3456 = vmatprep.subr.mxu0 0.0
        %3457 = vmatpush1.msra.mxu0 %v2848
        %3458 = vmatprep.subr.mxu0 0.0
        %3459 = vmatpush1.msra.mxu0 0.0
        %3460 = vmatprep.subr.mxu0 0.0
        %3461 = vmatpush1.msra.mxu0 0.0
        %3462 = vmatprep.subr.mxu0 0.0
        %3463 = vmatpush1.msra.mxu0 0.0
        %3464 = vmatprep.subr.mxu0 0.0
        %3465 = vmatpush1.msra.mxu0 0.0
        %3466 = vmatprep.subr.mxu0 0.0
        %3467 = vmatpush1.msra.mxu0 0.0
        %3468 = vmatprep.subr.mxu0 0.0
        %3469 = vmatpush1.msra.mxu0 0.0
        %3470 = vmatprep.subr.mxu0 0.0
        %3471 = vmatpush1.msra.mxu0 0.0
        %3472 = vmatprep.subr.mxu0 0.0
        %3473 = vmatpush1.msra.mxu0 0.0
        %3474 = vmatprep.subr.mxu0 0.0
        %3475 = vmatpush1.msra.mxu0 0.0
        %3476 = vmatprep.subr.mxu0 0.0
        %3477 = vmatpush1.msra.mxu0 0.0
        %3478 = vmatprep.subr.mxu0 0.0
        %3479 = vmatpush1.msra.mxu0 0.0
        %3480 = vmatprep.subr.mxu0 0.0
        %3481 = vmatpush1.msra.mxu0 0.0
        %3482 = vmatprep.subr.mxu0 0.0
        %3483 = vmatpush1.msra.mxu0 0.0
        %3484 = vmatprep.subr.mxu0 0.0
        %3485 = vmatpush1.msra.mxu0 0.0
        %3486 = vmatprep.subr.mxu0 0.0
        %3487 = vmatpush1.msra.mxu0 0.0
        %3488 = vmatprep.subr.mxu0 0.0
        %3489 = vmatpush1.msra.mxu0 0.0
        %3490 = vmatprep.subr.mxu0 0.0
        %3491 = vmatpush1.msra.mxu0 0.0
        %3492 = vmatprep.subr.mxu0 0.0
        %3493 = vmatpush1.msra.mxu0 0.0
        %3494 = vmatprep.subr.mxu0 0.0
        %3495 = vmatpush1.msra.mxu0 0.0
        %3496 = vmatprep.subr.mxu0 0.0
        %3497 = vmatpush1.msra.mxu0 0.0
        %3498 = vmatprep.subr.mxu0 0.0
        %3499 = vmatpush1.msra.mxu0 0.0
        %3500 = vmatprep.subr.mxu0 0.0
        %3501 = vmatpush1.msra.mxu0 0.0
        %3502 = vmatprep.subr.mxu0 0.0
        %3503 = vmatpush1.msra.mxu0 0.0
        %3504 = vmatprep.subr.mxu0 0.0
        %3505 = vmatpush1.msra.mxu0 0.0
        %3506 = vmatprep.subr.mxu0 0.0
        %3507 = vmatpush1.msra.mxu0 0.0
        %3508 = vmatprep.subr.mxu0 0.0
        %3509 = vmatpush1.msra.mxu0 0.0
        %3510 = vmatprep.subr.mxu0 0.0
        %3511 = vmatpush1.msra.mxu0 0.0
        %3512 = vmatprep.subr.mxu0 0.0
        %3513 = vmatpush1.msra.mxu0 0.0
        %3514 = vmatprep.mubr.f32.mxu0 0.0
        %3515 = vmatmul.mubr.f32.gmra.mrb[0].mxu0 %v2958
        %v3516 = vpop.f32.mrb[0].mxu0
        %v3517 = vadd.f32 %v2928, %v3516
        %v3518 = vpop.f32.mrb[0].mxu0
        %3519 = vdwg.mxu0
        %3520 = vmatprep.subr.mxu0 0.0
        %3521 = vmatpush1.msra.mxu0 %v2849
        %3522 = vmatprep.subr.mxu0 0.0
        %3523 = vmatpush1.msra.mxu0 %v2850
        %3524 = vmatprep.subr.mxu0 0.0
        %3525 = vmatpush1.msra.mxu0 %v2851
        %3526 = vmatprep.subr.mxu0 0.0
        %3527 = vmatpush1.msra.mxu0 %v2852
        %3528 = vmatprep.subr.mxu0 0.0
        %3529 = vmatpush1.msra.mxu0 0.0
        %3530 = vmatprep.subr.mxu0 0.0
        %3531 = vmatpush1.msra.mxu0 0.0
        %3532 = vmatprep.subr.mxu0 0.0
        %3533 = vmatpush1.msra.mxu0 0.0
        %3534 = vmatprep.subr.mxu0 0.0
        %3535 = vmatpush1.msra.mxu0 0.0
        %3536 = vmatprep.subr.mxu0 0.0
        %3537 = vmatpush1.msra.mxu0 0.0
        %3538 = vmatprep.subr.mxu0 0.0
        %3539 = vmatpush1.msra.mxu0 0.0
        %3540 = vmatprep.subr.mxu0 0.0
        %3541 = vmatpush1.msra.mxu0 0.0
        %3542 = vmatprep.subr.mxu0 0.0
        %3543 = vmatpush1.msra.mxu0 0.0
        %3544 = vmatprep.subr.mxu0 0.0
        %3545 = vmatpush1.msra.mxu0 0.0
        %3546 = vmatprep.subr.mxu0 0.0
        %3547 = vmatpush1.msra.mxu0 0.0
        %3548 = vmatprep.subr.mxu0 0.0
        %3549 = vmatpush1.msra.mxu0 0.0
        %3550 = vmatprep.subr.mxu0 0.0
        %3551 = vmatpush1.msra.mxu0 0.0
        %3552 = vmatprep.subr.mxu0 0.0
        %3553 = vmatpush1.msra.mxu0 0.0
        %3554 = vmatprep.subr.mxu0 0.0
        %3555 = vmatpush1.msra.mxu0 0.0
        %3556 = vmatprep.subr.mxu0 0.0
        %3557 = vmatpush1.msra.mxu0 0.0
        %3558 = vmatprep.subr.mxu0 0.0
        %3559 = vmatpush1.msra.mxu0 0.0
        %3560 = vmatprep.subr.mxu0 0.0
        %3561 = vmatpush1.msra.mxu0 0.0
        %3562 = vmatprep.subr.mxu0 0.0
        %3563 = vmatpush1.msra.mxu0 0.0
        %3564 = vmatprep.subr.mxu0 0.0
        %3565 = vmatpush1.msra.mxu0 0.0
        %3566 = vmatprep.subr.mxu0 0.0
        %3567 = vmatpush1.msra.mxu0 0.0
        %3568 = vmatprep.subr.mxu0 0.0
        %3569 = vmatpush1.msra.mxu0 0.0
        %3570 = vmatprep.subr.mxu0 0.0
        %3571 = vmatpush1.msra.mxu0 0.0
        %3572 = vmatprep.subr.mxu0 0.0
        %3573 = vmatpush1.msra.mxu0 0.0
        %3574 = vmatprep.subr.mxu0 0.0
        %3575 = vmatpush1.msra.mxu0 0.0
        %3576 = vmatprep.subr.mxu0 0.0
        %3577 = vmatpush1.msra.mxu0 0.0
        %3578 = vmatprep.subr.mxu0 0.0
        %3579 = vmatpush1.msra.mxu0 0.0
        %3580 = vmatprep.subr.mxu0 0.0
        %3581 = vmatpush1.msra.mxu0 0.0
        %3582 = vmatprep.subr.mxu0 0.0
        %3583 = vmatpush1.msra.mxu0 0.0
        %3584 = vmatprep.mubr.f32.mxu0 0.0
        %3585 = vmatmul.mubr.f32.gmra.mrb[0].mxu0 %v2958
        %v3586 = vpop.f32.mrb[0].mxu0
        %v3587 = vadd.f32 %v2932, %v3586
        %v3588 = vpop.f32.mrb[0].mxu0
        %3589 = vdwg.mxu0
        %3590 = vmatprep.subr.mxu0 0.0
        %3591 = vmatpush1.msra.mxu0 %v2853
        %3592 = vmatprep.subr.mxu0 0.0
        %3593 = vmatpush1.msra.mxu0 %v2854
        %3594 = vmatprep.subr.mxu0 0.0
        %3595 = vmatpush1.msra.mxu0 %v2855
        %3596 = vmatprep.subr.mxu0 0.0
        %3597 = vmatpush1.msra.mxu0 %v2856
        %3598 = vmatprep.subr.mxu0 0.0
        %3599 = vmatpush1.msra.mxu0 0.0
        %3600 = vmatprep.subr.mxu0 0.0
        %3601 = vmatpush1.msra.mxu0 0.0
        %3602 = vmatprep.subr.mxu0 0.0
        %3603 = vmatpush1.msra.mxu0 0.0
        %3604 = vmatprep.subr.mxu0 0.0
        %3605 = vmatpush1.msra.mxu0 0.0
        %3606 = vmatprep.subr.mxu0 0.0
        %3607 = vmatpush1.msra.mxu0 0.0
        %3608 = vmatprep.subr.mxu0 0.0
        %3609 = vmatpush1.msra.mxu0 0.0
        %3610 = vmatprep.subr.mxu0 0.0
        %3611 = vmatpush1.msra.mxu0 0.0
        %3612 = vmatprep.subr.mxu0 0.0
        %3613 = vmatpush1.msra.mxu0 0.0
        %3614 = vmatprep.subr.mxu0 0.0
        %3615 = vmatpush1.msra.mxu0 0.0
        %3616 = vmatprep.subr.mxu0 0.0
        %3617 = vmatpush1.msra.mxu0 0.0
        %3618 = vmatprep.subr.mxu0 0.0
        %3619 = vmatpush1.msra.mxu0 0.0
        %3620 = vmatprep.subr.mxu0 0.0
        %3621 = vmatpush1.msra.mxu0 0.0
        %3622 = vmatprep.subr.mxu0 0.0
        %3623 = vmatpush1.msra.mxu0 0.0
        %3624 = vmatprep.subr.mxu0 0.0
        %3625 = vmatpush1.msra.mxu0 0.0
        %3626 = vmatprep.subr.mxu0 0.0
        %3627 = vmatpush1.msra.mxu0 0.0
        %3628 = vmatprep.subr.mxu0 0.0
        %3629 = vmatpush1.msra.mxu0 0.0
        %3630 = vmatprep.subr.mxu0 0.0
        %3631 = vmatpush1.msra.mxu0 0.0
        %3632 = vmatprep.subr.mxu0 0.0
        %3633 = vmatpush1.msra.mxu0 0.0
        %3634 = vmatprep.subr.mxu0 0.0
        %3635 = vmatpush1.msra.mxu0 0.0
        %3636 = vmatprep.subr.mxu0 0.0
        %3637 = vmatpush1.msra.mxu0 0.0
        %3638 = vmatprep.subr.mxu0 0.0
        %3639 = vmatpush1.msra.mxu0 0.0
        %3640 = vmatprep.subr.mxu0 0.0
        %3641 = vmatpush1.msra.mxu0 0.0
        %3642 = vmatprep.subr.mxu0 0.0
        %3643 = vmatpush1.msra.mxu0 0.0
        %3644 = vmatprep.subr.mxu0 0.0
        %3645 = vmatpush1.msra.mxu0 0.0
        %3646 = vmatprep.subr.mxu0 0.0
        %3647 = vmatpush1.msra.mxu0 0.0
        %3648 = vmatprep.subr.mxu0 0.0
        %3649 = vmatpush1.msra.mxu0 0.0
        %3650 = vmatprep.subr.mxu0 0.0
        %3651 = vmatpush1.msra.mxu0 0.0
        %3652 = vmatprep.subr.mxu0 0.0
        %3653 = vmatpush1.msra.mxu0 0.0
        %3654 = vmatprep.mubr.f32.mxu0 0.0
        %3655 = vmatmul.mubr.f32.gmra.mrb[0].mxu0 %v2958
        %v3656 = vpop.f32.mrb[0].mxu0
        %v3657 = vadd.f32 %v2936, %v3656
        %v3658 = vpop.f32.mrb[0].mxu0
        %3659 = vdwg.mxu0
        %3660 = vmatprep.subr.mxu0 0.0
        %3661 = vmatpush1.msra.mxu0 %v2857
        %3662 = vmatprep.subr.mxu0 0.0
        %3663 = vmatpush1.msra.mxu0 %v2858
        %3664 = vmatprep.subr.mxu0 0.0
        %3665 = vmatpush1.msra.mxu0 %v2859
        %3666 = vmatprep.subr.mxu0 0.0
        %3667 = vmatpush1.msra.mxu0 %v2860
        %3668 = vmatprep.subr.mxu0 0.0
        %3669 = vmatpush1.msra.mxu0 0.0
        %3670 = vmatprep.subr.mxu0 0.0
        %3671 = vmatpush1.msra.mxu0 0.0
        %3672 = vmatprep.subr.mxu0 0.0
        %3673 = vmatpush1.msra.mxu0 0.0
        %3674 = vmatprep.subr.mxu0 0.0
        %3675 = vmatpush1.msra.mxu0 0.0
        %3676 = vmatprep.subr.mxu0 0.0
        %3677 = vmatpush1.msra.mxu0 0.0
        %3678 = vmatprep.subr.mxu0 0.0
        %3679 = vmatpush1.msra.mxu0 0.0
        %3680 = vmatprep.subr.mxu0 0.0
        %3681 = vmatpush1.msra.mxu0 0.0
        %3682 = vmatprep.subr.mxu0 0.0
        %3683 = vmatpush1.msra.mxu0 0.0
        %3684 = vmatprep.subr.mxu0 0.0
        %3685 = vmatpush1.msra.mxu0 0.0
        %3686 = vmatprep.subr.mxu0 0.0
        %3687 = vmatpush1.msra.mxu0 0.0
        %3688 = vmatprep.subr.mxu0 0.0
        %3689 = vmatpush1.msra.mxu0 0.0
        %3690 = vmatprep.subr.mxu0 0.0
        %3691 = vmatpush1.msra.mxu0 0.0
        %3692 = vmatprep.subr.mxu0 0.0
        %3693 = vmatpush1.msra.mxu0 0.0
        %3694 = vmatprep.subr.mxu0 0.0
        %3695 = vmatpush1.msra.mxu0 0.0
        %3696 = vmatprep.subr.mxu0 0.0
        %3697 = vmatpush1.msra.mxu0 0.0
        %3698 = vmatprep.subr.mxu0 0.0
        %3699 = vmatpush1.msra.mxu0 0.0
        %3700 = vmatprep.subr.mxu0 0.0
        %3701 = vmatpush1.msra.mxu0 0.0
        %3702 = vmatprep.subr.mxu0 0.0
        %3703 = vmatpush1.msra.mxu0 0.0
        %3704 = vmatprep.subr.mxu0 0.0
        %3705 = vmatpush1.msra.mxu0 0.0
        %3706 = vmatprep.subr.mxu0 0.0
        %3707 = vmatpush1.msra.mxu0 0.0
        %3708 = vmatprep.subr.mxu0 0.0
        %3709 = vmatpush1.msra.mxu0 0.0
        %3710 = vmatprep.subr.mxu0 0.0
        %3711 = vmatpush1.msra.mxu0 0.0
        %3712 = vmatprep.subr.mxu0 0.0
        %3713 = vmatpush1.msra.mxu0 0.0
        %3714 = vmatprep.subr.mxu0 0.0
        %3715 = vmatpush1.msra.mxu0 0.0
        %3716 = vmatprep.subr.mxu0 0.0
        %3717 = vmatpush1.msra.mxu0 0.0
        %3718 = vmatprep.subr.mxu0 0.0
        %3719 = vmatpush1.msra.mxu0 0.0
        %3720 = vmatprep.subr.mxu0 0.0
        %3721 = vmatpush1.msra.mxu0 0.0
        %3722 = vmatprep.subr.mxu0 0.0
        %3723 = vmatpush1.msra.mxu0 0.0
        %3724 = vmatprep.mubr.f32.mxu0 0.0
        %3725 = vmatmul.mubr.f32.gmra.mrb[0].mxu0 %v2958
        %v3726 = vpop.f32.mrb[0].mxu0
        %v3727 = vadd.f32 %v2940, %v3726
        %v3728 = vpop.f32.mrb[0].mxu0
        %3729 = vdwg.mxu0
        %3730 = vmatprep.subr.mxu0 0.0
        %3731 = vmatpush1.msra.mxu0 %v2861
        %3732 = vmatprep.subr.mxu0 0.0
        %3733 = vmatpush1.msra.mxu0 %v2862
        %3734 = vmatprep.subr.mxu0 0.0
        %3735 = vmatpush1.msra.mxu0 %v2863
        %3736 = vmatprep.subr.mxu0 0.0
        %3737 = vmatpush1.msra.mxu0 %v2864
        %3738 = vmatprep.subr.mxu0 0.0
        %3739 = vmatpush1.msra.mxu0 0.0
        %3740 = vmatprep.subr.mxu0 0.0
        %3741 = vmatpush1.msra.mxu0 0.0
        %3742 = vmatprep.subr.mxu0 0.0
        %3743 = vmatpush1.msra.mxu0 0.0
        %3744 = vmatprep.subr.mxu0 0.0
        %3745 = vmatpush1.msra.mxu0 0.0
        %3746 = vmatprep.subr.mxu0 0.0
        %3747 = vmatpush1.msra.mxu0 0.0
        %3748 = vmatprep.subr.mxu0 0.0
        %3749 = vmatpush1.msra.mxu0 0.0
        %3750 = vmatprep.subr.mxu0 0.0
        %3751 = vmatpush1.msra.mxu0 0.0
        %3752 = vmatprep.subr.mxu0 0.0
        %3753 = vmatpush1.msra.mxu0 0.0
        %3754 = vmatprep.subr.mxu0 0.0
        %3755 = vmatpush1.msra.mxu0 0.0
        %3756 = vmatprep.subr.mxu0 0.0
        %3757 = vmatpush1.msra.mxu0 0.0
        %3758 = vmatprep.subr.mxu0 0.0
        %3759 = vmatpush1.msra.mxu0 0.0
        %3760 = vmatprep.subr.mxu0 0.0
        %3761 = vmatpush1.msra.mxu0 0.0
        %3762 = vmatprep.subr.mxu0 0.0
        %3763 = vmatpush1.msra.mxu0 0.0
        %3764 = vmatprep.subr.mxu0 0.0
        %3765 = vmatpush1.msra.mxu0 0.0
        %3766 = vmatprep.subr.mxu0 0.0
        %3767 = vmatpush1.msra.mxu0 0.0
        %3768 = vmatprep.subr.mxu0 0.0
        %3769 = vmatpush1.msra.mxu0 0.0
        %3770 = vmatprep.subr.mxu0 0.0
        %3771 = vmatpush1.msra.mxu0 0.0
        %3772 = vmatprep.subr.mxu0 0.0
        %3773 = vmatpush1.msra.mxu0 0.0
        %3774 = vmatprep.subr.mxu0 0.0
        %3775 = vmatpush1.msra.mxu0 0.0
        %3776 = vmatprep.subr.mxu0 0.0
        %3777 = vmatpush1.msra.mxu0 0.0
        %3778 = vmatprep.subr.mxu0 0.0
        %3779 = vmatpush1.msra.mxu0 0.0
        %3780 = vmatprep.subr.mxu0 0.0
        %3781 = vmatpush1.msra.mxu0 0.0
        %3782 = vmatprep.subr.mxu0 0.0
        %3783 = vmatpush1.msra.mxu0 0.0
        %3784 = vmatprep.subr.mxu0 0.0
        %3785 = vmatpush1.msra.mxu0 0.0
        %3786 = vmatprep.subr.mxu0 0.0
        %3787 = vmatpush1.msra.mxu0 0.0
        %3788 = vmatprep.subr.mxu0 0.0
        %3789 = vmatpush1.msra.mxu0 0.0
        %3790 = vmatprep.subr.mxu0 0.0
        %3791 = vmatpush1.msra.mxu0 0.0
        %3792 = vmatprep.subr.mxu0 0.0
        %3793 = vmatpush1.msra.mxu0 0.0
        %3794 = vmatprep.mubr.f32.mxu0 0.0
        %3795 = vmatmul.mubr.f32.gmra.mrb[0].mxu0 %v2958
        %v3796 = vpop.f32.mrb[0].mxu0
        %v3797 = vadd.f32 %v2944, %v3796
        %v3798 = vpop.f32.mrb[0].mxu0
        %3799 = vdwg.mxu0
        %v3801 = vsel %vm1617, %v3027, 0
        %v3804 = vsel %vm1617, %v3307, 0
        %3806 = vmatprep.subr.mxu0 0.0
        %3807 = vmatpush1.xpose.msra.mxu0 %v3804
        %3808 = vmatprep.subr.mxu0 0.0
        %3809 = vmatpush1.xpose.msra.mxu0 0.0
        %3810 = vmatprep.subr.mxu0 0.0
        %3811 = vmatpush1.xpose.msra.mxu0 0.0
        %3812 = vmatprep.subr.mxu0 0.0
        %3813 = vmatpush1.xpose.msra.mxu0 0.0
        %3814 = vmatprep.subr.mxu0 0.0
        %3815 = vmatpush1.xpose.msra.mxu0 0.0
        %3816 = vmatprep.subr.mxu0 0.0
        %3817 = vmatpush1.xpose.msra.mxu0 0.0
        %3818 = vmatprep.subr.mxu0 0.0
        %3819 = vmatpush1.xpose.msra.mxu0 0.0
        %3820 = vmatprep.subr.mxu0 0.0
        %3821 = vmatpush1.xpose.msra.mxu0 0.0
        %3822 = vmatprep.subr.mxu0 0.0
        %3823 = vmatpush1.xpose.msra.mxu0 0.0
        %3824 = vmatprep.subr.mxu0 0.0
        %3825 = vmatpush1.xpose.msra.mxu0 0.0
        %3826 = vmatprep.subr.mxu0 0.0
        %3827 = vmatpush1.xpose.msra.mxu0 0.0
        %3828 = vmatprep.subr.mxu0 0.0
        %3829 = vmatpush1.xpose.msra.mxu0 0.0
        %3830 = vmatprep.subr.mxu0 0.0
        %3831 = vmatpush1.xpose.msra.mxu0 0.0
        %3832 = vmatprep.subr.mxu0 0.0
        %3833 = vmatpush1.xpose.msra.mxu0 0.0
        %3834 = vmatprep.subr.mxu0 0.0
        %3835 = vmatpush1.xpose.msra.mxu0 0.0
        %3836 = vmatprep.subr.mxu0 0.0
        %3837 = vmatpush1.xpose.msra.mxu0 0.0
        %3838 = vmatprep.subr.mxu0 0.0
        %3839 = vmatpush1.xpose.msra.mxu0 0.0
        %3840 = vmatprep.subr.mxu0 0.0
        %3841 = vmatpush1.xpose.msra.mxu0 0.0
        %3842 = vmatprep.subr.mxu0 0.0
        %3843 = vmatpush1.xpose.msra.mxu0 0.0
        %3844 = vmatprep.subr.mxu0 0.0
        %3845 = vmatpush1.xpose.msra.mxu0 0.0
        %3846 = vmatprep.subr.mxu0 0.0
        %3847 = vmatpush1.xpose.msra.mxu0 0.0
        %3848 = vmatprep.subr.mxu0 0.0
        %3849 = vmatpush1.xpose.msra.mxu0 0.0
        %3850 = vmatprep.subr.mxu0 0.0
        %3851 = vmatpush1.xpose.msra.mxu0 0.0
        %3852 = vmatprep.subr.mxu0 0.0
        %3853 = vmatpush1.xpose.msra.mxu0 0.0
        %3854 = vmatprep.subr.mxu0 0.0
        %3855 = vmatpush1.xpose.msra.mxu0 0.0
        %3856 = vmatprep.subr.mxu0 0.0
        %3857 = vmatpush1.xpose.msra.mxu0 0.0
        %3858 = vmatprep.subr.mxu0 0.0
        %3859 = vmatpush1.xpose.msra.mxu0 0.0
        %3860 = vmatprep.subr.mxu0 0.0
        %3861 = vmatpush1.xpose.msra.mxu0 0.0
        %3862 = vmatprep.subr.mxu0 0.0
        %3863 = vmatpush1.xpose.msra.mxu0 0.0
        %3864 = vmatprep.subr.mxu0 0.0
        %3865 = vmatpush1.xpose.msra.mxu0 0.0
        %3866 = vmatprep.subr.mxu0 0.0
        %3867 = vmatpush1.xpose.msra.mxu0 0.0
        %3868 = vmatprep.subr.mxu0 0.0
        %3869 = vmatpush1.xpose.msra.mxu0 0.0
        %3870 = vmatprep.mubr.f32.mxu0 0.0
        %3871 = vmatmul.mubr.f32.gmra.mrb[0].mxu0 %v3801
        %v3872 = vpop.f32.mrb[0].mxu0
        %v3873 = vadd.f32 0.0, %v3872
        %v3874 = vpop.f32.mrb[0].mxu0
        %3875 = vdwg.mxu0
        %v3877 = vsel %vm1617, %v3097, 0
        %v3880 = vsel %vm1617, %v3377, 0
        %3882 = vmatprep.subr.mxu0 0.0
        %3883 = vmatpush1.xpose.msra.mxu0 %v3880
        %3884 = vmatprep.subr.mxu0 0.0
        %3885 = vmatpush1.xpose.msra.mxu0 0.0
        %3886 = vmatprep.subr.mxu0 0.0
        %3887 = vmatpush1.xpose.msra.mxu0 0.0
        %3888 = vmatprep.subr.mxu0 0.0
        %3889 = vmatpush1.xpose.msra.mxu0 0.0
        %3890 = vmatprep.subr.mxu0 0.0
        %3891 = vmatpush1.xpose.msra.mxu0 0.0
        %3892 = vmatprep.subr.mxu0 0.0
        %3893 = vmatpush1.xpose.msra.mxu0 0.0
        %3894 = vmatprep.subr.mxu0 0.0
        %3895 = vmatpush1.xpose.msra.mxu0 0.0
        %3896 = vmatprep.subr.mxu0 0.0
        %3897 = vmatpush1.xpose.msra.mxu0 0.0
        %3898 = vmatprep.subr.mxu0 0.0
        %3899 = vmatpush1.xpose.msra.mxu0 0.0
        %3900 = vmatprep.subr.mxu0 0.0
        %3901 = vmatpush1.xpose.msra.mxu0 0.0
        %3902 = vmatprep.subr.mxu0 0.0
        %3903 = vmatpush1.xpose.msra.mxu0 0.0
        %3904 = vmatprep.subr.mxu0 0.0
        %3905 = vmatpush1.xpose.msra.mxu0 0.0
        %3906 = vmatprep.subr.mxu0 0.0
        %3907 = vmatpush1.xpose.msra.mxu0 0.0
        %3908 = vmatprep.subr.mxu0 0.0
        %3909 = vmatpush1.xpose.msra.mxu0 0.0
        %3910 = vmatprep.subr.mxu0 0.0
        %3911 = vmatpush1.xpose.msra.mxu0 0.0
        %3912 = vmatprep.subr.mxu0 0.0
        %3913 = vmatpush1.xpose.msra.mxu0 0.0
        %3914 = vmatprep.subr.mxu0 0.0
        %3915 = vmatpush1.xpose.msra.mxu0 0.0
        %3916 = vmatprep.subr.mxu0 0.0
        %3917 = vmatpush1.xpose.msra.mxu0 0.0
        %3918 = vmatprep.subr.mxu0 0.0
        %3919 = vmatpush1.xpose.msra.mxu0 0.0
        %3920 = vmatprep.subr.mxu0 0.0
        %3921 = vmatpush1.xpose.msra.mxu0 0.0
        %3922 = vmatprep.subr.mxu0 0.0
        %3923 = vmatpush1.xpose.msra.mxu0 0.0
        %3924 = vmatprep.subr.mxu0 0.0
        %3925 = vmatpush1.xpose.msra.mxu0 0.0
        %3926 = vmatprep.subr.mxu0 0.0
        %3927 = vmatpush1.xpose.msra.mxu0 0.0
        %3928 = vmatprep.subr.mxu0 0.0
        %3929 = vmatpush1.xpose.msra.mxu0 0.0
        %3930 = vmatprep.subr.mxu0 0.0
        %3931 = vmatpush1.xpose.msra.mxu0 0.0
        %3932 = vmatprep.subr.mxu0 0.0
        %3933 = vmatpush1.xpose.msra.mxu0 0.0
        %3934 = vmatprep.subr.mxu0 0.0
        %3935 = vmatpush1.xpose.msra.mxu0 0.0
        %3936 = vmatprep.subr.mxu0 0.0
        %3937 = vmatpush1.xpose.msra.mxu0 0.0
        %3938 = vmatprep.subr.mxu0 0.0
        %3939 = vmatpush1.xpose.msra.mxu0 0.0
        %3940 = vmatprep.subr.mxu0 0.0
        %3941 = vmatpush1.xpose.msra.mxu0 0.0
        %3942 = vmatprep.subr.mxu0 0.0
        %3943 = vmatpush1.xpose.msra.mxu0 0.0
        %3944 = vmatprep.subr.mxu0 0.0
        %3945 = vmatpush1.xpose.msra.mxu0 0.0
        %3946 = vmatprep.mubr.f32.mxu0 0.0
        %3947 = vmatmul.mubr.f32.gmra.mrb[0].mxu0 %v3877
        %v3948 = vpop.f32.mrb[0].mxu0
        %v3949 = vadd.f32 0.0, %v3948
        %v3950 = vpop.f32.mrb[0].mxu0
        %3951 = vdwg.mxu0
        %v3953 = vsel %vm1617, %v3167, 0
        %v3956 = vsel %vm1617, %v3447, 0
        %3958 = vmatprep.subr.mxu0 0.0
        %3959 = vmatpush1.xpose.msra.mxu0 %v3956
        %3960 = vmatprep.subr.mxu0 0.0
        %3961 = vmatpush1.xpose.msra.mxu0 0.0
        %3962 = vmatprep.subr.mxu0 0.0
        %3963 = vmatpush1.xpose.msra.mxu0 0.0
        %3964 = vmatprep.subr.mxu0 0.0
        %3965 = vmatpush1.xpose.msra.mxu0 0.0
        %3966 = vmatprep.subr.mxu0 0.0
        %3967 = vmatpush1.xpose.msra.mxu0 0.0
        %3968 = vmatprep.subr.mxu0 0.0
        %3969 = vmatpush1.xpose.msra.mxu0 0.0
        %3970 = vmatprep.subr.mxu0 0.0
        %3971 = vmatpush1.xpose.msra.mxu0 0.0
        %3972 = vmatprep.subr.mxu0 0.0
        %3973 = vmatpush1.xpose.msra.mxu0 0.0
        %3974 = vmatprep.subr.mxu0 0.0
        %3975 = vmatpush1.xpose.msra.mxu0 0.0
        %3976 = vmatprep.subr.mxu0 0.0
        %3977 = vmatpush1.xpose.msra.mxu0 0.0
        %3978 = vmatprep.subr.mxu0 0.0
        %3979 = vmatpush1.xpose.msra.mxu0 0.0
        %3980 = vmatprep.subr.mxu0 0.0
        %3981 = vmatpush1.xpose.msra.mxu0 0.0
        %3982 = vmatprep.subr.mxu0 0.0
        %3983 = vmatpush1.xpose.msra.mxu0 0.0
        %3984 = vmatprep.subr.mxu0 0.0
        %3985 = vmatpush1.xpose.msra.mxu0 0.0
        %3986 = vmatprep.subr.mxu0 0.0
        %3987 = vmatpush1.xpose.msra.mxu0 0.0
        %3988 = vmatprep.subr.mxu0 0.0
        %3989 = vmatpush1.xpose.msra.mxu0 0.0
        %3990 = vmatprep.subr.mxu0 0.0
        %3991 = vmatpush1.xpose.msra.mxu0 0.0
        %3992 = vmatprep.subr.mxu0 0.0
        %3993 = vmatpush1.xpose.msra.mxu0 0.0
        %3994 = vmatprep.subr.mxu0 0.0
        %3995 = vmatpush1.xpose.msra.mxu0 0.0
        %3996 = vmatprep.subr.mxu0 0.0
        %3997 = vmatpush1.xpose.msra.mxu0 0.0
        %3998 = vmatprep.subr.mxu0 0.0
        %3999 = vmatpush1.xpose.msra.mxu0 0.0
        %4000 = vmatprep.subr.mxu0 0.0
        %4001 = vmatpush1.xpose.msra.mxu0 0.0
        %4002 = vmatprep.subr.mxu0 0.0
        %4003 = vmatpush1.xpose.msra.mxu0 0.0
        %4004 = vmatprep.subr.mxu0 0.0
        %4005 = vmatpush1.xpose.msra.mxu0 0.0
        %4006 = vmatprep.subr.mxu0 0.0
        %4007 = vmatpush1.xpose.msra.mxu0 0.0
        %4008 = vmatprep.subr.mxu0 0.0
        %4009 = vmatpush1.xpose.msra.mxu0 0.0
        %4010 = vmatprep.subr.mxu0 0.0
        %4011 = vmatpush1.xpose.msra.mxu0 0.0
        %4012 = vmatprep.subr.mxu0 0.0
        %4013 = vmatpush1.xpose.msra.mxu0 0.0
        %4014 = vmatprep.subr.mxu0 0.0
        %4015 = vmatpush1.xpose.msra.mxu0 0.0
        %4016 = vmatprep.subr.mxu0 0.0
        %4017 = vmatpush1.xpose.msra.mxu0 0.0
        %4018 = vmatprep.subr.mxu0 0.0
        %4019 = vmatpush1.xpose.msra.mxu0 0.0
        %4020 = vmatprep.subr.mxu0 0.0
        %4021 = vmatpush1.xpose.msra.mxu0 0.0
        %4022 = vmatprep.mubr.f32.mxu0 0.0
        %4023 = vmatmul.mubr.f32.gmra.mrb[0].mxu0 %v3953
        %v4024 = vpop.f32.mrb[0].mxu0
        %v4025 = vadd.f32 0.0, %v4024
        %v4026 = vpop.f32.mrb[0].mxu0
        %4027 = vdwg.mxu0
        %v4029 = vsel %vm1617, %v3237, 0
        %v4032 = vsel %vm1617, %v3517, 0
        %4034 = vmatprep.subr.mxu0 0.0
        %4035 = vmatpush1.xpose.msra.mxu0 %v4032
        %4036 = vmatprep.subr.mxu0 0.0
        %4037 = vmatpush1.xpose.msra.mxu0 0.0
        %4038 = vmatprep.subr.mxu0 0.0
        %4039 = vmatpush1.xpose.msra.mxu0 0.0
        %4040 = vmatprep.subr.mxu0 0.0
        %4041 = vmatpush1.xpose.msra.mxu0 0.0
        %4042 = vmatprep.subr.mxu0 0.0
        %4043 = vmatpush1.xpose.msra.mxu0 0.0
        %4044 = vmatprep.subr.mxu0 0.0
        %4045 = vmatpush1.xpose.msra.mxu0 0.0
        %4046 = vmatprep.subr.mxu0 0.0
        %4047 = vmatpush1.xpose.msra.mxu0 0.0
        %4048 = vmatprep.subr.mxu0 0.0
        %4049 = vmatpush1.xpose.msra.mxu0 0.0
        %4050 = vmatprep.subr.mxu0 0.0
        %4051 = vmatpush1.xpose.msra.mxu0 0.0
        %4052 = vmatprep.subr.mxu0 0.0
        %4053 = vmatpush1.xpose.msra.mxu0 0.0
        %4054 = vmatprep.subr.mxu0 0.0
        %4055 = vmatpush1.xpose.msra.mxu0 0.0
        %4056 = vmatprep.subr.mxu0 0.0
        %4057 = vmatpush1.xpose.msra.mxu0 0.0
        %4058 = vmatprep.subr.mxu0 0.0
        %4059 = vmatpush1.xpose.msra.mxu0 0.0
        %4060 = vmatprep.subr.mxu0 0.0
        %4061 = vmatpush1.xpose.msra.mxu0 0.0
        %4062 = vmatprep.subr.mxu0 0.0
        %4063 = vmatpush1.xpose.msra.mxu0 0.0
        %4064 = vmatprep.subr.mxu0 0.0
        %4065 = vmatpush1.xpose.msra.mxu0 0.0
        %4066 = vmatprep.subr.mxu0 0.0
        %4067 = vmatpush1.xpose.msra.mxu0 0.0
        %4068 = vmatprep.subr.mxu0 0.0
        %4069 = vmatpush1.xpose.msra.mxu0 0.0
        %4070 = vmatprep.subr.mxu0 0.0
        %4071 = vmatpush1.xpose.msra.mxu0 0.0
        %4072 = vmatprep.subr.mxu0 0.0
        %4073 = vmatpush1.xpose.msra.mxu0 0.0
        %4074 = vmatprep.subr.mxu0 0.0
        %4075 = vmatpush1.xpose.msra.mxu0 0.0
        %4076 = vmatprep.subr.mxu0 0.0
        %4077 = vmatpush1.xpose.msra.mxu0 0.0
        %4078 = vmatprep.subr.mxu0 0.0
        %4079 = vmatpush1.xpose.msra.mxu0 0.0
        %4080 = vmatprep.subr.mxu0 0.0
        %4081 = vmatpush1.xpose.msra.mxu0 0.0
        %4082 = vmatprep.subr.mxu0 0.0
        %4083 = vmatpush1.xpose.msra.mxu0 0.0
        %4084 = vmatprep.subr.mxu0 0.0
        %4085 = vmatpush1.xpose.msra.mxu0 0.0
        %4086 = vmatprep.subr.mxu0 0.0
        %4087 = vmatpush1.xpose.msra.mxu0 0.0
        %4088 = vmatprep.subr.mxu0 0.0
        %4089 = vmatpush1.xpose.msra.mxu0 0.0
        %4090 = vmatprep.subr.mxu0 0.0
        %4091 = vmatpush1.xpose.msra.mxu0 0.0
        %4092 = vmatprep.subr.mxu0 0.0
        %4093 = vmatpush1.xpose.msra.mxu0 0.0
        %4094 = vmatprep.subr.mxu0 0.0
        %4095 = vmatpush1.xpose.msra.mxu0 0.0
        %4096 = vmatprep.subr.mxu0 0.0
        %4097 = vmatpush1.xpose.msra.mxu0 0.0
        %4098 = vmatprep.mubr.f32.mxu0 0.0
        %4099 = vmatmul.mubr.f32.gmra.mrb[0].mxu0 %v4029
        %v4100 = vpop.f32.mrb[0].mxu0
        %v4101 = vadd.f32 0.0, %v4100
        %v4102 = vpop.f32.mrb[0].mxu0
        %4103 = vdwg.mxu0
        %v4104 = vmul.f32 %v3873, 0.35355338
        %v4105 = vmul.f32 %v3949, 0.35355338
        %v4106 = vmul.f32 %v4025, 0.35355338
        %v4107 = vmul.f32 %v4101, 0.35355338
        %v4108 = vadd.f32 %v4104, %v605
        %v4109 = vadd.f32 %v4105, %v605
        %v4110 = vadd.f32 %v4106, %v605
        %v4111 = vadd.f32 %v4107, %v605
        %v4112 = vsel %vm1617, %v4108, -inf
        %4113 = vmax.xlane.f32.xlu0 %v4112
        %v4114 = vpop.xlane.xlu0 %4113
        %v4115 = vsel %vm1617, %v4109, -inf
        %4116 = vmax.xlane.f32.xlu0 %v4115
        %v4117 = vpop.xlane.xlu0 %4116
        %v4118 = vsel %vm1617, %v4110, -inf
        %4119 = vmax.xlane.f32.xlu0 %v4118
        %v4120 = vpop.xlane.xlu0 %4119
        %v4121 = vsel %vm1617, %v4111, -inf
        %4122 = vmax.xlane.f32.xlu0 %v4121
        %v4123 = vpop.xlane.xlu0 %4122
        %v4124 = vsub.f32 %v4108, %v4114
        %v4125 = vsub.f32 %v4109, %v4117
        %v4126 = vsub.f32 %v4110, %v4120
        %v4127 = vsub.f32 %v4111, %v4123
        %v4128 = vmul.f32 %v4124, 1.442695
        %v4129 = vpow.pop %v4128
        %v4130 = vmul.f32 %v4125, 1.442695
        %v4131 = vpow.pop %v4130
        %v4132 = vmul.f32 %v4126, 1.442695
        %v4133 = vpow.pop %v4132
        %v4134 = vmul.f32 %v4127, 1.442695
        %v4135 = vpow.pop %v4134
        %v4136 = vsel %vm1617, %v4129, 0.0
        %4137 = vadd.xlane.f32.xlu0 %v4136
        %v4138 = vpop.xlane.xlu0 %4137
        %v4139 = vsel %vm1617, %v4131, 0.0
        %4140 = vadd.xlane.f32.xlu0 %v4139
        %v4141 = vpop.xlane.xlu0 %4140
        %v4142 = vsel %vm1617, %v4133, 0.0
        %4143 = vadd.xlane.f32.xlu0 %v4142
        %v4144 = vpop.xlane.xlu0 %4143
        %v4145 = vsel %vm1617, %v4135, 0.0
        %4146 = vadd.xlane.f32.xlu0 %v4145
        %v4147 = vpop.xlane.xlu0 %4146
        %v4148 = vrcp.pop %v4138
        %v4149 = vrcp.pop %v4141
        %v4150 = vrcp.pop %v4144
        %v4151 = vrcp.pop %v4147
        %v4152 = vmul.f32 %v4129, %v4148
        %v4153 = vmul.f32 %v4131, %v4149
        %v4154 = vmul.f32 %v4133, %v4150
        %v4155 = vmul.f32 %v4135, %v4151
        %v4157 = vsel %vm1617, %v4152, 0
        %4159 = vmatprep.subr.mxu0 0.0
        %4160 = vmatpush1.msra.mxu0 %v3587
        %4161 = vmatprep.subr.mxu0 0.0
        %4162 = vmatpush1.msra.mxu0 0.0
        %4163 = vmatprep.subr.mxu0 0.0
        %4164 = vmatpush1.msra.mxu0 0.0
        %4165 = vmatprep.subr.mxu0 0.0
        %4166 = vmatpush1.msra.mxu0 0.0
        %4167 = vmatprep.subr.mxu0 0.0
        %4168 = vmatpush1.msra.mxu0 0.0
        %4169 = vmatprep.subr.mxu0 0.0
        %4170 = vmatpush1.msra.mxu0 0.0
        %4171 = vmatprep.subr.mxu0 0.0
        %4172 = vmatpush1.msra.mxu0 0.0
        %4173 = vmatprep.subr.mxu0 0.0
        %4174 = vmatpush1.msra.mxu0 0.0
        %4175 = vmatprep.subr.mxu0 0.0
        %4176 = vmatpush1.msra.mxu0 0.0
        %4177 = vmatprep.subr.mxu0 0.0
        %4178 = vmatpush1.msra.mxu0 0.0
        %4179 = vmatprep.subr.mxu0 0.0
        %4180 = vmatpush1.msra.mxu0 0.0
        %4181 = vmatprep.subr.mxu0 0.0
        %4182 = vmatpush1.msra.mxu0 0.0
        %4183 = vmatprep.subr.mxu0 0.0
        %4184 = vmatpush1.msra.mxu0 0.0
        %4185 = vmatprep.subr.mxu0 0.0
        %4186 = vmatpush1.msra.mxu0 0.0
        %4187 = vmatprep.subr.mxu0 0.0
        %4188 = vmatpush1.msra.mxu0 0.0
        %4189 = vmatprep.subr.mxu0 0.0
        %4190 = vmatpush1.msra.mxu0 0.0
        %4191 = vmatprep.subr.mxu0 0.0
        %4192 = vmatpush1.msra.mxu0 0.0
        %4193 = vmatprep.subr.mxu0 0.0
        %4194 = vmatpush1.msra.mxu0 0.0
        %4195 = vmatprep.subr.mxu0 0.0
        %4196 = vmatpush1.msra.mxu0 0.0
        %4197 = vmatprep.subr.mxu0 0.0
        %4198 = vmatpush1.msra.mxu0 0.0
        %4199 = vmatprep.subr.mxu0 0.0
        %4200 = vmatpush1.msra.mxu0 0.0
        %4201 = vmatprep.subr.mxu0 0.0
        %4202 = vmatpush1.msra.mxu0 0.0
        %4203 = vmatprep.subr.mxu0 0.0
        %4204 = vmatpush1.msra.mxu0 0.0
        %4205 = vmatprep.subr.mxu0 0.0
        %4206 = vmatpush1.msra.mxu0 0.0
        %4207 = vmatprep.subr.mxu0 0.0
        %4208 = vmatpush1.msra.mxu0 0.0
        %4209 = vmatprep.subr.mxu0 0.0
        %4210 = vmatpush1.msra.mxu0 0.0
        %4211 = vmatprep.subr.mxu0 0.0
        %4212 = vmatpush1.msra.mxu0 0.0
        %4213 = vmatprep.subr.mxu0 0.0
        %4214 = vmatpush1.msra.mxu0 0.0
        %4215 = vmatprep.subr.mxu0 0.0
        %4216 = vmatpush1.msra.mxu0 0.0
        %4217 = vmatprep.subr.mxu0 0.0
        %4218 = vmatpush1.msra.mxu0 0.0
        %4219 = vmatprep.subr.mxu0 0.0
        %4220 = vmatpush1.msra.mxu0 0.0
        %4221 = vmatprep.subr.mxu0 0.0
        %4222 = vmatpush1.msra.mxu0 0.0
        %4223 = vmatprep.mubr.f32.mxu0 0.0
        %4224 = vmatmul.mubr.f32.gmra.mrb[0].mxu0 %v4157
        %v4225 = vpop.f32.mrb[0].mxu0
        %v4226 = vadd.f32 0.0, %v4225
        %v4227 = vpop.f32.mrb[0].mxu0
        %4228 = vdwg.mxu0
        %v4230 = vsel %vm1617, %v4153, 0
        %4232 = vmatprep.subr.mxu0 0.0
        %4233 = vmatpush1.msra.mxu0 %v3657
        %4234 = vmatprep.subr.mxu0 0.0
        %4235 = vmatpush1.msra.mxu0 0.0
        %4236 = vmatprep.subr.mxu0 0.0
        %4237 = vmatpush1.msra.mxu0 0.0
        %4238 = vmatprep.subr.mxu0 0.0
        %4239 = vmatpush1.msra.mxu0 0.0
        %4240 = vmatprep.subr.mxu0 0.0
        %4241 = vmatpush1.msra.mxu0 0.0
        %4242 = vmatprep.subr.mxu0 0.0
        %4243 = vmatpush1.msra.mxu0 0.0
        %4244 = vmatprep.subr.mxu0 0.0
        %4245 = vmatpush1.msra.mxu0 0.0
        %4246 = vmatprep.subr.mxu0 0.0
        %4247 = vmatpush1.msra.mxu0 0.0
        %4248 = vmatprep.subr.mxu0 0.0
        %4249 = vmatpush1.msra.mxu0 0.0
        %4250 = vmatprep.subr.mxu0 0.0
        %4251 = vmatpush1.msra.mxu0 0.0
        %4252 = vmatprep.subr.mxu0 0.0
        %4253 = vmatpush1.msra.mxu0 0.0
        %4254 = vmatprep.subr.mxu0 0.0
        %4255 = vmatpush1.msra.mxu0 0.0
        %4256 = vmatprep.subr.mxu0 0.0
        %4257 = vmatpush1.msra.mxu0 0.0
        %4258 = vmatprep.subr.mxu0 0.0
        %4259 = vmatpush1.msra.mxu0 0.0
        %4260 = vmatprep.subr.mxu0 0.0
        %4261 = vmatpush1.msra.mxu0 0.0
        %4262 = vmatprep.subr.mxu0 0.0
        %4263 = vmatpush1.msra.mxu0 0.0
        %4264 = vmatprep.subr.mxu0 0.0
        %4265 = vmatpush1.msra.mxu0 0.0
        %4266 = vmatprep.subr.mxu0 0.0
        %4267 = vmatpush1.msra.mxu0 0.0
        %4268 = vmatprep.subr.mxu0 0.0
        %4269 = vmatpush1.msra.mxu0 0.0
        %4270 = vmatprep.subr.mxu0 0.0
        %4271 = vmatpush1.msra.mxu0 0.0
        %4272 = vmatprep.subr.mxu0 0.0
        %4273 = vmatpush1.msra.mxu0 0.0
        %4274 = vmatprep.subr.mxu0 0.0
        %4275 = vmatpush1.msra.mxu0 0.0
        %4276 = vmatprep.subr.mxu0 0.0
        %4277 = vmatpush1.msra.mxu0 0.0
        %4278 = vmatprep.subr.mxu0 0.0
        %4279 = vmatpush1.msra.mxu0 0.0
        %4280 = vmatprep.subr.mxu0 0.0
        %4281 = vmatpush1.msra.mxu0 0.0
        %4282 = vmatprep.subr.mxu0 0.0
        %4283 = vmatpush1.msra.mxu0 0.0
        %4284 = vmatprep.subr.mxu0 0.0
        %4285 = vmatpush1.msra.mxu0 0.0
        %4286 = vmatprep.subr.mxu0 0.0
        %4287 = vmatpush1.msra.mxu0 0.0
        %4288 = vmatprep.subr.mxu0 0.0
        %4289 = vmatpush1.msra.mxu0 0.0
        %4290 = vmatprep.subr.mxu0 0.0
        %4291 = vmatpush1.msra.mxu0 0.0
        %4292 = vmatprep.subr.mxu0 0.0
        %4293 = vmatpush1.msra.mxu0 0.0
        %4294 = vmatprep.subr.mxu0 0.0
        %4295 = vmatpush1.msra.mxu0 0.0
        %4296 = vmatprep.mubr.f32.mxu0 0.0
        %4297 = vmatmul.mubr.f32.gmra.mrb[0].mxu0 %v4230
        %v4298 = vpop.f32.mrb[0].mxu0
        %v4299 = vadd.f32 0.0, %v4298
        %v4300 = vpop.f32.mrb[0].mxu0
        %4301 = vdwg.mxu0
        %v4303 = vsel %vm1617, %v4154, 0
        %4305 = vmatprep.subr.mxu0 0.0
        %4306 = vmatpush1.msra.mxu0 %v3727
        %4307 = vmatprep.subr.mxu0 0.0
        %4308 = vmatpush1.msra.mxu0 0.0
        %4309 = vmatprep.subr.mxu0 0.0
        %4310 = vmatpush1.msra.mxu0 0.0
        %4311 = vmatprep.subr.mxu0 0.0
        %4312 = vmatpush1.msra.mxu0 0.0
        %4313 = vmatprep.subr.mxu0 0.0
        %4314 = vmatpush1.msra.mxu0 0.0
        %4315 = vmatprep.subr.mxu0 0.0
        %4316 = vmatpush1.msra.mxu0 0.0
        %4317 = vmatprep.subr.mxu0 0.0
        %4318 = vmatpush1.msra.mxu0 0.0
        %4319 = vmatprep.subr.mxu0 0.0
        %4320 = vmatpush1.msra.mxu0 0.0
        %4321 = vmatprep.subr.mxu0 0.0
        %4322 = vmatpush1.msra.mxu0 0.0
        %4323 = vmatprep.subr.mxu0 0.0
        %4324 = vmatpush1.msra.mxu0 0.0
        %4325 = vmatprep.subr.mxu0 0.0
        %4326 = vmatpush1.msra.mxu0 0.0
        %4327 = vmatprep.subr.mxu0 0.0
        %4328 = vmatpush1.msra.mxu0 0.0
        %4329 = vmatprep.subr.mxu0 0.0
        %4330 = vmatpush1.msra.mxu0 0.0
        %4331 = vmatprep.subr.mxu0 0.0
        %4332 = vmatpush1.msra.mxu0 0.0
        %4333 = vmatprep.subr.mxu0 0.0
        %4334 = vmatpush1.msra.mxu0 0.0
        %4335 = vmatprep.subr.mxu0 0.0
        %4336 = vmatpush1.msra.mxu0 0.0
        %4337 = vmatprep.subr.mxu0 0.0
        %4338 = vmatpush1.msra.mxu0 0.0
        %4339 = vmatprep.subr.mxu0 0.0
        %4340 = vmatpush1.msra.mxu0 0.0
        %4341 = vmatprep.subr.mxu0 0.0
        %4342 = vmatpush1.msra.mxu0 0.0
        %4343 = vmatprep.subr.mxu0 0.0
        %4344 = vmatpush1.msra.mxu0 0.0
        %4345 = vmatprep.subr.mxu0 0.0
        %4346 = vmatpush1.msra.mxu0 0.0
        %4347 = vmatprep.subr.mxu0 0.0
        %4348 = vmatpush1.msra.mxu0 0.0
        %4349 = vmatprep.subr.mxu0 0.0
        %4350 = vmatpush1.msra.mxu0 0.0
        %4351 = vmatprep.subr.mxu0 0.0
        %4352 = vmatpush1.msra.mxu0 0.0
        %4353 = vmatprep.subr.mxu0 0.0
        %4354 = vmatpush1.msra.mxu0 0.0
        %4355 = vmatprep.subr.mxu0 0.0
        %4356 = vmatpush1.msra.mxu0 0.0
        %4357 = vmatprep.subr.mxu0 0.0
        %4358 = vmatpush1.msra.mxu0 0.0
        %4359 = vmatprep.subr.mxu0 0.0
        %4360 = vmatpush1.msra.mxu0 0.0
        %4361 = vmatprep.subr.mxu0 0.0
        %4362 = vmatpush1.msra.mxu0 0.0
        %4363 = vmatprep.subr.mxu0 0.0
        %4364 = vmatpush1.msra.mxu0 0.0
        %4365 = vmatprep.subr.mxu0 0.0
        %4366 = vmatpush1.msra.mxu0 0.0
        %4367 = vmatprep.subr.mxu0 0.0
        %4368 = vmatpush1.msra.mxu0 0.0
        %4369 = vmatprep.mubr.f32.mxu0 0.0
        %4370 = vmatmul.mubr.f32.gmra.mrb[0].mxu0 %v4303
        %v4371 = vpop.f32.mrb[0].mxu0
        %v4372 = vadd.f32 0.0, %v4371
        %v4373 = vpop.f32.mrb[0].mxu0
        %4374 = vdwg.mxu0
        %v4376 = vsel %vm1617, %v4155, 0
        %4378 = vmatprep.subr.mxu0 0.0
        %4379 = vmatpush1.msra.mxu0 %v3797
        %4380 = vmatprep.subr.mxu0 0.0
        %4381 = vmatpush1.msra.mxu0 0.0
        %4382 = vmatprep.subr.mxu0 0.0
        %4383 = vmatpush1.msra.mxu0 0.0
        %4384 = vmatprep.subr.mxu0 0.0
        %4385 = vmatpush1.msra.mxu0 0.0
        %4386 = vmatprep.subr.mxu0 0.0
        %4387 = vmatpush1.msra.mxu0 0.0
        %4388 = vmatprep.subr.mxu0 0.0
        %4389 = vmatpush1.msra.mxu0 0.0
        %4390 = vmatprep.subr.mxu0 0.0
        %4391 = vmatpush1.msra.mxu0 0.0
        %4392 = vmatprep.subr.mxu0 0.0
        %4393 = vmatpush1.msra.mxu0 0.0
        %4394 = vmatprep.subr.mxu0 0.0
        %4395 = vmatpush1.msra.mxu0 0.0
        %4396 = vmatprep.subr.mxu0 0.0
        %4397 = vmatpush1.msra.mxu0 0.0
        %4398 = vmatprep.subr.mxu0 0.0
        %4399 = vmatpush1.msra.mxu0 0.0
        %4400 = vmatprep.subr.mxu0 0.0
        %4401 = vmatpush1.msra.mxu0 0.0
        %4402 = vmatprep.subr.mxu0 0.0
        %4403 = vmatpush1.msra.mxu0 0.0
        %4404 = vmatprep.subr.mxu0 0.0
        %4405 = vmatpush1.msra.mxu0 0.0
        %4406 = vmatprep.subr.mxu0 0.0
        %4407 = vmatpush1.msra.mxu0 0.0
        %4408 = vmatprep.subr.mxu0 0.0
        %4409 = vmatpush1.msra.mxu0 0.0
        %4410 = vmatprep.subr.mxu0 0.0
        %4411 = vmatpush1.msra.mxu0 0.0
        %4412 = vmatprep.subr.mxu0 0.0
        %4413 = vmatpush1.msra.mxu0 0.0
        %4414 = vmatprep.subr.mxu0 0.0
        %4415 = vmatpush1.msra.mxu0 0.0
        %4416 = vmatprep.subr.mxu0 0.0
        %4417 = vmatpush1.msra.mxu0 0.0
        %4418 = vmatprep.subr.mxu0 0.0
        %4419 = vmatpush1.msra.mxu0 0.0
        %4420 = vmatprep.subr.mxu0 0.0
        %4421 = vmatpush1.msra.mxu0 0.0
        %4422 = vmatprep.subr.mxu0 0.0
        %4423 = vmatpush1.msra.mxu0 0.0
        %4424 = vmatprep.subr.mxu0 0.0
        %4425 = vmatpush1.msra.mxu0 0.0
        %4426 = vmatprep.subr.mxu0 0.0
        %4427 = vmatpush1.msra.mxu0 0.0
        %4428 = vmatprep.subr.mxu0 0.0
        %4429 = vmatpush1.msra.mxu0 0.0
        %4430 = vmatprep.subr.mxu0 0.0
        %4431 = vmatpush1.msra.mxu0 0.0
        %4432 = vmatprep.subr.mxu0 0.0
        %4433 = vmatpush1.msra.mxu0 0.0
        %4434 = vmatprep.subr.mxu0 0.0
        %4435 = vmatpush1.msra.mxu0 0.0
        %4436 = vmatprep.subr.mxu0 0.0
        %4437 = vmatpush1.msra.mxu0 0.0
        %4438 = vmatprep.subr.mxu0 0.0
        %4439 = vmatpush1.msra.mxu0 0.0
        %4440 = vmatprep.subr.mxu0 0.0
        %4441 = vmatpush1.msra.mxu0 0.0
        %4442 = vmatprep.mubr.f32.mxu0 0.0
        %4443 = vmatmul.mubr.f32.gmra.mrb[0].mxu0 %v4376
        %v4444 = vpop.f32.mrb[0].mxu0
        %v4445 = vadd.f32 0.0, %v4444
        %v4446 = vpop.f32.mrb[0].mxu0
        %4447 = vdwg.mxu0
        %v4449 = vsel %vm1617, %v4226, 0
        %4451 = vmatprep.subr.mxu0 0.0
        %4452 = vmatpush1.msra.mxu0 %v2879
        %4453 = vmatprep.subr.mxu0 0.0
        %4454 = vmatpush1.msra.mxu0 0.0
        %4455 = vmatprep.subr.mxu0 0.0
        %4456 = vmatpush1.msra.mxu0 0.0
        %4457 = vmatprep.subr.mxu0 0.0
        %4458 = vmatpush1.msra.mxu0 0.0
        %4459 = vmatprep.subr.mxu0 0.0
        %4460 = vmatpush1.msra.mxu0 0.0
        %4461 = vmatprep.subr.mxu0 0.0
        %4462 = vmatpush1.msra.mxu0 0.0
        %4463 = vmatprep.subr.mxu0 0.0
        %4464 = vmatpush1.msra.mxu0 0.0
        %4465 = vmatprep.subr.mxu0 0.0
        %4466 = vmatpush1.msra.mxu0 0.0
        %4467 = vmatprep.subr.mxu0 0.0
        %4468 = vmatpush1.msra.mxu0 0.0
        %4469 = vmatprep.subr.mxu0 0.0
        %4470 = vmatpush1.msra.mxu0 0.0
        %4471 = vmatprep.subr.mxu0 0.0
        %4472 = vmatpush1.msra.mxu0 0.0
        %4473 = vmatprep.subr.mxu0 0.0
        %4474 = vmatpush1.msra.mxu0 0.0
        %4475 = vmatprep.subr.mxu0 0.0
        %4476 = vmatpush1.msra.mxu0 0.0
        %4477 = vmatprep.subr.mxu0 0.0
        %4478 = vmatpush1.msra.mxu0 0.0
        %4479 = vmatprep.subr.mxu0 0.0
        %4480 = vmatpush1.msra.mxu0 0.0
        %4481 = vmatprep.subr.mxu0 0.0
        %4482 = vmatpush1.msra.mxu0 0.0
        %4483 = vmatprep.subr.mxu0 0.0
        %4484 = vmatpush1.msra.mxu0 0.0
        %4485 = vmatprep.subr.mxu0 0.0
        %4486 = vmatpush1.msra.mxu0 0.0
        %4487 = vmatprep.subr.mxu0 0.0
        %4488 = vmatpush1.msra.mxu0 0.0
        %4489 = vmatprep.subr.mxu0 0.0
        %4490 = vmatpush1.msra.mxu0 0.0
        %4491 = vmatprep.subr.mxu0 0.0
        %4492 = vmatpush1.msra.mxu0 0.0
        %4493 = vmatprep.subr.mxu0 0.0
        %4494 = vmatpush1.msra.mxu0 0.0
        %4495 = vmatprep.subr.mxu0 0.0
        %4496 = vmatpush1.msra.mxu0 0.0
        %4497 = vmatprep.subr.mxu0 0.0
        %4498 = vmatpush1.msra.mxu0 0.0
        %4499 = vmatprep.subr.mxu0 0.0
        %4500 = vmatpush1.msra.mxu0 0.0
        %4501 = vmatprep.subr.mxu0 0.0
        %4502 = vmatpush1.msra.mxu0 0.0
        %4503 = vmatprep.subr.mxu0 0.0
        %4504 = vmatpush1.msra.mxu0 0.0
        %4505 = vmatprep.subr.mxu0 0.0
        %4506 = vmatpush1.msra.mxu0 0.0
        %4507 = vmatprep.subr.mxu0 0.0
        %4508 = vmatpush1.msra.mxu0 0.0
        %4509 = vmatprep.subr.mxu0 0.0
        %4510 = vmatpush1.msra.mxu0 0.0
        %4511 = vmatprep.subr.mxu0 0.0
        %4512 = vmatpush1.msra.mxu0 0.0
        %4513 = vmatprep.subr.mxu0 0.0
        %4514 = vmatpush1.msra.mxu0 0.0
        %4515 = vmatprep.mubr.f32.mxu0 0.0
        %4516 = vmatmul.mubr.f32.gmra.mrb[0].mxu0 %v4449
        %v4517 = vpop.f32.mrb[0].mxu0
        %v4518 = vadd.f32 0.0, %v4517
        %v4519 = vpop.f32.mrb[0].mxu0
        %4520 = vdwg.mxu0
        %v4522 = vsel %vm1617, %v4299, 0
        %4524 = vmatprep.subr.mxu0 0.0
        %4525 = vmatpush1.msra.mxu0 %v2880
        %4526 = vmatprep.subr.mxu0 0.0
        %4527 = vmatpush1.msra.mxu0 0.0
        %4528 = vmatprep.subr.mxu0 0.0
        %4529 = vmatpush1.msra.mxu0 0.0
        %4530 = vmatprep.subr.mxu0 0.0
        %4531 = vmatpush1.msra.mxu0 0.0
        %4532 = vmatprep.subr.mxu0 0.0
        %4533 = vmatpush1.msra.mxu0 0.0
        %4534 = vmatprep.subr.mxu0 0.0
        %4535 = vmatpush1.msra.mxu0 0.0
        %4536 = vmatprep.subr.mxu0 0.0
        %4537 = vmatpush1.msra.mxu0 0.0
        %4538 = vmatprep.subr.mxu0 0.0
        %4539 = vmatpush1.msra.mxu0 0.0
        %4540 = vmatprep.subr.mxu0 0.0
        %4541 = vmatpush1.msra.mxu0 0.0
        %4542 = vmatprep.subr.mxu0 0.0
        %4543 = vmatpush1.msra.mxu0 0.0
        %4544 = vmatprep.subr.mxu0 0.0
        %4545 = vmatpush1.msra.mxu0 0.0
        %4546 = vmatprep.subr.mxu0 0.0
        %4547 = vmatpush1.msra.mxu0 0.0
        %4548 = vmatprep.subr.mxu0 0.0
        %4549 = vmatpush1.msra.mxu0 0.0
        %4550 = vmatprep.subr.mxu0 0.0
        %4551 = vmatpush1.msra.mxu0 0.0
        %4552 = vmatprep.subr.mxu0 0.0
        %4553 = vmatpush1.msra.mxu0 0.0
        %4554 = vmatprep.subr.mxu0 0.0
        %4555 = vmatpush1.msra.mxu0 0.0
        %4556 = vmatprep.subr.mxu0 0.0
        %4557 = vmatpush1.msra.mxu0 0.0
        %4558 = vmatprep.subr.mxu0 0.0
        %4559 = vmatpush1.msra.mxu0 0.0
        %4560 = vmatprep.subr.mxu0 0.0
        %4561 = vmatpush1.msra.mxu0 0.0
        %4562 = vmatprep.subr.mxu0 0.0
        %4563 = vmatpush1.msra.mxu0 0.0
        %4564 = vmatprep.subr.mxu0 0.0
        %4565 = vmatpush1.msra.mxu0 0.0
        %4566 = vmatprep.subr.mxu0 0.0
        %4567 = vmatpush1.msra.mxu0 0.0
        %4568 = vmatprep.subr.mxu0 0.0
        %4569 = vmatpush1.msra.mxu0 0.0
        %4570 = vmatprep.subr.mxu0 0.0
        %4571 = vmatpush1.msra.mxu0 0.0
        %4572 = vmatprep.subr.mxu0 0.0
        %4573 = vmatpush1.msra.mxu0 0.0
        %4574 = vmatprep.subr.mxu0 0.0
        %4575 = vmatpush1.msra.mxu0 0.0
        %4576 = vmatprep.subr.mxu0 0.0
        %4577 = vmatpush1.msra.mxu0 0.0
        %4578 = vmatprep.subr.mxu0 0.0
        %4579 = vmatpush1.msra.mxu0 0.0
        %4580 = vmatprep.subr.mxu0 0.0
        %4581 = vmatpush1.msra.mxu0 0.0
        %4582 = vmatprep.subr.mxu0 0.0
        %4583 = vmatpush1.msra.mxu0 0.0
        %4584 = vmatprep.subr.mxu0 0.0
        %4585 = vmatpush1.msra.mxu0 0.0
        %4586 = vmatprep.subr.mxu0 0.0
        %4587 = vmatpush1.msra.mxu0 0.0
        %4588 = vmatprep.mubr.f32.mxu0 0.0
        %4589 = vmatmul.mubr.f32.gmra.mrb[0].mxu0 %v4522
        %v4590 = vpop.f32.mrb[0].mxu0
        %v4591 = vadd.f32 0.0, %v4590
        %v4592 = vpop.f32.mrb[0].mxu0
        %4593 = vdwg.mxu0
        %v4595 = vsel %vm1617, %v4372, 0
        %4597 = vmatprep.subr.mxu0 0.0
        %4598 = vmatpush1.msra.mxu0 %v2881
        %4599 = vmatprep.subr.mxu0 0.0
        %4600 = vmatpush1.msra.mxu0 0.0
        %4601 = vmatprep.subr.mxu0 0.0
        %4602 = vmatpush1.msra.mxu0 0.0
        %4603 = vmatprep.subr.mxu0 0.0
        %4604 = vmatpush1.msra.mxu0 0.0
        %4605 = vmatprep.subr.mxu0 0.0
        %4606 = vmatpush1.msra.mxu0 0.0
        %4607 = vmatprep.subr.mxu0 0.0
        %4608 = vmatpush1.msra.mxu0 0.0
        %4609 = vmatprep.subr.mxu0 0.0
        %4610 = vmatpush1.msra.mxu0 0.0
        %4611 = vmatprep.subr.mxu0 0.0
        %4612 = vmatpush1.msra.mxu0 0.0
        %4613 = vmatprep.subr.mxu0 0.0
        %4614 = vmatpush1.msra.mxu0 0.0
        %4615 = vmatprep.subr.mxu0 0.0
        %4616 = vmatpush1.msra.mxu0 0.0
        %4617 = vmatprep.subr.mxu0 0.0
        %4618 = vmatpush1.msra.mxu0 0.0
        %4619 = vmatprep.subr.mxu0 0.0
        %4620 = vmatpush1.msra.mxu0 0.0
        %4621 = vmatprep.subr.mxu0 0.0
        %4622 = vmatpush1.msra.mxu0 0.0
        %4623 = vmatprep.subr.mxu0 0.0
        %4624 = vmatpush1.msra.mxu0 0.0
        %4625 = vmatprep.subr.mxu0 0.0
        %4626 = vmatpush1.msra.mxu0 0.0
        %4627 = vmatprep.subr.mxu0 0.0
        %4628 = vmatpush1.msra.mxu0 0.0
        %4629 = vmatprep.subr.mxu0 0.0
        %4630 = vmatpush1.msra.mxu0 0.0
        %4631 = vmatprep.subr.mxu0 0.0
        %4632 = vmatpush1.msra.mxu0 0.0
        %4633 = vmatprep.subr.mxu0 0.0
        %4634 = vmatpush1.msra.mxu0 0.0
        %4635 = vmatprep.subr.mxu0 0.0
        %4636 = vmatpush1.msra.mxu0 0.0
        %4637 = vmatprep.subr.mxu0 0.0
        %4638 = vmatpush1.msra.mxu0 0.0
        %4639 = vmatprep.subr.mxu0 0.0
        %4640 = vmatpush1.msra.mxu0 0.0
        %4641 = vmatprep.subr.mxu0 0.0
        %4642 = vmatpush1.msra.mxu0 0.0
        %4643 = vmatprep.subr.mxu0 0.0
        %4644 = vmatpush1.msra.mxu0 0.0
        %4645 = vmatprep.subr.mxu0 0.0
        %4646 = vmatpush1.msra.mxu0 0.0
        %4647 = vmatprep.subr.mxu0 0.0
        %4648 = vmatpush1.msra.mxu0 0.0
        %4649 = vmatprep.subr.mxu0 0.0
        %4650 = vmatpush1.msra.mxu0 0.0
        %4651 = vmatprep.subr.mxu0 0.0
        %4652 = vmatpush1.msra.mxu0 0.0
        %4653 = vmatprep.subr.mxu0 0.0
        %4654 = vmatpush1.msra.mxu0 0.0
        %4655 = vmatprep.subr.mxu0 0.0
        %4656 = vmatpush1.msra.mxu0 0.0
        %4657 = vmatprep.subr.mxu0 0.0
        %4658 = vmatpush1.msra.mxu0 0.0
        %4659 = vmatprep.subr.mxu0 0.0
        %4660 = vmatpush1.msra.mxu0 0.0
        %4661 = vmatprep.mubr.f32.mxu0 0.0
        %4662 = vmatmul.mubr.f32.gmra.mrb[0].mxu0 %v4595
        %v4663 = vpop.f32.mrb[0].mxu0
        %v4664 = vadd.f32 0.0, %v4663
        %v4665 = vpop.f32.mrb[0].mxu0
        %4666 = vdwg.mxu0
        %v4668 = vsel %vm1617, %v4445, 0
        %4670 = vmatprep.subr.mxu0 0.0
        %4671 = vmatpush1.msra.mxu0 %v2882
        %4672 = vmatprep.subr.mxu0 0.0
        %4673 = vmatpush1.msra.mxu0 0.0
        %4674 = vmatprep.subr.mxu0 0.0
        %4675 = vmatpush1.msra.mxu0 0.0
        %4676 = vmatprep.subr.mxu0 0.0
        %4677 = vmatpush1.msra.mxu0 0.0
        %4678 = vmatprep.subr.mxu0 0.0
        %4679 = vmatpush1.msra.mxu0 0.0
        %4680 = vmatprep.subr.mxu0 0.0
        %4681 = vmatpush1.msra.mxu0 0.0
        %4682 = vmatprep.subr.mxu0 0.0
        %4683 = vmatpush1.msra.mxu0 0.0
        %4684 = vmatprep.subr.mxu0 0.0
        %4685 = vmatpush1.msra.mxu0 0.0
        %4686 = vmatprep.subr.mxu0 0.0
        %4687 = vmatpush1.msra.mxu0 0.0
        %4688 = vmatprep.subr.mxu0 0.0
        %4689 = vmatpush1.msra.mxu0 0.0
        %4690 = vmatprep.subr.mxu0 0.0
        %4691 = vmatpush1.msra.mxu0 0.0
        %4692 = vmatprep.subr.mxu0 0.0
        %4693 = vmatpush1.msra.mxu0 0.0
        %4694 = vmatprep.subr.mxu0 0.0
        %4695 = vmatpush1.msra.mxu0 0.0
        %4696 = vmatprep.subr.mxu0 0.0
        %4697 = vmatpush1.msra.mxu0 0.0
        %4698 = vmatprep.subr.mxu0 0.0
        %4699 = vmatpush1.msra.mxu0 0.0
        %4700 = vmatprep.subr.mxu0 0.0
        %4701 = vmatpush1.msra.mxu0 0.0
        %4702 = vmatprep.subr.mxu0 0.0
        %4703 = vmatpush1.msra.mxu0 0.0
        %4704 = vmatprep.subr.mxu0 0.0
        %4705 = vmatpush1.msra.mxu0 0.0
        %4706 = vmatprep.subr.mxu0 0.0
        %4707 = vmatpush1.msra.mxu0 0.0
        %4708 = vmatprep.subr.mxu0 0.0
        %4709 = vmatpush1.msra.mxu0 0.0
        %4710 = vmatprep.subr.mxu0 0.0
        %4711 = vmatpush1.msra.mxu0 0.0
        %4712 = vmatprep.subr.mxu0 0.0
        %4713 = vmatpush1.msra.mxu0 0.0
        %4714 = vmatprep.subr.mxu0 0.0
        %4715 = vmatpush1.msra.mxu0 0.0
        %4716 = vmatprep.subr.mxu0 0.0
        %4717 = vmatpush1.msra.mxu0 0.0
        %4718 = vmatprep.subr.mxu0 0.0
        %4719 = vmatpush1.msra.mxu0 0.0
        %4720 = vmatprep.subr.mxu0 0.0
        %4721 = vmatpush1.msra.mxu0 0.0
        %4722 = vmatprep.subr.mxu0 0.0
        %4723 = vmatpush1.msra.mxu0 0.0
        %4724 = vmatprep.subr.mxu0 0.0
        %4725 = vmatpush1.msra.mxu0 0.0
        %4726 = vmatprep.subr.mxu0 0.0
        %4727 = vmatpush1.msra.mxu0 0.0
        %4728 = vmatprep.subr.mxu0 0.0
        %4729 = vmatpush1.msra.mxu0 0.0
        %4730 = vmatprep.subr.mxu0 0.0
        %4731 = vmatpush1.msra.mxu0 0.0
        %4732 = vmatprep.subr.mxu0 0.0
        %4733 = vmatpush1.msra.mxu0 0.0
        %4734 = vmatprep.mubr.f32.mxu0 0.0
        %4735 = vmatmul.mubr.f32.gmra.mrb[0].mxu0 %v4668
        %v4736 = vpop.f32.mrb[0].mxu0
        %v4737 = vadd.f32 0.0, %v4736
        %v4738 = vpop.f32.mrb[0].mxu0
        %4739 = vdwg.mxu0
        %v4740 = vsel %vm608, %v4518, 0.0
        %v4741 = vsel %vm608, %v4591, 0.0
        %v4742 = vadd.f32 %v4740, %v4741
        %v4743 = vsel %vm608, %v4664, 0.0
        %v4744 = vadd.f32 %v4742, %v4743
        %v4745 = vsel %vm608, %v4737, 0.0
        %v4746 = vadd.f32 %v4744, %v4745
        %v4748 = vlaneseq
        %v4749 = vshrl.u32 %v4748, 7
        %v4750 = vsub.s32 0, %v4749
        %v4751 = vrot.slane %v2884, %v4750
        %v4753 = vadd.f32 %v4746, %v4751
        %v4754 = vadd.f32 %v2784, %v4753
        %s4755 = scalar_lea.vmem %s8, 1
        %v4756 = vld [vmem:[%s4755] sm:$0x1]
        %s4757 = scalar_lea.vmem %s9, 1
        %v4758 = vld [vmem:[%s4757] sm:$0x1]
        %v4759 = vsel %vm608, %v4754, 0.0
        %4760 = vadd.xlane.f32.xlu0 %v4759
        %v4761 = vpop.xlane.xlu0 %4760
        %v4762 = vmul.f32 %v4761, %v612
        %v4763 = vsub.f32 %v4754, %v4762
        %v4764 = vmul.f32 %v4763, %v4763
        %v4765 = vsel %vm608, %v4764, 0.0
        %4766 = vadd.xlane.f32.xlu0 %v4765
        %v4767 = vpop.xlane.xlu0 %4766
        %v4768 = vmul.f32 %v4767, %v612
        %v4769 = vadd.f32 %v4768, 1e-05
        %v4770 = vrsqrt.pop %v4769
        %v4771 = vmul.f32 %v4763, %v4770
        %v4773 = vlaneseq
        %v4774 = vshrl.u32 %v4773, 7
        %v4775 = vsub.s32 0, %v4774
        %v4776 = vrot.slane %v4756, %v4775
        %v4778 = vmul.f32 %v4771, %v4776
        %v4780 = vlaneseq
        %v4781 = vshrl.u32 %v4780, 7
        %v4782 = vsub.s32 0, %v4781
        %v4783 = vrot.slane %v4758, %v4782
        %v4785 = vadd.f32 %v4778, %v4783
        %s4786 = scalar_lea.vmem %s10, 32
        %v4787 = vld [vmem:[%s4786] sm:$0xff]
        %v4788 = vld [vmem:[%s4786 + $0x8] sm:$0xff]
        %v4789 = vld [vmem:[%s4786 + $0x10] sm:$0xff]
        %v4790 = vld [vmem:[%s4786 + $0x18] sm:$0xff]
        %s4791 = scalar_lea.vmem %s11, 1
        %v4792 = vld [vmem:[%s4791] sm:$0x1]
        %s4793 = scalar_lea.vmem %s12, 128
        %v4794 = vld [vmem:[%s4793] sm:$0xff]
        %v4795 = vld [vmem:[%s4793 + $0x8] sm:$0xff]
        %v4796 = vld [vmem:[%s4793 + $0x10] sm:$0xff]
        %v4797 = vld [vmem:[%s4793 + $0x18] sm:$0xff]
        %v4798 = vld [vmem:[%s4793 + $0x20] sm:$0xff]
        %v4799 = vld [vmem:[%s4793 + $0x28] sm:$0xff]
        %v4800 = vld [vmem:[%s4793 + $0x30] sm:$0xff]
        %v4801 = vld [vmem:[%s4793 + $0x38] sm:$0xff]
        %v4802 = vld [vmem:[%s4793 + $0x40] sm:$0xff]
        %v4803 = vld [vmem:[%s4793 + $0x48] sm:$0xff]
        %v4804 = vld [vmem:[%s4793 + $0x50] sm:$0xff]
        %v4805 = vld [vmem:[%s4793 + $0x58] sm:$0xff]
        %v4806 = vld [vmem:[%s4793 + $0x60] sm:$0xff]
        %v4807 = vld [vmem:[%s4793 + $0x68] sm:$0xff]
        %v4808 = vld [vmem:[%s4793 + $0x70] sm:$0xff]
        %v4809 = vld [vmem:[%s4793 + $0x78] sm:$0xff]
        %s4810 = scalar_lea.vmem %s13, 1
        %v4811 = vld [vmem:[%s4810] sm:$0x1]
        %v4813 = vlaneseq
        %v4814 = vshrl.u32 %v4813, 7
        %v4815 = vsub.s32 0, %v4814
        %v4816 = vrot.slane %v4792, %v4815
        %v4819 = vsel %vm608, %v4785, 0
        %4821 = vmatprep.subr.mxu0 0.0
        %4822 = vmatpush1.msra.mxu0 %v4787
        %4823 = vmatprep.subr.mxu0 0.0
        %4824 = vmatpush1.msra.mxu0 %v4788
        %4825 = vmatprep.subr.mxu0 0.0
        %4826 = vmatpush1.msra.mxu0 %v4789
        %4827 = vmatprep.subr.mxu0 0.0
        %4828 = vmatpush1.msra.mxu0 %v4790
        %4829 = vmatprep.subr.mxu0 0.0
        %4830 = vmatpush1.msra.mxu0 0.0
        %4831 = vmatprep.subr.mxu0 0.0
        %4832 = vmatpush1.msra.mxu0 0.0
        %4833 = vmatprep.subr.mxu0 0.0
        %4834 = vmatpush1.msra.mxu0 0.0
        %4835 = vmatprep.subr.mxu0 0.0
        %4836 = vmatpush1.msra.mxu0 0.0
        %4837 = vmatprep.subr.mxu0 0.0
        %4838 = vmatpush1.msra.mxu0 0.0
        %4839 = vmatprep.subr.mxu0 0.0
        %4840 = vmatpush1.msra.mxu0 0.0
        %4841 = vmatprep.subr.mxu0 0.0
        %4842 = vmatpush1.msra.mxu0 0.0
        %4843 = vmatprep.subr.mxu0 0.0
        %4844 = vmatpush1.msra.mxu0 0.0
        %4845 = vmatprep.subr.mxu0 0.0
        %4846 = vmatpush1.msra.mxu0 0.0
        %4847 = vmatprep.subr.mxu0 0.0
        %4848 = vmatpush1.msra.mxu0 0.0
        %4849 = vmatprep.subr.mxu0 0.0
        %4850 = vmatpush1.msra.mxu0 0.0
        %4851 = vmatprep.subr.mxu0 0.0
        %4852 = vmatpush1.msra.mxu0 0.0
        %4853 = vmatprep.subr.mxu0 0.0
        %4854 = vmatpush1.msra.mxu0 0.0
        %4855 = vmatprep.subr.mxu0 0.0
        %4856 = vmatpush1.msra.mxu0 0.0
        %4857 = vmatprep.subr.mxu0 0.0
        %4858 = vmatpush1.msra.mxu0 0.0
        %4859 = vmatprep.subr.mxu0 0.0
        %4860 = vmatpush1.msra.mxu0 0.0
        %4861 = vmatprep.subr.mxu0 0.0
        %4862 = vmatpush1.msra.mxu0 0.0
        %4863 = vmatprep.subr.mxu0 0.0
        %4864 = vmatpush1.msra.mxu0 0.0
        %4865 = vmatprep.subr.mxu0 0.0
        %4866 = vmatpush1.msra.mxu0 0.0
        %4867 = vmatprep.subr.mxu0 0.0
        %4868 = vmatpush1.msra.mxu0 0.0
        %4869 = vmatprep.subr.mxu0 0.0
        %4870 = vmatpush1.msra.mxu0 0.0
        %4871 = vmatprep.subr.mxu0 0.0
        %4872 = vmatpush1.msra.mxu0 0.0
        %4873 = vmatprep.subr.mxu0 0.0
        %4874 = vmatpush1.msra.mxu0 0.0
        %4875 = vmatprep.subr.mxu0 0.0
        %4876 = vmatpush1.msra.mxu0 0.0
        %4877 = vmatprep.subr.mxu0 0.0
        %4878 = vmatpush1.msra.mxu0 0.0
        %4879 = vmatprep.subr.mxu0 0.0
        %4880 = vmatpush1.msra.mxu0 0.0
        %4881 = vmatprep.subr.mxu0 0.0
        %4882 = vmatpush1.msra.mxu0 0.0
        %4883 = vmatprep.subr.mxu0 0.0
        %4884 = vmatpush1.msra.mxu0 0.0
        %4885 = vmatprep.mubr.f32.mxu0 0.0
        %4886 = vmatmul.mubr.f32.gmra.mrb[0].mxu0 %v4819
        %v4887 = vpop.f32.mrb[0].mxu0
        %v4888 = vadd.f32 %v4816, %v4887
        %v4889 = vpop.f32.mrb[0].mxu0
        %4890 = vdwg.mxu0
        %v4891 = vmul.f32 %v4888, 0.5
        %v4892 = vmul.f32 %v4888, 0.70710677
        %v4893 = verf.f32.pop %v4892
        %v4894 = vadd.f32 %v4893, 1.0
        %v4895 = vmul.f32 %v4891, %v4894
        %v4897 = vlaneseq
        %v4898 = vshrl.u32 %v4897, 7
        %v4899 = vsub.s32 0, %v4898
        %v4900 = vrot.slane %v4811, %v4899
        %4902 = vmatprep.subr.mxu0 0.0
        %4903 = vmatpush1.msra.mxu0 %v4794
        %4904 = vmatprep.subr.mxu0 0.0
        %4905 = vmatpush1.msra.mxu0 %v4795
        %4906 = vmatprep.subr.mxu0 0.0
        %4907 = vmatpush1.msra.mxu0 %v4796
        %4908 = vmatprep.subr.mxu0 0.0
        %4909 = vmatpush1.msra.mxu0 %v4797
        %4910 = vmatprep.subr.mxu0 0.0
        %4911 = vmatpush1.msra.mxu0 %v4798
        %4912 = vmatprep.subr.mxu0 0.0
        %4913 = vmatpush1.msra.mxu0 %v4799
        %4914 = vmatprep.subr.mxu0 0.0
        %4915 = vmatpush1.msra.mxu0 %v4800
        %4916 = vmatprep.subr.mxu0 0.0
        %4917 = vmatpush1.msra.mxu0 %v4801
        %4918 = vmatprep.subr.mxu0 0.0
        %4919 = vmatpush1.msra.mxu0 %v4802
        %4920 = vmatprep.subr.mxu0 0.0
        %4921 = vmatpush1.msra.mxu0 %v4803
        %4922 = vmatprep.subr.mxu0 0.0
        %4923 = vmatpush1.msra.mxu0 %v4804
        %4924 = vmatprep.subr.mxu0 0.0
        %4925 = vmatpush1.msra.mxu0 %v4805
        %4926 = vmatprep.subr.mxu0 0.0
        %4927 = vmatpush1.msra.mxu0 %v4806
        %4928 = vmatprep.subr.mxu0 0.0
        %4929 = vmatpush1.msra.mxu0 %v4807
        %4930 = vmatprep.subr.mxu0 0.0
        %4931 = vmatpush1.msra.mxu0 %v4808
        %4932 = vmatprep.subr.mxu0 0.0
        %4933 = vmatpush1.msra.mxu0 %v4809
        %4934 = vmatprep.subr.mxu0 0.0
        %4935 = vmatpush1.msra.mxu0 0.0
        %4936 = vmatprep.subr.mxu0 0.0
        %4937 = vmatpush1.msra.mxu0 0.0
        %4938 = vmatprep.subr.mxu0 0.0
        %4939 = vmatpush1.msra.mxu0 0.0
        %4940 = vmatprep.subr.mxu0 0.0
        %4941 = vmatpush1.msra.mxu0 0.0
        %4942 = vmatprep.subr.mxu0 0.0
        %4943 = vmatpush1.msra.mxu0 0.0
        %4944 = vmatprep.subr.mxu0 0.0
        %4945 = vmatpush1.msra.mxu0 0.0
        %4946 = vmatprep.subr.mxu0 0.0
        %4947 = vmatpush1.msra.mxu0 0.0
        %4948 = vmatprep.subr.mxu0 0.0
        %4949 = vmatpush1.msra.mxu0 0.0
        %4950 = vmatprep.subr.mxu0 0.0
        %4951 = vmatpush1.msra.mxu0 0.0
        %4952 = vmatprep.subr.mxu0 0.0
        %4953 = vmatpush1.msra.mxu0 0.0
        %4954 = vmatprep.subr.mxu0 0.0
        %4955 = vmatpush1.msra.mxu0 0.0
        %4956 = vmatprep.subr.mxu0 0.0
        %4957 = vmatpush1.msra.mxu0 0.0
        %4958 = vmatprep.subr.mxu0 0.0
        %4959 = vmatpush1.msra.mxu0 0.0
        %4960 = vmatprep.subr.mxu0 0.0
        %4961 = vmatpush1.msra.mxu0 0.0
        %4962 = vmatprep.subr.mxu0 0.0
        %4963 = vmatpush1.msra.mxu0 0.0
        %4964 = vmatprep.subr.mxu0 0.0
        %4965 = vmatpush1.msra.mxu0 0.0
        %4966 = vmatprep.mubr.f32.mxu0 0.0
        %4967 = vmatmul.mubr.f32.gmra.mrb[0].mxu0 %v4895
        %v4968 = vpop.f32.mrb[0].mxu0
        %v4969 = vadd.f32 %v4900, %v4968
        %v4970 = vpop.f32.mrb[0].mxu0
        %4971 = vdwg.mxu0
        %v4972 = vadd.f32 %v4754, %v4969
        %v4973 = vld [vmem:[%s17] sm:$0x1]
        %v4975 = vlaneseq
        %v4976 = vshrl.u32 %v4975, 7
        %v4977 = vsub.s32 0, %v4976
        %v4978 = vrot.slane %v4973, %v4977
        %v4980 = vmul.f32 %v4978, %v599
        %s4981 = scalar_lea.vmem %s17, 1
        %v4982 = vld [vmem:[%s4981] sm:$0x1]
        %v4984 = vlaneseq
        %v4985 = vshrl.u32 %v4984, 7
        %v4986 = vsub.s32 0, %v4985
        %v4987 = vrot.slane %v4982, %v4986
        %v4989 = vmul.f32 %v4987, %v4972
        %v4990 = vadd.f32 %v4980, %v4989
        %s4991 = scalar_lea.vmem %s2, 2
        %v4992 = vld [vmem:[%s4991] sm:$0x1]
        %s4993 = scalar_lea.vmem %s3, 2
        %v4994 = vld [vmem:[%s4993] sm:$0x1]
        %v4995 = vsel %vm608, %v4990, 0.0
        %4996 = vadd.xlane.f32.xlu0 %v4995
        %v4997 = vpop.xlane.xlu0 %4996
        %v4998 = vmul.f32 %v4997, %v612
        %v4999 = vsub.f32 %v4990, %v4998
        %v5000 = vmul.f32 %v4999, %v4999
        %v5001 = vsel %vm608, %v5000, 0.0
        %5002 = vadd.xlane.f32.xlu0 %v5001
        %v5003 = vpop.xlane.xlu0 %5002
        %v5004 = vmul.f32 %v5003, %v612
        %v5005 = vadd.f32 %v5004, 1e-05
        %v5006 = vrsqrt.pop %v5005
        %v5007 = vmul.f32 %v4999, %v5006
        %v5009 = vlaneseq
        %v5010 = vshrl.u32 %v5009, 7
        %v5011 = vsub.s32 0, %v5010
        %v5012 = vrot.slane %v4992, %v5011
        %v5014 = vmul.f32 %v5007, %v5012
        %v5016 = vlaneseq
        %v5017 = vshrl.u32 %v5016, 7
        %v5018 = vsub.s32 0, %v5017
        %v5019 = vrot.slane %v4994, %v5018
        %v5021 = vadd.f32 %v5014, %v5019
        %s5022 = scalar_lea.vmem %s4, 768
        %v5023 = vld [vmem:[%s5022] sm:$0xff]
        %v5024 = vld [vmem:[%s5022 + $0x8] sm:$0xff]
        %v5025 = vld [vmem:[%s5022 + $0x10] sm:$0xff]
        %v5026 = vld [vmem:[%s5022 + $0x18] sm:$0xff]
        %v5027 = vld [vmem:[%s5022 + $0x20] sm:$0xff]
        %v5028 = vld [vmem:[%s5022 + $0x28] sm:$0xff]
        %v5029 = vld [vmem:[%s5022 + $0x30] sm:$0xff]
        %v5030 = vld [vmem:[%s5022 + $0x38] sm:$0xff]
        %v5031 = vld [vmem:[%s5022 + $0x40] sm:$0xff]
        %v5032 = vld [vmem:[%s5022 + $0x48] sm:$0xff]
        %v5033 = vld [vmem:[%s5022 + $0x50] sm:$0xff]
        %v5034 = vld [vmem:[%s5022 + $0x58] sm:$0xff]
        %v5035 = vld [vmem:[%s5022 + $0x60] sm:$0xff]
        %v5036 = vld [vmem:[%s5022 + $0x68] sm:$0xff]
        %v5037 = vld [vmem:[%s5022 + $0x70] sm:$0xff]
        %v5038 = vld [vmem:[%s5022 + $0x78] sm:$0xff]
        %v5039 = vld [vmem:[%s5022 + $0x80] sm:$0xff]
        %v5040 = vld [vmem:[%s5022 + $0x88] sm:$0xff]
        %v5041 = vld [vmem:[%s5022 + $0x90] sm:$0xff]
        %v5042 = vld [vmem:[%s5022 + $0x98] sm:$0xff]
        %v5043 = vld [vmem:[%s5022 + $0xa0] sm:$0xff]
        %v5044 = vld [vmem:[%s5022 + $0xa8] sm:$0xff]
        %v5045 = vld [vmem:[%s5022 + $0xb0] sm:$0xff]
        %v5046 = vld [vmem:[%s5022 + $0xb8] sm:$0xff]
        %v5047 = vld [vmem:[%s5022 + $0xc0] sm:$0xff]
        %v5048 = vld [vmem:[%s5022 + $0xc8] sm:$0xff]
        %v5049 = vld [vmem:[%s5022 + $0xd0] sm:$0xff]
        %v5050 = vld [vmem:[%s5022 + $0xd8] sm:$0xff]
        %v5051 = vld [vmem:[%s5022 + $0xe0] sm:$0xff]
        %v5052 = vld [vmem:[%s5022 + $0xe8] sm:$0xff]
        %v5053 = vld [vmem:[%s5022 + $0xf0] sm:$0xff]
        %v5054 = vld [vmem:[%s5022 + $0xf8] sm:$0xff]
        %v5055 = vld [vmem:[%s5022 + $0x100] sm:$0xff]
        %v5056 = vld [vmem:[%s5022 + $0x108] sm:$0xff]
        %v5057 = vld [vmem:[%s5022 + $0x110] sm:$0xff]
        %v5058 = vld [vmem:[%s5022 + $0x118] sm:$0xff]
        %v5059 = vld [vmem:[%s5022 + $0x120] sm:$0xff]
        %v5060 = vld [vmem:[%s5022 + $0x128] sm:$0xff]
        %v5061 = vld [vmem:[%s5022 + $0x130] sm:$0xff]
        %v5062 = vld [vmem:[%s5022 + $0x138] sm:$0xff]
        %v5063 = vld [vmem:[%s5022 + $0x140] sm:$0xff]
        %v5064 = vld [vmem:[%s5022 + $0x148] sm:$0xff]
        %v5065 = vld [vmem:[%s5022 + $0x150] sm:$0xff]
        %v5066 = vld [vmem:[%s5022 + $0x158] sm:$0xff]
        %v5067 = vld [vmem:[%s5022 + $0x160] sm:$0xff]
        %v5068 = vld [vmem:[%s5022 + $0x168] sm:$0xff]
        %v5069 = vld [vmem:[%s5022 + $0x170] sm:$0xff]
        %v5070 = vld [vmem:[%s5022 + $0x178] sm:$0xff]
        %s5071 = scalar_lea.vmem %s5, 24
        %v5072 = vld [vmem:[%s5071] sm:$0x1]
        %v5073 = vld [vmem:[%s5071 + $0x1] sm:$0x1]
        %v5074 = vld [vmem:[%s5071 + $0x2] sm:$0x1]
        %v5075 = vld [vmem:[%s5071 + $0x3] sm:$0x1]
        %v5076 = vld [vmem:[%s5071 + $0x4] sm:$0x1]
        %v5077 = vld [vmem:[%s5071 + $0x5] sm:$0x1]
        %v5078 = vld [vmem:[%s5071 + $0x6] sm:$0x1]
        %v5079 = vld [vmem:[%s5071 + $0x7] sm:$0x1]
        %v5080 = vld [vmem:[%s5071 + $0x8] sm:$0x1]
        %v5081 = vld [vmem:[%s5071 + $0x9] sm:$0x1]
        %v5082 = vld [vmem:[%s5071 + $0xa] sm:$0x1]
        %v5083 = vld [vmem:[%s5071 + $0xb] sm:$0x1]
        %s5084 = scalar_lea.vmem %s6, 64
        %v5085 = vld [vmem:[%s5084] sm:$0xff]
        %v5086 = vld [vmem:[%s5084 + $0x8] sm:$0xff]
        %v5087 = vld [vmem:[%s5084 + $0x10] sm:$0xff]
        %v5088 = vld [vmem:[%s5084 + $0x18] sm:$0xff]
        %s5089 = scalar_lea.vmem %s7, 2
        %v5090 = vld [vmem:[%s5089] sm:$0x1]
        %v5103 = vlaneseq
        %v5104 = vshrl.u32 %v5103, 7
        %v5105 = vsub.s32 0, %v5104
        %v5106 = vrot.slane %v5072, %v5105
        %v5107 = vlaneseq
        %v5108 = vshrl.u32 %v5107, 7
        %v5109 = vsub.s32 0, %v5108
        %v5110 = vrot.slane %v5073, %v5109
        %v5111 = vlaneseq
        %v5112 = vshrl.u32 %v5111, 7
        %v5113 = vsub.s32 0, %v5112
        %v5114 = vrot.slane %v5074, %v5113
        %v5115 = vlaneseq
        %v5116 = vshrl.u32 %v5115, 7
        %v5117 = vsub.s32 0, %v5116
        %v5118 = vrot.slane %v5075, %v5117
        %v5119 = vlaneseq
        %v5120 = vshrl.u32 %v5119, 7
        %v5121 = vsub.s32 0, %v5120
        %v5122 = vrot.slane %v5076, %v5121
        %v5123 = vlaneseq
        %v5124 = vshrl.u32 %v5123, 7
        %v5125 = vsub.s32 0, %v5124
        %v5126 = vrot.slane %v5077, %v5125
        %v5127 = vlaneseq
        %v5128 = vshrl.u32 %v5127, 7
        %v5129 = vsub.s32 0, %v5128
        %v5130 = vrot.slane %v5078, %v5129
        %v5131 = vlaneseq
        %v5132 = vshrl.u32 %v5131, 7
        %v5133 = vsub.s32 0, %v5132
        %v5134 = vrot.slane %v5079, %v5133
        %v5135 = vlaneseq
        %v5136 = vshrl.u32 %v5135, 7
        %v5137 = vsub.s32 0, %v5136
        %v5138 = vrot.slane %v5080, %v5137
        %v5139 = vlaneseq
        %v5140 = vshrl.u32 %v5139, 7
        %v5141 = vsub.s32 0, %v5140
        %v5142 = vrot.slane %v5081, %v5141
        %v5143 = vlaneseq
        %v5144 = vshrl.u32 %v5143, 7
        %v5145 = vsub.s32 0, %v5144
        %v5146 = vrot.slane %v5082, %v5145
        %v5147 = vlaneseq
        %v5148 = vshrl.u32 %v5147, 7
        %v5149 = vsub.s32 0, %v5148
        %v5150 = vrot.slane %v5083, %v5149
        %v5164 = vsel %vm608, %v5021, 0
        %5166 = vmatprep.subr.mxu0 0.0
        %5167 = vmatpush1.msra.mxu0 %v5023
        %5168 = vmatprep.subr.mxu0 0.0
        %5169 = vmatpush1.msra.mxu0 %v5024
        %5170 = vmatprep.subr.mxu0 0.0
        %5171 = vmatpush1.msra.mxu0 %v5025
        %5172 = vmatprep.subr.mxu0 0.0
        %5173 = vmatpush1.msra.mxu0 %v5026
        %5174 = vmatprep.subr.mxu0 0.0
        %5175 = vmatpush1.msra.mxu0 0.0
        %5176 = vmatprep.subr.mxu0 0.0
        %5177 = vmatpush1.msra.mxu0 0.0
        %5178 = vmatprep.subr.mxu0 0.0
        %5179 = vmatpush1.msra.mxu0 0.0
        %5180 = vmatprep.subr.mxu0 0.0
        %5181 = vmatpush1.msra.mxu0 0.0
        %5182 = vmatprep.subr.mxu0 0.0
        %5183 = vmatpush1.msra.mxu0 0.0
        %5184 = vmatprep.subr.mxu0 0.0
        %5185 = vmatpush1.msra.mxu0 0.0
        %5186 = vmatprep.subr.mxu0 0.0
        %5187 = vmatpush1.msra.mxu0 0.0
        %5188 = vmatprep.subr.mxu0 0.0
        %5189 = vmatpush1.msra.mxu0 0.0
        %5190 = vmatprep.subr.mxu0 0.0
        %5191 = vmatpush1.msra.mxu0 0.0
        %5192 = vmatprep.subr.mxu0 0.0
        %5193 = vmatpush1.msra.mxu0 0.0
        %5194 = vmatprep.subr.mxu0 0.0
        %5195 = vmatpush1.msra.mxu0 0.0
        %5196 = vmatprep.subr.mxu0 0.0
        %5197 = vmatpush1.msra.mxu0 0.0
        %5198 = vmatprep.subr.mxu0 0.0
        %5199 = vmatpush1.msra.mxu0 0.0
        %5200 = vmatprep.subr.mxu0 0.0
        %5201 = vmatpush1.msra.mxu0 0.0
        %5202 = vmatprep.subr.mxu0 0.0
        %5203 = vmatpush1.msra.mxu0 0.0
        %5204 = vmatprep.subr.mxu0 0.0
        %5205 = vmatpush1.msra.mxu0 0.0
        %5206 = vmatprep.subr.mxu0 0.0
        %5207 = vmatpush1.msra.mxu0 0.0
        %5208 = vmatprep.subr.mxu0 0.0
        %5209 = vmatpush1.msra.mxu0 0.0
        %5210 = vmatprep.subr.mxu0 0.0
        %5211 = vmatpush1.msra.mxu0 0.0
        %5212 = vmatprep.subr.mxu0 0.0
        %5213 = vmatpush1.msra.mxu0 0.0
        %5214 = vmatprep.subr.mxu0 0.0
        %5215 = vmatpush1.msra.mxu0 0.0
        %5216 = vmatprep.subr.mxu0 0.0
        %5217 = vmatpush1.msra.mxu0 0.0
        %5218 = vmatprep.subr.mxu0 0.0
        %5219 = vmatpush1.msra.mxu0 0.0
        %5220 = vmatprep.subr.mxu0 0.0
        %5221 = vmatpush1.msra.mxu0 0.0
        %5222 = vmatprep.subr.mxu0 0.0
        %5223 = vmatpush1.msra.mxu0 0.0
        %5224 = vmatprep.subr.mxu0 0.0
        %5225 = vmatpush1.msra.mxu0 0.0
        %5226 = vmatprep.subr.mxu0 0.0
        %5227 = vmatpush1.msra.mxu0 0.0
        %5228 = vmatprep.subr.mxu0 0.0
        %5229 = vmatpush1.msra.mxu0 0.0
        %5230 = vmatprep.mubr.f32.mxu0 0.0
        %5231 = vmatmul.mubr.f32.gmra.mrb[0].mxu0 %v5164
        %v5232 = vpop.f32.mrb[0].mxu0
        %v5233 = vadd.f32 %v5106, %v5232
        %v5234 = vpop.f32.mrb[0].mxu0
        %5235 = vdwg.mxu0
        %5236 = vmatprep.subr.mxu0 0.0
        %5237 = vmatpush1.msra.mxu0 %v5027
        %5238 = vmatprep.subr.mxu0 0.0
        %5239 = vmatpush1.msra.mxu0 %v5028
        %5240 = vmatprep.subr.mxu0 0.0
        %5241 = vmatpush1.msra.mxu0 %v5029
        %5242 = vmatprep.subr.mxu0 0.0
        %5243 = vmatpush1.msra.mxu0 %v5030
        %5244 = vmatprep.subr.mxu0 0.0
        %5245 = vmatpush1.msra.mxu0 0.0
        %5246 = vmatprep.subr.mxu0 0.0
        %5247 = vmatpush1.msra.mxu0 0.0
        %5248 = vmatprep.subr.mxu0 0.0
        %5249 = vmatpush1.msra.mxu0 0.0
        %5250 = vmatprep.subr.mxu0 0.0
        %5251 = vmatpush1.msra.mxu0 0.0
        %5252 = vmatprep.subr.mxu0 0.0
        %5253 = vmatpush1.msra.mxu0 0.0
        %5254 = vmatprep.subr.mxu0 0.0
        %5255 = vmatpush1.msra.mxu0 0.0
        %5256 = vmatprep.subr.mxu0 0.0
        %5257 = vmatpush1.msra.mxu0 0.0
        %5258 = vmatprep.subr.mxu0 0.0
        %5259 = vmatpush1.msra.mxu0 0.0
        %5260 = vmatprep.subr.mxu0 0.0
        %5261 = vmatpush1.msra.mxu0 0.0
        %5262 = vmatprep.subr.mxu0 0.0
        %5263 = vmatpush1.msra.mxu0 0.0
        %5264 = vmatprep.subr.mxu0 0.0
        %5265 = vmatpush1.msra.mxu0 0.0
        %5266 = vmatprep.subr.mxu0 0.0
        %5267 = vmatpush1.msra.mxu0 0.0
        %5268 = vmatprep.subr.mxu0 0.0
        %5269 = vmatpush1.msra.mxu0 0.0
        %5270 = vmatprep.subr.mxu0 0.0
        %5271 = vmatpush1.msra.mxu0 0.0
        %5272 = vmatprep.subr.mxu0 0.0
        %5273 = vmatpush1.msra.mxu0 0.0
        %5274 = vmatprep.subr.mxu0 0.0
        %5275 = vmatpush1.msra.mxu0 0.0
        %5276 = vmatprep.subr.mxu0 0.0
        %5277 = vmatpush1.msra.mxu0 0.0
        %5278 = vmatprep.subr.mxu0 0.0
        %5279 = vmatpush1.msra.mxu0 0.0
        %5280 = vmatprep.subr.mxu0 0.0
        %5281 = vmatpush1.msra.mxu0 0.0
        %5282 = vmatprep.subr.mxu0 0.0
        %5283 = vmatpush1.msra.mxu0 0.0
        %5284 = vmatprep.subr.mxu0 0.0
        %5285 = vmatpush1.msra.mxu0 0.0
        %5286 = vmatprep.subr.mxu0 0.0
        %5287 = vmatpush1.msra.mxu0 0.0
        %5288 = vmatprep.subr.mxu0 0.0
        %5289 = vmatpush1.msra.mxu0 0.0
        %5290 = vmatprep.subr.mxu0 0.0
        %5291 = vmatpush1.msra.mxu0 0.0
        %5292 = vmatprep.subr.mxu0 0.0
        %5293 = vmatpush1.msra.mxu0 0.0
        %5294 = vmatprep.subr.mxu0 0.0
        %5295 = vmatpush1.msra.mxu0 0.0
        %5296 = vmatprep.subr.mxu0 0.0
        %5297 = vmatpush1.msra.mxu0 0.0
        %5298 = vmatprep.subr.mxu0 0.0
        %5299 = vmatpush1.msra.mxu0 0.0
        %5300 = vmatprep.mubr.f32.mxu0 0.0
        %5301 = vmatmul.mubr.f32.gmra.mrb[0].mxu0 %v5164
        %v5302 = vpop.f32.mrb[0].mxu0
        %v5303 = vadd.f32 %v5110, %v5302
        %v5304 = vpop.f32.mrb[0].mxu0
        %5305 = vdwg.mxu0
        %5306 = vmatprep.subr.mxu0 0.0
        %5307 = vmatpush1.msra.mxu0 %v5031
        %5308 = vmatprep.subr.mxu0 0.0
        %5309 = vmatpush1.msra.mxu0 %v5032
        %5310 = vmatprep.subr.mxu0 0.0
        %5311 = vmatpush1.msra.mxu0 %v5033
        %5312 = vmatprep.subr.mxu0 0.0
        %5313 = vmatpush1.msra.mxu0 %v5034
        %5314 = vmatprep.subr.mxu0 0.0
        %5315 = vmatpush1.msra.mxu0 0.0
        %5316 = vmatprep.subr.mxu0 0.0
        %5317 = vmatpush1.msra.mxu0 0.0
        %5318 = vmatprep.subr.mxu0 0.0
        %5319 = vmatpush1.msra.mxu0 0.0
        %5320 = vmatprep.subr.mxu0 0.0
        %5321 = vmatpush1.msra.mxu0 0.0
        %5322 = vmatprep.subr.mxu0 0.0
        %5323 = vmatpush1.msra.mxu0 0.0
        %5324 = vmatprep.subr.mxu0 0.0
        %5325 = vmatpush1.msra.mxu0 0.0
        %5326 = vmatprep.subr.mxu0 0.0
        %5327 = vmatpush1.msra.mxu0 0.0
        %5328 = vmatprep.subr.mxu0 0.0
        %5329 = vmatpush1.msra.mxu0 0.0
        %5330 = vmatprep.subr.mxu0 0.0
        %5331 = vmatpush1.msra.mxu0 0.0
        %5332 = vmatprep.subr.mxu0 0.0
        %5333 = vmatpush1.msra.mxu0 0.0
        %5334 = vmatprep.subr.mxu0 0.0
        %5335 = vmatpush1.msra.mxu0 0.0
        %5336 = vmatprep.subr.mxu0 0.0
        %5337 = vmatpush1.msra.mxu0 0.0
        %5338 = vmatprep.subr.mxu0 0.0
        %5339 = vmatpush1.msra.mxu0 0.0
        %5340 = vmatprep.subr.mxu0 0.0
        %5341 = vmatpush1.msra.mxu0 0.0
        %5342 = vmatprep.subr.mxu0 0.0
        %5343 = vmatpush1.msra.mxu0 0.0
        %5344 = vmatprep.subr.mxu0 0.0
        %5345 = vmatpush1.msra.mxu0 0.0
        %5346 = vmatprep.subr.mxu0 0.0
        %5347 = vmatpush1.msra.mxu0 0.0
        %5348 = vmatprep.subr.mxu0 0.0
        %5349 = vmatpush1.msra.mxu0 0.0
        %5350 = vmatprep.subr.mxu0 0.0
        %5351 = vmatpush1.msra.mxu0 0.0
        %5352 = vmatprep.subr.mxu0 0.0
        %5353 = vmatpush1.msra.mxu0 0.0
        %5354 = vmatprep.subr.mxu0 0.0
        %5355 = vmatpush1.msra.mxu0 0.0
        %5356 = vmatprep.subr.mxu0 0.0
        %5357 = vmatpush1.msra.mxu0 0.0
        %5358 = vmatprep.subr.mxu0 0.0
        %5359 = vmatpush1.msra.mxu0 0.0
        %5360 = vmatprep.subr.mxu0 0.0
        %5361 = vmatpush1.msra.mxu0 0.0
        %5362 = vmatprep.subr.mxu0 0.0
        %5363 = vmatpush1.msra.mxu0 0.0
        %5364 = vmatprep.subr.mxu0 0.0
        %5365 = vmatpush1.msra.mxu0 0.0
        %5366 = vmatprep.subr.mxu0 0.0
        %5367 = vmatpush1.msra.mxu0 0.0
        %5368 = vmatprep.subr.mxu0 0.0
        %5369 = vmatpush1.msra.mxu0 0.0
        %5370 = vmatprep.mubr.f32.mxu0 0.0
        %5371 = vmatmul.mubr.f32.gmra.mrb[0].mxu0 %v5164
        %v5372 = vpop.f32.mrb[0].mxu0
        %v5373 = vadd.f32 %v5114, %v5372
        %v5374 = vpop.f32.mrb[0].mxu0
        %5375 = vdwg.mxu0
        %5376 = vmatprep.subr.mxu0 0.0
        %5377 = vmatpush1.msra.mxu0 %v5035
        %5378 = vmatprep.subr.mxu0 0.0
        %5379 = vmatpush1.msra.mxu0 %v5036
        %5380 = vmatprep.subr.mxu0 0.0
        %5381 = vmatpush1.msra.mxu0 %v5037
        %5382 = vmatprep.subr.mxu0 0.0
        %5383 = vmatpush1.msra.mxu0 %v5038
        %5384 = vmatprep.subr.mxu0 0.0
        %5385 = vmatpush1.msra.mxu0 0.0
        %5386 = vmatprep.subr.mxu0 0.0
        %5387 = vmatpush1.msra.mxu0 0.0
        %5388 = vmatprep.subr.mxu0 0.0
        %5389 = vmatpush1.msra.mxu0 0.0
        %5390 = vmatprep.subr.mxu0 0.0
        %5391 = vmatpush1.msra.mxu0 0.0
        %5392 = vmatprep.subr.mxu0 0.0
        %5393 = vmatpush1.msra.mxu0 0.0
        %5394 = vmatprep.subr.mxu0 0.0
        %5395 = vmatpush1.msra.mxu0 0.0
        %5396 = vmatprep.subr.mxu0 0.0
        %5397 = vmatpush1.msra.mxu0 0.0
        %5398 = vmatprep.subr.mxu0 0.0
        %5399 = vmatpush1.msra.mxu0 0.0
        %5400 = vmatprep.subr.mxu0 0.0
        %5401 = vmatpush1.msra.mxu0 0.0
        %5402 = vmatprep.subr.mxu0 0.0
        %5403 = vmatpush1.msra.mxu0 0.0
        %5404 = vmatprep.subr.mxu0 0.0
        %5405 = vmatpush1.msra.mxu0 0.0
        %5406 = vmatprep.subr.mxu0 0.0
        %5407 = vmatpush1.msra.mxu0 0.0
        %5408 = vmatprep.subr.mxu0 0.0
        %5409 = vmatpush1.msra.mxu0 0.0
        %5410 = vmatprep.subr.mxu0 0.0
        %5411 = vmatpush1.msra.mxu0 0.0
        %5412 = vmatprep.subr.mxu0 0.0
        %5413 = vmatpush1.msra.mxu0 0.0
        %5414 = vmatprep.subr.mxu0 0.0
        %5415 = vmatpush1.msra.mxu0 0.0
        %5416 = vmatprep.subr.mxu0 0.0
        %5417 = vmatpush1.msra.mxu0 0.0
        %5418 = vmatprep.subr.mxu0 0.0
        %5419 = vmatpush1.msra.mxu0 0.0
        %5420 = vmatprep.subr.mxu0 0.0
        %5421 = vmatpush1.msra.mxu0 0.0
        %5422 = vmatprep.subr.mxu0 0.0
        %5423 = vmatpush1.msra.mxu0 0.0
        %5424 = vmatprep.subr.mxu0 0.0
        %5425 = vmatpush1.msra.mxu0 0.0
        %5426 = vmatprep.subr.mxu0 0.0
        %5427 = vmatpush1.msra.mxu0 0.0
        %5428 = vmatprep.subr.mxu0 0.0
        %5429 = vmatpush1.msra.mxu0 0.0
        %5430 = vmatprep.subr.mxu0 0.0
        %5431 = vmatpush1.msra.mxu0 0.0
        %5432 = vmatprep.subr.mxu0 0.0
        %5433 = vmatpush1.msra.mxu0 0.0
        %5434 = vmatprep.subr.mxu0 0.0
        %5435 = vmatpush1.msra.mxu0 0.0
        %5436 = vmatprep.subr.mxu0 0.0
        %5437 = vmatpush1.msra.mxu0 0.0
        %5438 = vmatprep.subr.mxu0 0.0
        %5439 = vmatpush1.msra.mxu0 0.0
        %5440 = vmatprep.mubr.f32.mxu0 0.0
        %5441 = vmatmul.mubr.f32.gmra.mrb[0].mxu0 %v5164
        %v5442 = vpop.f32.mrb[0].mxu0
        %v5443 = vadd.f32 %v5118, %v5442
        %v5444 = vpop.f32.mrb[0].mxu0
        %5445 = vdwg.mxu0
        %5446 = vmatprep.subr.mxu0 0.0
        %5447 = vmatpush1.msra.mxu0 %v5039
        %5448 = vmatprep.subr.mxu0 0.0
        %5449 = vmatpush1.msra.mxu0 %v5040
        %5450 = vmatprep.subr.mxu0 0.0
        %5451 = vmatpush1.msra.mxu0 %v5041
        %5452 = vmatprep.subr.mxu0 0.0
        %5453 = vmatpush1.msra.mxu0 %v5042
        %5454 = vmatprep.subr.mxu0 0.0
        %5455 = vmatpush1.msra.mxu0 0.0
        %5456 = vmatprep.subr.mxu0 0.0
        %5457 = vmatpush1.msra.mxu0 0.0
        %5458 = vmatprep.subr.mxu0 0.0
        %5459 = vmatpush1.msra.mxu0 0.0
        %5460 = vmatprep.subr.mxu0 0.0
        %5461 = vmatpush1.msra.mxu0 0.0
        %5462 = vmatprep.subr.mxu0 0.0
        %5463 = vmatpush1.msra.mxu0 0.0
        %5464 = vmatprep.subr.mxu0 0.0
        %5465 = vmatpush1.msra.mxu0 0.0
        %5466 = vmatprep.subr.mxu0 0.0
        %5467 = vmatpush1.msra.mxu0 0.0
        %5468 = vmatprep.subr.mxu0 0.0
        %5469 = vmatpush1.msra.mxu0 0.0
        %5470 = vmatprep.subr.mxu0 0.0
        %5471 = vmatpush1.msra.mxu0 0.0
        %5472 = vmatprep.subr.mxu0 0.0
        %5473 = vmatpush1.msra.mxu0 0.0
        %5474 = vmatprep.subr.mxu0 0.0
        %5475 = vmatpush1.msra.mxu0 0.0
        %5476 = vmatprep.subr.mxu0 0.0
        %5477 = vmatpush1.msra.mxu0 0.0
        %5478 = vmatprep.subr.mxu0 0.0
        %5479 = vmatpush1.msra.mxu0 0.0
        %5480 = vmatprep.subr.mxu0 0.0
        %5481 = vmatpush1.msra.mxu0 0.0
        %5482 = vmatprep.subr.mxu0 0.0
        %5483 = vmatpush1.msra.mxu0 0.0
        %5484 = vmatprep.subr.mxu0 0.0
        %5485 = vmatpush1.msra.mxu0 0.0
        %5486 = vmatprep.subr.mxu0 0.0
        %5487 = vmatpush1.msra.mxu0 0.0
        %5488 = vmatprep.subr.mxu0 0.0
        %5489 = vmatpush1.msra.mxu0 0.0
        %5490 = vmatprep.subr.mxu0 0.0
        %5491 = vmatpush1.msra.mxu0 0.0
        %5492 = vmatprep.subr.mxu0 0.0
        %5493 = vmatpush1.msra.mxu0 0.0
        %5494 = vmatprep.subr.mxu0 0.0
        %5495 = vmatpush1.msra.mxu0 0.0
        %5496 = vmatprep.subr.mxu0 0.0
        %5497 = vmatpush1.msra.mxu0 0.0
        %5498 = vmatprep.subr.mxu0 0.0
        %5499 = vmatpush1.msra.mxu0 0.0
        %5500 = vmatprep.subr.mxu0 0.0
        %5501 = vmatpush1.msra.mxu0 0.0
        %5502 = vmatprep.subr.mxu0 0.0
        %5503 = vmatpush1.msra.mxu0 0.0
        %5504 = vmatprep.subr.mxu0 0.0
        %5505 = vmatpush1.msra.mxu0 0.0
        %5506 = vmatprep.subr.mxu0 0.0
        %5507 = vmatpush1.msra.mxu0 0.0
        %5508 = vmatprep.subr.mxu0 0.0
        %5509 = vmatpush1.msra.mxu0 0.0
        %5510 = vmatprep.mubr.f32.mxu0 0.0
        %5511 = vmatmul.mubr.f32.gmra.mrb[0].mxu0 %v5164
        %v5512 = vpop.f32.mrb[0].mxu0
        %v5513 = vadd.f32 %v5122, %v5512
        %v5514 = vpop.f32.mrb[0].mxu0
        %5515 = vdwg.mxu0
        %5516 = vmatprep.subr.mxu0 0.0
        %5517 = vmatpush1.msra.mxu0 %v5043
        %5518 = vmatprep.subr.mxu0 0.0
        %5519 = vmatpush1.msra.mxu0 %v5044
        %5520 = vmatprep.subr.mxu0 0.0
        %5521 = vmatpush1.msra.mxu0 %v5045
        %5522 = vmatprep.subr.mxu0 0.0
        %5523 = vmatpush1.msra.mxu0 %v5046
        %5524 = vmatprep.subr.mxu0 0.0
        %5525 = vmatpush1.msra.mxu0 0.0
        %5526 = vmatprep.subr.mxu0 0.0
        %5527 = vmatpush1.msra.mxu0 0.0
        %5528 = vmatprep.subr.mxu0 0.0
        %5529 = vmatpush1.msra.mxu0 0.0
        %5530 = vmatprep.subr.mxu0 0.0
        %5531 = vmatpush1.msra.mxu0 0.0
        %5532 = vmatprep.subr.mxu0 0.0
        %5533 = vmatpush1.msra.mxu0 0.0
        %5534 = vmatprep.subr.mxu0 0.0
        %5535 = vmatpush1.msra.mxu0 0.0
        %5536 = vmatprep.subr.mxu0 0.0
        %5537 = vmatpush1.msra.mxu0 0.0
        %5538 = vmatprep.subr.mxu0 0.0
        %5539 = vmatpush1.msra.mxu0 0.0
        %5540 = vmatprep.subr.mxu0 0.0
        %5541 = vmatpush1.msra.mxu0 0.0
        %5542 = vmatprep.subr.mxu0 0.0
        %5543 = vmatpush1.msra.mxu0 0.0
        %5544 = vmatprep.subr.mxu0 0.0
        %5545 = vmatpush1.msra.mxu0 0.0
        %5546 = vmatprep.subr.mxu0 0.0
        %5547 = vmatpush1.msra.mxu0 0.0
        %5548 = vmatprep.subr.mxu0 0.0
        %5549 = vmatpush1.msra.mxu0 0.0
        %5550 = vmatprep.subr.mxu0 0.0
        %5551 = vmatpush1.msra.mxu0 0.0
        %5552 = vmatprep.subr.mxu0 0.0
        %5553 = vmatpush1.msra.mxu0 0.0
        %5554 = vmatprep.subr.mxu0 0.0
        %5555 = vmatpush1.msra.mxu0 0.0
        %5556 = vmatprep.subr.mxu0 0.0
        %5557 = vmatpush1.msra.mxu0 0.0
        %5558 = vmatprep.subr.mxu0 0.0
        %5559 = vmatpush1.msra.mxu0 0.0
        %5560 = vmatprep.subr.mxu0 0.0
        %5561 = vmatpush1.msra.mxu0 0.0
        %5562 = vmatprep.subr.mxu0 0.0
        %5563 = vmatpush1.msra.mxu0 0.0
        %5564 = vmatprep.subr.mxu0 0.0
        %5565 = vmatpush1.msra.mxu0 0.0
        %5566 = vmatprep.subr.mxu0 0.0
        %5567 = vmatpush1.msra.mxu0 0.0
        %5568 = vmatprep.subr.mxu0 0.0
        %5569 = vmatpush1.msra.mxu0 0.0
        %5570 = vmatprep.subr.mxu0 0.0
        %5571 = vmatpush1.msra.mxu0 0.0
        %5572 = vmatprep.subr.mxu0 0.0
        %5573 = vmatpush1.msra.mxu0 0.0
        %5574 = vmatprep.subr.mxu0 0.0
        %5575 = vmatpush1.msra.mxu0 0.0
        %5576 = vmatprep.subr.mxu0 0.0
        %5577 = vmatpush1.msra.mxu0 0.0
        %5578 = vmatprep.subr.mxu0 0.0
        %5579 = vmatpush1.msra.mxu0 0.0
        %5580 = vmatprep.mubr.f32.mxu0 0.0
        %5581 = vmatmul.mubr.f32.gmra.mrb[0].mxu0 %v5164
        %v5582 = vpop.f32.mrb[0].mxu0
        %v5583 = vadd.f32 %v5126, %v5582
        %v5584 = vpop.f32.mrb[0].mxu0
        %5585 = vdwg.mxu0
        %5586 = vmatprep.subr.mxu0 0.0
        %5587 = vmatpush1.msra.mxu0 %v5047
        %5588 = vmatprep.subr.mxu0 0.0
        %5589 = vmatpush1.msra.mxu0 %v5048
        %5590 = vmatprep.subr.mxu0 0.0
        %5591 = vmatpush1.msra.mxu0 %v5049
        %5592 = vmatprep.subr.mxu0 0.0
        %5593 = vmatpush1.msra.mxu0 %v5050
        %5594 = vmatprep.subr.mxu0 0.0
        %5595 = vmatpush1.msra.mxu0 0.0
        %5596 = vmatprep.subr.mxu0 0.0
        %5597 = vmatpush1.msra.mxu0 0.0
        %5598 = vmatprep.subr.mxu0 0.0
        %5599 = vmatpush1.msra.mxu0 0.0
        %5600 = vmatprep.subr.mxu0 0.0
        %5601 = vmatpush1.msra.mxu0 0.0
        %5602 = vmatprep.subr.mxu0 0.0
        %5603 = vmatpush1.msra.mxu0 0.0
        %5604 = vmatprep.subr.mxu0 0.0
        %5605 = vmatpush1.msra.mxu0 0.0
        %5606 = vmatprep.subr.mxu0 0.0
        %5607 = vmatpush1.msra.mxu0 0.0
        %5608 = vmatprep.subr.mxu0 0.0
        %5609 = vmatpush1.msra.mxu0 0.0
        %5610 = vmatprep.subr.mxu0 0.0
        %5611 = vmatpush1.msra.mxu0 0.0
        %5612 = vmatprep.subr.mxu0 0.0
        %5613 = vmatpush1.msra.mxu0 0.0
        %5614 = vmatprep.subr.mxu0 0.0
        %5615 = vmatpush1.msra.mxu0 0.0
        %5616 = vmatprep.subr.mxu0 0.0
        %5617 = vmatpush1.msra.mxu0 0.0
        %5618 = vmatprep.subr.mxu0 0.0
        %5619 = vmatpush1.msra.mxu0 0.0
        %5620 = vmatprep.subr.mxu0 0.0
        %5621 = vmatpush1.msra.mxu0 0.0
        %5622 = vmatprep.subr.mxu0 0.0
        %5623 = vmatpush1.msra.mxu0 0.0
        %5624 = vmatprep.subr.mxu0 0.0
        %5625 = vmatpush1.msra.mxu0 0.0
        %5626 = vmatprep.subr.mxu0 0.0
        %5627 = vmatpush1.msra.mxu0 0.0
        %5628 = vmatprep.subr.mxu0 0.0
        %5629 = vmatpush1.msra.mxu0 0.0
        %5630 = vmatprep.subr.mxu0 0.0
        %5631 = vmatpush1.msra.mxu0 0.0
        %5632 = vmatprep.subr.mxu0 0.0
        %5633 = vmatpush1.msra.mxu0 0.0
        %5634 = vmatprep.subr.mxu0 0.0
        %5635 = vmatpush1.msra.mxu0 0.0
        %5636 = vmatprep.subr.mxu0 0.0
        %5637 = vmatpush1.msra.mxu0 0.0
        %5638 = vmatprep.subr.mxu0 0.0
        %5639 = vmatpush1.msra.mxu0 0.0
        %5640 = vmatprep.subr.mxu0 0.0
        %5641 = vmatpush1.msra.mxu0 0.0
        %5642 = vmatprep.subr.mxu0 0.0
        %5643 = vmatpush1.msra.mxu0 0.0
        %5644 = vmatprep.subr.mxu0 0.0
        %5645 = vmatpush1.msra.mxu0 0.0
        %5646 = vmatprep.subr.mxu0 0.0
        %5647 = vmatpush1.msra.mxu0 0.0
        %5648 = vmatprep.subr.mxu0 0.0
        %5649 = vmatpush1.msra.mxu0 0.0
        %5650 = vmatprep.mubr.f32.mxu0 0.0
        %5651 = vmatmul.mubr.f32.gmra.mrb[0].mxu0 %v5164
        %v5652 = vpop.f32.mrb[0].mxu0
        %v5653 = vadd.f32 %v5130, %v5652
        %v5654 = vpop.f32.mrb[0].mxu0
        %5655 = vdwg.mxu0
        %5656 = vmatprep.subr.mxu0 0.0
        %5657 = vmatpush1.msra.mxu0 %v5051
        %5658 = vmatprep.subr.mxu0 0.0
        %5659 = vmatpush1.msra.mxu0 %v5052
        %5660 = vmatprep.subr.mxu0 0.0
        %5661 = vmatpush1.msra.mxu0 %v5053
        %5662 = vmatprep.subr.mxu0 0.0
        %5663 = vmatpush1.msra.mxu0 %v5054
        %5664 = vmatprep.subr.mxu0 0.0
        %5665 = vmatpush1.msra.mxu0 0.0
        %5666 = vmatprep.subr.mxu0 0.0
        %5667 = vmatpush1.msra.mxu0 0.0
        %5668 = vmatprep.subr.mxu0 0.0
        %5669 = vmatpush1.msra.mxu0 0.0
        %5670 = vmatprep.subr.mxu0 0.0
        %5671 = vmatpush1.msra.mxu0 0.0
        %5672 = vmatprep.subr.mxu0 0.0
        %5673 = vmatpush1.msra.mxu0 0.0
        %5674 = vmatprep.subr.mxu0 0.0
        %5675 = vmatpush1.msra.mxu0 0.0
        %5676 = vmatprep.subr.mxu0 0.0
        %5677 = vmatpush1.msra.mxu0 0.0
        %5678 = vmatprep.subr.mxu0 0.0
        %5679 = vmatpush1.msra.mxu0 0.0
        %5680 = vmatprep.subr.mxu0 0.0
        %5681 = vmatpush1.msra.mxu0 0.0
        %5682 = vmatprep.subr.mxu0 0.0
        %5683 = vmatpush1.msra.mxu0 0.0
        %5684 = vmatprep.subr.mxu0 0.0
        %5685 = vmatpush1.msra.mxu0 0.0
        %5686 = vmatprep.subr.mxu0 0.0
        %5687 = vmatpush1.msra.mxu0 0.0
        %5688 = vmatprep.subr.mxu0 0.0
        %5689 = vmatpush1.msra.mxu0 0.0
        %5690 = vmatprep.subr.mxu0 0.0
        %5691 = vmatpush1.msra.mxu0 0.0
        %5692 = vmatprep.subr.mxu0 0.0
        %5693 = vmatpush1.msra.mxu0 0.0
        %5694 = vmatprep.subr.mxu0 0.0
        %5695 = vmatpush1.msra.mxu0 0.0
        %5696 = vmatprep.subr.mxu0 0.0
        %5697 = vmatpush1.msra.mxu0 0.0
        %5698 = vmatprep.subr.mxu0 0.0
        %5699 = vmatpush1.msra.mxu0 0.0
        %5700 = vmatprep.subr.mxu0 0.0
        %5701 = vmatpush1.msra.mxu0 0.0
        %5702 = vmatprep.subr.mxu0 0.0
        %5703 = vmatpush1.msra.mxu0 0.0
        %5704 = vmatprep.subr.mxu0 0.0
        %5705 = vmatpush1.msra.mxu0 0.0
        %5706 = vmatprep.subr.mxu0 0.0
        %5707 = vmatpush1.msra.mxu0 0.0
        %5708 = vmatprep.subr.mxu0 0.0
        %5709 = vmatpush1.msra.mxu0 0.0
        %5710 = vmatprep.subr.mxu0 0.0
        %5711 = vmatpush1.msra.mxu0 0.0
        %5712 = vmatprep.subr.mxu0 0.0
        %5713 = vmatpush1.msra.mxu0 0.0
        %5714 = vmatprep.subr.mxu0 0.0
        %5715 = vmatpush1.msra.mxu0 0.0
        %5716 = vmatprep.subr.mxu0 0.0
        %5717 = vmatpush1.msra.mxu0 0.0
        %5718 = vmatprep.subr.mxu0 0.0
        %5719 = vmatpush1.msra.mxu0 0.0
        %5720 = vmatprep.mubr.f32.mxu0 0.0
        %5721 = vmatmul.mubr.f32.gmra.mrb[0].mxu0 %v5164
        %v5722 = vpop.f32.mrb[0].mxu0
        %v5723 = vadd.f32 %v5134, %v5722
        %v5724 = vpop.f32.mrb[0].mxu0
        %5725 = vdwg.mxu0
        %5726 = vmatprep.subr.mxu0 0.0
        %5727 = vmatpush1.msra.mxu0 %v5055
        %5728 = vmatprep.subr.mxu0 0.0
        %5729 = vmatpush1.msra.mxu0 %v5056
        %5730 = vmatprep.subr.mxu0 0.0
        %5731 = vmatpush1.msra.mxu0 %v5057
        %5732 = vmatprep.subr.mxu0 0.0
        %5733 = vmatpush1.msra.mxu0 %v5058
        %5734 = vmatprep.subr.mxu0 0.0
        %5735 = vmatpush1.msra.mxu0 0.0
        %5736 = vmatprep.subr.mxu0 0.0
        %5737 = vmatpush1.msra.mxu0 0.0
        %5738 = vmatprep.subr.mxu0 0.0
        %5739 = vmatpush1.msra.mxu0 0.0
        %5740 = vmatprep.subr.mxu0 0.0
        %5741 = vmatpush1.msra.mxu0 0.0
        %5742 = vmatprep.subr.mxu0 0.0
        %5743 = vmatpush1.msra.mxu0 0.0
        %5744 = vmatprep.subr.mxu0 0.0
        %5745 = vmatpush1.msra.mxu0 0.0
        %5746 = vmatprep.subr.mxu0 0.0
        %5747 = vmatpush1.msra.mxu0 0.0
        %5748 = vmatprep.subr.mxu0 0.0
        %5749 = vmatpush1.msra.mxu0 0.0
        %5750 = vmatprep.subr.mxu0 0.0
        %5751 = vmatpush1.msra.mxu0 0.0
        %5752 = vmatprep.subr.mxu0 0.0
        %5753 = vmatpush1.msra.mxu0 0.0
        %5754 = vmatprep.subr.mxu0 0.0
        %5755 = vmatpush1.msra.mxu0 0.0
        %5756 = vmatprep.subr.mxu0 0.0
        %5757 = vmatpush1.msra.mxu0 0.0
        %5758 = vmatprep.subr.mxu0 0.0
        %5759 = vmatpush1.msra.mxu0 0.0
        %5760 = vmatprep.subr.mxu0 0.0
        %5761 = vmatpush1.msra.mxu0 0.0
        %5762 = vmatprep.subr.mxu0 0.0
        %5763 = vmatpush1.msra.mxu0 0.0
        %5764 = vmatprep.subr.mxu0 0.0
        %5765 = vmatpush1.msra.mxu0 0.0
        %5766 = vmatprep.subr.mxu0 0.0
        %5767 = vmatpush1.msra.mxu0 0.0
        %5768 = vmatprep.subr.mxu0 0.0
        %5769 = vmatpush1.msra.mxu0 0.0
        %5770 = vmatprep.subr.mxu0 0.0
        %5771 = vmatpush1.msra.mxu0 0.0
        %5772 = vmatprep.subr.mxu0 0.0
        %5773 = vmatpush1.msra.mxu0 0.0
        %5774 = vmatprep.subr.mxu0 0.0
        %5775 = vmatpush1.msra.mxu0 0.0
        %5776 = vmatprep.subr.mxu0 0.0
        %5777 = vmatpush1.msra.mxu0 0.0
        %5778 = vmatprep.subr.mxu0 0.0
        %5779 = vmatpush1.msra.mxu0 0.0
        %5780 = vmatprep.subr.mxu0 0.0
        %5781 = vmatpush1.msra.mxu0 0.0
        %5782 = vmatprep.subr.mxu0 0.0
        %5783 = vmatpush1.msra.mxu0 0.0
        %5784 = vmatprep.subr.mxu0 0.0
        %5785 = vmatpush1.msra.mxu0 0.0
        %5786 = vmatprep.subr.mxu0 0.0
        %5787 = vmatpush1.msra.mxu0 0.0
        %5788 = vmatprep.subr.mxu0 0.0
        %5789 = vmatpush1.msra.mxu0 0.0
        %5790 = vmatprep.mubr.f32.mxu0 0.0
        %5791 = vmatmul.mubr.f32.gmra.mrb[0].mxu0 %v5164
        %v5792 = vpop.f32.mrb[0].mxu0
        %v5793 = vadd.f32 %v5138, %v5792
        %v5794 = vpop.f32.mrb[0].mxu0
        %5795 = vdwg.mxu0
        %5796 = vmatprep.subr.mxu0 0.0
        %5797 = vmatpush1.msra.mxu0 %v5059
        %5798 = vmatprep.subr.mxu0 0.0
        %5799 = vmatpush1.msra.mxu0 %v5060
        %5800 = vmatprep.subr.mxu0 0.0
        %5801 = vmatpush1.msra.mxu0 %v5061
        %5802 = vmatprep.subr.mxu0 0.0
        %5803 = vmatpush1.msra.mxu0 %v5062
        %5804 = vmatprep.subr.mxu0 0.0
        %5805 = vmatpush1.msra.mxu0 0.0
        %5806 = vmatprep.subr.mxu0 0.0
        %5807 = vmatpush1.msra.mxu0 0.0
        %5808 = vmatprep.subr.mxu0 0.0
        %5809 = vmatpush1.msra.mxu0 0.0
        %5810 = vmatprep.subr.mxu0 0.0
        %5811 = vmatpush1.msra.mxu0 0.0
        %5812 = vmatprep.subr.mxu0 0.0
        %5813 = vmatpush1.msra.mxu0 0.0
        %5814 = vmatprep.subr.mxu0 0.0
        %5815 = vmatpush1.msra.mxu0 0.0
        %5816 = vmatprep.subr.mxu0 0.0
        %5817 = vmatpush1.msra.mxu0 0.0
        %5818 = vmatprep.subr.mxu0 0.0
        %5819 = vmatpush1.msra.mxu0 0.0
        %5820 = vmatprep.subr.mxu0 0.0
        %5821 = vmatpush1.msra.mxu0 0.0
        %5822 = vmatprep.subr.mxu0 0.0
        %5823 = vmatpush1.msra.mxu0 0.0
        %5824 = vmatprep.subr.mxu0 0.0
        %5825 = vmatpush1.msra.mxu0 0.0
        %5826 = vmatprep.subr.mxu0 0.0
        %5827 = vmatpush1.msra.mxu0 0.0
        %5828 = vmatprep.subr.mxu0 0.0
        %5829 = vmatpush1.msra.mxu0 0.0
        %5830 = vmatprep.subr.mxu0 0.0
        %5831 = vmatpush1.msra.mxu0 0.0
        %5832 = vmatprep.subr.mxu0 0.0
        %5833 = vmatpush1.msra.mxu0 0.0
        %5834 = vmatprep.subr.mxu0 0.0
        %5835 = vmatpush1.msra.mxu0 0.0
        %5836 = vmatprep.subr.mxu0 0.0
        %5837 = vmatpush1.msra.mxu0 0.0
        %5838 = vmatprep.subr.mxu0 0.0
        %5839 = vmatpush1.msra.mxu0 0.0
        %5840 = vmatprep.subr.mxu0 0.0
        %5841 = vmatpush1.msra.mxu0 0.0
        %5842 = vmatprep.subr.mxu0 0.0
        %5843 = vmatpush1.msra.mxu0 0.0
        %5844 = vmatprep.subr.mxu0 0.0
        %5845 = vmatpush1.msra.mxu0 0.0
        %5846 = vmatprep.subr.mxu0 0.0
        %5847 = vmatpush1.msra.mxu0 0.0
        %5848 = vmatprep.subr.mxu0 0.0
        %5849 = vmatpush1.msra.mxu0 0.0
        %5850 = vmatprep.subr.mxu0 0.0
        %5851 = vmatpush1.msra.mxu0 0.0
        %5852 = vmatprep.subr.mxu0 0.0
        %5853 = vmatpush1.msra.mxu0 0.0
        %5854 = vmatprep.subr.mxu0 0.0
        %5855 = vmatpush1.msra.mxu0 0.0
        %5856 = vmatprep.subr.mxu0 0.0
        %5857 = vmatpush1.msra.mxu0 0.0
        %5858 = vmatprep.subr.mxu0 0.0
        %5859 = vmatpush1.msra.mxu0 0.0
        %5860 = vmatprep.mubr.f32.mxu0 0.0
        %5861 = vmatmul.mubr.f32.gmra.mrb[0].mxu0 %v5164
        %v5862 = vpop.f32.mrb[0].mxu0
        %v5863 = vadd.f32 %v5142, %v5862
        %v5864 = vpop.f32.mrb[0].mxu0
        %5865 = vdwg.mxu0
        %5866 = vmatprep.subr.mxu0 0.0
        %5867 = vmatpush1.msra.mxu0 %v5063
        %5868 = vmatprep.subr.mxu0 0.0
        %5869 = vmatpush1.msra.mxu0 %v5064
        %5870 = vmatprep.subr.mxu0 0.0
        %5871 = vmatpush1.msra.mxu0 %v5065
        %5872 = vmatprep.subr.mxu0 0.0
        %5873 = vmatpush1.msra.mxu0 %v5066
        %5874 = vmatprep.subr.mxu0 0.0
        %5875 = vmatpush1.msra.mxu0 0.0
        %5876 = vmatprep.subr.mxu0 0.0
        %5877 = vmatpush1.msra.mxu0 0.0
        %5878 = vmatprep.subr.mxu0 0.0
        %5879 = vmatpush1.msra.mxu0 0.0
        %5880 = vmatprep.subr.mxu0 0.0
        %5881 = vmatpush1.msra.mxu0 0.0
        %5882 = vmatprep.subr.mxu0 0.0
        %5883 = vmatpush1.msra.mxu0 0.0
        %5884 = vmatprep.subr.mxu0 0.0
        %5885 = vmatpush1.msra.mxu0 0.0
        %5886 = vmatprep.subr.mxu0 0.0
        %5887 = vmatpush1.msra.mxu0 0.0
        %5888 = vmatprep.subr.mxu0 0.0
        %5889 = vmatpush1.msra.mxu0 0.0
        %5890 = vmatprep.subr.mxu0 0.0
        %5891 = vmatpush1.msra.mxu0 0.0
        %5892 = vmatprep.subr.mxu0 0.0
        %5893 = vmatpush1.msra.mxu0 0.0
        %5894 = vmatprep.subr.mxu0 0.0
        %5895 = vmatpush1.msra.mxu0 0.0
        %5896 = vmatprep.subr.mxu0 0.0
        %5897 = vmatpush1.msra.mxu0 0.0
        %5898 = vmatprep.subr.mxu0 0.0
        %5899 = vmatpush1.msra.mxu0 0.0
        %5900 = vmatprep.subr.mxu0 0.0
        %5901 = vmatpush1.msra.mxu0 0.0
        %5902 = vmatprep.subr.mxu0 0.0
        %5903 = vmatpush1.msra.mxu0 0.0
        %5904 = vmatprep.subr.mxu0 0.0
        %5905 = vmatpush1.msra.mxu0 0.0
        %5906 = vmatprep.subr.mxu0 0.0
        %5907 = vmatpush1.msra.mxu0 0.0
        %5908 = vmatprep.subr.mxu0 0.0
        %5909 = vmatpush1.msra.mxu0 0.0
        %5910 = vmatprep.subr.mxu0 0.0
        %5911 = vmatpush1.msra.mxu0 0.0
        %5912 = vmatprep.subr.mxu0 0.0
        %5913 = vmatpush1.msra.mxu0 0.0
        %5914 = vmatprep.subr.mxu0 0.0
        %5915 = vmatpush1.msra.mxu0 0.0
        %5916 = vmatprep.subr.mxu0 0.0
        %5917 = vmatpush1.msra.mxu0 0.0
        %5918 = vmatprep.subr.mxu0 0.0
        %5919 = vmatpush1.msra.mxu0 0.0
        %5920 = vmatprep.subr.mxu0 0.0
        %5921 = vmatpush1.msra.mxu0 0.0
        %5922 = vmatprep.subr.mxu0 0.0
        %5923 = vmatpush1.msra.mxu0 0.0
        %5924 = vmatprep.subr.mxu0 0.0
        %5925 = vmatpush1.msra.mxu0 0.0
        %5926 = vmatprep.subr.mxu0 0.0
        %5927 = vmatpush1.msra.mxu0 0.0
        %5928 = vmatprep.subr.mxu0 0.0
        %5929 = vmatpush1.msra.mxu0 0.0
        %5930 = vmatprep.mubr.f32.mxu0 0.0
        %5931 = vmatmul.mubr.f32.gmra.mrb[0].mxu0 %v5164
        %v5932 = vpop.f32.mrb[0].mxu0
        %v5933 = vadd.f32 %v5146, %v5932
        %v5934 = vpop.f32.mrb[0].mxu0
        %5935 = vdwg.mxu0
        %5936 = vmatprep.subr.mxu0 0.0
        %5937 = vmatpush1.msra.mxu0 %v5067
        %5938 = vmatprep.subr.mxu0 0.0
        %5939 = vmatpush1.msra.mxu0 %v5068
        %5940 = vmatprep.subr.mxu0 0.0
        %5941 = vmatpush1.msra.mxu0 %v5069
        %5942 = vmatprep.subr.mxu0 0.0
        %5943 = vmatpush1.msra.mxu0 %v5070
        %5944 = vmatprep.subr.mxu0 0.0
        %5945 = vmatpush1.msra.mxu0 0.0
        %5946 = vmatprep.subr.mxu0 0.0
        %5947 = vmatpush1.msra.mxu0 0.0
        %5948 = vmatprep.subr.mxu0 0.0
        %5949 = vmatpush1.msra.mxu0 0.0
        %5950 = vmatprep.subr.mxu0 0.0
        %5951 = vmatpush1.msra.mxu0 0.0
        %5952 = vmatprep.subr.mxu0 0.0
        %5953 = vmatpush1.msra.mxu0 0.0
        %5954 = vmatprep.subr.mxu0 0.0
        %5955 = vmatpush1.msra.mxu0 0.0
        %5956 = vmatprep.subr.mxu0 0.0
        %5957 = vmatpush1.msra.mxu0 0.0
        %5958 = vmatprep.subr.mxu0 0.0
        %5959 = vmatpush1.msra.mxu0 0.0
        %5960 = vmatprep.subr.mxu0 0.0
        %5961 = vmatpush1.msra.mxu0 0.0
        %5962 = vmatprep.subr.mxu0 0.0
        %5963 = vmatpush1.msra.mxu0 0.0
        %5964 = vmatprep.subr.mxu0 0.0
        %5965 = vmatpush1.msra.mxu0 0.0
        %5966 = vmatprep.subr.mxu0 0.0
        %5967 = vmatpush1.msra.mxu0 0.0
        %5968 = vmatprep.subr.mxu0 0.0
        %5969 = vmatpush1.msra.mxu0 0.0
        %5970 = vmatprep.subr.mxu0 0.0
        %5971 = vmatpush1.msra.mxu0 0.0
        %5972 = vmatprep.subr.mxu0 0.0
        %5973 = vmatpush1.msra.mxu0 0.0
        %5974 = vmatprep.subr.mxu0 0.0
        %5975 = vmatpush1.msra.mxu0 0.0
        %5976 = vmatprep.subr.mxu0 0.0
        %5977 = vmatpush1.msra.mxu0 0.0
        %5978 = vmatprep.subr.mxu0 0.0
        %5979 = vmatpush1.msra.mxu0 0.0
        %5980 = vmatprep.subr.mxu0 0.0
        %5981 = vmatpush1.msra.mxu0 0.0
        %5982 = vmatprep.subr.mxu0 0.0
        %5983 = vmatpush1.msra.mxu0 0.0
        %5984 = vmatprep.subr.mxu0 0.0
        %5985 = vmatpush1.msra.mxu0 0.0
        %5986 = vmatprep.subr.mxu0 0.0
        %5987 = vmatpush1.msra.mxu0 0.0
        %5988 = vmatprep.subr.mxu0 0.0
        %5989 = vmatpush1.msra.mxu0 0.0
        %5990 = vmatprep.subr.mxu0 0.0
        %5991 = vmatpush1.msra.mxu0 0.0
        %5992 = vmatprep.subr.mxu0 0.0
        %5993 = vmatpush1.msra.mxu0 0.0
        %5994 = vmatprep.subr.mxu0 0.0
        %5995 = vmatpush1.msra.mxu0 0.0
        %5996 = vmatprep.subr.mxu0 0.0
        %5997 = vmatpush1.msra.mxu0 0.0
        %5998 = vmatprep.subr.mxu0 0.0
        %5999 = vmatpush1.msra.mxu0 0.0
        %6000 = vmatprep.mubr.f32.mxu0 0.0
        %6001 = vmatmul.mubr.f32.gmra.mrb[0].mxu0 %v5164
        %v6002 = vpop.f32.mrb[0].mxu0
        %v6003 = vadd.f32 %v5150, %v6002
        %v6004 = vpop.f32.mrb[0].mxu0
        %6005 = vdwg.mxu0
        %v6007 = vsel %vm1617, %v5233, 0
        %v6010 = vsel %vm1617, %v5513, 0
        %6012 = vmatprep.subr.mxu0 0.0
        %6013 = vmatpush1.xpose.msra.mxu0 %v6010
        %6014 = vmatprep.subr.mxu0 0.0
        %6015 = vmatpush1.xpose.msra.mxu0 0.0
        %6016 = vmatprep.subr.mxu0 0.0
        %6017 = vmatpush1.xpose.msra.mxu0 0.0
        %6018 = vmatprep.subr.mxu0 0.0
        %6019 = vmatpush1.xpose.msra.mxu0 0.0
        %6020 = vmatprep.subr.mxu0 0.0
        %6021 = vmatpush1.xpose.msra.mxu0 0.0
        %6022 = vmatprep.subr.mxu0 0.0
        %6023 = vmatpush1.xpose.msra.mxu0 0.0
        %6024 = vmatprep.subr.mxu0 0.0
        %6025 = vmatpush1.xpose.msra.mxu0 0.0
        %6026 = vmatprep.subr.mxu0 0.0
        %6027 = vmatpush1.xpose.msra.mxu0 0.0
        %6028 = vmatprep.subr.mxu0 0.0
        %6029 = vmatpush1.xpose.msra.mxu0 0.0
        %6030 = vmatprep.subr.mxu0 0.0
        %6031 = vmatpush1.xpose.msra.mxu0 0.0
        %6032 = vmatprep.subr.mxu0 0.0
        %6033 = vmatpush1.xpose.msra.mxu0 0.0
        %6034 = vmatprep.subr.mxu0 0.0
        %6035 = vmatpush1.xpose.msra.mxu0 0.0
        %6036 = vmatprep.subr.mxu0 0.0
        %6037 = vmatpush1.xpose.msra.mxu0 0.0
        %6038 = vmatprep.subr.mxu0 0.0
        %6039 = vmatpush1.xpose.msra.mxu0 0.0
        %6040 = vmatprep.subr.mxu0 0.0
        %6041 = vmatpush1.xpose.msra.mxu0 0.0
        %6042 = vmatprep.subr.mxu0 0.0
        %6043 = vmatpush1.xpose.msra.mxu0 0.0
        %6044 = vmatprep.subr.mxu0 0.0
        %6045 = vmatpush1.xpose.msra.mxu0 0.0
        %6046 = vmatprep.subr.mxu0 0.0
        %6047 = vmatpush1.xpose.msra.mxu0 0.0
        %6048 = vmatprep.subr.mxu0 0.0
        %6049 = vmatpush1.xpose.msra.mxu0 0.0
        %6050 = vmatprep.subr.mxu0 0.0
        %6051 = vmatpush1.xpose.msra.mxu0 0.0
        %6052 = vmatprep.subr.mxu0 0.0
        %6053 = vmatpush1.xpose.msra.mxu0 0.0
        %6054 = vmatprep.subr.mxu0 0.0
        %6055 = vmatpush1.xpose.msra.mxu0 0.0
        %6056 = vmatprep.subr.mxu0 0.0
        %6057 = vmatpush1.xpose.msra.mxu0 0.0
        %6058 = vmatprep.subr.mxu0 0.0
        %6059 = vmatpush1.xpose.msra.mxu0 0.0
        %6060 = vmatprep.subr.mxu0 0.0
        %6061 = vmatpush1.xpose.msra.mxu0 0.0
        %6062 = vmatprep.subr.mxu0 0.0
        %6063 = vmatpush1.xpose.msra.mxu0 0.0
        %6064 = vmatprep.subr.mxu0 0.0
        %6065 = vmatpush1.xpose.msra.mxu0 0.0
        %6066 = vmatprep.subr.mxu0 0.0
        %6067 = vmatpush1.xpose.msra.mxu0 0.0
        %6068 = vmatprep.subr.mxu0 0.0
        %6069 = vmatpush1.xpose.msra.mxu0 0.0
        %6070 = vmatprep.subr.mxu0 0.0
        %6071 = vmatpush1.xpose.msra.mxu0 0.0
        %6072 = vmatprep.subr.mxu0 0.0
        %6073 = vmatpush1.xpose.msra.mxu0 0.0
        %6074 = vmatprep.subr.mxu0 0.0
        %6075 = vmatpush1.xpose.msra.mxu0 0.0
        %6076 = vmatprep.mubr.f32.mxu0 0.0
        %6077 = vmatmul.mubr.f32.gmra.mrb[0].mxu0 %v6007
        %v6078 = vpop.f32.mrb[0].mxu0
        %v6079 = vadd.f32 0.0, %v6078
        %v6080 = vpop.f32.mrb[0].mxu0
        %6081 = vdwg.mxu0
        %v6083 = vsel %vm1617, %v5303, 0
        %v6086 = vsel %vm1617, %v5583, 0
        %6088 = vmatprep.subr.mxu0 0.0
        %6089 = vmatpush1.xpose.msra.mxu0 %v6086
        %6090 = vmatprep.subr.mxu0 0.0
        %6091 = vmatpush1.xpose.msra.mxu0 0.0
        %6092 = vmatprep.subr.mxu0 0.0
        %6093 = vmatpush1.xpose.msra.mxu0 0.0
        %6094 = vmatprep.subr.mxu0 0.0
        %6095 = vmatpush1.xpose.msra.mxu0 0.0
        %6096 = vmatprep.subr.mxu0 0.0
        %6097 = vmatpush1.xpose.msra.mxu0 0.0
        %6098 = vmatprep.subr.mxu0 0.0
        %6099 = vmatpush1.xpose.msra.mxu0 0.0
        %6100 = vmatprep.subr.mxu0 0.0
        %6101 = vmatpush1.xpose.msra.mxu0 0.0
        %6102 = vmatprep.subr.mxu0 0.0
        %6103 = vmatpush1.xpose.msra.mxu0 0.0
        %6104 = vmatprep.subr.mxu0 0.0
        %6105 = vmatpush1.xpose.msra.mxu0 0.0
        %6106 = vmatprep.subr.mxu0 0.0
        %6107 = vmatpush1.xpose.msra.mxu0 0.0
        %6108 = vmatprep.subr.mxu0 0.0
        %6109 = vmatpush1.xpose.msra.mxu0 0.0
        %6110 = vmatprep.subr.mxu0 0.0
        %6111 = vmatpush1.xpose.msra.mxu0 0.0
        %6112 = vmatprep.subr.mxu0 0.0
        %6113 = vmatpush1.xpose.msra.mxu0 0.0
        %6114 = vmatprep.subr.mxu0 0.0
        %6115 = vmatpush1.xpose.msra.mxu0 0.0
        %6116 = vmatprep.subr.mxu0 0.0
        %6117 = vmatpush1.xpose.msra.mxu0 0.0
        %6118 = vmatprep.subr.mxu0 0.0
        %6119 = vmatpush1.xpose.msra.mxu0 0.0
        %6120 = vmatprep.subr.mxu0 0.0
        %6121 = vmatpush1.xpose.msra.mxu0 0.0
        %6122 = vmatprep.subr.mxu0 0.0
        %6123 = vmatpush1.xpose.msra.mxu0 0.0
        %6124 = vmatprep.subr.mxu0 0.0
        %6125 = vmatpush1.xpose.msra.mxu0 0.0
        %6126 = vmatprep.subr.mxu0 0.0
        %6127 = vmatpush1.xpose.msra.mxu0 0.0
        %6128 = vmatprep.subr.mxu0 0.0
        %6129 = vmatpush1.xpose.msra.mxu0 0.0
        %6130 = vmatprep.subr.mxu0 0.0
        %6131 = vmatpush1.xpose.msra.mxu0 0.0
        %6132 = vmatprep.subr.mxu0 0.0
        %6133 = vmatpush1.xpose.msra.mxu0 0.0
        %6134 = vmatprep.subr.mxu0 0.0
        %6135 = vmatpush1.xpose.msra.mxu0 0.0
        %6136 = vmatprep.subr.mxu0 0.0
        %6137 = vmatpush1.xpose.msra.mxu0 0.0
        %6138 = vmatprep.subr.mxu0 0.0
        %6139 = vmatpush1.xpose.msra.mxu0 0.0
        %6140 = vmatprep.subr.mxu0 0.0
        %6141 = vmatpush1.xpose.msra.mxu0 0.0
        %6142 = vmatprep.subr.mxu0 0.0
        %6143 = vmatpush1.xpose.msra.mxu0 0.0
        %6144 = vmatprep.subr.mxu0 0.0
        %6145 = vmatpush1.xpose.msra.mxu0 0.0
        %6146 = vmatprep.subr.mxu0 0.0
        %6147 = vmatpush1.xpose.msra.mxu0 0.0
        %6148 = vmatprep.subr.mxu0 0.0
        %6149 = vmatpush1.xpose.msra.mxu0 0.0
        %6150 = vmatprep.subr.mxu0 0.0
        %6151 = vmatpush1.xpose.msra.mxu0 0.0
        %6152 = vmatprep.mubr.f32.mxu0 0.0
        %6153 = vmatmul.mubr.f32.gmra.mrb[0].mxu0 %v6083
        %v6154 = vpop.f32.mrb[0].mxu0
        %v6155 = vadd.f32 0.0, %v6154
        %v6156 = vpop.f32.mrb[0].mxu0
        %6157 = vdwg.mxu0
        %v6159 = vsel %vm1617, %v5373, 0
        %v6162 = vsel %vm1617, %v5653, 0
        %6164 = vmatprep.subr.mxu0 0.0
        %6165 = vmatpush1.xpose.msra.mxu0 %v6162
        %6166 = vmatprep.subr.mxu0 0.0
        %6167 = vmatpush1.xpose.msra.mxu0 0.0
        %6168 = vmatprep.subr.mxu0 0.0
        %6169 = vmatpush1.xpose.msra.mxu0 0.0
        %6170 = vmatprep.subr.mxu0 0.0
        %6171 = vmatpush1.xpose.msra.mxu0 0.0
        %6172 = vmatprep.subr.mxu0 0.0
        %6173 = vmatpush1.xpose.msra.mxu0 0.0
        %6174 = vmatprep.subr.mxu0 0.0
        %6175 = vmatpush1.xpose.msra.mxu0 0.0
        %6176 = vmatprep.subr.mxu0 0.0
        %6177 = vmatpush1.xpose.msra.mxu0 0.0
        %6178 = vmatprep.subr.mxu0 0.0
        %6179 = vmatpush1.xpose.msra.mxu0 0.0
        %6180 = vmatprep.subr.mxu0 0.0
        %6181 = vmatpush1.xpose.msra.mxu0 0.0
        %6182 = vmatprep.subr.mxu0 0.0
        %6183 = vmatpush1.xpose.msra.mxu0 0.0
        %6184 = vmatprep.subr.mxu0 0.0
        %6185 = vmatpush1.xpose.msra.mxu0 0.0
        %6186 = vmatprep.subr.mxu0 0.0
        %6187 = vmatpush1.xpose.msra.mxu0 0.0
        %6188 = vmatprep.subr.mxu0 0.0
        %6189 = vmatpush1.xpose.msra.mxu0 0.0
        %6190 = vmatprep.subr.mxu0 0.0
        %6191 = vmatpush1.xpose.msra.mxu0 0.0
        %6192 = vmatprep.subr.mxu0 0.0
        %6193 = vmatpush1.xpose.msra.mxu0 0.0
        %6194 = vmatprep.subr.mxu0 0.0
        %6195 = vmatpush1.xpose.msra.mxu0 0.0
        %6196 = vmatprep.subr.mxu0 0.0
        %6197 = vmatpush1.xpose.msra.mxu0 0.0
        %6198 = vmatprep.subr.mxu0 0.0
        %6199 = vmatpush1.xpose.msra.mxu0 0.0
        %6200 = vmatprep.subr.mxu0 0.0
        %6201 = vmatpush1.xpose.msra.mxu0 0.0
        %6202 = vmatprep.subr.mxu0 0.0
        %6203 = vmatpush1.xpose.msra.mxu0 0.0
        %6204 = vmatprep.subr.mxu0 0.0
        %6205 = vmatpush1.xpose.msra.mxu0 0.0
        %6206 = vmatprep.subr.mxu0 0.0
        %6207 = vmatpush1.xpose.msra.mxu0 0.0
        %6208 = vmatprep.subr.mxu0 0.0
        %6209 = vmatpush1.xpose.msra.mxu0 0.0
        %6210 = vmatprep.subr.mxu0 0.0
        %6211 = vmatpush1.xpose.msra.mxu0 0.0
        %6212 = vmatprep.subr.mxu0 0.0
        %6213 = vmatpush1.xpose.msra.mxu0 0.0
        %6214 = vmatprep.subr.mxu0 0.0
        %6215 = vmatpush1.xpose.msra.mxu0 0.0
        %6216 = vmatprep.subr.mxu0 0.0
        %6217 = vmatpush1.xpose.msra.mxu0 0.0
        %6218 = vmatprep.subr.mxu0 0.0
        %6219 = vmatpush1.xpose.msra.mxu0 0.0
        %6220 = vmatprep.subr.mxu0 0.0
        %6221 = vmatpush1.xpose.msra.mxu0 0.0
        %6222 = vmatprep.subr.mxu0 0.0
        %6223 = vmatpush1.xpose.msra.mxu0 0.0
        %6224 = vmatprep.subr.mxu0 0.0
        %6225 = vmatpush1.xpose.msra.mxu0 0.0
        %6226 = vmatprep.subr.mxu0 0.0
        %6227 = vmatpush1.xpose.msra.mxu0 0.0
        %6228 = vmatprep.mubr.f32.mxu0 0.0
        %6229 = vmatmul.mubr.f32.gmra.mrb[0].mxu0 %v6159
        %v6230 = vpop.f32.mrb[0].mxu0
        %v6231 = vadd.f32 0.0, %v6230
        %v6232 = vpop.f32.mrb[0].mxu0
        %6233 = vdwg.mxu0
        %v6235 = vsel %vm1617, %v5443, 0
        %v6238 = vsel %vm1617, %v5723, 0
        %6240 = vmatprep.subr.mxu0 0.0
        %6241 = vmatpush1.xpose.msra.mxu0 %v6238
        %6242 = vmatprep.subr.mxu0 0.0
        %6243 = vmatpush1.xpose.msra.mxu0 0.0
        %6244 = vmatprep.subr.mxu0 0.0
        %6245 = vmatpush1.xpose.msra.mxu0 0.0
        %6246 = vmatprep.subr.mxu0 0.0
        %6247 = vmatpush1.xpose.msra.mxu0 0.0
        %6248 = vmatprep.subr.mxu0 0.0
        %6249 = vmatpush1.xpose.msra.mxu0 0.0
        %6250 = vmatprep.subr.mxu0 0.0
        %6251 = vmatpush1.xpose.msra.mxu0 0.0
        %6252 = vmatprep.subr.mxu0 0.0
        %6253 = vmatpush1.xpose.msra.mxu0 0.0
        %6254 = vmatprep.subr.mxu0 0.0
        %6255 = vmatpush1.xpose.msra.mxu0 0.0
        %6256 = vmatprep.subr.mxu0 0.0
        %6257 = vmatpush1.xpose.msra.mxu0 0.0
        %6258 = vmatprep.subr.mxu0 0.0
        %6259 = vmatpush1.xpose.msra.mxu0 0.0
        %6260 = vmatprep.subr.mxu0 0.0
        %6261 = vmatpush1.xpose.msra.mxu0 0.0
        %6262 = vmatprep.subr.mxu0 0.0
        %6263 = vmatpush1.xpose.msra.mxu0 0.0
        %6264 = vmatprep.subr.mxu0 0.0
        %6265 = vmatpush1.xpose.msra.mxu0 0.0
        %6266 = vmatprep.subr.mxu0 0.0
        %6267 = vmatpush1.xpose.msra.mxu0 0.0
        %6268 = vmatprep.subr.mxu0 0.0
        %6269 = vmatpush1.xpose.msra.mxu0 0.0
        %6270 = vmatprep.subr.mxu0 0.0
        %6271 = vmatpush1.xpose.msra.mxu0 0.0
        %6272 = vmatprep.subr.mxu0 0.0
        %6273 = vmatpush1.xpose.msra.mxu0 0.0
        %6274 = vmatprep.subr.mxu0 0.0
        %6275 = vmatpush1.xpose.msra.mxu0 0.0
        %6276 = vmatprep.subr.mxu0 0.0
        %6277 = vmatpush1.xpose.msra.mxu0 0.0
        %6278 = vmatprep.subr.mxu0 0.0
        %6279 = vmatpush1.xpose.msra.mxu0 0.0
        %6280 = vmatprep.subr.mxu0 0.0
        %6281 = vmatpush1.xpose.msra.mxu0 0.0
        %6282 = vmatprep.subr.mxu0 0.0
        %6283 = vmatpush1.xpose.msra.mxu0 0.0
        %6284 = vmatprep.subr.mxu0 0.0
        %6285 = vmatpush1.xpose.msra.mxu0 0.0
        %6286 = vmatprep.subr.mxu0 0.0
        %6287 = vmatpush1.xpose.msra.mxu0 0.0
        %6288 = vmatprep.subr.mxu0 0.0
        %6289 = vmatpush1.xpose.msra.mxu0 0.0
        %6290 = vmatprep.subr.mxu0 0.0
        %6291 = vmatpush1.xpose.msra.mxu0 0.0
        %6292 = vmatprep.subr.mxu0 0.0
        %6293 = vmatpush1.xpose.msra.mxu0 0.0
        %6294 = vmatprep.subr.mxu0 0.0
        %6295 = vmatpush1.xpose.msra.mxu0 0.0
        %6296 = vmatprep.subr.mxu0 0.0
        %6297 = vmatpush1.xpose.msra.mxu0 0.0
        %6298 = vmatprep.subr.mxu0 0.0
        %6299 = vmatpush1.xpose.msra.mxu0 0.0
        %6300 = vmatprep.subr.mxu0 0.0
        %6301 = vmatpush1.xpose.msra.mxu0 0.0
        %6302 = vmatprep.subr.mxu0 0.0
        %6303 = vmatpush1.xpose.msra.mxu0 0.0
        %6304 = vmatprep.mubr.f32.mxu0 0.0
        %6305 = vmatmul.mubr.f32.gmra.mrb[0].mxu0 %v6235
        %v6306 = vpop.f32.mrb[0].mxu0
        %v6307 = vadd.f32 0.0, %v6306
        %v6308 = vpop.f32.mrb[0].mxu0
        %6309 = vdwg.mxu0
        %v6310 = vmul.f32 %v6079, 0.35355338
        %v6311 = vmul.f32 %v6155, 0.35355338
        %v6312 = vmul.f32 %v6231, 0.35355338
        %v6313 = vmul.f32 %v6307, 0.35355338
        %v6314 = vadd.f32 %v6310, %v605
        %v6315 = vadd.f32 %v6311, %v605
        %v6316 = vadd.f32 %v6312, %v605
        %v6317 = vadd.f32 %v6313, %v605
        %v6318 = vsel %vm1617, %v6314, -inf
        %6319 = vmax.xlane.f32.xlu0 %v6318
        %v6320 = vpop.xlane.xlu0 %6319
        %v6321 = vsel %vm1617, %v6315, -inf
        %6322 = vmax.xlane.f32.xlu0 %v6321
        %v6323 = vpop.xlane.xlu0 %6322
        %v6324 = vsel %vm1617, %v6316, -inf
        %6325 = vmax.xlane.f32.xlu0 %v6324
        %v6326 = vpop.xlane.xlu0 %6325
        %v6327 = vsel %vm1617, %v6317, -inf
        %6328 = vmax.xlane.f32.xlu0 %v6327
        %v6329 = vpop.xlane.xlu0 %6328
        %v6330 = vsub.f32 %v6314, %v6320
        %v6331 = vsub.f32 %v6315, %v6323
        %v6332 = vsub.f32 %v6316, %v6326
        %v6333 = vsub.f32 %v6317, %v6329
        %v6334 = vmul.f32 %v6330, 1.442695
        %v6335 = vpow.pop %v6334
        %v6336 = vmul.f32 %v6331, 1.442695
        %v6337 = vpow.pop %v6336
        %v6338 = vmul.f32 %v6332, 1.442695
        %v6339 = vpow.pop %v6338
        %v6340 = vmul.f32 %v6333, 1.442695
        %v6341 = vpow.pop %v6340
        %v6342 = vsel %vm1617, %v6335, 0.0
        %6343 = vadd.xlane.f32.xlu0 %v6342
        %v6344 = vpop.xlane.xlu0 %6343
        %v6345 = vsel %vm1617, %v6337, 0.0
        %6346 = vadd.xlane.f32.xlu0 %v6345
        %v6347 = vpop.xlane.xlu0 %6346
        %v6348 = vsel %vm1617, %v6339, 0.0
        %6349 = vadd.xlane.f32.xlu0 %v6348
        %v6350 = vpop.xlane.xlu0 %6349
        %v6351 = vsel %vm1617, %v6341, 0.0
        %6352 = vadd.xlane.f32.xlu0 %v6351
        %v6353 = vpop.xlane.xlu0 %6352
        %v6354 = vrcp.pop %v6344
        %v6355 = vrcp.pop %v6347
        %v6356 = vrcp.pop %v6350
        %v6357 = vrcp.pop %v6353
        %v6358 = vmul.f32 %v6335, %v6354
        %v6359 = vmul.f32 %v6337, %v6355
        %v6360 = vmul.f32 %v6339, %v6356
        %v6361 = vmul.f32 %v6341, %v6357
        %v6363 = vsel %vm1617, %v6358, 0
        %6365 = vmatprep.subr.mxu0 0.0
        %6366 = vmatpush1.msra.mxu0 %v5793
        %6367 = vmatprep.subr.mxu0 0.0
        %6368 = vmatpush1.msra.mxu0 0.0
        %6369 = vmatprep.subr.mxu0 0.0
        %6370 = vmatpush1.msra.mxu0 0.0
        %6371 = vmatprep.subr.mxu0 0.0
        %6372 = vmatpush1.msra.mxu0 0.0
        %6373 = vmatprep.subr.mxu0 0.0
        %6374 = vmatpush1.msra.mxu0 0.0
        %6375 = vmatprep.subr.mxu0 0.0
        %6376 = vmatpush1.msra.mxu0 0.0
        %6377 = vmatprep.subr.mxu0 0.0
        %6378 = vmatpush1.msra.mxu0 0.0
        %6379 = vmatprep.subr.mxu0 0.0
        %6380 = vmatpush1.msra.mxu0 0.0
        %6381 = vmatprep.subr.mxu0 0.0
        %6382 = vmatpush1.msra.mxu0 0.0
        %6383 = vmatprep.subr.mxu0 0.0
        %6384 = vmatpush1.msra.mxu0 0.0
        %6385 = vmatprep.subr.mxu0 0.0
        %6386 = vmatpush1.msra.mxu0 0.0
        %6387 = vmatprep.subr.mxu0 0.0
        %6388 = vmatpush1.msra.mxu0 0.0
        %6389 = vmatprep.subr.mxu0 0.0
        %6390 = vmatpush1.msra.mxu0 0.0
        %6391 = vmatprep.subr.mxu0 0.0
        %6392 = vmatpush1.msra.mxu0 0.0
        %6393 = vmatprep.subr.mxu0 0.0
        %6394 = vmatpush1.msra.mxu0 0.0
        %6395 = vmatprep.subr.mxu0 0.0
        %6396 = vmatpush1.msra.mxu0 0.0
        %6397 = vmatprep.subr.mxu0 0.0
        %6398 = vmatpush1.msra.mxu0 0.0
        %6399 = vmatprep.subr.mxu0 0.0
        %6400 = vmatpush1.msra.mxu0 0.0
        %6401 = vmatprep.subr.mxu0 0.0
        %6402 = vmatpush1.msra.mxu0 0.0
        %6403 = vmatprep.subr.mxu0 0.0
        %6404 = vmatpush1.msra.mxu0 0.0
        %6405 = vmatprep.subr.mxu0 0.0
        %6406 = vmatpush1.msra.mxu0 0.0
        %6407 = vmatprep.subr.mxu0 0.0
        %6408 = vmatpush1.msra.mxu0 0.0
        %6409 = vmatprep.subr.mxu0 0.0
        %6410 = vmatpush1.msra.mxu0 0.0
        %6411 = vmatprep.subr.mxu0 0.0
        %6412 = vmatpush1.msra.mxu0 0.0
        %6413 = vmatprep.subr.mxu0 0.0
        %6414 = vmatpush1.msra.mxu0 0.0
        %6415 = vmatprep.subr.mxu0 0.0
        %6416 = vmatpush1.msra.mxu0 0.0
        %6417 = vmatprep.subr.mxu0 0.0
        %6418 = vmatpush1.msra.mxu0 0.0
        %6419 = vmatprep.subr.mxu0 0.0
        %6420 = vmatpush1.msra.mxu0 0.0
        %6421 = vmatprep.subr.mxu0 0.0
        %6422 = vmatpush1.msra.mxu0 0.0
        %6423 = vmatprep.subr.mxu0 0.0
        %6424 = vmatpush1.msra.mxu0 0.0
        %6425 = vmatprep.subr.mxu0 0.0
        %6426 = vmatpush1.msra.mxu0 0.0
        %6427 = vmatprep.subr.mxu0 0.0
        %6428 = vmatpush1.msra.mxu0 0.0
        %6429 = vmatprep.mubr.f32.mxu0 0.0
        %6430 = vmatmul.mubr.f32.gmra.mrb[0].mxu0 %v6363
        %v6431 = vpop.f32.mrb[0].mxu0
        %v6432 = vadd.f32 0.0, %v6431
        %v6433 = vpop.f32.mrb[0].mxu0
        %6434 = vdwg.mxu0
        %v6436 = vsel %vm1617, %v6359, 0
        %6438 = vmatprep.subr.mxu0 0.0
        %6439 = vmatpush1.msra.mxu0 %v5863
        %6440 = vmatprep.subr.mxu0 0.0
        %6441 = vmatpush1.msra.mxu0 0.0
        %6442 = vmatprep.subr.mxu0 0.0
        %6443 = vmatpush1.msra.mxu0 0.0
        %6444 = vmatprep.subr.mxu0 0.0
        %6445 = vmatpush1.msra.mxu0 0.0
        %6446 = vmatprep.subr.mxu0 0.0
        %6447 = vmatpush1.msra.mxu0 0.0
        %6448 = vmatprep.subr.mxu0 0.0
        %6449 = vmatpush1.msra.mxu0 0.0
        %6450 = vmatprep.subr.mxu0 0.0
        %6451 = vmatpush1.msra.mxu0 0.0
        %6452 = vmatprep.subr.mxu0 0.0
        %6453 = vmatpush1.msra.mxu0 0.0
        %6454 = vmatprep.subr.mxu0 0.0
        %6455 = vmatpush1.msra.mxu0 0.0
        %6456 = vmatprep.subr.mxu0 0.0
        %6457 = vmatpush1.msra.mxu0 0.0
        %6458 = vmatprep.subr.mxu0 0.0
        %6459 = vmatpush1.msra.mxu0 0.0
        %6460 = vmatprep.subr.mxu0 0.0
        %6461 = vmatpush1.msra.mxu0 0.0
        %6462 = vmatprep.subr.mxu0 0.0
        %6463 = vmatpush1.msra.mxu0 0.0
        %6464 = vmatprep.subr.mxu0 0.0
        %6465 = vmatpush1.msra.mxu0 0.0
        %6466 = vmatprep.subr.mxu0 0.0
        %6467 = vmatpush1.msra.mxu0 0.0
        %6468 = vmatprep.subr.mxu0 0.0
        %6469 = vmatpush1.msra.mxu0 0.0
        %6470 = vmatprep.subr.mxu0 0.0
        %6471 = vmatpush1.msra.mxu0 0.0
        %6472 = vmatprep.subr.mxu0 0.0
        %6473 = vmatpush1.msra.mxu0 0.0
        %6474 = vmatprep.subr.mxu0 0.0
        %6475 = vmatpush1.msra.mxu0 0.0
        %6476 = vmatprep.subr.mxu0 0.0
        %6477 = vmatpush1.msra.mxu0 0.0
        %6478 = vmatprep.subr.mxu0 0.0
        %6479 = vmatpush1.msra.mxu0 0.0
        %6480 = vmatprep.subr.mxu0 0.0
        %6481 = vmatpush1.msra.mxu0 0.0
        %6482 = vmatprep.subr.mxu0 0.0
        %6483 = vmatpush1.msra.mxu0 0.0
        %6484 = vmatprep.subr.mxu0 0.0
        %6485 = vmatpush1.msra.mxu0 0.0
        %6486 = vmatprep.subr.mxu0 0.0
        %6487 = vmatpush1.msra.mxu0 0.0
        %6488 = vmatprep.subr.mxu0 0.0
        %6489 = vmatpush1.msra.mxu0 0.0
        %6490 = vmatprep.subr.mxu0 0.0
        %6491 = vmatpush1.msra.mxu0 0.0
        %6492 = vmatprep.subr.mxu0 0.0
        %6493 = vmatpush1.msra.mxu0 0.0
        %6494 = vmatprep.subr.mxu0 0.0
        %6495 = vmatpush1.msra.mxu0 0.0
        %6496 = vmatprep.subr.mxu0 0.0
        %6497 = vmatpush1.msra.mxu0 0.0
        %6498 = vmatprep.subr.mxu0 0.0
        %6499 = vmatpush1.msra.mxu0 0.0
        %6500 = vmatprep.subr.mxu0 0.0
        %6501 = vmatpush1.msra.mxu0 0.0
        %6502 = vmatprep.mubr.f32.mxu0 0.0
        %6503 = vmatmul.mubr.f32.gmra.mrb[0].mxu0 %v6436
        %v6504 = vpop.f32.mrb[0].mxu0
        %v6505 = vadd.f32 0.0, %v6504
        %v6506 = vpop.f32.mrb[0].mxu0
        %6507 = vdwg.mxu0
        %v6509 = vsel %vm1617, %v6360, 0
        %6511 = vmatprep.subr.mxu0 0.0
        %6512 = vmatpush1.msra.mxu0 %v5933
        %6513 = vmatprep.subr.mxu0 0.0
        %6514 = vmatpush1.msra.mxu0 0.0
        %6515 = vmatprep.subr.mxu0 0.0
        %6516 = vmatpush1.msra.mxu0 0.0
        %6517 = vmatprep.subr.mxu0 0.0
        %6518 = vmatpush1.msra.mxu0 0.0
        %6519 = vmatprep.subr.mxu0 0.0
        %6520 = vmatpush1.msra.mxu0 0.0
        %6521 = vmatprep.subr.mxu0 0.0
        %6522 = vmatpush1.msra.mxu0 0.0
        %6523 = vmatprep.subr.mxu0 0.0
        %6524 = vmatpush1.msra.mxu0 0.0
        %6525 = vmatprep.subr.mxu0 0.0
        %6526 = vmatpush1.msra.mxu0 0.0
        %6527 = vmatprep.subr.mxu0 0.0
        %6528 = vmatpush1.msra.mxu0 0.0
        %6529 = vmatprep.subr.mxu0 0.0
        %6530 = vmatpush1.msra.mxu0 0.0
        %6531 = vmatprep.subr.mxu0 0.0
        %6532 = vmatpush1.msra.mxu0 0.0
        %6533 = vmatprep.subr.mxu0 0.0
        %6534 = vmatpush1.msra.mxu0 0.0
        %6535 = vmatprep.subr.mxu0 0.0
        %6536 = vmatpush1.msra.mxu0 0.0
        %6537 = vmatprep.subr.mxu0 0.0
        %6538 = vmatpush1.msra.mxu0 0.0
        %6539 = vmatprep.subr.mxu0 0.0
        %6540 = vmatpush1.msra.mxu0 0.0
        %6541 = vmatprep.subr.mxu0 0.0
        %6542 = vmatpush1.msra.mxu0 0.0
        %6543 = vmatprep.subr.mxu0 0.0
        %6544 = vmatpush1.msra.mxu0 0.0
        %6545 = vmatprep.subr.mxu0 0.0
        %6546 = vmatpush1.msra.mxu0 0.0
        %6547 = vmatprep.subr.mxu0 0.0
        %6548 = vmatpush1.msra.mxu0 0.0
        %6549 = vmatprep.subr.mxu0 0.0
        %6550 = vmatpush1.msra.mxu0 0.0
        %6551 = vmatprep.subr.mxu0 0.0
        %6552 = vmatpush1.msra.mxu0 0.0
        %6553 = vmatprep.subr.mxu0 0.0
        %6554 = vmatpush1.msra.mxu0 0.0
        %6555 = vmatprep.subr.mxu0 0.0
        %6556 = vmatpush1.msra.mxu0 0.0
        %6557 = vmatprep.subr.mxu0 0.0
        %6558 = vmatpush1.msra.mxu0 0.0
        %6559 = vmatprep.subr.mxu0 0.0
        %6560 = vmatpush1.msra.mxu0 0.0
        %6561 = vmatprep.subr.mxu0 0.0
        %6562 = vmatpush1.msra.mxu0 0.0
        %6563 = vmatprep.subr.mxu0 0.0
        %6564 = vmatpush1.msra.mxu0 0.0
        %6565 = vmatprep.subr.mxu0 0.0
        %6566 = vmatpush1.msra.mxu0 0.0
        %6567 = vmatprep.subr.mxu0 0.0
        %6568 = vmatpush1.msra.mxu0 0.0
        %6569 = vmatprep.subr.mxu0 0.0
        %6570 = vmatpush1.msra.mxu0 0.0
        %6571 = vmatprep.subr.mxu0 0.0
        %6572 = vmatpush1.msra.mxu0 0.0
        %6573 = vmatprep.subr.mxu0 0.0
        %6574 = vmatpush1.msra.mxu0 0.0
        %6575 = vmatprep.mubr.f32.mxu0 0.0
        %6576 = vmatmul.mubr.f32.gmra.mrb[0].mxu0 %v6509
        %v6577 = vpop.f32.mrb[0].mxu0
        %v6578 = vadd.f32 0.0, %v6577
        %v6579 = vpop.f32.mrb[0].mxu0
        %6580 = vdwg.mxu0
        %v6582 = vsel %vm1617, %v6361, 0
        %6584 = vmatprep.subr.mxu0 0.0
        %6585 = vmatpush1.msra.mxu0 %v6003
        %6586 = vmatprep.subr.mxu0 0.0
        %6587 = vmatpush1.msra.mxu0 0.0
        %6588 = vmatprep.subr.mxu0 0.0
        %6589 = vmatpush1.msra.mxu0 0.0
        %6590 = vmatprep.subr.mxu0 0.0
        %6591 = vmatpush1.msra.mxu0 0.0
        %6592 = vmatprep.subr.mxu0 0.0
        %6593 = vmatpush1.msra.mxu0 0.0
        %6594 = vmatprep.subr.mxu0 0.0
        %6595 = vmatpush1.msra.mxu0 0.0
        %6596 = vmatprep.subr.mxu0 0.0
        %6597 = vmatpush1.msra.mxu0 0.0
        %6598 = vmatprep.subr.mxu0 0.0
        %6599 = vmatpush1.msra.mxu0 0.0
        %6600 = vmatprep.subr.mxu0 0.0
        %6601 = vmatpush1.msra.mxu0 0.0
        %6602 = vmatprep.subr.mxu0 0.0
        %6603 = vmatpush1.msra.mxu0 0.0
        %6604 = vmatprep.subr.mxu0 0.0
        %6605 = vmatpush1.msra.mxu0 0.0
        %6606 = vmatprep.subr.mxu0 0.0
        %6607 = vmatpush1.msra.mxu0 0.0
        %6608 = vmatprep.subr.mxu0 0.0
        %6609 = vmatpush1.msra.mxu0 0.0
        %6610 = vmatprep.subr.mxu0 0.0
        %6611 = vmatpush1.msra.mxu0 0.0
        %6612 = vmatprep.subr.mxu0 0.0
        %6613 = vmatpush1.msra.mxu0 0.0
        %6614 = vmatprep.subr.mxu0 0.0
        %6615 = vmatpush1.msra.mxu0 0.0
        %6616 = vmatprep.subr.mxu0 0.0
        %6617 = vmatpush1.msra.mxu0 0.0
        %6618 = vmatprep.subr.mxu0 0.0
        %6619 = vmatpush1.msra.mxu0 0.0
        %6620 = vmatprep.subr.mxu0 0.0
        %6621 = vmatpush1.msra.mxu0 0.0
        %6622 = vmatprep.subr.mxu0 0.0
        %6623 = vmatpush1.msra.mxu0 0.0
        %6624 = vmatprep.subr.mxu0 0.0
        %6625 = vmatpush1.msra.mxu0 0.0
        %6626 = vmatprep.subr.mxu0 0.0
        %6627 = vmatpush1.msra.mxu0 0.0
        %6628 = vmatprep.subr.mxu0 0.0
        %6629 = vmatpush1.msra.mxu0 0.0
        %6630 = vmatprep.subr.mxu0 0.0
        %6631 = vmatpush1.msra.mxu0 0.0
        %6632 = vmatprep.subr.mxu0 0.0
        %6633 = vmatpush1.msra.mxu0 0.0
        %6634 = vmatprep.subr.mxu0 0.0
        %6635 = vmatpush1.msra.mxu0 0.0
        %6636 = vmatprep.subr.mxu0 0.0
        %6637 = vmatpush1.msra.mxu0 0.0
        %6638 = vmatprep.subr.mxu0 0.0
        %6639 = vmatpush1.msra.mxu0 0.0
        %6640 = vmatprep.subr.mxu0 0.0
        %6641 = vmatpush1.msra.mxu0 0.0
        %6642 = vmatprep.subr.mxu0 0.0
        %6643 = vmatpush1.msra.mxu0 0.0
        %6644 = vmatprep.subr.mxu0 0.0
        %6645 = vmatpush1.msra.mxu0 0.0
        %6646 = vmatprep.subr.mxu0 0.0
        %6647 = vmatpush1.msra.mxu0 0.0
        %6648 = vmatprep.mubr.f32.mxu0 0.0
        %6649 = vmatmul.mubr.f32.gmra.mrb[0].mxu0 %v6582
        %v6650 = vpop.f32.mrb[0].mxu0
        %v6651 = vadd.f32 0.0, %v6650
        %v6652 = vpop.f32.mrb[0].mxu0
        %6653 = vdwg.mxu0
        %v6655 = vsel %vm1617, %v6432, 0
        %6657 = vmatprep.subr.mxu0 0.0
        %6658 = vmatpush1.msra.mxu0 %v5085
        %6659 = vmatprep.subr.mxu0 0.0
        %6660 = vmatpush1.msra.mxu0 0.0
        %6661 = vmatprep.subr.mxu0 0.0
        %6662 = vmatpush1.msra.mxu0 0.0
        %6663 = vmatprep.subr.mxu0 0.0
        %6664 = vmatpush1.msra.mxu0 0.0
        %6665 = vmatprep.subr.mxu0 0.0
        %6666 = vmatpush1.msra.mxu0 0.0
        %6667 = vmatprep.subr.mxu0 0.0
        %6668 = vmatpush1.msra.mxu0 0.0
        %6669 = vmatprep.subr.mxu0 0.0
        %6670 = vmatpush1.msra.mxu0 0.0
        %6671 = vmatprep.subr.mxu0 0.0
        %6672 = vmatpush1.msra.mxu0 0.0
        %6673 = vmatprep.subr.mxu0 0.0
        %6674 = vmatpush1.msra.mxu0 0.0
        %6675 = vmatprep.subr.mxu0 0.0
        %6676 = vmatpush1.msra.mxu0 0.0
        %6677 = vmatprep.subr.mxu0 0.0
        %6678 = vmatpush1.msra.mxu0 0.0
        %6679 = vmatprep.subr.mxu0 0.0
        %6680 = vmatpush1.msra.mxu0 0.0
        %6681 = vmatprep.subr.mxu0 0.0
        %6682 = vmatpush1.msra.mxu0 0.0
        %6683 = vmatprep.subr.mxu0 0.0
        %6684 = vmatpush1.msra.mxu0 0.0
        %6685 = vmatprep.subr.mxu0 0.0
        %6686 = vmatpush1.msra.mxu0 0.0
        %6687 = vmatprep.subr.mxu0 0.0
        %6688 = vmatpush1.msra.mxu0 0.0
        %6689 = vmatprep.subr.mxu0 0.0
        %6690 = vmatpush1.msra.mxu0 0.0
        %6691 = vmatprep.subr.mxu0 0.0
        %6692 = vmatpush1.msra.mxu0 0.0
        %6693 = vmatprep.subr.mxu0 0.0
        %6694 = vmatpush1.msra.mxu0 0.0
        %6695 = vmatprep.subr.mxu0 0.0
        %6696 = vmatpush1.msra.mxu0 0.0
        %6697 = vmatprep.subr.mxu0 0.0
        %6698 = vmatpush1.msra.mxu0 0.0
        %6699 = vmatprep.subr.mxu0 0.0
        %6700 = vmatpush1.msra.mxu0 0.0
        %6701 = vmatprep.subr.mxu0 0.0
        %6702 = vmatpush1.msra.mxu0 0.0
        %6703 = vmatprep.subr.mxu0 0.0
        %6704 = vmatpush1.msra.mxu0 0.0
        %6705 = vmatprep.subr.mxu0 0.0
        %6706 = vmatpush1.msra.mxu0 0.0
        %6707 = vmatprep.subr.mxu0 0.0
        %6708 = vmatpush1.msra.mxu0 0.0
        %6709 = vmatprep.subr.mxu0 0.0
        %6710 = vmatpush1.msra.mxu0 0.0
        %6711 = vmatprep.subr.mxu0 0.0
        %6712 = vmatpush1.msra.mxu0 0.0
        %6713 = vmatprep.subr.mxu0 0.0
        %6714 = vmatpush1.msra.mxu0 0.0
        %6715 = vmatprep.subr.mxu0 0.0
        %6716 = vmatpush1.msra.mxu0 0.0
        %6717 = vmatprep.subr.mxu0 0.0
        %6718 = vmatpush1.msra.mxu0 0.0
        %6719 = vmatprep.subr.mxu0 0.0
        %6720 = vmatpush1.msra.mxu0 0.0
        %6721 = vmatprep.mubr.f32.mxu0 0.0
        %6722 = vmatmul.mubr.f32.gmra.mrb[0].mxu0 %v6655
        %v6723 = vpop.f32.mrb[0].mxu0
        %v6724 = vadd.f32 0.0, %v6723
        %v6725 = vpop.f32.mrb[0].mxu0
        %6726 = vdwg.mxu0
        %v6728 = vsel %vm1617, %v6505, 0
        %6730 = vmatprep.subr.mxu0 0.0
        %6731 = vmatpush1.msra.mxu0 %v5086
        %6732 = vmatprep.subr.mxu0 0.0
        %6733 = vmatpush1.msra.mxu0 0.0
        %6734 = vmatprep.subr.mxu0 0.0
        %6735 = vmatpush1.msra.mxu0 0.0
        %6736 = vmatprep.subr.mxu0 0.0
        %6737 = vmatpush1.msra.mxu0 0.0
        %6738 = vmatprep.subr.mxu0 0.0
        %6739 = vmatpush1.msra.mxu0 0.0
        %6740 = vmatprep.subr.mxu0 0.0
        %6741 = vmatpush1.msra.mxu0 0.0
        %6742 = vmatprep.subr.mxu0 0.0
        %6743 = vmatpush1.msra.mxu0 0.0
        %6744 = vmatprep.subr.mxu0 0.0
        %6745 = vmatpush1.msra.mxu0 0.0
        %6746 = vmatprep.subr.mxu0 0.0
        %6747 = vmatpush1.msra.mxu0 0.0
        %6748 = vmatprep.subr.mxu0 0.0
        %6749 = vmatpush1.msra.mxu0 0.0
        %6750 = vmatprep.subr.mxu0 0.0
        %6751 = vmatpush1.msra.mxu0 0.0
        %6752 = vmatprep.subr.mxu0 0.0
        %6753 = vmatpush1.msra.mxu0 0.0
        %6754 = vmatprep.subr.mxu0 0.0
        %6755 = vmatpush1.msra.mxu0 0.0
        %6756 = vmatprep.subr.mxu0 0.0
        %6757 = vmatpush1.msra.mxu0 0.0
        %6758 = vmatprep.subr.mxu0 0.0
        %6759 = vmatpush1.msra.mxu0 0.0
        %6760 = vmatprep.subr.mxu0 0.0
        %6761 = vmatpush1.msra.mxu0 0.0
        %6762 = vmatprep.subr.mxu0 0.0
        %6763 = vmatpush1.msra.mxu0 0.0
        %6764 = vmatprep.subr.mxu0 0.0
        %6765 = vmatpush1.msra.mxu0 0.0
        %6766 = vmatprep.subr.mxu0 0.0
        %6767 = vmatpush1.msra.mxu0 0.0
        %6768 = vmatprep.subr.mxu0 0.0
        %6769 = vmatpush1.msra.mxu0 0.0
        %6770 = vmatprep.subr.mxu0 0.0
        %6771 = vmatpush1.msra.mxu0 0.0
        %6772 = vmatprep.subr.mxu0 0.0
        %6773 = vmatpush1.msra.mxu0 0.0
        %6774 = vmatprep.subr.mxu0 0.0
        %6775 = vmatpush1.msra.mxu0 0.0
        %6776 = vmatprep.subr.mxu0 0.0
        %6777 = vmatpush1.msra.mxu0 0.0
        %6778 = vmatprep.subr.mxu0 0.0
        %6779 = vmatpush1.msra.mxu0 0.0
        %6780 = vmatprep.subr.mxu0 0.0
        %6781 = vmatpush1.msra.mxu0 0.0
        %6782 = vmatprep.subr.mxu0 0.0
        %6783 = vmatpush1.msra.mxu0 0.0
        %6784 = vmatprep.subr.mxu0 0.0
        %6785 = vmatpush1.msra.mxu0 0.0
        %6786 = vmatprep.subr.mxu0 0.0
        %6787 = vmatpush1.msra.mxu0 0.0
        %6788 = vmatprep.subr.mxu0 0.0
        %6789 = vmatpush1.msra.mxu0 0.0
        %6790 = vmatprep.subr.mxu0 0.0
        %6791 = vmatpush1.msra.mxu0 0.0
        %6792 = vmatprep.subr.mxu0 0.0
        %6793 = vmatpush1.msra.mxu0 0.0
        %6794 = vmatprep.mubr.f32.mxu0 0.0
        %6795 = vmatmul.mubr.f32.gmra.mrb[0].mxu0 %v6728
        %v6796 = vpop.f32.mrb[0].mxu0
        %v6797 = vadd.f32 0.0, %v6796
        %v6798 = vpop.f32.mrb[0].mxu0
        %6799 = vdwg.mxu0
        %v6801 = vsel %vm1617, %v6578, 0
        %6803 = vmatprep.subr.mxu0 0.0
        %6804 = vmatpush1.msra.mxu0 %v5087
        %6805 = vmatprep.subr.mxu0 0.0
        %6806 = vmatpush1.msra.mxu0 0.0
        %6807 = vmatprep.subr.mxu0 0.0
        %6808 = vmatpush1.msra.mxu0 0.0
        %6809 = vmatprep.subr.mxu0 0.0
        %6810 = vmatpush1.msra.mxu0 0.0
        %6811 = vmatprep.subr.mxu0 0.0
        %6812 = vmatpush1.msra.mxu0 0.0
        %6813 = vmatprep.subr.mxu0 0.0
        %6814 = vmatpush1.msra.mxu0 0.0
        %6815 = vmatprep.subr.mxu0 0.0
        %6816 = vmatpush1.msra.mxu0 0.0
        %6817 = vmatprep.subr.mxu0 0.0
        %6818 = vmatpush1.msra.mxu0 0.0
        %6819 = vmatprep.subr.mxu0 0.0
        %6820 = vmatpush1.msra.mxu0 0.0
        %6821 = vmatprep.subr.mxu0 0.0
        %6822 = vmatpush1.msra.mxu0 0.0
        %6823 = vmatprep.subr.mxu0 0.0
        %6824 = vmatpush1.msra.mxu0 0.0
        %6825 = vmatprep.subr.mxu0 0.0
        %6826 = vmatpush1.msra.mxu0 0.0
        %6827 = vmatprep.subr.mxu0 0.0
        %6828 = vmatpush1.msra.mxu0 0.0
        %6829 = vmatprep.subr.mxu0 0.0
        %6830 = vmatpush1.msra.mxu0 0.0
        %6831 = vmatprep.subr.mxu0 0.0
        %6832 = vmatpush1.msra.mxu0 0.0
        %6833 = vmatprep.subr.mxu0 0.0
        %6834 = vmatpush1.msra.mxu0 0.0
        %6835 = vmatprep.subr.mxu0 0.0
        %6836 = vmatpush1.msra.mxu0 0.0
        %6837 = vmatprep.subr.mxu0 0.0
        %6838 = vmatpush1.msra.mxu0 0.0
        %6839 = vmatprep.subr.mxu0 0.0
        %6840 = vmatpush1.msra.mxu0 0.0
        %6841 = vmatprep.subr.mxu0 0.0
        %6842 = vmatpush1.msra.mxu0 0.0
        %6843 = vmatprep.subr.mxu0 0.0
        %6844 = vmatpush1.msra.mxu0 0.0
        %6845 = vmatprep.subr.mxu0 0.0
        %6846 = vmatpush1.msra.mxu0 0.0
        %6847 = vmatprep.subr.mxu0 0.0
        %6848 = vmatpush1.msra.mxu0 0.0
        %6849 = vmatprep.subr.mxu0 0.0
        %6850 = vmatpush1.msra.mxu0 0.0
        %6851 = vmatprep.subr.mxu0 0.0
        %6852 = vmatpush1.msra.mxu0 0.0
        %6853 = vmatprep.subr.mxu0 0.0
        %6854 = vmatpush1.msra.mxu0 0.0
        %6855 = vmatprep.subr.mxu0 0.0
        %6856 = vmatpush1.msra.mxu0 0.0
        %6857 = vmatprep.subr.mxu0 0.0
        %6858 = vmatpush1.msra.mxu0 0.0
        %6859 = vmatprep.subr.mxu0 0.0
        %6860 = vmatpush1.msra.mxu0 0.0
        %6861 = vmatprep.subr.mxu0 0.0
        %6862 = vmatpush1.msra.mxu0 0.0
        %6863 = vmatprep.subr.mxu0 0.0
        %6864 = vmatpush1.msra.mxu0 0.0
        %6865 = vmatprep.subr.mxu0 0.0
        %6866 = vmatpush1.msra.mxu0 0.0
        %6867 = vmatprep.mubr.f32.mxu0 0.0
        %6868 = vmatmul.mubr.f32.gmra.mrb[0].mxu0 %v6801
        %v6869 = vpop.f32.mrb[0].mxu0
        %v6870 = vadd.f32 0.0, %v6869
        %v6871 = vpop.f32.mrb[0].mxu0
        %6872 = vdwg.mxu0
        %v6874 = vsel %vm1617, %v6651, 0
        %6876 = vmatprep.subr.mxu0 0.0
        %6877 = vmatpush1.msra.mxu0 %v5088
        %6878 = vmatprep.subr.mxu0 0.0
        %6879 = vmatpush1.msra.mxu0 0.0
        %6880 = vmatprep.subr.mxu0 0.0
        %6881 = vmatpush1.msra.mxu0 0.0
        %6882 = vmatprep.subr.mxu0 0.0
        %6883 = vmatpush1.msra.mxu0 0.0
        %6884 = vmatprep.subr.mxu0 0.0
        %6885 = vmatpush1.msra.mxu0 0.0
        %6886 = vmatprep.subr.mxu0 0.0
        %6887 = vmatpush1.msra.mxu0 0.0
        %6888 = vmatprep.subr.mxu0 0.0
        %6889 = vmatpush1.msra.mxu0 0.0
        %6890 = vmatprep.subr.mxu0 0.0
        %6891 = vmatpush1.msra.mxu0 0.0
        %6892 = vmatprep.subr.mxu0 0.0
        %6893 = vmatpush1.msra.mxu0 0.0
        %6894 = vmatprep.subr.mxu0 0.0
        %6895 = vmatpush1.msra.mxu0 0.0
        %6896 = vmatprep.subr.mxu0 0.0
        %6897 = vmatpush1.msra.mxu0 0.0
        %6898 = vmatprep.subr.mxu0 0.0
        %6899 = vmatpush1.msra.mxu0 0.0
        %6900 = vmatprep.subr.mxu0 0.0
        %6901 = vmatpush1.msra.mxu0 0.0
        %6902 = vmatprep.subr.mxu0 0.0
        %6903 = vmatpush1.msra.mxu0 0.0
        %6904 = vmatprep.subr.mxu0 0.0
        %6905 = vmatpush1.msra.mxu0 0.0
        %6906 = vmatprep.subr.mxu0 0.0
        %6907 = vmatpush1.msra.mxu0 0.0
        %6908 = vmatprep.subr.mxu0 0.0
        %6909 = vmatpush1.msra.mxu0 0.0
        %6910 = vmatprep.subr.mxu0 0.0
        %6911 = vmatpush1.msra.mxu0 0.0
        %6912 = vmatprep.subr.mxu0 0.0
        %6913 = vmatpush1.msra.mxu0 0.0
        %6914 = vmatprep.subr.mxu0 0.0
        %6915 = vmatpush1.msra.mxu0 0.0
        %6916 = vmatprep.subr.mxu0 0.0
        %6917 = vmatpush1.msra.mxu0 0.0
        %6918 = vmatprep.subr.mxu0 0.0
        %6919 = vmatpush1.msra.mxu0 0.0
        %6920 = vmatprep.subr.mxu0 0.0
        %6921 = vmatpush1.msra.mxu0 0.0
        %6922 = vmatprep.subr.mxu0 0.0
        %6923 = vmatpush1.msra.mxu0 0.0
        %6924 = vmatprep.subr.mxu0 0.0
        %6925 = vmatpush1.msra.mxu0 0.0
        %6926 = vmatprep.subr.mxu0 0.0
        %6927 = vmatpush1.msra.mxu0 0.0
        %6928 = vmatprep.subr.mxu0 0.0
        %6929 = vmatpush1.msra.mxu0 0.0
        %6930 = vmatprep.subr.mxu0 0.0
        %6931 = vmatpush1.msra.mxu0 0.0
        %6932 = vmatprep.subr.mxu0 0.0
        %6933 = vmatpush1.msra.mxu0 0.0
        %6934 = vmatprep.subr.mxu0 0.0
        %6935 = vmatpush1.msra.mxu0 0.0
        %6936 = vmatprep.subr.mxu0 0.0
        %6937 = vmatpush1.msra.mxu0 0.0
        %6938 = vmatprep.subr.mxu0 0.0
        %6939 = vmatpush1.msra.mxu0 0.0
        %6940 = vmatprep.mubr.f32.mxu0 0.0
        %6941 = vmatmul.mubr.f32.gmra.mrb[0].mxu0 %v6874
        %v6942 = vpop.f32.mrb[0].mxu0
        %v6943 = vadd.f32 0.0, %v6942
        %v6944 = vpop.f32.mrb[0].mxu0
        %6945 = vdwg.mxu0
        %v6946 = vsel %vm608, %v6724, 0.0
        %v6947 = vsel %vm608, %v6797, 0.0
        %v6948 = vadd.f32 %v6946, %v6947
        %v6949 = vsel %vm608, %v6870, 0.0
        %v6950 = vadd.f32 %v6948, %v6949
        %v6951 = vsel %vm608, %v6943, 0.0
        %v6952 = vadd.f32 %v6950, %v6951
        %v6954 = vlaneseq
        %v6955 = vshrl.u32 %v6954, 7
        %v6956 = vsub.s32 0, %v6955
        %v6957 = vrot.slane %v5090, %v6956
        %v6959 = vadd.f32 %v6952, %v6957
        %v6960 = vadd.f32 %v4990, %v6959
        %s6961 = scalar_lea.vmem %s8, 2
        %v6962 = vld [vmem:[%s6961] sm:$0x1]
        %s6963 = scalar_lea.vmem %s9, 2
        %v6964 = vld [vmem:[%s6963] sm:$0x1]
        %v6965 = vsel %vm608, %v6960, 0.0
        %6966 = vadd.xlane.f32.xlu0 %v6965
        %v6967 = vpop.xlane.xlu0 %6966
        %v6968 = vmul.f32 %v6967, %v612
        %v6969 = vsub.f32 %v6960, %v6968
        %v6970 = vmul.f32 %v6969, %v6969
        %v6971 = vsel %vm608, %v6970, 0.0
        %6972 = vadd.xlane.f32.xlu0 %v6971
        %v6973 = vpop.xlane.xlu0 %6972
        %v6974 = vmul.f32 %v6973, %v612
        %v6975 = vadd.f32 %v6974, 1e-05
        %v6976 = vrsqrt.pop %v6975
        %v6977 = vmul.f32 %v6969, %v6976
        %v6979 = vlaneseq
        %v6980 = vshrl.u32 %v6979, 7
        %v6981 = vsub.s32 0, %v6980
        %v6982 = vrot.slane %v6962, %v6981
        %v6984 = vmul.f32 %v6977, %v6982
        %v6986 = vlaneseq
        %v6987 = vshrl.u32 %v6986, 7
        %v6988 = vsub.s32 0, %v6987
        %v6989 = vrot.slane %v6964, %v6988
        %v6991 = vadd.f32 %v6984, %v6989
        %s6992 = scalar_lea.vmem %s10, 64
        %v6993 = vld [vmem:[%s6992] sm:$0xff]
        %v6994 = vld [vmem:[%s6992 + $0x8] sm:$0xff]
        %v6995 = vld [vmem:[%s6992 + $0x10] sm:$0xff]
        %v6996 = vld [vmem:[%s6992 + $0x18] sm:$0xff]
        %s6997 = scalar_lea.vmem %s11, 2
        %v6998 = vld [vmem:[%s6997] sm:$0x1]
        %s6999 = scalar_lea.vmem %s12, 256
        %v7000 = vld [vmem:[%s6999] sm:$0xff]
        %v7001 = vld [vmem:[%s6999 + $0x8] sm:$0xff]
        %v7002 = vld [vmem:[%s6999 + $0x10] sm:$0xff]
        %v7003 = vld [vmem:[%s6999 + $0x18] sm:$0xff]
        %v7004 = vld [vmem:[%s6999 + $0x20] sm:$0xff]
        %v7005 = vld [vmem:[%s6999 + $0x28] sm:$0xff]
        %v7006 = vld [vmem:[%s6999 + $0x30] sm:$0xff]
        %v7007 = vld [vmem:[%s6999 + $0x38] sm:$0xff]
        %v7008 = vld [vmem:[%s6999 + $0x40] sm:$0xff]
        %v7009 = vld [vmem:[%s6999 + $0x48] sm:$0xff]
        %v7010 = vld [vmem:[%s6999 + $0x50] sm:$0xff]
        %v7011 = vld [vmem:[%s6999 + $0x58] sm:$0xff]
        %v7012 = vld [vmem:[%s6999 + $0x60] sm:$0xff]
        %v7013 = vld [vmem:[%s6999 + $0x68] sm:$0xff]
        %v7014 = vld [vmem:[%s6999 + $0x70] sm:$0xff]
        %v7015 = vld [vmem:[%s6999 + $0x78] sm:$0xff]
        %s7016 = scalar_lea.vmem %s13, 2
        %v7017 = vld [vmem:[%s7016] sm:$0x1]
        %v7019 = vlaneseq
        %v7020 = vshrl.u32 %v7019, 7
        %v7021 = vsub.s32 0, %v7020
        %v7022 = vrot.slane %v6998, %v7021
        %v7025 = vsel %vm608, %v6991, 0
        %7027 = vmatprep.subr.mxu0 0.0
        %7028 = vmatpush1.msra.mxu0 %v6993
        %7029 = vmatprep.subr.mxu0 0.0
        %7030 = vmatpush1.msra.mxu0 %v6994
        %7031 = vmatprep.subr.mxu0 0.0
        %7032 = vmatpush1.msra.mxu0 %v6995
        %7033 = vmatprep.subr.mxu0 0.0
        %7034 = vmatpush1.msra.mxu0 %v6996
        %7035 = vmatprep.subr.mxu0 0.0
        %7036 = vmatpush1.msra.mxu0 0.0
        %7037 = vmatprep.subr.mxu0 0.0
        %7038 = vmatpush1.msra.mxu0 0.0
        %7039 = vmatprep.subr.mxu0 0.0
        %7040 = vmatpush1.msra.mxu0 0.0
        %7041 = vmatprep.subr.mxu0 0.0
        %7042 = vmatpush1.msra.mxu0 0.0
        %7043 = vmatprep.subr.mxu0 0.0
        %7044 = vmatpush1.msra.mxu0 0.0
        %7045 = vmatprep.subr.mxu0 0.0
        %7046 = vmatpush1.msra.mxu0 0.0
        %7047 = vmatprep.subr.mxu0 0.0
        %7048 = vmatpush1.msra.mxu0 0.0
        %7049 = vmatprep.subr.mxu0 0.0
        %7050 = vmatpush1.msra.mxu0 0.0
        %7051 = vmatprep.subr.mxu0 0.0
        %7052 = vmatpush1.msra.mxu0 0.0
        %7053 = vmatprep.subr.mxu0 0.0
        %7054 = vmatpush1.msra.mxu0 0.0
        %7055 = vmatprep.subr.mxu0 0.0
        %7056 = vmatpush1.msra.mxu0 0.0
        %7057 = vmatprep.subr.mxu0 0.0
        %7058 = vmatpush1.msra.mxu0 0.0
        %7059 = vmatprep.subr.mxu0 0.0
        %7060 = vmatpush1.msra.mxu0 0.0
        %7061 = vmatprep.subr.mxu0 0.0
        %7062 = vmatpush1.msra.mxu0 0.0
        %7063 = vmatprep.subr.mxu0 0.0
        %7064 = vmatpush1.msra.mxu0 0.0
        %7065 = vmatprep.subr.mxu0 0.0
        %7066 = vmatpush1.msra.mxu0 0.0
        %7067 = vmatprep.subr.mxu0 0.0
        %7068 = vmatpush1.msra.mxu0 0.0
        %7069 = vmatprep.subr.mxu0 0.0
        %7070 = vmatpush1.msra.mxu0 0.0
        %7071 = vmatprep.subr.mxu0 0.0
        %7072 = vmatpush1.msra.mxu0 0.0
        %7073 = vmatprep.subr.mxu0 0.0
        %7074 = vmatpush1.msra.mxu0 0.0
        %7075 = vmatprep.subr.mxu0 0.0
        %7076 = vmatpush1.msra.mxu0 0.0
        %7077 = vmatprep.subr.mxu0 0.0
        %7078 = vmatpush1.msra.mxu0 0.0
        %7079 = vmatprep.subr.mxu0 0.0
        %7080 = vmatpush1.msra.mxu0 0.0
        %7081 = vmatprep.subr.mxu0 0.0
        %7082 = vmatpush1.msra.mxu0 0.0
        %7083 = vmatprep.subr.mxu0 0.0
        %7084 = vmatpush1.msra.mxu0 0.0
        %7085 = vmatprep.subr.mxu0 0.0
        %7086 = vmatpush1.msra.mxu0 0.0
        %7087 = vmatprep.subr.mxu0 0.0
        %7088 = vmatpush1.msra.mxu0 0.0
        %7089 = vmatprep.subr.mxu0 0.0
        %7090 = vmatpush1.msra.mxu0 0.0
        %7091 = vmatprep.mubr.f32.mxu0 0.0
        %7092 = vmatmul.mubr.f32.gmra.mrb[0].mxu0 %v7025
        %v7093 = vpop.f32.mrb[0].mxu0
        %v7094 = vadd.f32 %v7022, %v7093
        %v7095 = vpop.f32.mrb[0].mxu0
        %7096 = vdwg.mxu0
        %v7097 = vmul.f32 %v7094, 0.5
        %v7098 = vmul.f32 %v7094, 0.70710677
        %v7099 = verf.f32.pop %v7098
        %v7100 = vadd.f32 %v7099, 1.0
        %v7101 = vmul.f32 %v7097, %v7100
        %v7103 = vlaneseq
        %v7104 = vshrl.u32 %v7103, 7
        %v7105 = vsub.s32 0, %v7104
        %v7106 = vrot.slane %v7017, %v7105
        %7108 = vmatprep.subr.mxu0 0.0
        %7109 = vmatpush1.msra.mxu0 %v7000
        %7110 = vmatprep.subr.mxu0 0.0
        %7111 = vmatpush1.msra.mxu0 %v7001
        %7112 = vmatprep.subr.mxu0 0.0
        %7113 = vmatpush1.msra.mxu0 %v7002
        %7114 = vmatprep.subr.mxu0 0.0
        %7115 = vmatpush1.msra.mxu0 %v7003
        %7116 = vmatprep.subr.mxu0 0.0
        %7117 = vmatpush1.msra.mxu0 %v7004
        %7118 = vmatprep.subr.mxu0 0.0
        %7119 = vmatpush1.msra.mxu0 %v7005
        %7120 = vmatprep.subr.mxu0 0.0
        %7121 = vmatpush1.msra.mxu0 %v7006
        %7122 = vmatprep.subr.mxu0 0.0
        %7123 = vmatpush1.msra.mxu0 %v7007
        %7124 = vmatprep.subr.mxu0 0.0
        %7125 = vmatpush1.msra.mxu0 %v7008
        %7126 = vmatprep.subr.mxu0 0.0
        %7127 = vmatpush1.msra.mxu0 %v7009
        %7128 = vmatprep.subr.mxu0 0.0
        %7129 = vmatpush1.msra.mxu0 %v7010
        %7130 = vmatprep.subr.mxu0 0.0
        %7131 = vmatpush1.msra.mxu0 %v7011
        %7132 = vmatprep.subr.mxu0 0.0
        %7133 = vmatpush1.msra.mxu0 %v7012
        %7134 = vmatprep.subr.mxu0 0.0
        %7135 = vmatpush1.msra.mxu0 %v7013
        %7136 = vmatprep.subr.mxu0 0.0
        %7137 = vmatpush1.msra.mxu0 %v7014
        %7138 = vmatprep.subr.mxu0 0.0
        %7139 = vmatpush1.msra.mxu0 %v7015
        %7140 = vmatprep.subr.mxu0 0.0
        %7141 = vmatpush1.msra.mxu0 0.0
        %7142 = vmatprep.subr.mxu0 0.0
        %7143 = vmatpush1.msra.mxu0 0.0
        %7144 = vmatprep.subr.mxu0 0.0
        %7145 = vmatpush1.msra.mxu0 0.0
        %7146 = vmatprep.subr.mxu0 0.0
        %7147 = vmatpush1.msra.mxu0 0.0
        %7148 = vmatprep.subr.mxu0 0.0
        %7149 = vmatpush1.msra.mxu0 0.0
        %7150 = vmatprep.subr.mxu0 0.0
        %7151 = vmatpush1.msra.mxu0 0.0
        %7152 = vmatprep.subr.mxu0 0.0
        %7153 = vmatpush1.msra.mxu0 0.0
        %7154 = vmatprep.subr.mxu0 0.0
        %7155 = vmatpush1.msra.mxu0 0.0
        %7156 = vmatprep.subr.mxu0 0.0
        %7157 = vmatpush1.msra.mxu0 0.0
        %7158 = vmatprep.subr.mxu0 0.0
        %7159 = vmatpush1.msra.mxu0 0.0
        %7160 = vmatprep.subr.mxu0 0.0
        %7161 = vmatpush1.msra.mxu0 0.0
        %7162 = vmatprep.subr.mxu0 0.0
        %7163 = vmatpush1.msra.mxu0 0.0
        %7164 = vmatprep.subr.mxu0 0.0
        %7165 = vmatpush1.msra.mxu0 0.0
        %7166 = vmatprep.subr.mxu0 0.0
        %7167 = vmatpush1.msra.mxu0 0.0
        %7168 = vmatprep.subr.mxu0 0.0
        %7169 = vmatpush1.msra.mxu0 0.0
        %7170 = vmatprep.subr.mxu0 0.0
        %7171 = vmatpush1.msra.mxu0 0.0
        %7172 = vmatprep.mubr.f32.mxu0 0.0
        %7173 = vmatmul.mubr.f32.gmra.mrb[0].mxu0 %v7101
        %v7174 = vpop.f32.mrb[0].mxu0
        %v7175 = vadd.f32 %v7106, %v7174
        %v7176 = vpop.f32.mrb[0].mxu0
        %7177 = vdwg.mxu0
        %v7178 = vadd.f32 %v6960, %v7175
        %s7179 = scalar_lea.vmem %s2, 3
        %v7180 = vld [vmem:[%s7179] sm:$0x1]
        %s7181 = scalar_lea.vmem %s3, 3
        %v7182 = vld [vmem:[%s7181] sm:$0x1]
        %v7183 = vsel %vm608, %v7178, 0.0
        %7184 = vadd.xlane.f32.xlu0 %v7183
        %v7185 = vpop.xlane.xlu0 %7184
        %v7186 = vmul.f32 %v7185, %v612
        %v7187 = vsub.f32 %v7178, %v7186
        %v7188 = vmul.f32 %v7187, %v7187
        %v7189 = vsel %vm608, %v7188, 0.0
        %7190 = vadd.xlane.f32.xlu0 %v7189
        %v7191 = vpop.xlane.xlu0 %7190
        %v7192 = vmul.f32 %v7191, %v612
        %v7193 = vadd.f32 %v7192, 1e-05
        %v7194 = vrsqrt.pop %v7193
        %v7195 = vmul.f32 %v7187, %v7194
        %v7197 = vlaneseq
        %v7198 = vshrl.u32 %v7197, 7
        %v7199 = vsub.s32 0, %v7198
        %v7200 = vrot.slane %v7180, %v7199
        %v7202 = vmul.f32 %v7195, %v7200
        %v7204 = vlaneseq
        %v7205 = vshrl.u32 %v7204, 7
        %v7206 = vsub.s32 0, %v7205
        %v7207 = vrot.slane %v7182, %v7206
        %v7209 = vadd.f32 %v7202, %v7207
        %s7210 = scalar_lea.vmem %s4, 1152
        %v7211 = vld [vmem:[%s7210] sm:$0xff]
        %v7212 = vld [vmem:[%s7210 + $0x8] sm:$0xff]
        %v7213 = vld [vmem:[%s7210 + $0x10] sm:$0xff]
        %v7214 = vld [vmem:[%s7210 + $0x18] sm:$0xff]
        %v7215 = vld [vmem:[%s7210 + $0x20] sm:$0xff]
        %v7216 = vld [vmem:[%s7210 + $0x28] sm:$0xff]
        %v7217 = vld [vmem:[%s7210 + $0x30] sm:$0xff]
        %v7218 = vld [vmem:[%s7210 + $0x38] sm:$0xff]
        %v7219 = vld [vmem:[%s7210 + $0x40] sm:$0xff]
        %v7220 = vld [vmem:[%s7210 + $0x48] sm:$0xff]
        %v7221 = vld [vmem:[%s7210 + $0x50] sm:$0xff]
        %v7222 = vld [vmem:[%s7210 + $0x58] sm:$0xff]
        %v7223 = vld [vmem:[%s7210 + $0x60] sm:$0xff]
        %v7224 = vld [vmem:[%s7210 + $0x68] sm:$0xff]
        %v7225 = vld [vmem:[%s7210 + $0x70] sm:$0xff]
        %v7226 = vld [vmem:[%s7210 + $0x78] sm:$0xff]
        %v7227 = vld [vmem:[%s7210 + $0x80] sm:$0xff]
        %v7228 = vld [vmem:[%s7210 + $0x88] sm:$0xff]
        %v7229 = vld [vmem:[%s7210 + $0x90] sm:$0xff]
        %v7230 = vld [vmem:[%s7210 + $0x98] sm:$0xff]
        %v7231 = vld [vmem:[%s7210 + $0xa0] sm:$0xff]
        %v7232 = vld [vmem:[%s7210 + $0xa8] sm:$0xff]
        %v7233 = vld [vmem:[%s7210 + $0xb0] sm:$0xff]
        %v7234 = vld [vmem:[%s7210 + $0xb8] sm:$0xff]
        %v7235 = vld [vmem:[%s7210 + $0xc0] sm:$0xff]
        %v7236 = vld [vmem:[%s7210 + $0xc8] sm:$0xff]
        %v7237 = vld [vmem:[%s7210 + $0xd0] sm:$0xff]
        %v7238 = vld [vmem:[%s7210 + $0xd8] sm:$0xff]
        %v7239 = vld [vmem:[%s7210 + $0xe0] sm:$0xff]
        %v7240 = vld [vmem:[%s7210 + $0xe8] sm:$0xff]
        %v7241 = vld [vmem:[%s7210 + $0xf0] sm:$0xff]
        %v7242 = vld [vmem:[%s7210 + $0xf8] sm:$0xff]
        %v7243 = vld [vmem:[%s7210 + $0x100] sm:$0xff]
        %v7244 = vld [vmem:[%s7210 + $0x108] sm:$0xff]
        %v7245 = vld [vmem:[%s7210 + $0x110] sm:$0xff]
        %v7246 = vld [vmem:[%s7210 + $0x118] sm:$0xff]
        %v7247 = vld [vmem:[%s7210 + $0x120] sm:$0xff]
        %v7248 = vld [vmem:[%s7210 + $0x128] sm:$0xff]
        %v7249 = vld [vmem:[%s7210 + $0x130] sm:$0xff]
        %v7250 = vld [vmem:[%s7210 + $0x138] sm:$0xff]
        %v7251 = vld [vmem:[%s7210 + $0x140] sm:$0xff]
        %v7252 = vld [vmem:[%s7210 + $0x148] sm:$0xff]
        %v7253 = vld [vmem:[%s7210 + $0x150] sm:$0xff]
        %v7254 = vld [vmem:[%s7210 + $0x158] sm:$0xff]
        %v7255 = vld [vmem:[%s7210 + $0x160] sm:$0xff]
        %v7256 = vld [vmem:[%s7210 + $0x168] sm:$0xff]
        %v7257 = vld [vmem:[%s7210 + $0x170] sm:$0xff]
        %v7258 = vld [vmem:[%s7210 + $0x178] sm:$0xff]
        %s7259 = scalar_lea.vmem %s5, 36
        %v7260 = vld [vmem:[%s7259] sm:$0x1]
        %v7261 = vld [vmem:[%s7259 + $0x1] sm:$0x1]
        %v7262 = vld [vmem:[%s7259 + $0x2] sm:$0x1]
        %v7263 = vld [vmem:[%s7259 + $0x3] sm:$0x1]
        %v7264 = vld [vmem:[%s7259 + $0x4] sm:$0x1]
        %v7265 = vld [vmem:[%s7259 + $0x5] sm:$0x1]
        %v7266 = vld [vmem:[%s7259 + $0x6] sm:$0x1]
        %v7267 = vld [vmem:[%s7259 + $0x7] sm:$0x1]
        %v7268 = vld [vmem:[%s7259 + $0x8] sm:$0x1]
        %v7269 = vld [vmem:[%s7259 + $0x9] sm:$0x1]
        %v7270 = vld [vmem:[%s7259 + $0xa] sm:$0x1]
        %v7271 = vld [vmem:[%s7259 + $0xb] sm:$0x1]
        %s7272 = scalar_lea.vmem %s6, 96
        %v7273 = vld [vmem:[%s7272] sm:$0xff]
        %v7274 = vld [vmem:[%s7272 + $0x8] sm:$0xff]
        %v7275 = vld [vmem:[%s7272 + $0x10] sm:$0xff]
        %v7276 = vld [vmem:[%s7272 + $0x18] sm:$0xff]
        %s7277 = scalar_lea.vmem %s7, 3
        %v7278 = vld [vmem:[%s7277] sm:$0x1]
        %v7291 = vlaneseq
        %v7292 = vshrl.u32 %v7291, 7
        %v7293 = vsub.s32 0, %v7292
        %v7294 = vrot.slane %v7260, %v7293
        %v7295 = vlaneseq
        %v7296 = vshrl.u32 %v7295, 7
        %v7297 = vsub.s32 0, %v7296
        %v7298 = vrot.slane %v7261, %v7297
        %v7299 = vlaneseq
        %v7300 = vshrl.u32 %v7299, 7
        %v7301 = vsub.s32 0, %v7300
        %v7302 = vrot.slane %v7262, %v7301
        %v7303 = vlaneseq
        %v7304 = vshrl.u32 %v7303, 7
        %v7305 = vsub.s32 0, %v7304
        %v7306 = vrot.slane %v7263, %v7305
        %v7307 = vlaneseq
        %v7308 = vshrl.u32 %v7307, 7
        %v7309 = vsub.s32 0, %v7308
        %v7310 = vrot.slane %v7264, %v7309
        %v7311 = vlaneseq
        %v7312 = vshrl.u32 %v7311, 7
        %v7313 = vsub.s32 0, %v7312
        %v7314 = vrot.slane %v7265, %v7313
        %v7315 = vlaneseq
        %v7316 = vshrl.u32 %v7315, 7
        %v7317 = vsub.s32 0, %v7316
        %v7318 = vrot.slane %v7266, %v7317
        %v7319 = vlaneseq
        %v7320 = vshrl.u32 %v7319, 7
        %v7321 = vsub.s32 0, %v7320
        %v7322 = vrot.slane %v7267, %v7321
        %v7323 = vlaneseq
        %v7324 = vshrl.u32 %v7323, 7
        %v7325 = vsub.s32 0, %v7324
        %v7326 = vrot.slane %v7268, %v7325
        %v7327 = vlaneseq
        %v7328 = vshrl.u32 %v7327, 7
        %v7329 = vsub.s32 0, %v7328
        %v7330 = vrot.slane %v7269, %v7329
        %v7331 = vlaneseq
        %v7332 = vshrl.u32 %v7331, 7
        %v7333 = vsub.s32 0, %v7332
        %v7334 = vrot.slane %v7270, %v7333
        %v7335 = vlaneseq
        %v7336 = vshrl.u32 %v7335, 7
        %v7337 = vsub.s32 0, %v7336
        %v7338 = vrot.slane %v7271, %v7337
        %v7352 = vsel %vm608, %v7209, 0
        %7354 = vmatprep.subr.mxu0 0.0
        %7355 = vmatpush1.msra.mxu0 %v7211
        %7356 = vmatprep.subr.mxu0 0.0
        %7357 = vmatpush1.msra.mxu0 %v7212
        %7358 = vmatprep.subr.mxu0 0.0
        %7359 = vmatpush1.msra.mxu0 %v7213
        %7360 = vmatprep.subr.mxu0 0.0
        %7361 = vmatpush1.msra.mxu0 %v7214
        %7362 = vmatprep.subr.mxu0 0.0
        %7363 = vmatpush1.msra.mxu0 0.0
        %7364 = vmatprep.subr.mxu0 0.0
        %7365 = vmatpush1.msra.mxu0 0.0
        %7366 = vmatprep.subr.mxu0 0.0
        %7367 = vmatpush1.msra.mxu0 0.0
        %7368 = vmatprep.subr.mxu0 0.0
        %7369 = vmatpush1.msra.mxu0 0.0
        %7370 = vmatprep.subr.mxu0 0.0
        %7371 = vmatpush1.msra.mxu0 0.0
        %7372 = vmatprep.subr.mxu0 0.0
        %7373 = vmatpush1.msra.mxu0 0.0
        %7374 = vmatprep.subr.mxu0 0.0
        %7375 = vmatpush1.msra.mxu0 0.0
        %7376 = vmatprep.subr.mxu0 0.0
        %7377 = vmatpush1.msra.mxu0 0.0
        %7378 = vmatprep.subr.mxu0 0.0
        %7379 = vmatpush1.msra.mxu0 0.0
        %7380 = vmatprep.subr.mxu0 0.0
        %7381 = vmatpush1.msra.mxu0 0.0
        %7382 = vmatprep.subr.mxu0 0.0
        %7383 = vmatpush1.msra.mxu0 0.0
        %7384 = vmatprep.subr.mxu0 0.0
        %7385 = vmatpush1.msra.mxu0 0.0
        %7386 = vmatprep.subr.mxu0 0.0
        %7387 = vmatpush1.msra.mxu0 0.0
        %7388 = vmatprep.subr.mxu0 0.0
        %7389 = vmatpush1.msra.mxu0 0.0
        %7390 = vmatprep.subr.mxu0 0.0
        %7391 = vmatpush1.msra.mxu0 0.0
        %7392 = vmatprep.subr.mxu0 0.0
        %7393 = vmatpush1.msra.mxu0 0.0
        %7394 = vmatprep.subr.mxu0 0.0
        %7395 = vmatpush1.msra.mxu0 0.0
        %7396 = vmatprep.subr.mxu0 0.0
        %7397 = vmatpush1.msra.mxu0 0.0
        %7398 = vmatprep.subr.mxu0 0.0
        %7399 = vmatpush1.msra.mxu0 0.0
        %7400 = vmatprep.subr.mxu0 0.0
        %7401 = vmatpush1.msra.mxu0 0.0
        %7402 = vmatprep.subr.mxu0 0.0
        %7403 = vmatpush1.msra.mxu0 0.0
        %7404 = vmatprep.subr.mxu0 0.0
        %7405 = vmatpush1.msra.mxu0 0.0
        %7406 = vmatprep.subr.mxu0 0.0
        %7407 = vmatpush1.msra.mxu0 0.0
        %7408 = vmatprep.subr.mxu0 0.0
        %7409 = vmatpush1.msra.mxu0 0.0
        %7410 = vmatprep.subr.mxu0 0.0
        %7411 = vmatpush1.msra.mxu0 0.0
        %7412 = vmatprep.subr.mxu0 0.0
        %7413 = vmatpush1.msra.mxu0 0.0
        %7414 = vmatprep.subr.mxu0 0.0
        %7415 = vmatpush1.msra.mxu0 0.0
        %7416 = vmatprep.subr.mxu0 0.0
        %7417 = vmatpush1.msra.mxu0 0.0
        %7418 = vmatprep.mubr.f32.mxu0 0.0
        %7419 = vmatmul.mubr.f32.gmra.mrb[0].mxu0 %v7352
        %v7420 = vpop.f32.mrb[0].mxu0
        %v7421 = vadd.f32 %v7294, %v7420
        %v7422 = vpop.f32.mrb[0].mxu0
        %7423 = vdwg.mxu0
        %7424 = vmatprep.subr.mxu0 0.0
        %7425 = vmatpush1.msra.mxu0 %v7215
        %7426 = vmatprep.subr.mxu0 0.0
        %7427 = vmatpush1.msra.mxu0 %v7216
        %7428 = vmatprep.subr.mxu0 0.0
        %7429 = vmatpush1.msra.mxu0 %v7217
        %7430 = vmatprep.subr.mxu0 0.0
        %7431 = vmatpush1.msra.mxu0 %v7218
        %7432 = vmatprep.subr.mxu0 0.0
        %7433 = vmatpush1.msra.mxu0 0.0
        %7434 = vmatprep.subr.mxu0 0.0
        %7435 = vmatpush1.msra.mxu0 0.0
        %7436 = vmatprep.subr.mxu0 0.0
        %7437 = vmatpush1.msra.mxu0 0.0
        %7438 = vmatprep.subr.mxu0 0.0
        %7439 = vmatpush1.msra.mxu0 0.0
        %7440 = vmatprep.subr.mxu0 0.0
        %7441 = vmatpush1.msra.mxu0 0.0
        %7442 = vmatprep.subr.mxu0 0.0
        %7443 = vmatpush1.msra.mxu0 0.0
        %7444 = vmatprep.subr.mxu0 0.0
        %7445 = vmatpush1.msra.mxu0 0.0
        %7446 = vmatprep.subr.mxu0 0.0
        %7447 = vmatpush1.msra.mxu0 0.0
        %7448 = vmatprep.subr.mxu0 0.0
        %7449 = vmatpush1.msra.mxu0 0.0
        %7450 = vmatprep.subr.mxu0 0.0
        %7451 = vmatpush1.msra.mxu0 0.0
        %7452 = vmatprep.subr.mxu0 0.0
        %7453 = vmatpush1.msra.mxu0 0.0
        %7454 = vmatprep.subr.mxu0 0.0
        %7455 = vmatpush1.msra.mxu0 0.0
        %7456 = vmatprep.subr.mxu0 0.0
        %7457 = vmatpush1.msra.mxu0 0.0
        %7458 = vmatprep.subr.mxu0 0.0
        %7459 = vmatpush1.msra.mxu0 0.0
        %7460 = vmatprep.subr.mxu0 0.0
        %7461 = vmatpush1.msra.mxu0 0.0
        %7462 = vmatprep.subr.mxu0 0.0
        %7463 = vmatpush1.msra.mxu0 0.0
        %7464 = vmatprep.subr.mxu0 0.0
        %7465 = vmatpush1.msra.mxu0 0.0
        %7466 = vmatprep.subr.mxu0 0.0
        %7467 = vmatpush1.msra.mxu0 0.0
        %7468 = vmatprep.subr.mxu0 0.0
        %7469 = vmatpush1.msra.mxu0 0.0
        %7470 = vmatprep.subr.mxu0 0.0
        %7471 = vmatpush1.msra.mxu0 0.0
        %7472 = vmatprep.subr.mxu0 0.0
        %7473 = vmatpush1.msra.mxu0 0.0
        %7474 = vmatprep.subr.mxu0 0.0
        %7475 = vmatpush1.msra.mxu0 0.0
        %7476 = vmatprep.subr.mxu0 0.0
        %7477 = vmatpush1.msra.mxu0 0.0
        %7478 = vmatprep.subr.mxu0 0.0
        %7479 = vmatpush1.msra.mxu0 0.0
        %7480 = vmatprep.subr.mxu0 0.0
        %7481 = vmatpush1.msra.mxu0 0.0
        %7482 = vmatprep.subr.mxu0 0.0
        %7483 = vmatpush1.msra.mxu0 0.0
        %7484 = vmatprep.subr.mxu0 0.0
        %7485 = vmatpush1.msra.mxu0 0.0
        %7486 = vmatprep.subr.mxu0 0.0
        %7487 = vmatpush1.msra.mxu0 0.0
        %7488 = vmatprep.mubr.f32.mxu0 0.0
        %7489 = vmatmul.mubr.f32.gmra.mrb[0].mxu0 %v7352
        %v7490 = vpop.f32.mrb[0].mxu0
        %v7491 = vadd.f32 %v7298, %v7490
        %v7492 = vpop.f32.mrb[0].mxu0
        %7493 = vdwg.mxu0
        %7494 = vmatprep.subr.mxu0 0.0
        %7495 = vmatpush1.msra.mxu0 %v7219
        %7496 = vmatprep.subr.mxu0 0.0
        %7497 = vmatpush1.msra.mxu0 %v7220
        %7498 = vmatprep.subr.mxu0 0.0
        %7499 = vmatpush1.msra.mxu0 %v7221
        %7500 = vmatprep.subr.mxu0 0.0
        %7501 = vmatpush1.msra.mxu0 %v7222
        %7502 = vmatprep.subr.mxu0 0.0
        %7503 = vmatpush1.msra.mxu0 0.0
        %7504 = vmatprep.subr.mxu0 0.0
        %7505 = vmatpush1.msra.mxu0 0.0
        %7506 = vmatprep.subr.mxu0 0.0
        %7507 = vmatpush1.msra.mxu0 0.0
        %7508 = vmatprep.subr.mxu0 0.0
        %7509 = vmatpush1.msra.mxu0 0.0
        %7510 = vmatprep.subr.mxu0 0.0
        %7511 = vmatpush1.msra.mxu0 0.0
        %7512 = vmatprep.subr.mxu0 0.0
        %7513 = vmatpush1.msra.mxu0 0.0
        %7514 = vmatprep.subr.mxu0 0.0
        %7515 = vmatpush1.msra.mxu0 0.0
        %7516 = vmatprep.subr.mxu0 0.0
        %7517 = vmatpush1.msra.mxu0 0.0
        %7518 = vmatprep.subr.mxu0 0.0
        %7519 = vmatpush1.msra.mxu0 0.0
        %7520 = vmatprep.subr.mxu0 0.0
        %7521 = vmatpush1.msra.mxu0 0.0
        %7522 = vmatprep.subr.mxu0 0.0
        %7523 = vmatpush1.msra.mxu0 0.0
        %7524 = vmatprep.subr.mxu0 0.0
        %7525 = vmatpush1.msra.mxu0 0.0
        %7526 = vmatprep.subr.mxu0 0.0
        %7527 = vmatpush1.msra.mxu0 0.0
        %7528 = vmatprep.subr.mxu0 0.0
        %7529 = vmatpush1.msra.mxu0 0.0
        %7530 = vmatprep.subr.mxu0 0.0
        %7531 = vmatpush1.msra.mxu0 0.0
        %7532 = vmatprep.subr.mxu0 0.0
        %7533 = vmatpush1.msra.mxu0 0.0
        %7534 = vmatprep.subr.mxu0 0.0
        %7535 = vmatpush1.msra.mxu0 0.0
        %7536 = vmatprep.subr.mxu0 0.0
        %7537 = vmatpush1.msra.mxu0 0.0
        %7538 = vmatprep.subr.mxu0 0.0
        %7539 = vmatpush1.msra.mxu0 0.0
        %7540 = vmatprep.subr.mxu0 0.0
        %7541 = vmatpush1.msra.mxu0 0.0
        %7542 = vmatprep.subr.mxu0 0.0
        %7543 = vmatpush1.msra.mxu0 0.0
        %7544 = vmatprep.subr.mxu0 0.0
        %7545 = vmatpush1.msra.mxu0 0.0
        %7546 = vmatprep.subr.mxu0 0.0
        %7547 = vmatpush1.msra.mxu0 0.0
        %7548 = vmatprep.subr.mxu0 0.0
        %7549 = vmatpush1.msra.mxu0 0.0
        %7550 = vmatprep.subr.mxu0 0.0
        %7551 = vmatpush1.msra.mxu0 0.0
        %7552 = vmatprep.subr.mxu0 0.0
        %7553 = vmatpush1.msra.mxu0 0.0
        %7554 = vmatprep.subr.mxu0 0.0
        %7555 = vmatpush1.msra.mxu0 0.0
        %7556 = vmatprep.subr.mxu0 0.0
        %7557 = vmatpush1.msra.mxu0 0.0
        %7558 = vmatprep.mubr.f32.mxu0 0.0
        %7559 = vmatmul.mubr.f32.gmra.mrb[0].mxu0 %v7352
        %v7560 = vpop.f32.mrb[0].mxu0
        %v7561 = vadd.f32 %v7302, %v7560
        %v7562 = vpop.f32.mrb[0].mxu0
        %7563 = vdwg.mxu0
        %7564 = vmatprep.subr.mxu0 0.0
        %7565 = vmatpush1.msra.mxu0 %v7223
        %7566 = vmatprep.subr.mxu0 0.0
        %7567 = vmatpush1.msra.mxu0 %v7224
        %7568 = vmatprep.subr.mxu0 0.0
        %7569 = vmatpush1.msra.mxu0 %v7225
        %7570 = vmatprep.subr.mxu0 0.0
        %7571 = vmatpush1.msra.mxu0 %v7226
        %7572 = vmatprep.subr.mxu0 0.0
        %7573 = vmatpush1.msra.mxu0 0.0
        %7574 = vmatprep.subr.mxu0 0.0
        %7575 = vmatpush1.msra.mxu0 0.0
        %7576 = vmatprep.subr.mxu0 0.0
        %7577 = vmatpush1.msra.mxu0 0.0
        %7578 = vmatprep.subr.mxu0 0.0
        %7579 = vmatpush1.msra.mxu0 0.0
        %7580 = vmatprep.subr.mxu0 0.0
        %7581 = vmatpush1.msra.mxu0 0.0
        %7582 = vmatprep.subr.mxu0 0.0
        %7583 = vmatpush1.msra.mxu0 0.0
        %7584 = vmatprep.subr.mxu0 0.0
        %7585 = vmatpush1.msra.mxu0 0.0
        %7586 = vmatprep.subr.mxu0 0.0
        %7587 = vmatpush1.msra.mxu0 0.0
        %7588 = vmatprep.subr.mxu0 0.0
        %7589 = vmatpush1.msra.mxu0 0.0
        %7590 = vmatprep.subr.mxu0 0.0
        %7591 = vmatpush1.msra.mxu0 0.0
        %7592 = vmatprep.subr.mxu0 0.0
        %7593 = vmatpush1.msra.mxu0 0.0
        %7594 = vmatprep.subr.mxu0 0.0
        %7595 = vmatpush1.msra.mxu0 0.0
        %7596 = vmatprep.subr.mxu0 0.0
        %7597 = vmatpush1.msra.mxu0 0.0
        %7598 = vmatprep.subr.mxu0 0.0
        %7599 = vmatpush1.msra.mxu0 0.0
        %7600 = vmatprep.subr.mxu0 0.0
        %7601 = vmatpush1.msra.mxu0 0.0
        %7602 = vmatprep.subr.mxu0 0.0
        %7603 = vmatpush1.msra.mxu0 0.0
        %7604 = vmatprep.subr.mxu0 0.0
        %7605 = vmatpush1.msra.mxu0 0.0
        %7606 = vmatprep.subr.mxu0 0.0
        %7607 = vmatpush1.msra.mxu0 0.0
        %7608 = vmatprep.subr.mxu0 0.0
        %7609 = vmatpush1.msra.mxu0 0.0
        %7610 = vmatprep.subr.mxu0 0.0
        %7611 = vmatpush1.msra.mxu0 0.0
        %7612 = vmatprep.subr.mxu0 0.0
        %7613 = vmatpush1.msra.mxu0 0.0
        %7614 = vmatprep.subr.mxu0 0.0
        %7615 = vmatpush1.msra.mxu0 0.0
        %7616 = vmatprep.subr.mxu0 0.0
        %7617 = vmatpush1.msra.mxu0 0.0
        %7618 = vmatprep.subr.mxu0 0.0
        %7619 = vmatpush1.msra.mxu0 0.0
        %7620 = vmatprep.subr.mxu0 0.0
        %7621 = vmatpush1.msra.mxu0 0.0
        %7622 = vmatprep.subr.mxu0 0.0
        %7623 = vmatpush1.msra.mxu0 0.0
        %7624 = vmatprep.subr.mxu0 0.0
        %7625 = vmatpush1.msra.mxu0 0.0
        %7626 = vmatprep.subr.mxu0 0.0
        %7627 = vmatpush1.msra.mxu0 0.0
        %7628 = vmatprep.mubr.f32.mxu0 0.0
        %7629 = vmatmul.mubr.f32.gmra.mrb[0].mxu0 %v7352
        %v7630 = vpop.f32.mrb[0].mxu0
        %v7631 = vadd.f32 %v7306, %v7630
        %v7632 = vpop.f32.mrb[0].mxu0
        %7633 = vdwg.mxu0
        %7634 = vmatprep.subr.mxu0 0.0
        %7635 = vmatpush1.msra.mxu0 %v7227
        %7636 = vmatprep.subr.mxu0 0.0
        %7637 = vmatpush1.msra.mxu0 %v7228
        %7638 = vmatprep.subr.mxu0 0.0
        %7639 = vmatpush1.msra.mxu0 %v7229
        %7640 = vmatprep.subr.mxu0 0.0
        %7641 = vmatpush1.msra.mxu0 %v7230
        %7642 = vmatprep.subr.mxu0 0.0
        %7643 = vmatpush1.msra.mxu0 0.0
        %7644 = vmatprep.subr.mxu0 0.0
        %7645 = vmatpush1.msra.mxu0 0.0
        %7646 = vmatprep.subr.mxu0 0.0
        %7647 = vmatpush1.msra.mxu0 0.0
        %7648 = vmatprep.subr.mxu0 0.0
        %7649 = vmatpush1.msra.mxu0 0.0
        %7650 = vmatprep.subr.mxu0 0.0
        %7651 = vmatpush1.msra.mxu0 0.0
        %7652 = vmatprep.subr.mxu0 0.0
        %7653 = vmatpush1.msra.mxu0 0.0
        %7654 = vmatprep.subr.mxu0 0.0
        %7655 = vmatpush1.msra.mxu0 0.0
        %7656 = vmatprep.subr.mxu0 0.0
        %7657 = vmatpush1.msra.mxu0 0.0
        %7658 = vmatprep.subr.mxu0 0.0
        %7659 = vmatpush1.msra.mxu0 0.0
        %7660 = vmatprep.subr.mxu0 0.0
        %7661 = vmatpush1.msra.mxu0 0.0
        %7662 = vmatprep.subr.mxu0 0.0
        %7663 = vmatpush1.msra.mxu0 0.0
        %7664 = vmatprep.subr.mxu0 0.0
        %7665 = vmatpush1.msra.mxu0 0.0
        %7666 = vmatprep.subr.mxu0 0.0
        %7667 = vmatpush1.msra.mxu0 0.0
        %7668 = vmatprep.subr.mxu0 0.0
        %7669 = vmatpush1.msra.mxu0 0.0
        %7670 = vmatprep.subr.mxu0 0.0
        %7671 = vmatpush1.msra.mxu0 0.0
        %7672 = vmatprep.subr.mxu0 0.0
        %7673 = vmatpush1.msra.mxu0 0.0
        %7674 = vmatprep.subr.mxu0 0.0
        %7675 = vmatpush1.msra.mxu0 0.0
        %7676 = vmatprep.subr.mxu0 0.0
        %7677 = vmatpush1.msra.mxu0 0.0
        %7678 = vmatprep.subr.mxu0 0.0
        %7679 = vmatpush1.msra.mxu0 0.0
        %7680 = vmatprep.subr.mxu0 0.0
        %7681 = vmatpush1.msra.mxu0 0.0
        %7682 = vmatprep.subr.mxu0 0.0
        %7683 = vmatpush1.msra.mxu0 0.0
        %7684 = vmatprep.subr.mxu0 0.0
        %7685 = vmatpush1.msra.mxu0 0.0
        %7686 = vmatprep.subr.mxu0 0.0
        %7687 = vmatpush1.msra.mxu0 0.0
        %7688 = vmatprep.subr.mxu0 0.0
        %7689 = vmatpush1.msra.mxu0 0.0
        %7690 = vmatprep.subr.mxu0 0.0
        %7691 = vmatpush1.msra.mxu0 0.0
        %7692 = vmatprep.subr.mxu0 0.0
        %7693 = vmatpush1.msra.mxu0 0.0
        %7694 = vmatprep.subr.mxu0 0.0
        %7695 = vmatpush1.msra.mxu0 0.0
        %7696 = vmatprep.subr.mxu0 0.0
        %7697 = vmatpush1.msra.mxu0 0.0
        %7698 = vmatprep.mubr.f32.mxu0 0.0
        %7699 = vmatmul.mubr.f32.gmra.mrb[0].mxu0 %v7352
        %v7700 = vpop.f32.mrb[0].mxu0
        %v7701 = vadd.f32 %v7310, %v7700
        %v7702 = vpop.f32.mrb[0].mxu0
        %7703 = vdwg.mxu0
        %7704 = vmatprep.subr.mxu0 0.0
        %7705 = vmatpush1.msra.mxu0 %v7231
        %7706 = vmatprep.subr.mxu0 0.0
        %7707 = vmatpush1.msra.mxu0 %v7232
        %7708 = vmatprep.subr.mxu0 0.0
        %7709 = vmatpush1.msra.mxu0 %v7233
        %7710 = vmatprep.subr.mxu0 0.0
        %7711 = vmatpush1.msra.mxu0 %v7234
        %7712 = vmatprep.subr.mxu0 0.0
        %7713 = vmatpush1.msra.mxu0 0.0
        %7714 = vmatprep.subr.mxu0 0.0
        %7715 = vmatpush1.msra.mxu0 0.0
        %7716 = vmatprep.subr.mxu0 0.0
        %7717 = vmatpush1.msra.mxu0 0.0
        %7718 = vmatprep.subr.mxu0 0.0
        %7719 = vmatpush1.msra.mxu0 0.0
        %7720 = vmatprep.subr.mxu0 0.0
        %7721 = vmatpush1.msra.mxu0 0.0
        %7722 = vmatprep.subr.mxu0 0.0
        %7723 = vmatpush1.msra.mxu0 0.0
        %7724 = vmatprep.subr.mxu0 0.0
        %7725 = vmatpush1.msra.mxu0 0.0
        %7726 = vmatprep.subr.mxu0 0.0
        %7727 = vmatpush1.msra.mxu0 0.0
        %7728 = vmatprep.subr.mxu0 0.0
        %7729 = vmatpush1.msra.mxu0 0.0
        %7730 = vmatprep.subr.mxu0 0.0
        %7731 = vmatpush1.msra.mxu0 0.0
        %7732 = vmatprep.subr.mxu0 0.0
        %7733 = vmatpush1.msra.mxu0 0.0
        %7734 = vmatprep.subr.mxu0 0.0
        %7735 = vmatpush1.msra.mxu0 0.0
        %7736 = vmatprep.subr.mxu0 0.0
        %7737 = vmatpush1.msra.mxu0 0.0
        %7738 = vmatprep.subr.mxu0 0.0
        %7739 = vmatpush1.msra.mxu0 0.0
        %7740 = vmatprep.subr.mxu0 0.0
        %7741 = vmatpush1.msra.mxu0 0.0
        %7742 = vmatprep.subr.mxu0 0.0
        %7743 = vmatpush1.msra.mxu0 0.0
        %7744 = vmatprep.subr.mxu0 0.0
        %7745 = vmatpush1.msra.mxu0 0.0
        %7746 = vmatprep.subr.mxu0 0.0
        %7747 = vmatpush1.msra.mxu0 0.0
        %7748 = vmatprep.subr.mxu0 0.0
        %7749 = vmatpush1.msra.mxu0 0.0
        %7750 = vmatprep.subr.mxu0 0.0
        %7751 = vmatpush1.msra.mxu0 0.0
        %7752 = vmatprep.subr.mxu0 0.0
        %7753 = vmatpush1.msra.mxu0 0.0
        %7754 = vmatprep.subr.mxu0 0.0
        %7755 = vmatpush1.msra.mxu0 0.0
        %7756 = vmatprep.subr.mxu0 0.0
        %7757 = vmatpush1.msra.mxu0 0.0
        %7758 = vmatprep.subr.mxu0 0.0
        %7759 = vmatpush1.msra.mxu0 0.0
        %7760 = vmatprep.subr.mxu0 0.0
        %7761 = vmatpush1.msra.mxu0 0.0
        %7762 = vmatprep.subr.mxu0 0.0
        %7763 = vmatpush1.msra.mxu0 0.0
        %7764 = vmatprep.subr.mxu0 0.0
        %7765 = vmatpush1.msra.mxu0 0.0
        %7766 = vmatprep.subr.mxu0 0.0
        %7767 = vmatpush1.msra.mxu0 0.0
        %7768 = vmatprep.mubr.f32.mxu0 0.0
        %7769 = vmatmul.mubr.f32.gmra.mrb[0].mxu0 %v7352
        %v7770 = vpop.f32.mrb[0].mxu0
        %v7771 = vadd.f32 %v7314, %v7770
        %v7772 = vpop.f32.mrb[0].mxu0
        %7773 = vdwg.mxu0
        %7774 = vmatprep.subr.mxu0 0.0
        %7775 = vmatpush1.msra.mxu0 %v7235
        %7776 = vmatprep.subr.mxu0 0.0
        %7777 = vmatpush1.msra.mxu0 %v7236
        %7778 = vmatprep.subr.mxu0 0.0
        %7779 = vmatpush1.msra.mxu0 %v7237
        %7780 = vmatprep.subr.mxu0 0.0
        %7781 = vmatpush1.msra.mxu0 %v7238
        %7782 = vmatprep.subr.mxu0 0.0
        %7783 = vmatpush1.msra.mxu0 0.0
        %7784 = vmatprep.subr.mxu0 0.0
        %7785 = vmatpush1.msra.mxu0 0.0
        %7786 = vmatprep.subr.mxu0 0.0
        %7787 = vmatpush1.msra.mxu0 0.0
        %7788 = vmatprep.subr.mxu0 0.0
        %7789 = vmatpush1.msra.mxu0 0.0
        %7790 = vmatprep.subr.mxu0 0.0
        %7791 = vmatpush1.msra.mxu0 0.0
        %7792 = vmatprep.subr.mxu0 0.0
        %7793 = vmatpush1.msra.mxu0 0.0
        %7794 = vmatprep.subr.mxu0 0.0
        %7795 = vmatpush1.msra.mxu0 0.0
        %7796 = vmatprep.subr.mxu0 0.0
        %7797 = vmatpush1.msra.mxu0 0.0
        %7798 = vmatprep.subr.mxu0 0.0
        %7799 = vmatpush1.msra.mxu0 0.0
        %7800 = vmatprep.subr.mxu0 0.0
        %7801 = vmatpush1.msra.mxu0 0.0
        %7802 = vmatprep.subr.mxu0 0.0
        %7803 = vmatpush1.msra.mxu0 0.0
        %7804 = vmatprep.subr.mxu0 0.0
        %7805 = vmatpush1.msra.mxu0 0.0
        %7806 = vmatprep.subr.mxu0 0.0
        %7807 = vmatpush1.msra.mxu0 0.0
        %7808 = vmatprep.subr.mxu0 0.0
        %7809 = vmatpush1.msra.mxu0 0.0
        %7810 = vmatprep.subr.mxu0 0.0
        %7811 = vmatpush1.msra.mxu0 0.0
        %7812 = vmatprep.subr.mxu0 0.0
        %7813 = vmatpush1.msra.mxu0 0.0
        %7814 = vmatprep.subr.mxu0 0.0
        %7815 = vmatpush1.msra.mxu0 0.0
        %7816 = vmatprep.subr.mxu0 0.0
        %7817 = vmatpush1.msra.mxu0 0.0
        %7818 = vmatprep.subr.mxu0 0.0
        %7819 = vmatpush1.msra.mxu0 0.0
        %7820 = vmatprep.subr.mxu0 0.0
        %7821 = vmatpush1.msra.mxu0 0.0
        %7822 = vmatprep.subr.mxu0 0.0
        %7823 = vmatpush1.msra.mxu0 0.0
        %7824 = vmatprep.subr.mxu0 0.0
        %7825 = vmatpush1.msra.mxu0 0.0
        %7826 = vmatprep.subr.mxu0 0.0
        %7827 = vmatpush1.msra.mxu0 0.0
        %7828 = vmatprep.subr.mxu0 0.0
        %7829 = vmatpush1.msra.mxu0 0.0
        %7830 = vmatprep.subr.mxu0 0.0
        %7831 = vmatpush1.msra.mxu0 0.0
        %7832 = vmatprep.subr.mxu0 0.0
        %7833 = vmatpush1.msra.mxu0 0.0
        %7834 = vmatprep.subr.mxu0 0.0
        %7835 = vmatpush1.msra.mxu0 0.0
        %7836 = vmatprep.subr.mxu0 0.0
        %7837 = vmatpush1.msra.mxu0 0.0
        %7838 = vmatprep.mubr.f32.mxu0 0.0
        %7839 = vmatmul.mubr.f32.gmra.mrb[0].mxu0 %v7352
        %v7840 = vpop.f32.mrb[0].mxu0
        %v7841 = vadd.f32 %v7318, %v7840
        %v7842 = vpop.f32.mrb[0].mxu0
        %7843 = vdwg.mxu0
        %7844 = vmatprep.subr.mxu0 0.0
        %7845 = vmatpush1.msra.mxu0 %v7239
        %7846 = vmatprep.subr.mxu0 0.0
        %7847 = vmatpush1.msra.mxu0 %v7240
        %7848 = vmatprep.subr.mxu0 0.0
        %7849 = vmatpush1.msra.mxu0 %v7241
        %7850 = vmatprep.subr.mxu0 0.0
        %7851 = vmatpush1.msra.mxu0 %v7242
        %7852 = vmatprep.subr.mxu0 0.0
        %7853 = vmatpush1.msra.mxu0 0.0
        %7854 = vmatprep.subr.mxu0 0.0
        %7855 = vmatpush1.msra.mxu0 0.0
        %7856 = vmatprep.subr.mxu0 0.0
        %7857 = vmatpush1.msra.mxu0 0.0
        %7858 = vmatprep.subr.mxu0 0.0
        %7859 = vmatpush1.msra.mxu0 0.0
        %7860 = vmatprep.subr.mxu0 0.0
        %7861 = vmatpush1.msra.mxu0 0.0
        %7862 = vmatprep.subr.mxu0 0.0
        %7863 = vmatpush1.msra.mxu0 0.0
        %7864 = vmatprep.subr.mxu0 0.0
        %7865 = vmatpush1.msra.mxu0 0.0
        %7866 = vmatprep.subr.mxu0 0.0
        %7867 = vmatpush1.msra.mxu0 0.0
        %7868 = vmatprep.subr.mxu0 0.0
        %7869 = vmatpush1.msra.mxu0 0.0
        %7870 = vmatprep.subr.mxu0 0.0
        %7871 = vmatpush1.msra.mxu0 0.0
        %7872 = vmatprep.subr.mxu0 0.0
        %7873 = vmatpush1.msra.mxu0 0.0
        %7874 = vmatprep.subr.mxu0 0.0
        %7875 = vmatpush1.msra.mxu0 0.0
        %7876 = vmatprep.subr.mxu0 0.0
        %7877 = vmatpush1.msra.mxu0 0.0
        %7878 = vmatprep.subr.mxu0 0.0
        %7879 = vmatpush1.msra.mxu0 0.0
        %7880 = vmatprep.subr.mxu0 0.0
        %7881 = vmatpush1.msra.mxu0 0.0
        %7882 = vmatprep.subr.mxu0 0.0
        %7883 = vmatpush1.msra.mxu0 0.0
        %7884 = vmatprep.subr.mxu0 0.0
        %7885 = vmatpush1.msra.mxu0 0.0
        %7886 = vmatprep.subr.mxu0 0.0
        %7887 = vmatpush1.msra.mxu0 0.0
        %7888 = vmatprep.subr.mxu0 0.0
        %7889 = vmatpush1.msra.mxu0 0.0
        %7890 = vmatprep.subr.mxu0 0.0
        %7891 = vmatpush1.msra.mxu0 0.0
        %7892 = vmatprep.subr.mxu0 0.0
        %7893 = vmatpush1.msra.mxu0 0.0
        %7894 = vmatprep.subr.mxu0 0.0
        %7895 = vmatpush1.msra.mxu0 0.0
        %7896 = vmatprep.subr.mxu0 0.0
        %7897 = vmatpush1.msra.mxu0 0.0
        %7898 = vmatprep.subr.mxu0 0.0
        %7899 = vmatpush1.msra.mxu0 0.0
        %7900 = vmatprep.subr.mxu0 0.0
        %7901 = vmatpush1.msra.mxu0 0.0
        %7902 = vmatprep.subr.mxu0 0.0
        %7903 = vmatpush1.msra.mxu0 0.0
        %7904 = vmatprep.subr.mxu0 0.0
        %7905 = vmatpush1.msra.mxu0 0.0
        %7906 = vmatprep.subr.mxu0 0.0
        %7907 = vmatpush1.msra.mxu0 0.0
        %7908 = vmatprep.mubr.f32.mxu0 0.0
        %7909 = vmatmul.mubr.f32.gmra.mrb[0].mxu0 %v7352
        %v7910 = vpop.f32.mrb[0].mxu0
        %v7911 = vadd.f32 %v7322, %v7910
        %v7912 = vpop.f32.mrb[0].mxu0
        %7913 = vdwg.mxu0
        %7914 = vmatprep.subr.mxu0 0.0
        %7915 = vmatpush1.msra.mxu0 %v7243
        %7916 = vmatprep.subr.mxu0 0.0
        %7917 = vmatpush1.msra.mxu0 %v7244
        %7918 = vmatprep.subr.mxu0 0.0
        %7919 = vmatpush1.msra.mxu0 %v7245
        %7920 = vmatprep.subr.mxu0 0.0
        %7921 = vmatpush1.msra.mxu0 %v7246
        %7922 = vmatprep.subr.mxu0 0.0
        %7923 = vmatpush1.msra.mxu0 0.0
        %7924 = vmatprep.subr.mxu0 0.0
        %7925 = vmatpush1.msra.mxu0 0.0
        %7926 = vmatprep.subr.mxu0 0.0
        %7927 = vmatpush1.msra.mxu0 0.0
        %7928 = vmatprep.subr.mxu0 0.0
        %7929 = vmatpush1.msra.mxu0 0.0
        %7930 = vmatprep.subr.mxu0 0.0
        %7931 = vmatpush1.msra.mxu0 0.0
        %7932 = vmatprep.subr.mxu0 0.0
        %7933 = vmatpush1.msra.mxu0 0.0
        %7934 = vmatprep.subr.mxu0 0.0
        %7935 = vmatpush1.msra.mxu0 0.0
        %7936 = vmatprep.subr.mxu0 0.0
        %7937 = vmatpush1.msra.mxu0 0.0
        %7938 = vmatprep.subr.mxu0 0.0
        %7939 = vmatpush1.msra.mxu0 0.0
        %7940 = vmatprep.subr.mxu0 0.0
        %7941 = vmatpush1.msra.mxu0 0.0
        %7942 = vmatprep.subr.mxu0 0.0
        %7943 = vmatpush1.msra.mxu0 0.0
        %7944 = vmatprep.subr.mxu0 0.0
        %7945 = vmatpush1.msra.mxu0 0.0
        %7946 = vmatprep.subr.mxu0 0.0
        %7947 = vmatpush1.msra.mxu0 0.0
        %7948 = vmatprep.subr.mxu0 0.0
        %7949 = vmatpush1.msra.mxu0 0.0
        %7950 = vmatprep.subr.mxu0 0.0
        %7951 = vmatpush1.msra.mxu0 0.0
        %7952 = vmatprep.subr.mxu0 0.0
        %7953 = vmatpush1.msra.mxu0 0.0
        %7954 = vmatprep.subr.mxu0 0.0
        %7955 = vmatpush1.msra.mxu0 0.0
        %7956 = vmatprep.subr.mxu0 0.0
        %7957 = vmatpush1.msra.mxu0 0.0
        %7958 = vmatprep.subr.mxu0 0.0
        %7959 = vmatpush1.msra.mxu0 0.0
        %7960 = vmatprep.subr.mxu0 0.0
        %7961 = vmatpush1.msra.mxu0 0.0
        %7962 = vmatprep.subr.mxu0 0.0
        %7963 = vmatpush1.msra.mxu0 0.0
        %7964 = vmatprep.subr.mxu0 0.0
        %7965 = vmatpush1.msra.mxu0 0.0
        %7966 = vmatprep.subr.mxu0 0.0
        %7967 = vmatpush1.msra.mxu0 0.0
        %7968 = vmatprep.subr.mxu0 0.0
        %7969 = vmatpush1.msra.mxu0 0.0
        %7970 = vmatprep.subr.mxu0 0.0
        %7971 = vmatpush1.msra.mxu0 0.0
        %7972 = vmatprep.subr.mxu0 0.0
        %7973 = vmatpush1.msra.mxu0 0.0
        %7974 = vmatprep.subr.mxu0 0.0
        %7975 = vmatpush1.msra.mxu0 0.0
        %7976 = vmatprep.subr.mxu0 0.0
        %7977 = vmatpush1.msra.mxu0 0.0
        %7978 = vmatprep.mubr.f32.mxu0 0.0
        %7979 = vmatmul.mubr.f32.gmra.mrb[0].mxu0 %v7352
        %v7980 = vpop.f32.mrb[0].mxu0
        %v7981 = vadd.f32 %v7326, %v7980
        %v7982 = vpop.f32.mrb[0].mxu0
        %7983 = vdwg.mxu0
        %7984 = vmatprep.subr.mxu0 0.0
        %7985 = vmatpush1.msra.mxu0 %v7247
        %7986 = vmatprep.subr.mxu0 0.0
        %7987 = vmatpush1.msra.mxu0 %v7248
        %7988 = vmatprep.subr.mxu0 0.0
        %7989 = vmatpush1.msra.mxu0 %v7249
        %7990 = vmatprep.subr.mxu0 0.0
        %7991 = vmatpush1.msra.mxu0 %v7250
        %7992 = vmatprep.subr.mxu0 0.0
        %7993 = vmatpush1.msra.mxu0 0.0
        %7994 = vmatprep.subr.mxu0 0.0
        %7995 = vmatpush1.msra.mxu0 0.0
        %7996 = vmatprep.subr.mxu0 0.0
        %7997 = vmatpush1.msra.mxu0 0.0
        %7998 = vmatprep.subr.mxu0 0.0
        %7999 = vmatpush1.msra.mxu0 0.0
        %8000 = vmatprep.subr.mxu0 0.0
        %8001 = vmatpush1.msra.mxu0 0.0
        %8002 = vmatprep.subr.mxu0 0.0
        %8003 = vmatpush1.msra.mxu0 0.0
        %8004 = vmatprep.subr.mxu0 0.0
        %8005 = vmatpush1.msra.mxu0 0.0
        %8006 = vmatprep.subr.mxu0 0.0
        %8007 = vmatpush1.msra.mxu0 0.0
        %8008 = vmatprep.subr.mxu0 0.0
        %8009 = vmatpush1.msra.mxu0 0.0
        %8010 = vmatprep.subr.mxu0 0.0
        %8011 = vmatpush1.msra.mxu0 0.0
        %8012 = vmatprep.subr.mxu0 0.0
        %8013 = vmatpush1.msra.mxu0 0.0
        %8014 = vmatprep.subr.mxu0 0.0
        %8015 = vmatpush1.msra.mxu0 0.0
        %8016 = vmatprep.subr.mxu0 0.0
        %8017 = vmatpush1.msra.mxu0 0.0
        %8018 = vmatprep.subr.mxu0 0.0
        %8019 = vmatpush1.msra.mxu0 0.0
        %8020 = vmatprep.subr.mxu0 0.0
        %8021 = vmatpush1.msra.mxu0 0.0
        %8022 = vmatprep.subr.mxu0 0.0
        %8023 = vmatpush1.msra.mxu0 0.0
        %8024 = vmatprep.subr.mxu0 0.0
        %8025 = vmatpush1.msra.mxu0 0.0
        %8026 = vmatprep.subr.mxu0 0.0
        %8027 = vmatpush1.msra.mxu0 0.0
        %8028 = vmatprep.subr.mxu0 0.0
        %8029 = vmatpush1.msra.mxu0 0.0
        %8030 = vmatprep.subr.mxu0 0.0
        %8031 = vmatpush1.msra.mxu0 0.0
        %8032 = vmatprep.subr.mxu0 0.0
        %8033 = vmatpush1.msra.mxu0 0.0
        %8034 = vmatprep.subr.mxu0 0.0
        %8035 = vmatpush1.msra.mxu0 0.0
        %8036 = vmatprep.subr.mxu0 0.0
        %8037 = vmatpush1.msra.mxu0 0.0
        %8038 = vmatprep.subr.mxu0 0.0
        %8039 = vmatpush1.msra.mxu0 0.0
        %8040 = vmatprep.subr.mxu0 0.0
        %8041 = vmatpush1.msra.mxu0 0.0
        %8042 = vmatprep.subr.mxu0 0.0
        %8043 = vmatpush1.msra.mxu0 0.0
        %8044 = vmatprep.subr.mxu0 0.0
        %8045 = vmatpush1.msra.mxu0 0.0
        %8046 = vmatprep.subr.mxu0 0.0
        %8047 = vmatpush1.msra.mxu0 0.0
        %8048 = vmatprep.mubr.f32.mxu0 0.0
        %8049 = vmatmul.mubr.f32.gmra.mrb[0].mxu0 %v7352
        %v8050 = vpop.f32.mrb[0].mxu0
        %v8051 = vadd.f32 %v7330, %v8050
        %v8052 = vpop.f32.mrb[0].mxu0
        %8053 = vdwg.mxu0
        %8054 = vmatprep.subr.mxu0 0.0
        %8055 = vmatpush1.msra.mxu0 %v7251
        %8056 = vmatprep.subr.mxu0 0.0
        %8057 = vmatpush1.msra.mxu0 %v7252
        %8058 = vmatprep.subr.mxu0 0.0
        %8059 = vmatpush1.msra.mxu0 %v7253
        %8060 = vmatprep.subr.mxu0 0.0
        %8061 = vmatpush1.msra.mxu0 %v7254
        %8062 = vmatprep.subr.mxu0 0.0
        %8063 = vmatpush1.msra.mxu0 0.0
        %8064 = vmatprep.subr.mxu0 0.0
        %8065 = vmatpush1.msra.mxu0 0.0
        %8066 = vmatprep.subr.mxu0 0.0
        %8067 = vmatpush1.msra.mxu0 0.0
        %8068 = vmatprep.subr.mxu0 0.0
        %8069 = vmatpush1.msra.mxu0 0.0
        %8070 = vmatprep.subr.mxu0 0.0
        %8071 = vmatpush1.msra.mxu0 0.0
        %8072 = vmatprep.subr.mxu0 0.0
        %8073 = vmatpush1.msra.mxu0 0.0
        %8074 = vmatprep.subr.mxu0 0.0
        %8075 = vmatpush1.msra.mxu0 0.0
        %8076 = vmatprep.subr.mxu0 0.0
        %8077 = vmatpush1.msra.mxu0 0.0
        %8078 = vmatprep.subr.mxu0 0.0
        %8079 = vmatpush1.msra.mxu0 0.0
        %8080 = vmatprep.subr.mxu0 0.0
        %8081 = vmatpush1.msra.mxu0 0.0
        %8082 = vmatprep.subr.mxu0 0.0
        %8083 = vmatpush1.msra.mxu0 0.0
        %8084 = vmatprep.subr.mxu0 0.0
        %8085 = vmatpush1.msra.mxu0 0.0
        %8086 = vmatprep.subr.mxu0 0.0
        %8087 = vmatpush1.msra.mxu0 0.0
        %8088 = vmatprep.subr.mxu0 0.0
        %8089 = vmatpush1.msra.mxu0 0.0
        %8090 = vmatprep.subr.mxu0 0.0
        %8091 = vmatpush1.msra.mxu0 0.0
        %8092 = vmatprep.subr.mxu0 0.0
        %8093 = vmatpush1.msra.mxu0 0.0
        %8094 = vmatprep.subr.mxu0 0.0
        %8095 = vmatpush1.msra.mxu0 0.0
        %8096 = vmatprep.subr.mxu0 0.0
        %8097 = vmatpush1.msra.mxu0 0.0
        %8098 = vmatprep.subr.mxu0 0.0
        %8099 = vmatpush1.msra.mxu0 0.0
        %8100 = vmatprep.subr.mxu0 0.0
        %8101 = vmatpush1.msra.mxu0 0.0
        %8102 = vmatprep.subr.mxu0 0.0
        %8103 = vmatpush1.msra.mxu0 0.0
        %8104 = vmatprep.subr.mxu0 0.0
        %8105 = vmatpush1.msra.mxu0 0.0
        %8106 = vmatprep.subr.mxu0 0.0
        %8107 = vmatpush1.msra.mxu0 0.0
        %8108 = vmatprep.subr.mxu0 0.0
        %8109 = vmatpush1.msra.mxu0 0.0
        %8110 = vmatprep.subr.mxu0 0.0
        %8111 = vmatpush1.msra.mxu0 0.0
        %8112 = vmatprep.subr.mxu0 0.0
        %8113 = vmatpush1.msra.mxu0 0.0
        %8114 = vmatprep.subr.mxu0 0.0
        %8115 = vmatpush1.msra.mxu0 0.0
        %8116 = vmatprep.subr.mxu0 0.0
        %8117 = vmatpush1.msra.mxu0 0.0
        %8118 = vmatprep.mubr.f32.mxu0 0.0
        %8119 = vmatmul.mubr.f32.gmra.mrb[0].mxu0 %v7352
        %v8120 = vpop.f32.mrb[0].mxu0
        %v8121 = vadd.f32 %v7334, %v8120
        %v8122 = vpop.f32.mrb[0].mxu0
        %8123 = vdwg.mxu0
        %8124 = vmatprep.subr.mxu0 0.0
        %8125 = vmatpush1.msra.mxu0 %v7255
        %8126 = vmatprep.subr.mxu0 0.0
        %8127 = vmatpush1.msra.mxu0 %v7256
        %8128 = vmatprep.subr.mxu0 0.0
        %8129 = vmatpush1.msra.mxu0 %v7257
        %8130 = vmatprep.subr.mxu0 0.0
        %8131 = vmatpush1.msra.mxu0 %v7258
        %8132 = vmatprep.subr.mxu0 0.0
        %8133 = vmatpush1.msra.mxu0 0.0
        %8134 = vmatprep.subr.mxu0 0.0
        %8135 = vmatpush1.msra.mxu0 0.0
        %8136 = vmatprep.subr.mxu0 0.0
        %8137 = vmatpush1.msra.mxu0 0.0
        %8138 = vmatprep.subr.mxu0 0.0
        %8139 = vmatpush1.msra.mxu0 0.0
        %8140 = vmatprep.subr.mxu0 0.0
        %8141 = vmatpush1.msra.mxu0 0.0
        %8142 = vmatprep.subr.mxu0 0.0
        %8143 = vmatpush1.msra.mxu0 0.0
        %8144 = vmatprep.subr.mxu0 0.0
        %8145 = vmatpush1.msra.mxu0 0.0
        %8146 = vmatprep.subr.mxu0 0.0
        %8147 = vmatpush1.msra.mxu0 0.0
        %8148 = vmatprep.subr.mxu0 0.0
        %8149 = vmatpush1.msra.mxu0 0.0
        %8150 = vmatprep.subr.mxu0 0.0
        %8151 = vmatpush1.msra.mxu0 0.0
        %8152 = vmatprep.subr.mxu0 0.0
        %8153 = vmatpush1.msra.mxu0 0.0
        %8154 = vmatprep.subr.mxu0 0.0
        %8155 = vmatpush1.msra.mxu0 0.0
        %8156 = vmatprep.subr.mxu0 0.0
        %8157 = vmatpush1.msra.mxu0 0.0
        %8158 = vmatprep.subr.mxu0 0.0
        %8159 = vmatpush1.msra.mxu0 0.0
        %8160 = vmatprep.subr.mxu0 0.0
        %8161 = vmatpush1.msra.mxu0 0.0
        %8162 = vmatprep.subr.mxu0 0.0
        %8163 = vmatpush1.msra.mxu0 0.0
        %8164 = vmatprep.subr.mxu0 0.0
        %8165 = vmatpush1.msra.mxu0 0.0
        %8166 = vmatprep.subr.mxu0 0.0
        %8167 = vmatpush1.msra.mxu0 0.0
        %8168 = vmatprep.subr.mxu0 0.0
        %8169 = vmatpush1.msra.mxu0 0.0
        %8170 = vmatprep.subr.mxu0 0.0
        %8171 = vmatpush1.msra.mxu0 0.0
        %8172 = vmatprep.subr.mxu0 0.0
        %8173 = vmatpush1.msra.mxu0 0.0
        %8174 = vmatprep.subr.mxu0 0.0
        %8175 = vmatpush1.msra.mxu0 0.0
        %8176 = vmatprep.subr.mxu0 0.0
        %8177 = vmatpush1.msra.mxu0 0.0
        %8178 = vmatprep.subr.mxu0 0.0
        %8179 = vmatpush1.msra.mxu0 0.0
        %8180 = vmatprep.subr.mxu0 0.0
        %8181 = vmatpush1.msra.mxu0 0.0
        %8182 = vmatprep.subr.mxu0 0.0
        %8183 = vmatpush1.msra.mxu0 0.0
        %8184 = vmatprep.subr.mxu0 0.0
        %8185 = vmatpush1.msra.mxu0 0.0
        %8186 = vmatprep.subr.mxu0 0.0
        %8187 = vmatpush1.msra.mxu0 0.0
        %8188 = vmatprep.mubr.f32.mxu0 0.0
        %8189 = vmatmul.mubr.f32.gmra.mrb[0].mxu0 %v7352
        %v8190 = vpop.f32.mrb[0].mxu0
        %v8191 = vadd.f32 %v7338, %v8190
        %v8192 = vpop.f32.mrb[0].mxu0
        %8193 = vdwg.mxu0
        %v8195 = vsel %vm1617, %v7421, 0
        %v8198 = vsel %vm1617, %v7701, 0
        %8200 = vmatprep.subr.mxu0 0.0
        %8201 = vmatpush1.xpose.msra.mxu0 %v8198
        %8202 = vmatprep.subr.mxu0 0.0
        %8203 = vmatpush1.xpose.msra.mxu0 0.0
        %8204 = vmatprep.subr.mxu0 0.0
        %8205 = vmatpush1.xpose.msra.mxu0 0.0
        %8206 = vmatprep.subr.mxu0 0.0
        %8207 = vmatpush1.xpose.msra.mxu0 0.0
        %8208 = vmatprep.subr.mxu0 0.0
        %8209 = vmatpush1.xpose.msra.mxu0 0.0
        %8210 = vmatprep.subr.mxu0 0.0
        %8211 = vmatpush1.xpose.msra.mxu0 0.0
        %8212 = vmatprep.subr.mxu0 0.0
        %8213 = vmatpush1.xpose.msra.mxu0 0.0
        %8214 = vmatprep.subr.mxu0 0.0
        %8215 = vmatpush1.xpose.msra.mxu0 0.0
        %8216 = vmatprep.subr.mxu0 0.0
        %8217 = vmatpush1.xpose.msra.mxu0 0.0
        %8218 = vmatprep.subr.mxu0 0.0
        %8219 = vmatpush1.xpose.msra.mxu0 0.0
        %8220 = vmatprep.subr.mxu0 0.0
        %8221 = vmatpush1.xpose.msra.mxu0 0.0
        %8222 = vmatprep.subr.mxu0 0.0
        %8223 = vmatpush1.xpose.msra.mxu0 0.0
        %8224 = vmatprep.subr.mxu0 0.0
        %8225 = vmatpush1.xpose.msra.mxu0 0.0
        %8226 = vmatprep.subr.mxu0 0.0
        %8227 = vmatpush1.xpose.msra.mxu0 0.0
        %8228 = vmatprep.subr.mxu0 0.0
        %8229 = vmatpush1.xpose.msra.mxu0 0.0
        %8230 = vmatprep.subr.mxu0 0.0
        %8231 = vmatpush1.xpose.msra.mxu0 0.0
        %8232 = vmatprep.subr.mxu0 0.0
        %8233 = vmatpush1.xpose.msra.mxu0 0.0
        %8234 = vmatprep.subr.mxu0 0.0
        %8235 = vmatpush1.xpose.msra.mxu0 0.0
        %8236 = vmatprep.subr.mxu0 0.0
        %8237 = vmatpush1.xpose.msra.mxu0 0.0
        %8238 = vmatprep.subr.mxu0 0.0
        %8239 = vmatpush1.xpose.msra.mxu0 0.0
        %8240 = vmatprep.subr.mxu0 0.0
        %8241 = vmatpush1.xpose.msra.mxu0 0.0
        %8242 = vmatprep.subr.mxu0 0.0
        %8243 = vmatpush1.xpose.msra.mxu0 0.0
        %8244 = vmatprep.subr.mxu0 0.0
        %8245 = vmatpush1.xpose.msra.mxu0 0.0
        %8246 = vmatprep.subr.mxu0 0.0
        %8247 = vmatpush1.xpose.msra.mxu0 0.0
        %8248 = vmatprep.subr.mxu0 0.0
        %8249 = vmatpush1.xpose.msra.mxu0 0.0
        %8250 = vmatprep.subr.mxu0 0.0
        %8251 = vmatpush1.xpose.msra.mxu0 0.0
        %8252 = vmatprep.subr.mxu0 0.0
        %8253 = vmatpush1.xpose.msra.mxu0 0.0
        %8254 = vmatprep.subr.mxu0 0.0
        %8255 = vmatpush1.xpose.msra.mxu0 0.0
        %8256 = vmatprep.subr.mxu0 0.0
        %8257 = vmatpush1.xpose.msra.mxu0 0.0
        %8258 = vmatprep.subr.mxu0 0.0
        %8259 = vmatpush1.xpose.msra.mxu0 0.0
        %8260 = vmatprep.subr.mxu0 0.0
        %8261 = vmatpush1.xpose.msra.mxu0 0.0
        %8262 = vmatprep.subr.mxu0 0.0
        %8263 = vmatpush1.xpose.msra.mxu0 0.0
        %8264 = vmatprep.mubr.f32.mxu0 0.0
        %8265 = vmatmul.mubr.f32.gmra.mrb[0].mxu0 %v8195
        %v8266 = vpop.f32.mrb[0].mxu0
        %v8267 = vadd.f32 0.0, %v8266
        %v8268 = vpop.f32.mrb[0].mxu0
        %8269 = vdwg.mxu0
        %v8271 = vsel %vm1617, %v7491, 0
        %v8274 = vsel %vm1617, %v7771, 0
        %8276 = vmatprep.subr.mxu0 0.0
        %8277 = vmatpush1.xpose.msra.mxu0 %v8274
        %8278 = vmatprep.subr.mxu0 0.0
        %8279 = vmatpush1.xpose.msra.mxu0 0.0
        %8280 = vmatprep.subr.mxu0 0.0
        %8281 = vmatpush1.xpose.msra.mxu0 0.0
        %8282 = vmatprep.subr.mxu0 0.0
        %8283 = vmatpush1.xpose.msra.mxu0 0.0
        %8284 = vmatprep.subr.mxu0 0.0
        %8285 = vmatpush1.xpose.msra.mxu0 0.0
        %8286 = vmatprep.subr.mxu0 0.0
        %8287 = vmatpush1.xpose.msra.mxu0 0.0
        %8288 = vmatprep.subr.mxu0 0.0
        %8289 = vmatpush1.xpose.msra.mxu0 0.0
        %8290 = vmatprep.subr.mxu0 0.0
        %8291 = vmatpush1.xpose.msra.mxu0 0.0
        %8292 = vmatprep.subr.mxu0 0.0
        %8293 = vmatpush1.xpose.msra.mxu0 0.0
        %8294 = vmatprep.subr.mxu0 0.0
        %8295 = vmatpush1.xpose.msra.mxu0 0.0
        %8296 = vmatprep.subr.mxu0 0.0
        %8297 = vmatpush1.xpose.msra.mxu0 0.0
        %8298 = vmatprep.subr.mxu0 0.0
        %8299 = vmatpush1.xpose.msra.mxu0 0.0
        %8300 = vmatprep.subr.mxu0 0.0
        %8301 = vmatpush1.xpose.msra.mxu0 0.0
        %8302 = vmatprep.subr.mxu0 0.0
        %8303 = vmatpush1.xpose.msra.mxu0 0.0
        %8304 = vmatprep.subr.mxu0 0.0
        %8305 = vmatpush1.xpose.msra.mxu0 0.0
        %8306 = vmatprep.subr.mxu0 0.0
        %8307 = vmatpush1.xpose.msra.mxu0 0.0
        %8308 = vmatprep.subr.mxu0 0.0
        %8309 = vmatpush1.xpose.msra.mxu0 0.0
        %8310 = vmatprep.subr.mxu0 0.0
        %8311 = vmatpush1.xpose.msra.mxu0 0.0
        %8312 = vmatprep.subr.mxu0 0.0
        %8313 = vmatpush1.xpose.msra.mxu0 0.0
        %8314 = vmatprep.subr.mxu0 0.0
        %8315 = vmatpush1.xpose.msra.mxu0 0.0
        %8316 = vmatprep.subr.mxu0 0.0
        %8317 = vmatpush1.xpose.msra.mxu0 0.0
        %8318 = vmatprep.subr.mxu0 0.0
        %8319 = vmatpush1.xpose.msra.mxu0 0.0
        %8320 = vmatprep.subr.mxu0 0.0
        %8321 = vmatpush1.xpose.msra.mxu0 0.0
        %8322 = vmatprep.subr.mxu0 0.0
        %8323 = vmatpush1.xpose.msra.mxu0 0.0
        %8324 = vmatprep.subr.mxu0 0.0
        %8325 = vmatpush1.xpose.msra.mxu0 0.0
        %8326 = vmatprep.subr.mxu0 0.0
        %8327 = vmatpush1.xpose.msra.mxu0 0.0
        %8328 = vmatprep.subr.mxu0 0.0
        %8329 = vmatpush1.xpose.msra.mxu0 0.0
        %8330 = vmatprep.subr.mxu0 0.0
        %8331 = vmatpush1.xpose.msra.mxu0 0.0
        %8332 = vmatprep.subr.mxu0 0.0
        %8333 = vmatpush1.xpose.msra.mxu0 0.0
        %8334 = vmatprep.subr.mxu0 0.0
        %8335 = vmatpush1.xpose.msra.mxu0 0.0
        %8336 = vmatprep.subr.mxu0 0.0
        %8337 = vmatpush1.xpose.msra.mxu0 0.0
        %8338 = vmatprep.subr.mxu0 0.0
        %8339 = vmatpush1.xpose.msra.mxu0 0.0
        %8340 = vmatprep.mubr.f32.mxu0 0.0
        %8341 = vmatmul.mubr.f32.gmra.mrb[0].mxu0 %v8271
        %v8342 = vpop.f32.mrb[0].mxu0
        %v8343 = vadd.f32 0.0, %v8342
        %v8344 = vpop.f32.mrb[0].mxu0
        %8345 = vdwg.mxu0
        %v8347 = vsel %vm1617, %v7561, 0
        %v8350 = vsel %vm1617, %v7841, 0
        %8352 = vmatprep.subr.mxu0 0.0
        %8353 = vmatpush1.xpose.msra.mxu0 %v8350
        %8354 = vmatprep.subr.mxu0 0.0
        %8355 = vmatpush1.xpose.msra.mxu0 0.0
        %8356 = vmatprep.subr.mxu0 0.0
        %8357 = vmatpush1.xpose.msra.mxu0 0.0
        %8358 = vmatprep.subr.mxu0 0.0
        %8359 = vmatpush1.xpose.msra.mxu0 0.0
        %8360 = vmatprep.subr.mxu0 0.0
        %8361 = vmatpush1.xpose.msra.mxu0 0.0
        %8362 = vmatprep.subr.mxu0 0.0
        %8363 = vmatpush1.xpose.msra.mxu0 0.0
        %8364 = vmatprep.subr.mxu0 0.0
        %8365 = vmatpush1.xpose.msra.mxu0 0.0
        %8366 = vmatprep.subr.mxu0 0.0
        %8367 = vmatpush1.xpose.msra.mxu0 0.0
        %8368 = vmatprep.subr.mxu0 0.0
        %8369 = vmatpush1.xpose.msra.mxu0 0.0
        %8370 = vmatprep.subr.mxu0 0.0
        %8371 = vmatpush1.xpose.msra.mxu0 0.0
        %8372 = vmatprep.subr.mxu0 0.0
        %8373 = vmatpush1.xpose.msra.mxu0 0.0
        %8374 = vmatprep.subr.mxu0 0.0
        %8375 = vmatpush1.xpose.msra.mxu0 0.0
        %8376 = vmatprep.subr.mxu0 0.0
        %8377 = vmatpush1.xpose.msra.mxu0 0.0
        %8378 = vmatprep.subr.mxu0 0.0
        %8379 = vmatpush1.xpose.msra.mxu0 0.0
        %8380 = vmatprep.subr.mxu0 0.0
        %8381 = vmatpush1.xpose.msra.mxu0 0.0
        %8382 = vmatprep.subr.mxu0 0.0
        %8383 = vmatpush1.xpose.msra.mxu0 0.0
        %8384 = vmatprep.subr.mxu0 0.0
        %8385 = vmatpush1.xpose.msra.mxu0 0.0
        %8386 = vmatprep.subr.mxu0 0.0
        %8387 = vmatpush1.xpose.msra.mxu0 0.0
        %8388 = vmatprep.subr.mxu0 0.0
        %8389 = vmatpush1.xpose.msra.mxu0 0.0
        %8390 = vmatprep.subr.mxu0 0.0
        %8391 = vmatpush1.xpose.msra.mxu0 0.0
        %8392 = vmatprep.subr.mxu0 0.0
        %8393 = vmatpush1.xpose.msra.mxu0 0.0
        %8394 = vmatprep.subr.mxu0 0.0
        %8395 = vmatpush1.xpose.msra.mxu0 0.0
        %8396 = vmatprep.subr.mxu0 0.0
        %8397 = vmatpush1.xpose.msra.mxu0 0.0
        %8398 = vmatprep.subr.mxu0 0.0
        %8399 = vmatpush1.xpose.msra.mxu0 0.0
        %8400 = vmatprep.subr.mxu0 0.0
        %8401 = vmatpush1.xpose.msra.mxu0 0.0
        %8402 = vmatprep.subr.mxu0 0.0
        %8403 = vmatpush1.xpose.msra.mxu0 0.0
        %8404 = vmatprep.subr.mxu0 0.0
        %8405 = vmatpush1.xpose.msra.mxu0 0.0
        %8406 = vmatprep.subr.mxu0 0.0
        %8407 = vmatpush1.xpose.msra.mxu0 0.0
        %8408 = vmatprep.subr.mxu0 0.0
        %8409 = vmatpush1.xpose.msra.mxu0 0.0
        %8410 = vmatprep.subr.mxu0 0.0
        %8411 = vmatpush1.xpose.msra.mxu0 0.0
        %8412 = vmatprep.subr.mxu0 0.0
        %8413 = vmatpush1.xpose.msra.mxu0 0.0
        %8414 = vmatprep.subr.mxu0 0.0
        %8415 = vmatpush1.xpose.msra.mxu0 0.0
        %8416 = vmatprep.mubr.f32.mxu0 0.0
        %8417 = vmatmul.mubr.f32.gmra.mrb[0].mxu0 %v8347
        %v8418 = vpop.f32.mrb[0].mxu0
        %v8419 = vadd.f32 0.0, %v8418
        %v8420 = vpop.f32.mrb[0].mxu0
        %8421 = vdwg.mxu0
        %v8423 = vsel %vm1617, %v7631, 0
        %v8426 = vsel %vm1617, %v7911, 0
        %8428 = vmatprep.subr.mxu0 0.0
        %8429 = vmatpush1.xpose.msra.mxu0 %v8426
        %8430 = vmatprep.subr.mxu0 0.0
        %8431 = vmatpush1.xpose.msra.mxu0 0.0
        %8432 = vmatprep.subr.mxu0 0.0
        %8433 = vmatpush1.xpose.msra.mxu0 0.0
        %8434 = vmatprep.subr.mxu0 0.0
        %8435 = vmatpush1.xpose.msra.mxu0 0.0
        %8436 = vmatprep.subr.mxu0 0.0
        %8437 = vmatpush1.xpose.msra.mxu0 0.0
        %8438 = vmatprep.subr.mxu0 0.0
        %8439 = vmatpush1.xpose.msra.mxu0 0.0
        %8440 = vmatprep.subr.mxu0 0.0
        %8441 = vmatpush1.xpose.msra.mxu0 0.0
        %8442 = vmatprep.subr.mxu0 0.0
        %8443 = vmatpush1.xpose.msra.mxu0 0.0
        %8444 = vmatprep.subr.mxu0 0.0
        %8445 = vmatpush1.xpose.msra.mxu0 0.0
        %8446 = vmatprep.subr.mxu0 0.0
        %8447 = vmatpush1.xpose.msra.mxu0 0.0
        %8448 = vmatprep.subr.mxu0 0.0
        %8449 = vmatpush1.xpose.msra.mxu0 0.0
        %8450 = vmatprep.subr.mxu0 0.0
        %8451 = vmatpush1.xpose.msra.mxu0 0.0
        %8452 = vmatprep.subr.mxu0 0.0
        %8453 = vmatpush1.xpose.msra.mxu0 0.0
        %8454 = vmatprep.subr.mxu0 0.0
        %8455 = vmatpush1.xpose.msra.mxu0 0.0
        %8456 = vmatprep.subr.mxu0 0.0
        %8457 = vmatpush1.xpose.msra.mxu0 0.0
        %8458 = vmatprep.subr.mxu0 0.0
        %8459 = vmatpush1.xpose.msra.mxu0 0.0
        %8460 = vmatprep.subr.mxu0 0.0
        %8461 = vmatpush1.xpose.msra.mxu0 0.0
        %8462 = vmatprep.subr.mxu0 0.0
        %8463 = vmatpush1.xpose.msra.mxu0 0.0
        %8464 = vmatprep.subr.mxu0 0.0
        %8465 = vmatpush1.xpose.msra.mxu0 0.0
        %8466 = vmatprep.subr.mxu0 0.0
        %8467 = vmatpush1.xpose.msra.mxu0 0.0
        %8468 = vmatprep.subr.mxu0 0.0
        %8469 = vmatpush1.xpose.msra.mxu0 0.0
        %8470 = vmatprep.subr.mxu0 0.0
        %8471 = vmatpush1.xpose.msra.mxu0 0.0
        %8472 = vmatprep.subr.mxu0 0.0
        %8473 = vmatpush1.xpose.msra.mxu0 0.0
        %8474 = vmatprep.subr.mxu0 0.0
        %8475 = vmatpush1.xpose.msra.mxu0 0.0
        %8476 = vmatprep.subr.mxu0 0.0
        %8477 = vmatpush1.xpose.msra.mxu0 0.0
        %8478 = vmatprep.subr.mxu0 0.0
        %8479 = vmatpush1.xpose.msra.mxu0 0.0
        %8480 = vmatprep.subr.mxu0 0.0
        %8481 = vmatpush1.xpose.msra.mxu0 0.0
        %8482 = vmatprep.subr.mxu0 0.0
        %8483 = vmatpush1.xpose.msra.mxu0 0.0
        %8484 = vmatprep.subr.mxu0 0.0
        %8485 = vmatpush1.xpose.msra.mxu0 0.0
        %8486 = vmatprep.subr.mxu0 0.0
        %8487 = vmatpush1.xpose.msra.mxu0 0.0
        %8488 = vmatprep.subr.mxu0 0.0
        %8489 = vmatpush1.xpose.msra.mxu0 0.0
        %8490 = vmatprep.subr.mxu0 0.0
        %8491 = vmatpush1.xpose.msra.mxu0 0.0
        %8492 = vmatprep.mubr.f32.mxu0 0.0
        %8493 = vmatmul.mubr.f32.gmra.mrb[0].mxu0 %v8423
        %v8494 = vpop.f32.mrb[0].mxu0
        %v8495 = vadd.f32 0.0, %v8494
        %v8496 = vpop.f32.mrb[0].mxu0
        %8497 = vdwg.mxu0
        %v8498 = vmul.f32 %v8267, 0.35355338
        %v8499 = vmul.f32 %v8343, 0.35355338
        %v8500 = vmul.f32 %v8419, 0.35355338
        %v8501 = vmul.f32 %v8495, 0.35355338
        %v8502 = vadd.f32 %v8498, %v605
        %v8503 = vadd.f32 %v8499, %v605
        %v8504 = vadd.f32 %v8500, %v605
        %v8505 = vadd.f32 %v8501, %v605
        %v8506 = vsel %vm1617, %v8502, -inf
        %8507 = vmax.xlane.f32.xlu0 %v8506
        %v8508 = vpop.xlane.xlu0 %8507
        %v8509 = vsel %vm1617, %v8503, -inf
        %8510 = vmax.xlane.f32.xlu0 %v8509
        %v8511 = vpop.xlane.xlu0 %8510
        %v8512 = vsel %vm1617, %v8504, -inf
        %8513 = vmax.xlane.f32.xlu0 %v8512
        %v8514 = vpop.xlane.xlu0 %8513
        %v8515 = vsel %vm1617, %v8505, -inf
        %8516 = vmax.xlane.f32.xlu0 %v8515
        %v8517 = vpop.xlane.xlu0 %8516
        %v8518 = vsub.f32 %v8502, %v8508
        %v8519 = vsub.f32 %v8503, %v8511
        %v8520 = vsub.f32 %v8504, %v8514
        %v8521 = vsub.f32 %v8505, %v8517
        %v8522 = vmul.f32 %v8518, 1.442695
        %v8523 = vpow.pop %v8522
        %v8524 = vmul.f32 %v8519, 1.442695
        %v8525 = vpow.pop %v8524
        %v8526 = vmul.f32 %v8520, 1.442695
        %v8527 = vpow.pop %v8526
        %v8528 = vmul.f32 %v8521, 1.442695
        %v8529 = vpow.pop %v8528
        %v8530 = vsel %vm1617, %v8523, 0.0
        %8531 = vadd.xlane.f32.xlu0 %v8530
        %v8532 = vpop.xlane.xlu0 %8531
        %v8533 = vsel %vm1617, %v8525, 0.0
        %8534 = vadd.xlane.f32.xlu0 %v8533
        %v8535 = vpop.xlane.xlu0 %8534
        %v8536 = vsel %vm1617, %v8527, 0.0
        %8537 = vadd.xlane.f32.xlu0 %v8536
        %v8538 = vpop.xlane.xlu0 %8537
        %v8539 = vsel %vm1617, %v8529, 0.0
        %8540 = vadd.xlane.f32.xlu0 %v8539
        %v8541 = vpop.xlane.xlu0 %8540
        %v8542 = vrcp.pop %v8532
        %v8543 = vrcp.pop %v8535
        %v8544 = vrcp.pop %v8538
        %v8545 = vrcp.pop %v8541
        %v8546 = vmul.f32 %v8523, %v8542
        %v8547 = vmul.f32 %v8525, %v8543
        %v8548 = vmul.f32 %v8527, %v8544
        %v8549 = vmul.f32 %v8529, %v8545
        %v8551 = vsel %vm1617, %v8546, 0
        %8553 = vmatprep.subr.mxu0 0.0
        %8554 = vmatpush1.msra.mxu0 %v7981
        %8555 = vmatprep.subr.mxu0 0.0
        %8556 = vmatpush1.msra.mxu0 0.0
        %8557 = vmatprep.subr.mxu0 0.0
        %8558 = vmatpush1.msra.mxu0 0.0
        %8559 = vmatprep.subr.mxu0 0.0
        %8560 = vmatpush1.msra.mxu0 0.0
        %8561 = vmatprep.subr.mxu0 0.0
        %8562 = vmatpush1.msra.mxu0 0.0
        %8563 = vmatprep.subr.mxu0 0.0
        %8564 = vmatpush1.msra.mxu0 0.0
        %8565 = vmatprep.subr.mxu0 0.0
        %8566 = vmatpush1.msra.mxu0 0.0
        %8567 = vmatprep.subr.mxu0 0.0
        %8568 = vmatpush1.msra.mxu0 0.0
        %8569 = vmatprep.subr.mxu0 0.0
        %8570 = vmatpush1.msra.mxu0 0.0
        %8571 = vmatprep.subr.mxu0 0.0
        %8572 = vmatpush1.msra.mxu0 0.0
        %8573 = vmatprep.subr.mxu0 0.0
        %8574 = vmatpush1.msra.mxu0 0.0
        %8575 = vmatprep.subr.mxu0 0.0
        %8576 = vmatpush1.msra.mxu0 0.0
        %8577 = vmatprep.subr.mxu0 0.0
        %8578 = vmatpush1.msra.mxu0 0.0
        %8579 = vmatprep.subr.mxu0 0.0
        %8580 = vmatpush1.msra.mxu0 0.0
        %8581 = vmatprep.subr.mxu0 0.0
        %8582 = vmatpush1.msra.mxu0 0.0
        %8583 = vmatprep.subr.mxu0 0.0
        %8584 = vmatpush1.msra.mxu0 0.0
        %8585 = vmatprep.subr.mxu0 0.0
        %8586 = vmatpush1.msra.mxu0 0.0
        %8587 = vmatprep.subr.mxu0 0.0
        %8588 = vmatpush1.msra.mxu0 0.0
        %8589 = vmatprep.subr.mxu0 0.0
        %8590 = vmatpush1.msra.mxu0 0.0
        %8591 = vmatprep.subr.mxu0 0.0
        %8592 = vmatpush1.msra.mxu0 0.0
        %8593 = vmatprep.subr.mxu0 0.0
        %8594 = vmatpush1.msra.mxu0 0.0
        %8595 = vmatprep.subr.mxu0 0.0
        %8596 = vmatpush1.msra.mxu0 0.0
        %8597 = vmatprep.subr.mxu0 0.0
        %8598 = vmatpush1.msra.mxu0 0.0
        %8599 = vmatprep.subr.mxu0 0.0
        %8600 = vmatpush1.msra.mxu0 0.0
        %8601 = vmatprep.subr.mxu0 0.0
        %8602 = vmatpush1.msra.mxu0 0.0
        %8603 = vmatprep.subr.mxu0 0.0
        %8604 = vmatpush1.msra.mxu0 0.0
        %8605 = vmatprep.subr.mxu0 0.0
        %8606 = vmatpush1.msra.mxu0 0.0
        %8607 = vmatprep.subr.mxu0 0.0
        %8608 = vmatpush1.msra.mxu0 0.0
        %8609 = vmatprep.subr.mxu0 0.0
        %8610 = vmatpush1.msra.mxu0 0.0
        %8611 = vmatprep.subr.mxu0 0.0
        %8612 = vmatpush1.msra.mxu0 0.0
        %8613 = vmatprep.subr.mxu0 0.0
        %8614 = vmatpush1.msra.mxu0 0.0
        %8615 = vmatprep.subr.mxu0 0.0
        %8616 = vmatpush1.msra.mxu0 0.0
        %8617 = vmatprep.mubr.f32.mxu0 0.0
        %8618 = vmatmul.mubr.f32.gmra.mrb[0].mxu0 %v8551
        %v8619 = vpop.f32.mrb[0].mxu0
        %v8620 = vadd.f32 0.0, %v8619
        %v8621 = vpop.f32.mrb[0].mxu0
        %8622 = vdwg.mxu0
        %v8624 = vsel %vm1617, %v8547, 0
        %8626 = vmatprep.subr.mxu0 0.0
        %8627 = vmatpush1.msra.mxu0 %v8051
        %8628 = vmatprep.subr.mxu0 0.0
        %8629 = vmatpush1.msra.mxu0 0.0
        %8630 = vmatprep.subr.mxu0 0.0
        %8631 = vmatpush1.msra.mxu0 0.0
        %8632 = vmatprep.subr.mxu0 0.0
        %8633 = vmatpush1.msra.mxu0 0.0
        %8634 = vmatprep.subr.mxu0 0.0
        %8635 = vmatpush1.msra.mxu0 0.0
        %8636 = vmatprep.subr.mxu0 0.0
        %8637 = vmatpush1.msra.mxu0 0.0
        %8638 = vmatprep.subr.mxu0 0.0
        %8639 = vmatpush1.msra.mxu0 0.0
        %8640 = vmatprep.subr.mxu0 0.0
        %8641 = vmatpush1.msra.mxu0 0.0
        %8642 = vmatprep.subr.mxu0 0.0
        %8643 = vmatpush1.msra.mxu0 0.0
        %8644 = vmatprep.subr.mxu0 0.0
        %8645 = vmatpush1.msra.mxu0 0.0
        %8646 = vmatprep.subr.mxu0 0.0
        %8647 = vmatpush1.msra.mxu0 0.0
        %8648 = vmatprep.subr.mxu0 0.0
        %8649 = vmatpush1.msra.mxu0 0.0
        %8650 = vmatprep.subr.mxu0 0.0
        %8651 = vmatpush1.msra.mxu0 0.0
        %8652 = vmatprep.subr.mxu0 0.0
        %8653 = vmatpush1.msra.mxu0 0.0
        %8654 = vmatprep.subr.mxu0 0.0
        %8655 = vmatpush1.msra.mxu0 0.0
        %8656 = vmatprep.subr.mxu0 0.0
        %8657 = vmatpush1.msra.mxu0 0.0
        %8658 = vmatprep.subr.mxu0 0.0
        %8659 = vmatpush1.msra.mxu0 0.0
        %8660 = vmatprep.subr.mxu0 0.0
        %8661 = vmatpush1.msra.mxu0 0.0
        %8662 = vmatprep.subr.mxu0 0.0
        %8663 = vmatpush1.msra.mxu0 0.0
        %8664 = vmatprep.subr.mxu0 0.0
        %8665 = vmatpush1.msra.mxu0 0.0
        %8666 = vmatprep.subr.mxu0 0.0
        %8667 = vmatpush1.msra.mxu0 0.0
        %8668 = vmatprep.subr.mxu0 0.0
        %8669 = vmatpush1.msra.mxu0 0.0
        %8670 = vmatprep.subr.mxu0 0.0
        %8671 = vmatpush1.msra.mxu0 0.0
        %8672 = vmatprep.subr.mxu0 0.0
        %8673 = vmatpush1.msra.mxu0 0.0
        %8674 = vmatprep.subr.mxu0 0.0
        %8675 = vmatpush1.msra.mxu0 0.0
        %8676 = vmatprep.subr.mxu0 0.0
        %8677 = vmatpush1.msra.mxu0 0.0
        %8678 = vmatprep.subr.mxu0 0.0
        %8679 = vmatpush1.msra.mxu0 0.0
        %8680 = vmatprep.subr.mxu0 0.0
        %8681 = vmatpush1.msra.mxu0 0.0
        %8682 = vmatprep.subr.mxu0 0.0
        %8683 = vmatpush1.msra.mxu0 0.0
        %8684 = vmatprep.subr.mxu0 0.0
        %8685 = vmatpush1.msra.mxu0 0.0
        %8686 = vmatprep.subr.mxu0 0.0
        %8687 = vmatpush1.msra.mxu0 0.0
        %8688 = vmatprep.subr.mxu0 0.0
        %8689 = vmatpush1.msra.mxu0 0.0
        %8690 = vmatprep.mubr.f32.mxu0 0.0
        %8691 = vmatmul.mubr.f32.gmra.mrb[0].mxu0 %v8624
        %v8692 = vpop.f32.mrb[0].mxu0
        %v8693 = vadd.f32 0.0, %v8692
        %v8694 = vpop.f32.mrb[0].mxu0
        %8695 = vdwg.mxu0
        %v8697 = vsel %vm1617, %v8548, 0
        %8699 = vmatprep.subr.mxu0 0.0
        %8700 = vmatpush1.msra.mxu0 %v8121
        %8701 = vmatprep.subr.mxu0 0.0
        %8702 = vmatpush1.msra.mxu0 0.0
        %8703 = vmatprep.subr.mxu0 0.0
        %8704 = vmatpush1.msra.mxu0 0.0
        %8705 = vmatprep.subr.mxu0 0.0
        %8706 = vmatpush1.msra.mxu0 0.0
        %8707 = vmatprep.subr.mxu0 0.0
        %8708 = vmatpush1.msra.mxu0 0.0
        %8709 = vmatprep.subr.mxu0 0.0
        %8710 = vmatpush1.msra.mxu0 0.0
        %8711 = vmatprep.subr.mxu0 0.0
        %8712 = vmatpush1.msra.mxu0 0.0
        %8713 = vmatprep.subr.mxu0 0.0
        %8714 = vmatpush1.msra.mxu0 0.0
        %8715 = vmatprep.subr.mxu0 0.0
        %8716 = vmatpush1.msra.mxu0 0.0
        %8717 = vmatprep.subr.mxu0 0.0
        %8718 = vmatpush1.msra.mxu0 0.0
        %8719 = vmatprep.subr.mxu0 0.0
        %8720 = vmatpush1.msra.mxu0 0.0
        %8721 = vmatprep.subr.mxu0 0.0
        %8722 = vmatpush1.msra.mxu0 0.0
        %8723 = vmatprep.subr.mxu0 0.0
        %8724 = vmatpush1.msra.mxu0 0.0
        %8725 = vmatprep.subr.mxu0 0.0
        %8726 = vmatpush1.msra.mxu0 0.0
        %8727 = vmatprep.subr.mxu0 0.0
        %8728 = vmatpush1.msra.mxu0 0.0
        %8729 = vmatprep.subr.mxu0 0.0
        %8730 = vmatpush1.msra.mxu0 0.0
        %8731 = vmatprep.subr.mxu0 0.0
        %8732 = vmatpush1.msra.mxu0 0.0
        %8733 = vmatprep.subr.mxu0 0.0
        %8734 = vmatpush1.msra.mxu0 0.0
        %8735 = vmatprep.subr.mxu0 0.0
        %8736 = vmatpush1.msra.mxu0 0.0
        %8737 = vmatprep.subr.mxu0 0.0
        %8738 = vmatpush1.msra.mxu0 0.0
        %8739 = vmatprep.subr.mxu0 0.0
        %8740 = vmatpush1.msra.mxu0 0.0
        %8741 = vmatprep.subr.mxu0 0.0
        %8742 = vmatpush1.msra.mxu0 0.0
        %8743 = vmatprep.subr.mxu0 0.0
        %8744 = vmatpush1.msra.mxu0 0.0
        %8745 = vmatprep.subr.mxu0 0.0
        %8746 = vmatpush1.msra.mxu0 0.0
        %8747 = vmatprep.subr.mxu0 0.0
        %8748 = vmatpush1.msra.mxu0 0.0
        %8749 = vmatprep.subr.mxu0 0.0
        %8750 = vmatpush1.msra.mxu0 0.0
        %8751 = vmatprep.subr.mxu0 0.0
        %8752 = vmatpush1.msra.mxu0 0.0
        %8753 = vmatprep.subr.mxu0 0.0
        %8754 = vmatpush1.msra.mxu0 0.0
        %8755 = vmatprep.subr.mxu0 0.0
        %8756 = vmatpush1.msra.mxu0 0.0
        %8757 = vmatprep.subr.mxu0 0.0
        %8758 = vmatpush1.msra.mxu0 0.0
        %8759 = vmatprep.subr.mxu0 0.0
        %8760 = vmatpush1.msra.mxu0 0.0
        %8761 = vmatprep.subr.mxu0 0.0
        %8762 = vmatpush1.msra.mxu0 0.0
        %8763 = vmatprep.mubr.f32.mxu0 0.0
        %8764 = vmatmul.mubr.f32.gmra.mrb[0].mxu0 %v8697
        %v8765 = vpop.f32.mrb[0].mxu0
        %v8766 = vadd.f32 0.0, %v8765
        %v8767 = vpop.f32.mrb[0].mxu0
        %8768 = vdwg.mxu0
        %v8770 = vsel %vm1617, %v8549, 0
        %8772 = vmatprep.subr.mxu0 0.0
        %8773 = vmatpush1.msra.mxu0 %v8191
        %8774 = vmatprep.subr.mxu0 0.0
        %8775 = vmatpush1.msra.mxu0 0.0
        %8776 = vmatprep.subr.mxu0 0.0
        %8777 = vmatpush1.msra.mxu0 0.0
        %8778 = vmatprep.subr.mxu0 0.0
        %8779 = vmatpush1.msra.mxu0 0.0
        %8780 = vmatprep.subr.mxu0 0.0
        %8781 = vmatpush1.msra.mxu0 0.0
        %8782 = vmatprep.subr.mxu0 0.0
        %8783 = vmatpush1.msra.mxu0 0.0
        %8784 = vmatprep.subr.mxu0 0.0
        %8785 = vmatpush1.msra.mxu0 0.0
        %8786 = vmatprep.subr.mxu0 0.0
        %8787 = vmatpush1.msra.mxu0 0.0
        %8788 = vmatprep.subr.mxu0 0.0
        %8789 = vmatpush1.msra.mxu0 0.0
        %8790 = vmatprep.subr.mxu0 0.0
        %8791 = vmatpush1.msra.mxu0 0.0
        %8792 = vmatprep.subr.mxu0 0.0
        %8793 = vmatpush1.msra.mxu0 0.0
        %8794 = vmatprep.subr.mxu0 0.0
        %8795 = vmatpush1.msra.mxu0 0.0
        %8796 = vmatprep.subr.mxu0 0.0
        %8797 = vmatpush1.msra.mxu0 0.0
        %8798 = vmatprep.subr.mxu0 0.0
        %8799 = vmatpush1.msra.mxu0 0.0
        %8800 = vmatprep.subr.mxu0 0.0
        %8801 = vmatpush1.msra.mxu0 0.0
        %8802 = vmatprep.subr.mxu0 0.0
        %8803 = vmatpush1.msra.mxu0 0.0
        %8804 = vmatprep.subr.mxu0 0.0
        %8805 = vmatpush1.msra.mxu0 0.0
        %8806 = vmatprep.subr.mxu0 0.0
        %8807 = vmatpush1.msra.mxu0 0.0
        %8808 = vmatprep.subr.mxu0 0.0
        %8809 = vmatpush1.msra.mxu0 0.0
        %8810 = vmatprep.subr.mxu0 0.0
        %8811 = vmatpush1.msra.mxu0 0.0
        %8812 = vmatprep.subr.mxu0 0.0
        %8813 = vmatpush1.msra.mxu0 0.0
        %8814 = vmatprep.subr.mxu0 0.0
        %8815 = vmatpush1.msra.mxu0 0.0
        %8816 = vmatprep.subr.mxu0 0.0
        %8817 = vmatpush1.msra.mxu0 0.0
        %8818 = vmatprep.subr.mxu0 0.0
        %8819 = vmatpush1.msra.mxu0 0.0
        %8820 = vmatprep.subr.mxu0 0.0
        %8821 = vmatpush1.msra.mxu0 0.0
        %8822 = vmatprep.subr.mxu0 0.0
        %8823 = vmatpush1.msra.mxu0 0.0
        %8824 = vmatprep.subr.mxu0 0.0
        %8825 = vmatpush1.msra.mxu0 0.0
        %8826 = vmatprep.subr.mxu0 0.0
        %8827 = vmatpush1.msra.mxu0 0.0
        %8828 = vmatprep.subr.mxu0 0.0
        %8829 = vmatpush1.msra.mxu0 0.0
        %8830 = vmatprep.subr.mxu0 0.0
        %8831 = vmatpush1.msra.mxu0 0.0
        %8832 = vmatprep.subr.mxu0 0.0
        %8833 = vmatpush1.msra.mxu0 0.0
        %8834 = vmatprep.subr.mxu0 0.0
        %8835 = vmatpush1.msra.mxu0 0.0
        %8836 = vmatprep.mubr.f32.mxu0 0.0
        %8837 = vmatmul.mubr.f32.gmra.mrb[0].mxu0 %v8770
        %v8838 = vpop.f32.mrb[0].mxu0
        %v8839 = vadd.f32 0.0, %v8838
        %v8840 = vpop.f32.mrb[0].mxu0
        %8841 = vdwg.mxu0
        %v8843 = vsel %vm1617, %v8620, 0
        %8845 = vmatprep.subr.mxu0 0.0
        %8846 = vmatpush1.msra.mxu0 %v7273
        %8847 = vmatprep.subr.mxu0 0.0
        %8848 = vmatpush1.msra.mxu0 0.0
        %8849 = vmatprep.subr.mxu0 0.0
        %8850 = vmatpush1.msra.mxu0 0.0
        %8851 = vmatprep.subr.mxu0 0.0
        %8852 = vmatpush1.msra.mxu0 0.0
        %8853 = vmatprep.subr.mxu0 0.0
        %8854 = vmatpush1.msra.mxu0 0.0
        %8855 = vmatprep.subr.mxu0 0.0
        %8856 = vmatpush1.msra.mxu0 0.0
        %8857 = vmatprep.subr.mxu0 0.0
        %8858 = vmatpush1.msra.mxu0 0.0
        %8859 = vmatprep.subr.mxu0 0.0
        %8860 = vmatpush1.msra.mxu0 0.0
        %8861 = vmatprep.subr.mxu0 0.0
        %8862 = vmatpush1.msra.mxu0 0.0
        %8863 = vmatprep.subr.mxu0 0.0
        %8864 = vmatpush1.msra.mxu0 0.0
        %8865 = vmatprep.subr.mxu0 0.0
        %8866 = vmatpush1.msra.mxu0 0.0
        %8867 = vmatprep.subr.mxu0 0.0
        %8868 = vmatpush1.msra.mxu0 0.0
        %8869 = vmatprep.subr.mxu0 0.0
        %8870 = vmatpush1.msra.mxu0 0.0
        %8871 = vmatprep.subr.mxu0 0.0
        %8872 = vmatpush1.msra.mxu0 0.0
        %8873 = vmatprep.subr.mxu0 0.0
        %8874 = vmatpush1.msra.mxu0 0.0
        %8875 = vmatprep.subr.mxu0 0.0
        %8876 = vmatpush1.msra.mxu0 0.0
        %8877 = vmatprep.subr.mxu0 0.0
        %8878 = vmatpush1.msra.mxu0 0.0
        %8879 = vmatprep.subr.mxu0 0.0
        %8880 = vmatpush1.msra.mxu0 0.0
        %8881 = vmatprep.subr.mxu0 0.0
        %8882 = vmatpush1.msra.mxu0 0.0
        %8883 = vmatprep.subr.mxu0 0.0
        %8884 = vmatpush1.msra.mxu0 0.0
        %8885 = vmatprep.subr.mxu0 0.0
        %8886 = vmatpush1.msra.mxu0 0.0
        %8887 = vmatprep.subr.mxu0 0.0
        %8888 = vmatpush1.msra.mxu0 0.0
        %8889 = vmatprep.subr.mxu0 0.0
        %8890 = vmatpush1.msra.mxu0 0.0
        %8891 = vmatprep.subr.mxu0 0.0
        %8892 = vmatpush1.msra.mxu0 0.0
        %8893 = vmatprep.subr.mxu0 0.0
        %8894 = vmatpush1.msra.mxu0 0.0
        %8895 = vmatprep.subr.mxu0 0.0
        %8896 = vmatpush1.msra.mxu0 0.0
        %8897 = vmatprep.subr.mxu0 0.0
        %8898 = vmatpush1.msra.mxu0 0.0
        %8899 = vmatprep.subr.mxu0 0.0
        %8900 = vmatpush1.msra.mxu0 0.0
        %8901 = vmatprep.subr.mxu0 0.0
        %8902 = vmatpush1.msra.mxu0 0.0
        %8903 = vmatprep.subr.mxu0 0.0
        %8904 = vmatpush1.msra.mxu0 0.0
        %8905 = vmatprep.subr.mxu0 0.0
        %8906 = vmatpush1.msra.mxu0 0.0
        %8907 = vmatprep.subr.mxu0 0.0
        %8908 = vmatpush1.msra.mxu0 0.0
        %8909 = vmatprep.mubr.f32.mxu0 0.0
        %8910 = vmatmul.mubr.f32.gmra.mrb[0].mxu0 %v8843
        %v8911 = vpop.f32.mrb[0].mxu0
        %v8912 = vadd.f32 0.0, %v8911
        %v8913 = vpop.f32.mrb[0].mxu0
        %8914 = vdwg.mxu0
        %v8916 = vsel %vm1617, %v8693, 0
        %8918 = vmatprep.subr.mxu0 0.0
        %8919 = vmatpush1.msra.mxu0 %v7274
        %8920 = vmatprep.subr.mxu0 0.0
        %8921 = vmatpush1.msra.mxu0 0.0
        %8922 = vmatprep.subr.mxu0 0.0
        %8923 = vmatpush1.msra.mxu0 0.0
        %8924 = vmatprep.subr.mxu0 0.0
        %8925 = vmatpush1.msra.mxu0 0.0
        %8926 = vmatprep.subr.mxu0 0.0
        %8927 = vmatpush1.msra.mxu0 0.0
        %8928 = vmatprep.subr.mxu0 0.0
        %8929 = vmatpush1.msra.mxu0 0.0
        %8930 = vmatprep.subr.mxu0 0.0
        %8931 = vmatpush1.msra.mxu0 0.0
        %8932 = vmatprep.subr.mxu0 0.0
        %8933 = vmatpush1.msra.mxu0 0.0
        %8934 = vmatprep.subr.mxu0 0.0
        %8935 = vmatpush1.msra.mxu0 0.0
        %8936 = vmatprep.subr.mxu0 0.0
        %8937 = vmatpush1.msra.mxu0 0.0
        %8938 = vmatprep.subr.mxu0 0.0
        %8939 = vmatpush1.msra.mxu0 0.0
        %8940 = vmatprep.subr.mxu0 0.0
        %8941 = vmatpush1.msra.mxu0 0.0
        %8942 = vmatprep.subr.mxu0 0.0
        %8943 = vmatpush1.msra.mxu0 0.0
        %8944 = vmatprep.subr.mxu0 0.0
        %8945 = vmatpush1.msra.mxu0 0.0
        %8946 = vmatprep.subr.mxu0 0.0
        %8947 = vmatpush1.msra.mxu0 0.0
        %8948 = vmatprep.subr.mxu0 0.0
        %8949 = vmatpush1.msra.mxu0 0.0
        %8950 = vmatprep.subr.mxu0 0.0
        %8951 = vmatpush1.msra.mxu0 0.0
        %8952 = vmatprep.subr.mxu0 0.0
        %8953 = vmatpush1.msra.mxu0 0.0
        %8954 = vmatprep.subr.mxu0 0.0
        %8955 = vmatpush1.msra.mxu0 0.0
        %8956 = vmatprep.subr.mxu0 0.0
        %8957 = vmatpush1.msra.mxu0 0.0
        %8958 = vmatprep.subr.mxu0 0.0
        %8959 = vmatpush1.msra.mxu0 0.0
        %8960 = vmatprep.subr.mxu0 0.0
        %8961 = vmatpush1.msra.mxu0 0.0
        %8962 = vmatprep.subr.mxu0 0.0
        %8963 = vmatpush1.msra.mxu0 0.0
        %8964 = vmatprep.subr.mxu0 0.0
        %8965 = vmatpush1.msra.mxu0 0.0
        %8966 = vmatprep.subr.mxu0 0.0
        %8967 = vmatpush1.msra.mxu0 0.0
        %8968 = vmatprep.subr.mxu0 0.0
        %8969 = vmatpush1.msra.mxu0 0.0
        %8970 = vmatprep.subr.mxu0 0.0
        %8971 = vmatpush1.msra.mxu0 0.0
        %8972 = vmatprep.subr.mxu0 0.0
        %8973 = vmatpush1.msra.mxu0 0.0
        %8974 = vmatprep.subr.mxu0 0.0
        %8975 = vmatpush1.msra.mxu0 0.0
        %8976 = vmatprep.subr.mxu0 0.0
        %8977 = vmatpush1.msra.mxu0 0.0
        %8978 = vmatprep.subr.mxu0 0.0
        %8979 = vmatpush1.msra.mxu0 0.0
        %8980 = vmatprep.subr.mxu0 0.0
        %8981 = vmatpush1.msra.mxu0 0.0
        %8982 = vmatprep.mubr.f32.mxu0 0.0
        %8983 = vmatmul.mubr.f32.gmra.mrb[0].mxu0 %v8916
        %v8984 = vpop.f32.mrb[0].mxu0
        %v8985 = vadd.f32 0.0, %v8984
        %v8986 = vpop.f32.mrb[0].mxu0
        %8987 = vdwg.mxu0
        %v8989 = vsel %vm1617, %v8766, 0
        %8991 = vmatprep.subr.mxu0 0.0
        %8992 = vmatpush1.msra.mxu0 %v7275
        %8993 = vmatprep.subr.mxu0 0.0
        %8994 = vmatpush1.msra.mxu0 0.0
        %8995 = vmatprep.subr.mxu0 0.0
        %8996 = vmatpush1.msra.mxu0 0.0
        %8997 = vmatprep.subr.mxu0 0.0
        %8998 = vmatpush1.msra.mxu0 0.0
        %8999 = vmatprep.subr.mxu0 0.0
        %9000 = vmatpush1.msra.mxu0 0.0
        %9001 = vmatprep.subr.mxu0 0.0
        %9002 = vmatpush1.msra.mxu0 0.0
        %9003 = vmatprep.subr.mxu0 0.0
        %9004 = vmatpush1.msra.mxu0 0.0
        %9005 = vmatprep.subr.mxu0 0.0
        %9006 = vmatpush1.msra.mxu0 0.0
        %9007 = vmatprep.subr.mxu0 0.0
        %9008 = vmatpush1.msra.mxu0 0.0
        %9009 = vmatprep.subr.mxu0 0.0
        %9010 = vmatpush1.msra.mxu0 0.0
        %9011 = vmatprep.subr.mxu0 0.0
        %9012 = vmatpush1.msra.mxu0 0.0
        %9013 = vmatprep.subr.mxu0 0.0
        %9014 = vmatpush1.msra.mxu0 0.0
        %9015 = vmatprep.subr.mxu0 0.0
        %9016 = vmatpush1.msra.mxu0 0.0
        %9017 = vmatprep.subr.mxu0 0.0
        %9018 = vmatpush1.msra.mxu0 0.0
        %9019 = vmatprep.subr.mxu0 0.0
        %9020 = vmatpush1.msra.mxu0 0.0
        %9021 = vmatprep.subr.mxu0 0.0
        %9022 = vmatpush1.msra.mxu0 0.0
        %9023 = vmatprep.subr.mxu0 0.0
        %9024 = vmatpush1.msra.mxu0 0.0
        %9025 = vmatprep.subr.mxu0 0.0
        %9026 = vmatpush1.msra.mxu0 0.0
        %9027 = vmatprep.subr.mxu0 0.0
        %9028 = vmatpush1.msra.mxu0 0.0
        %9029 = vmatprep.subr.mxu0 0.0
        %9030 = vmatpush1.msra.mxu0 0.0
        %9031 = vmatprep.subr.mxu0 0.0
        %9032 = vmatpush1.msra.mxu0 0.0
        %9033 = vmatprep.subr.mxu0 0.0
        %9034 = vmatpush1.msra.mxu0 0.0
        %9035 = vmatprep.subr.mxu0 0.0
        %9036 = vmatpush1.msra.mxu0 0.0
        %9037 = vmatprep.subr.mxu0 0.0
        %9038 = vmatpush1.msra.mxu0 0.0
        %9039 = vmatprep.subr.mxu0 0.0
        %9040 = vmatpush1.msra.mxu0 0.0
        %9041 = vmatprep.subr.mxu0 0.0
        %9042 = vmatpush1.msra.mxu0 0.0
        %9043 = vmatprep.subr.mxu0 0.0
        %9044 = vmatpush1.msra.mxu0 0.0
        %9045 = vmatprep.subr.mxu0 0.0
        %9046 = vmatpush1.msra.mxu0 0.0
        %9047 = vmatprep.subr.mxu0 0.0
        %9048 = vmatpush1.msra.mxu0 0.0
        %9049 = vmatprep.subr.mxu0 0.0
        %9050 = vmatpush1.msra.mxu0 0.0
        %9051 = vmatprep.subr.mxu0 0.0
        %9052 = vmatpush1.msra.mxu0 0.0
        %9053 = vmatprep.subr.mxu0 0.0
        %9054 = vmatpush1.msra.mxu0 0.0
        %9055 = vmatprep.mubr.f32.mxu0 0.0
        %9056 = vmatmul.mubr.f32.gmra.mrb[0].mxu0 %v8989
        %v9057 = vpop.f32.mrb[0].mxu0
        %v9058 = vadd.f32 0.0, %v9057
        %v9059 = vpop.f32.mrb[0].mxu0
        %9060 = vdwg.mxu0
        %v9062 = vsel %vm1617, %v8839, 0
        %9064 = vmatprep.subr.mxu0 0.0
        %9065 = vmatpush1.msra.mxu0 %v7276
        %9066 = vmatprep.subr.mxu0 0.0
        %9067 = vmatpush1.msra.mxu0 0.0
        %9068 = vmatprep.subr.mxu0 0.0
        %9069 = vmatpush1.msra.mxu0 0.0
        %9070 = vmatprep.subr.mxu0 0.0
        %9071 = vmatpush1.msra.mxu0 0.0
        %9072 = vmatprep.subr.mxu0 0.0
        %9073 = vmatpush1.msra.mxu0 0.0
        %9074 = vmatprep.subr.mxu0 0.0
        %9075 = vmatpush1.msra.mxu0 0.0
        %9076 = vmatprep.subr.mxu0 0.0
        %9077 = vmatpush1.msra.mxu0 0.0
        %9078 = vmatprep.subr.mxu0 0.0
        %9079 = vmatpush1.msra.mxu0 0.0
        %9080 = vmatprep.subr.mxu0 0.0
        %9081 = vmatpush1.msra.mxu0 0.0
        %9082 = vmatprep.subr.mxu0 0.0
        %9083 = vmatpush1.msra.mxu0 0.0
        %9084 = vmatprep.subr.mxu0 0.0
        %9085 = vmatpush1.msra.mxu0 0.0
        %9086 = vmatprep.subr.mxu0 0.0
        %9087 = vmatpush1.msra.mxu0 0.0
        %9088 = vmatprep.subr.mxu0 0.0
        %9089 = vmatpush1.msra.mxu0 0.0
        %9090 = vmatprep.subr.mxu0 0.0
        %9091 = vmatpush1.msra.mxu0 0.0
        %9092 = vmatprep.subr.mxu0 0.0
        %9093 = vmatpush1.msra.mxu0 0.0
        %9094 = vmatprep.subr.mxu0 0.0
        %9095 = vmatpush1.msra.mxu0 0.0
        %9096 = vmatprep.subr.mxu0 0.0
        %9097 = vmatpush1.msra.mxu0 0.0
        %9098 = vmatprep.subr.mxu0 0.0
        %9099 = vmatpush1.msra.mxu0 0.0
        %9100 = vmatprep.subr.mxu0 0.0
        %9101 = vmatpush1.msra.mxu0 0.0
        %9102 = vmatprep.subr.mxu0 0.0
        %9103 = vmatpush1.msra.mxu0 0.0
        %9104 = vmatprep.subr.mxu0 0.0
        %9105 = vmatpush1.msra.mxu0 0.0
        %9106 = vmatprep.subr.mxu0 0.0
        %9107 = vmatpush1.msra.mxu0 0.0
        %9108 = vmatprep.subr.mxu0 0.0
        %9109 = vmatpush1.msra.mxu0 0.0
        %9110 = vmatprep.subr.mxu0 0.0
        %9111 = vmatpush1.msra.mxu0 0.0
        %9112 = vmatprep.subr.mxu0 0.0
        %9113 = vmatpush1.msra.mxu0 0.0
        %9114 = vmatprep.subr.mxu0 0.0
        %9115 = vmatpush1.msra.mxu0 0.0
        %9116 = vmatprep.subr.mxu0 0.0
        %9117 = vmatpush1.msra.mxu0 0.0
        %9118 = vmatprep.subr.mxu0 0.0
        %9119 = vmatpush1.msra.mxu0 0.0
        %9120 = vmatprep.subr.mxu0 0.0
        %9121 = vmatpush1.msra.mxu0 0.0
        %9122 = vmatprep.subr.mxu0 0.0
        %9123 = vmatpush1.msra.mxu0 0.0
        %9124 = vmatprep.subr.mxu0 0.0
        %9125 = vmatpush1.msra.mxu0 0.0
        %9126 = vmatprep.subr.mxu0 0.0
        %9127 = vmatpush1.msra.mxu0 0.0
        %9128 = vmatprep.mubr.f32.mxu0 0.0
        %9129 = vmatmul.mubr.f32.gmra.mrb[0].mxu0 %v9062
        %v9130 = vpop.f32.mrb[0].mxu0
        %v9131 = vadd.f32 0.0, %v9130
        %v9132 = vpop.f32.mrb[0].mxu0
        %9133 = vdwg.mxu0
        %v9134 = vsel %vm608, %v8912, 0.0
        %v9135 = vsel %vm608, %v8985, 0.0
        %v9136 = vadd.f32 %v9134, %v9135
        %v9137 = vsel %vm608, %v9058, 0.0
        %v9138 = vadd.f32 %v9136, %v9137
        %v9139 = vsel %vm608, %v9131, 0.0
        %v9140 = vadd.f32 %v9138, %v9139
        %v9142 = vlaneseq
        %v9143 = vshrl.u32 %v9142, 7
        %v9144 = vsub.s32 0, %v9143
        %v9145 = vrot.slane %v7278, %v9144
        %v9147 = vadd.f32 %v9140, %v9145
        %v9148 = vadd.f32 %v7178, %v9147
        %s9149 = scalar_lea.vmem %s8, 3
        %v9150 = vld [vmem:[%s9149] sm:$0x1]
        %s9151 = scalar_lea.vmem %s9, 3
        %v9152 = vld [vmem:[%s9151] sm:$0x1]
        %v9153 = vsel %vm608, %v9148, 0.0
        %9154 = vadd.xlane.f32.xlu0 %v9153
        %v9155 = vpop.xlane.xlu0 %9154
        %v9156 = vmul.f32 %v9155, %v612
        %v9157 = vsub.f32 %v9148, %v9156
        %v9158 = vmul.f32 %v9157, %v9157
        %v9159 = vsel %vm608, %v9158, 0.0
        %9160 = vadd.xlane.f32.xlu0 %v9159
        %v9161 = vpop.xlane.xlu0 %9160
        %v9162 = vmul.f32 %v9161, %v612
        %v9163 = vadd.f32 %v9162, 1e-05
        %v9164 = vrsqrt.pop %v9163
        %v9165 = vmul.f32 %v9157, %v9164
        %v9167 = vlaneseq
        %v9168 = vshrl.u32 %v9167, 7
        %v9169 = vsub.s32 0, %v9168
        %v9170 = vrot.slane %v9150, %v9169
        %v9172 = vmul.f32 %v9165, %v9170
        %v9174 = vlaneseq
        %v9175 = vshrl.u32 %v9174, 7
        %v9176 = vsub.s32 0, %v9175
        %v9177 = vrot.slane %v9152, %v9176
        %v9179 = vadd.f32 %v9172, %v9177
        %s9180 = scalar_lea.vmem %s10, 96
        %v9181 = vld [vmem:[%s9180] sm:$0xff]
        %v9182 = vld [vmem:[%s9180 + $0x8] sm:$0xff]
        %v9183 = vld [vmem:[%s9180 + $0x10] sm:$0xff]
        %v9184 = vld [vmem:[%s9180 + $0x18] sm:$0xff]
        %s9185 = scalar_lea.vmem %s11, 3
        %v9186 = vld [vmem:[%s9185] sm:$0x1]
        %s9187 = scalar_lea.vmem %s12, 384
        %v9188 = vld [vmem:[%s9187] sm:$0xff]
        %v9189 = vld [vmem:[%s9187 + $0x8] sm:$0xff]
        %v9190 = vld [vmem:[%s9187 + $0x10] sm:$0xff]
        %v9191 = vld [vmem:[%s9187 + $0x18] sm:$0xff]
        %v9192 = vld [vmem:[%s9187 + $0x20] sm:$0xff]
        %v9193 = vld [vmem:[%s9187 + $0x28] sm:$0xff]
        %v9194 = vld [vmem:[%s9187 + $0x30] sm:$0xff]
        %v9195 = vld [vmem:[%s9187 + $0x38] sm:$0xff]
        %v9196 = vld [vmem:[%s9187 + $0x40] sm:$0xff]
        %v9197 = vld [vmem:[%s9187 + $0x48] sm:$0xff]
        %v9198 = vld [vmem:[%s9187 + $0x50] sm:$0xff]
        %v9199 = vld [vmem:[%s9187 + $0x58] sm:$0xff]
        %v9200 = vld [vmem:[%s9187 + $0x60] sm:$0xff]
        %v9201 = vld [vmem:[%s9187 + $0x68] sm:$0xff]
        %v9202 = vld [vmem:[%s9187 + $0x70] sm:$0xff]
        %v9203 = vld [vmem:[%s9187 + $0x78] sm:$0xff]
        %s9204 = scalar_lea.vmem %s13, 3
        %v9205 = vld [vmem:[%s9204] sm:$0x1]
        %v9207 = vlaneseq
        %v9208 = vshrl.u32 %v9207, 7
        %v9209 = vsub.s32 0, %v9208
        %v9210 = vrot.slane %v9186, %v9209
        %v9213 = vsel %vm608, %v9179, 0
        %9215 = vmatprep.subr.mxu0 0.0
        %9216 = vmatpush1.msra.mxu0 %v9181
        %9217 = vmatprep.subr.mxu0 0.0
        %9218 = vmatpush1.msra.mxu0 %v9182
        %9219 = vmatprep.subr.mxu0 0.0
        %9220 = vmatpush1.msra.mxu0 %v9183
        %9221 = vmatprep.subr.mxu0 0.0
        %9222 = vmatpush1.msra.mxu0 %v9184
        %9223 = vmatprep.subr.mxu0 0.0
        %9224 = vmatpush1.msra.mxu0 0.0
        %9225 = vmatprep.subr.mxu0 0.0
        %9226 = vmatpush1.msra.mxu0 0.0
        %9227 = vmatprep.subr.mxu0 0.0
        %9228 = vmatpush1.msra.mxu0 0.0
        %9229 = vmatprep.subr.mxu0 0.0
        %9230 = vmatpush1.msra.mxu0 0.0
        %9231 = vmatprep.subr.mxu0 0.0
        %9232 = vmatpush1.msra.mxu0 0.0
        %9233 = vmatprep.subr.mxu0 0.0
        %9234 = vmatpush1.msra.mxu0 0.0
        %9235 = vmatprep.subr.mxu0 0.0
        %9236 = vmatpush1.msra.mxu0 0.0
        %9237 = vmatprep.subr.mxu0 0.0
        %9238 = vmatpush1.msra.mxu0 0.0
        %9239 = vmatprep.subr.mxu0 0.0
        %9240 = vmatpush1.msra.mxu0 0.0
        %9241 = vmatprep.subr.mxu0 0.0
        %9242 = vmatpush1.msra.mxu0 0.0
        %9243 = vmatprep.subr.mxu0 0.0
        %9244 = vmatpush1.msra.mxu0 0.0
        %9245 = vmatprep.subr.mxu0 0.0
        %9246 = vmatpush1.msra.mxu0 0.0
        %9247 = vmatprep.subr.mxu0 0.0
        %9248 = vmatpush1.msra.mxu0 0.0
        %9249 = vmatprep.subr.mxu0 0.0
        %9250 = vmatpush1.msra.mxu0 0.0
        %9251 = vmatprep.subr.mxu0 0.0
        %9252 = vmatpush1.msra.mxu0 0.0
        %9253 = vmatprep.subr.mxu0 0.0
        %9254 = vmatpush1.msra.mxu0 0.0
        %9255 = vmatprep.subr.mxu0 0.0
        %9256 = vmatpush1.msra.mxu0 0.0
        %9257 = vmatprep.subr.mxu0 0.0
        %9258 = vmatpush1.msra.mxu0 0.0
        %9259 = vmatprep.subr.mxu0 0.0
        %9260 = vmatpush1.msra.mxu0 0.0
        %9261 = vmatprep.subr.mxu0 0.0
        %9262 = vmatpush1.msra.mxu0 0.0
        %9263 = vmatprep.subr.mxu0 0.0
        %9264 = vmatpush1.msra.mxu0 0.0
        %9265 = vmatprep.subr.mxu0 0.0
        %9266 = vmatpush1.msra.mxu0 0.0
        %9267 = vmatprep.subr.mxu0 0.0
        %9268 = vmatpush1.msra.mxu0 0.0
        %9269 = vmatprep.subr.mxu0 0.0
        %9270 = vmatpush1.msra.mxu0 0.0
        %9271 = vmatprep.subr.mxu0 0.0
        %9272 = vmatpush1.msra.mxu0 0.0
        %9273 = vmatprep.subr.mxu0 0.0
        %9274 = vmatpush1.msra.mxu0 0.0
        %9275 = vmatprep.subr.mxu0 0.0
        %9276 = vmatpush1.msra.mxu0 0.0
        %9277 = vmatprep.subr.mxu0 0.0
        %9278 = vmatpush1.msra.mxu0 0.0
        %9279 = vmatprep.mubr.f32.mxu0 0.0
        %9280 = vmatmul.mubr.f32.gmra.mrb[0].mxu0 %v9213
        %v9281 = vpop.f32.mrb[0].mxu0
        %v9282 = vadd.f32 %v9210, %v9281
        %v9283 = vpop.f32.mrb[0].mxu0
        %9284 = vdwg.mxu0
        %v9285 = vmul.f32 %v9282, 0.5
        %v9286 = vmul.f32 %v9282, 0.70710677
        %v9287 = verf.f32.pop %v9286
        %v9288 = vadd.f32 %v9287, 1.0
        %v9289 = vmul.f32 %v9285, %v9288
        %v9291 = vlaneseq
        %v9292 = vshrl.u32 %v9291, 7
        %v9293 = vsub.s32 0, %v9292
        %v9294 = vrot.slane %v9205, %v9293
        %9296 = vmatprep.subr.mxu0 0.0
        %9297 = vmatpush1.msra.mxu0 %v9188
        %9298 = vmatprep.subr.mxu0 0.0
        %9299 = vmatpush1.msra.mxu0 %v9189
        %9300 = vmatprep.subr.mxu0 0.0
        %9301 = vmatpush1.msra.mxu0 %v9190
        %9302 = vmatprep.subr.mxu0 0.0
        %9303 = vmatpush1.msra.mxu0 %v9191
        %9304 = vmatprep.subr.mxu0 0.0
        %9305 = vmatpush1.msra.mxu0 %v9192
        %9306 = vmatprep.subr.mxu0 0.0
        %9307 = vmatpush1.msra.mxu0 %v9193
        %9308 = vmatprep.subr.mxu0 0.0
        %9309 = vmatpush1.msra.mxu0 %v9194
        %9310 = vmatprep.subr.mxu0 0.0
        %9311 = vmatpush1.msra.mxu0 %v9195
        %9312 = vmatprep.subr.mxu0 0.0
        %9313 = vmatpush1.msra.mxu0 %v9196
        %9314 = vmatprep.subr.mxu0 0.0
        %9315 = vmatpush1.msra.mxu0 %v9197
        %9316 = vmatprep.subr.mxu0 0.0
        %9317 = vmatpush1.msra.mxu0 %v9198
        %9318 = vmatprep.subr.mxu0 0.0
        %9319 = vmatpush1.msra.mxu0 %v9199
        %9320 = vmatprep.subr.mxu0 0.0
        %9321 = vmatpush1.msra.mxu0 %v9200
        %9322 = vmatprep.subr.mxu0 0.0
        %9323 = vmatpush1.msra.mxu0 %v9201
        %9324 = vmatprep.subr.mxu0 0.0
        %9325 = vmatpush1.msra.mxu0 %v9202
        %9326 = vmatprep.subr.mxu0 0.0
        %9327 = vmatpush1.msra.mxu0 %v9203
        %9328 = vmatprep.subr.mxu0 0.0
        %9329 = vmatpush1.msra.mxu0 0.0
        %9330 = vmatprep.subr.mxu0 0.0
        %9331 = vmatpush1.msra.mxu0 0.0
        %9332 = vmatprep.subr.mxu0 0.0
        %9333 = vmatpush1.msra.mxu0 0.0
        %9334 = vmatprep.subr.mxu0 0.0
        %9335 = vmatpush1.msra.mxu0 0.0
        %9336 = vmatprep.subr.mxu0 0.0
        %9337 = vmatpush1.msra.mxu0 0.0
        %9338 = vmatprep.subr.mxu0 0.0
        %9339 = vmatpush1.msra.mxu0 0.0
        %9340 = vmatprep.subr.mxu0 0.0
        %9341 = vmatpush1.msra.mxu0 0.0
        %9342 = vmatprep.subr.mxu0 0.0
        %9343 = vmatpush1.msra.mxu0 0.0
        %9344 = vmatprep.subr.mxu0 0.0
        %9345 = vmatpush1.msra.mxu0 0.0
        %9346 = vmatprep.subr.mxu0 0.0
        %9347 = vmatpush1.msra.mxu0 0.0
        %9348 = vmatprep.subr.mxu0 0.0
        %9349 = vmatpush1.msra.mxu0 0.0
        %9350 = vmatprep.subr.mxu0 0.0
        %9351 = vmatpush1.msra.mxu0 0.0
        %9352 = vmatprep.subr.mxu0 0.0
        %9353 = vmatpush1.msra.mxu0 0.0
        %9354 = vmatprep.subr.mxu0 0.0
        %9355 = vmatpush1.msra.mxu0 0.0
        %9356 = vmatprep.subr.mxu0 0.0
        %9357 = vmatpush1.msra.mxu0 0.0
        %9358 = vmatprep.subr.mxu0 0.0
        %9359 = vmatpush1.msra.mxu0 0.0
        %9360 = vmatprep.mubr.f32.mxu0 0.0
        %9361 = vmatmul.mubr.f32.gmra.mrb[0].mxu0 %v9289
        %v9362 = vpop.f32.mrb[0].mxu0
        %v9363 = vadd.f32 %v9294, %v9362
        %v9364 = vpop.f32.mrb[0].mxu0
        %9365 = vdwg.mxu0
        %v9366 = vadd.f32 %v9148, %v9363
        %v9367 = vld [vmem:[%s18] sm:$0x1]
        %v9369 = vlaneseq
        %v9370 = vshrl.u32 %v9369, 7
        %v9371 = vsub.s32 0, %v9370
        %v9372 = vrot.slane %v9367, %v9371
        %v9374 = vmul.f32 %v9372, %v599
        %s9375 = scalar_lea.vmem %s18, 1
        %v9376 = vld [vmem:[%s9375] sm:$0x1]
        %v9378 = vlaneseq
        %v9379 = vshrl.u32 %v9378, 7
        %v9380 = vsub.s32 0, %v9379
        %v9381 = vrot.slane %v9376, %v9380
        %v9383 = vmul.f32 %v9381, %v4972
        %v9384 = vadd.f32 %v9374, %v9383
        %s9385 = scalar_lea.vmem %s18, 2
        %v9386 = vld [vmem:[%s9385] sm:$0x1]
        %v9388 = vlaneseq
        %v9389 = vshrl.u32 %v9388, 7
        %v9390 = vsub.s32 0, %v9389
        %v9391 = vrot.slane %v9386, %v9390
        %v9393 = vmul.f32 %v9391, %v9366
        %v9394 = vadd.f32 %v9384, %v9393
        %v9395 = vld [vmem:[%s14] sm:$0x1]
        %v9396 = vld [vmem:[%s15] sm:$0x1]
        %vm9397 = vcmask 261127
        %v9398 = vsel %vm9397, %v9394, 0.0
        %9399 = vadd.xlane.f32.xlu0 %v9398
        %v9400 = vpop.xlane.xlu0 %9399
        %v9401 = vmul.f32 %v9400, %v612
        %v9402 = vsub.f32 %v9394, %v9401
        %v9403 = vmul.f32 %v9402, %v9402
        %v9404 = vsel %vm9397, %v9403, 0.0
        %9405 = vadd.xlane.f32.xlu0 %v9404
        %v9406 = vpop.xlane.xlu0 %9405
        %v9407 = vmul.f32 %v9406, %v612
        %v9408 = vadd.f32 %v9407, 1e-05
        %v9409 = vrsqrt.pop %v9408
        %v9410 = vmul.f32 %v9402, %v9409
        %v9412 = vlaneseq
        %v9413 = vshrl.u32 %v9412, 7
        %v9414 = vsub.s32 0, %v9413
        %v9415 = vrot.slane %v9395, %v9414
        %v9417 = vmul.f32 %v9410, %v9415
        %v9419 = vlaneseq
        %v9420 = vshrl.u32 %v9419, 7
        %v9421 = vsub.s32 0, %v9420
        %v9422 = vrot.slane %v9396, %v9421
        %v9424 = vadd.f32 %v9417, %v9422
        %v9425 = vld [vmem:[%s16] sm:$0xff]
        %v9426 = vld [vmem:[%s16 + $0x8] sm:$0xff]
        %v9427 = vld [vmem:[%s16 + $0x10] sm:$0xff]
        %v9428 = vld [vmem:[%s16 + $0x18] sm:$0xff]
        %v9429 = vld [vmem:[%s16 + $0x20] sm:$0xff]
        %v9430 = vld [vmem:[%s16 + $0x28] sm:$0xff]
        %v9431 = vld [vmem:[%s16 + $0x30] sm:$0xff]
        %v9432 = vld [vmem:[%s16 + $0x38] sm:$0xff]
        %v9433 = vld [vmem:[%s16 + $0x40] sm:$0xff]
        %v9434 = vld [vmem:[%s16 + $0x48] sm:$0xff]
        %v9435 = vld [vmem:[%s16 + $0x50] sm:$0xff]
        %v9436 = vld [vmem:[%s16 + $0x58] sm:$0xff]
        %v9437 = vld [vmem:[%s16 + $0x60] sm:$0xff]
        %v9438 = vld [vmem:[%s16 + $0x68] sm:$0xff]
        %v9439 = vld [vmem:[%s16 + $0x70] sm:$0xff]
        %v9440 = vld [vmem:[%s16 + $0x78] sm:$0xff]
        %v9442 = vrot.slane %v9424, 7
        %v9443 = vsel %vm608, %v9442, 0
        %v9446 = vsel %vm608, %v9425, 0
        %v9449 = vsel %vm608, %v9426, 0
        %v9452 = vsel %vm608, %v9427, 0
        %v9455 = vsel %vm608, %v9428, 0
        %v9458 = vsel %vm608, %v9429, 0
        %v9461 = vsel %vm608, %v9430, 0
        %v9464 = vsel %vm608, %v9431, 0
        %v9467 = vsel %vm608, %v9432, 0
        %v9470 = vsel %vm608, %v9433, 0
        %v9473 = vsel %vm608, %v9434, 0
        %v9476 = vsel %vm608, %v9435, 0
        %v9479 = vsel %vm608, %v9436, 0
        %v9482 = vsel %vm608, %v9437, 0
        %v9485 = vsel %vm608, %v9438, 0
        %v9488 = vsel %vm608, %v9439, 0
        %v9491 = vsel %vm608, %v9440, 0
        %9493 = vmatprep.subr.mxu0 0.0
        %9494 = vmatpush1.xpose.msra.mxu0 %v9446
        %9495 = vmatprep.subr.mxu0 0.0
        %9496 = vmatpush1.xpose.msra.mxu0 %v9449
        %9497 = vmatprep.subr.mxu0 0.0
        %9498 = vmatpush1.xpose.msra.mxu0 %v9452
        %9499 = vmatprep.subr.mxu0 0.0
        %9500 = vmatpush1.xpose.msra.mxu0 %v9455
        %9501 = vmatprep.subr.mxu0 0.0
        %9502 = vmatpush1.xpose.msra.mxu0 %v9458
        %9503 = vmatprep.subr.mxu0 0.0
        %9504 = vmatpush1.xpose.msra.mxu0 %v9461
        %9505 = vmatprep.subr.mxu0 0.0
        %9506 = vmatpush1.xpose.msra.mxu0 %v9464
        %9507 = vmatprep.subr.mxu0 0.0
        %9508 = vmatpush1.xpose.msra.mxu0 %v9467
        %9509 = vmatprep.subr.mxu0 0.0
        %9510 = vmatpush1.xpose.msra.mxu0 %v9470
        %9511 = vmatprep.subr.mxu0 0.0
        %9512 = vmatpush1.xpose.msra.mxu0 %v9473
        %9513 = vmatprep.subr.mxu0 0.0
        %9514 = vmatpush1.xpose.msra.mxu0 %v9476
        %9515 = vmatprep.subr.mxu0 0.0
        %9516 = vmatpush1.xpose.msra.mxu0 %v9479
        %9517 = vmatprep.subr.mxu0 0.0
        %9518 = vmatpush1.xpose.msra.mxu0 %v9482
        %9519 = vmatprep.subr.mxu0 0.0
        %9520 = vmatpush1.xpose.msra.mxu0 %v9485
        %9521 = vmatprep.subr.mxu0 0.0
        %9522 = vmatpush1.xpose.msra.mxu0 %v9488
        %9523 = vmatprep.subr.mxu0 0.0
        %9524 = vmatpush1.xpose.msra.mxu0 %v9491
        %9525 = vmatprep.subr.mxu0 0.0
        %9526 = vmatpush1.xpose.msra.mxu0 0.0
        %9527 = vmatprep.subr.mxu0 0.0
        %9528 = vmatpush1.xpose.msra.mxu0 0.0
        %9529 = vmatprep.subr.mxu0 0.0
        %9530 = vmatpush1.xpose.msra.mxu0 0.0
        %9531 = vmatprep.subr.mxu0 0.0
        %9532 = vmatpush1.xpose.msra.mxu0 0.0
        %9533 = vmatprep.subr.mxu0 0.0
        %9534 = vmatpush1.xpose.msra.mxu0 0.0
        %9535 = vmatprep.subr.mxu0 0.0
        %9536 = vmatpush1.xpose.msra.mxu0 0.0
        %9537 = vmatprep.subr.mxu0 0.0
        %9538 = vmatpush1.xpose.msra.mxu0 0.0
        %9539 = vmatprep.subr.mxu0 0.0
        %9540 = vmatpush1.xpose.msra.mxu0 0.0
        %9541 = vmatprep.subr.mxu0 0.0
        %9542 = vmatpush1.xpose.msra.mxu0 0.0
        %9543 = vmatprep.subr.mxu0 0.0
        %9544 = vmatpush1.xpose.msra.mxu0 0.0
        %9545 = vmatprep.subr.mxu0 0.0
        %9546 = vmatpush1.xpose.msra.mxu0 0.0
        %9547 = vmatprep.subr.mxu0 0.0
        %9548 = vmatpush1.xpose.msra.mxu0 0.0
        %9549 = vmatprep.subr.mxu0 0.0
        %9550 = vmatpush1.xpose.msra.mxu0 0.0
        %9551 = vmatprep.subr.mxu0 0.0
        %9552 = vmatpush1.xpose.msra.mxu0 0.0
        %9553 = vmatprep.subr.mxu0 0.0
        %9554 = vmatpush1.xpose.msra.mxu0 0.0
        %9555 = vmatprep.subr.mxu0 0.0
        %9556 = vmatpush1.xpose.msra.mxu0 0.0
        %9557 = vmatprep.mubr.f32.mxu0 0.0
        %9558 = vmatmul.mubr.f32.gmra.mrb[0].mxu0 %v9443
        %v9559 = vpop.f32.mrb[0].mxu0
        %v9560 = vadd.f32 0.0, %v9559
        %v9561 = vpop.f32.mrb[0].mxu0
        %9562 = vdwg.mxu0
        %9563 = vst [vmem:[%s592] sm:$0x1] %v9560
        %s9564 = sand.u32 %s445, 1
        %s9565 = scalar_lea.sflag [#allocation3], %s9564
        %s9566 = sand.u32 %s445, 1
        %s9567 = scalar_lea.vmem [#allocation2], %s9566
        // Predicated region
        $region97: #{forward.1} parent=95 // pred_check
          %p9568 = pneg %p455
        $region98: #{forward.1} parent=95 // pred_check_branch
          %9570 = sbr.rel (%p9568) target = $region100
        $region99: #{forward.1} parent=95 // pred_region
          %s9572 = ssub.s32 16, 16
          %9573 = vsyncadd %s9565, %s9572
          %s9574 = smul.addr %s33, 16
          %s9575 = scalar_lea.hbm %s19, %s9574
          %s9577 = sshll.u32 %s9567, 4
          %s9578 = int_to_ptr.vmem [resolvable:$true] %s9577
          %9580 = dma.vmem_to_hbm [thread:$0]  %s9578, 16, %s9575, %s9565
        $region100: #{forward.1} parent=95 // pred_fallthru
          _
      $region96: #{forward.1} parent=5 // pred_fallthru
        _
      %p9581 = scmp.le.s32.totalorder 2, %s28
      // Predicated region
      $region101: #{forward.1} parent=5 // pred_check
        %p9582 = pneg %p9581
      $region102: #{forward.1} parent=5 // pred_check_branch
        %9584 = sbr.rel (%p9582) target = $region104
      $region103: #{forward.1} parent=5 // pred_region
        %s9585 = ssub.s32 %s28, 2
        // Predicated region
        $region105: #{forward.1} parent=103 // pred_check
          %p9586 = pneg %p461
        $region106: #{forward.1} parent=103 // pred_check_branch
          %9588 = sbr.rel (%p9586) target = $region108
        $region107: #{forward.1} parent=103 // pred_region
          %s9589 = sand.u32 %s446, 1
          %s9590 = scalar_lea.sflag [#allocation3], %s9589
          %s9591 = sand.u32 %s446, 1
          %s9592 = scalar_lea.vmem [#allocation2], %s9591
          %9593 = dma.done %s9590, 16
        $region108: #{forward.1} parent=103 // pred_fallthru
          _
      $region104: #{forward.1} parent=5 // pred_fallthru
        _
    $region6: #{forward.1} parent=1 // loop_footer
      %s32 = sadd.s32 1, %s28
    $region7: #{forward.1} parent=1 // loop_footer_branch
      %27 = sbr.rel target = $region3
    $region8: #{forward.1} parent=1 // loop_exit
      _
    %9594 = vsyncpa [#allocation3], 1
    %s9595 = scalar_lea.sflag [#allocation3], 1
    %9596 = vsyncpa %s9595, 1

</llo_original>
